<compile_context>
chip_gen: v7x
topology: tpu7x:2x2x1
jax: 0.10.0
libtpu: 0.0.40
codegen_flags: <defaults>
</compile_context>

<pallas_src>
import math
import jax
import jax.numpy as jnp
from jax import lax
from jax.experimental import pallas as pl
from jax.experimental.pallas import tpu as pltpu

# Shrunk hyperparameters (module defaults are 50000/256/512/3; semantics identical).
VOCAB = 1000
EMB = 32            # embedding_dim
HID = 64            # hidden_dim -> bi-LSTM feature dim E = 2*HID = 128
NUM_LAYERS = 3
NUM_HEADS = 8       # head_dim = 2*HID / 8 = 16
NUM_TOPICS = 5
B = 2
S = 8

N_INPUTS = 4 + NUM_LAYERS * 2 * 3 + 4 + 16   # ids, emb, pool, abias, lstm, attn, heads


# ----------------------------------------------------------------------------
# Fused kernel: embedding gather + bi-LSTM stack + MHA + pooling + MLP heads.
# ----------------------------------------------------------------------------
def fused_kernel(ids_ref, emb_ref, pool_ref, abias_ref, *rest):
    lstm_refs = rest[0:18]
    wqkv_ref, bqkv_ref, wout_ref, bout_ref = rest[18:22]
    (kw1, kb1, kw2, kb2, qw1, qb1, qw2, qb2, qw3, qb3,
     tw1, tb1, tw2, tb2, tw3, tb3) = rest[22:38]
    kf_ref, quality_ref, topic_ref = rest[38:41]
    x0_sc, act_sc, ctx_sc = rest[41:44]

    f32 = jnp.float32
    bf16 = jnp.bfloat16
    H = HID
    E = 2 * HID
    hd = E // NUM_HEADS

    # ---------------- embedding gather (ids: SMEM scalars, table: VMEM) -----
    for s in range(S):
        for b in range(B):
            r = s * B + b                               # time-major row id
            idx = ids_ref[b, s]
            x0_sc[r:r + 1, :] = emb_ref[pl.ds(idx, 1), :]

    # ---------------- 3-layer bidirectional LSTM ----------------------------
    def lstm_cell(gates, c):
        # PyTorch gate order i, f, g, o; sigmoid applied to the i|f pair (one 128-lane op).
        sif = jax.nn.sigmoid(gates[:, 0:2 * H])
        i_g = sif[:, 0:H]
        f_g = sif[:, H:2 * H]
        g_g = jnp.tanh(gates[:, 2 * H:3 * H])
        o_g = jax.nn.sigmoid(gates[:, 3 * H:4 * H])
        c_new = f_g * c + i_g * g_g
        return o_g * jnp.tanh(c_new), c_new

    x_flat = x0_sc[...]                                 # (S*B, EMB)
    for l in range(NUM_LAYERS):
        wih_f, whh_f, b_f = lstm_refs[(l * 2 + 0) * 3:(l * 2 + 0) * 3 + 3]
        wih_b, whh_b, b_b = lstm_refs[(l * 2 + 1) * 3:(l * 2 + 1) * 3 + 3]
        xb = x_flat.astype(bf16)
        # Input projection hoisted out of the recurrence (b = b_ih + b_hh folded in).
        gx_f = jnp.dot(xb, wih_f[...], preferred_element_type=f32) + b_f[...]
        gx_b = jnp.dot(xb, wih_b[...], preferred_element_type=f32) + b_b[...]
        whhf = whh_f[...]                               # hoist weight reads
        whhb = whh_b[...]
        h_f = jnp.zeros((B, H), f32)
        c_f = jnp.zeros((B, H), f32)
        h_b = jnp.zeros((B, H), f32)
        c_b = jnp.zeros((B, H), f32)
        for t in range(S):                              # fully unrolled; fwd & bwd interleaved
            tb = S - 1 - t
            g_f = gx_f[t * B:(t + 1) * B, :] + jnp.dot(
                h_f.astype(bf16), whhf, preferred_element_type=f32)
            h_f, c_f = lstm_cell(g_f, c_f)
            act_sc[t * B:(t + 1) * B, 0:H] = h_f
            g_b = gx_b[tb * B:(tb + 1) * B, :] + jnp.dot(
                h_b.astype(bf16), whhb, preferred_element_type=f32)
            h_b, c_b = lstm_cell(g_b, c_b)
            act_sc[tb * B:(tb + 1) * B, H:E] = h_b
        x_flat = act_sc[...]                            # (S*B, 2H) input for next layer

    # ---------------- multi-head self-attention (no mask, eval) -------------
    xb = x_flat.astype(bf16)
    qkv = jnp.dot(xb, wqkv_ref[...], preferred_element_type=f32) + bqkv_ref[...]  # (S*B, 3E)
    abias = abias_ref[...]                              # 0 same-batch / -1e9 cross-batch
    for h in range(NUM_HEADS):
        lo = h * hd
        hi = lo + hd
        q_h = qkv[:, lo:hi].astype(bf16)                # scale already folded into Wq/bq
        k_h = qkv[:, E + lo:E + hi].astype(bf16)
        v_h = qkv[:, 2 * E + lo:2 * E + hi].astype(bf16)
        s_h = lax.dot_general(q_h, k_h, (((1,), (1,)), ((), ())),
                              preferred_element_type=f32)          # (S*B, S*B)
        s_h = s_h + abias
        s_h = s_h - jnp.max(s_h, axis=-1, keepdims=True)
        p = jnp.exp(s_h)
        p = p * pl.reciprocal(jnp.sum(p, axis=-1, keepdims=True), approx=True)
        ctx_sc[:, lo:hi] = jnp.dot(p.astype(bf16), v_h, preferred_element_type=f32)
    attn = (jnp.dot(ctx_sc[...].astype(bf16), wout_ref[...], preferred_element_type=f32)
            + bout_ref[...])                            # (S*B, E)

    # ---------------- mean pool over sequence + MLP heads --------------------
    pooled = jnp.dot(pool_ref[...], attn, preferred_element_type=f32)   # (B, E)

    def lin(v, w_ref, b_ref):
        return jnp.dot(v.astype(bf16), w_ref[...], preferred_element_type=f32) + b_ref[...]

    def relu(v):
        return jnp.maximum(v, 0.0)

    # knowledge_extractor: Linear(2H->H) ReLU Linear(H->H/2) ReLU
    kf = relu(lin(relu(lin(pooled, kw1, kb1)), kw2, kb2))
    kf_ref[...] = kf

    # quality_assessor: Linear(H/2->128) ReLU Linear(128->64) ReLU Linear(64->1) Sigmoid
    q = relu(lin(kf, qw1, qb1))
    q = relu(lin(q, qw2, qb2))
    quality_ref[...] = jax.nn.sigmoid(lin(q, qw3, qb3))

    # topic_classifier: Linear(H/2->256) ReLU Linear(256->128) ReLU Linear(128->5)
    t_ = relu(lin(kf, tw1, tb1))
    t_ = relu(lin(t_, tw2, tb2))
    topic_ref[...] = lin(t_, tw3, tb3)


def build_fused_call():
    in_specs = ([pl.BlockSpec(memory_space=pltpu.MemorySpace.SMEM)]
                + [pl.BlockSpec(memory_space=pltpu.MemorySpace.VMEM)] * (N_INPUTS - 1))
    return pl.pallas_call(
        fused_kernel,
        out_shape=(jax.ShapeDtypeStruct((B, HID // 2), jnp.float32),
                   jax.ShapeDtypeStruct((B, 1), jnp.float32),
                   jax.ShapeDtypeStruct((B, NUM_TOPICS), jnp.float32)),
        in_specs=in_specs,
        out_specs=(pl.BlockSpec(memory_space=pltpu.MemorySpace.VMEM),
                   pl.BlockSpec(memory_space=pltpu.MemorySpace.VMEM),
                   pl.BlockSpec(memory_space=pltpu.MemorySpace.VMEM)),
        scratch_shapes=[pltpu.VMEM((S * B, EMB), jnp.float32),       # gathered embeddings
                        pltpu.VMEM((S * B, 2 * HID), jnp.float32),   # LSTM layer output
                        pltpu.VMEM((S * B, 2 * HID), jnp.float32)],  # attention context
    )


# ----------------------------------------------------------------------------
# Parameter init (deterministic, in-script; PyTorch-like f32 parameters).
# ----------------------------------------------------------------------------
def init_params(key):
    keys = iter(jax.random.split(key, 64))

    def nrm(shape, scale):
        return jax.random.normal(next(keys), shape, jnp.float32) * scale

    def linear(din, dout):
        return nrm((din, dout), 1.0 / math.sqrt(din)), nrm((1, dout), 0.01)

    params = {'embedding': nrm((VOCAB, EMB), 0.1)}

    lstm = {}
    for l in range(NUM_LAYERS):
        din = EMB if l == 0 else 2 * HID
        for d in range(2):
            lstm[(l, d)] = dict(
                wih_t=nrm((din, 4 * HID), 1.0 / math.sqrt(din)),
                whh_t=nrm((HID, 4 * HID), 1.0 / math.sqrt(HID)),
                b=nrm((1, 4 * HID), 0.01),              # b_ih + b_hh folded together
            )
    params['lstm'] = lstm

    E = 2 * HID
    params['attn'] = dict(
        wqkv_t=nrm((E, 3 * E), 1.0 / math.sqrt(E)),
        bqkv=nrm((1, 3 * E), 0.01),
        wout_t=nrm((E, E), 1.0 / math.sqrt(E)),
        bout=nrm((1, E), 0.01),
    )

    hp = {}
    hp['kw1'], hp['kb1'] = linear(E, HID)
    hp['kw2'], hp['kb2'] = linear(HID, HID // 2)
    hp['qw1'], hp['qb1'] = linear(HID // 2, 128)
    hp['qw2'], hp['qb2'] = linear(128, 64)
    hp['qw3'], hp['qb3'] = linear(64, 1)
    hp['tw1'], hp['tb1'] = linear(HID // 2, 256)
    hp['tw2'], hp['tb2'] = linear(256, 128)
    hp['tw3'], hp['tb3'] = linear(128, NUM_TOPICS)
    params['heads'] = hp
    return params


def prepare_kernel_args(params):
    """Host-side, one-time layout/dtype transforms: bf16 casts for all matmul
    weights, attention scale folded into Wq/bq, pooling + batch-mask constants."""
    bf16 = jnp.bfloat16
    E = 2 * HID
    hd = E // NUM_HEADS
    scale = 1.0 / math.sqrt(hd)

    args = [params['embedding']]                        # f32 table, gathered in-kernel

    rows = jnp.arange(S * B)
    row_batch = rows % B                                # time-major rows: batch = row % B
    pool = (row_batch[None, :] == jnp.arange(B)[:, None]).astype(jnp.float32) / S   # (B, S*B)
    abias = jnp.where(row_batch[:, None] == row_batch[None, :], 0.0, -1e9).astype(jnp.float32)
    args += [pool, abias]

    for l in range(NUM_LAYERS):
        for d in range(2):
            p = params['lstm'][(l, d)]
            args += [p['wih_t'].astype(bf16), p['whh_t'].astype(bf16), p['b']]

    a = params['attn']
    wqkv = a['wqkv_t'].at[:, :E].multiply(scale).astype(bf16)   # fold 1/sqrt(hd) into q
    bqkv = a['bqkv'].at[:, :E].multiply(scale)
    args += [wqkv, bqkv, a['wout_t'].astype(bf16), a['bout']]

    hp = params['heads']
    for name in ['kw1', 'kb1', 'kw2', 'kb2', 'qw1', 'qb1', 'qw2', 'qb2', 'qw3', 'qb3',
                 'tw1', 'tb1', 'tw2', 'tb2', 'tw3', 'tb3']:
        v = hp[name]
        args.append(v.astype(bf16) if name[1] == 'w' else v)
    return args


# ----------------------------------------------------------------------------
# Full forward pass (attention_mask=None path of the PyTorch module).
# ----------------------------------------------------------------------------
def forward(params, input_ids):
    args = prepare_kernel_args(params)
    kf, quality, topic = build_fused_call()(input_ids, *args)
    return {'knowledge_features': kf,          # (B, HID//2)
            'quality_score': quality,          # (B, 1)
            'topic_logits': topic}             # (B, NUM_TOPICS)


if __name__ == "__main__":
    root = jax.random.PRNGKey(0)
    pkey, dkey = jax.random.split(root)
    params = init_params(pkey)
    input_ids = jax.random.randint(dkey, (B, S), 0, VOCAB, dtype=jnp.int32)

    out = forward(params, input_ids)
    out = jax.tree_util.tree_map(jax.block_until_ready, out)

    assert out['knowledge_features'].shape == (B, HID // 2)
    assert out['quality_score'].shape == (B, 1)
    assert out['topic_logits'].shape == (B, NUM_TOPICS)
    assert bool(jnp.all(jnp.isfinite(out['knowledge_features'])))
    assert bool(jnp.all(jnp.isfinite(out['topic_logits'])))
    assert bool(jnp.all((out['quality_score'] >= 0) & (out['quality_score'] <= 1)))
    print("KERNEL_OK")
</pallas_src>

<mosaic_0001>
module attributes {stable_mosaic.version = 11 : i64} {
  func.func @fused_kernel(%arg0: memref<2x8xi32, #tpu.memory_space<smem>>, %arg1: memref<1000x32xf32, #tpu.memory_space<vmem>>, %arg2: memref<2x16xf32, #tpu.memory_space<vmem>>, %arg3: memref<16x16xf32, #tpu.memory_space<vmem>>, %arg4: memref<32x256xbf16, #tpu.memory_space<vmem>>, %arg5: memref<64x256xbf16, #tpu.memory_space<vmem>>, %arg6: memref<1x256xf32, #tpu.memory_space<vmem>>, %arg7: memref<32x256xbf16, #tpu.memory_space<vmem>>, %arg8: memref<64x256xbf16, #tpu.memory_space<vmem>>, %arg9: memref<1x256xf32, #tpu.memory_space<vmem>>, %arg10: memref<128x256xbf16, #tpu.memory_space<vmem>>, %arg11: memref<64x256xbf16, #tpu.memory_space<vmem>>, %arg12: memref<1x256xf32, #tpu.memory_space<vmem>>, %arg13: memref<128x256xbf16, #tpu.memory_space<vmem>>, %arg14: memref<64x256xbf16, #tpu.memory_space<vmem>>, %arg15: memref<1x256xf32, #tpu.memory_space<vmem>>, %arg16: memref<128x256xbf16, #tpu.memory_space<vmem>>, %arg17: memref<64x256xbf16, #tpu.memory_space<vmem>>, %arg18: memref<1x256xf32, #tpu.memory_space<vmem>>, %arg19: memref<128x256xbf16, #tpu.memory_space<vmem>>, %arg20: memref<64x256xbf16, #tpu.memory_space<vmem>>, %arg21: memref<1x256xf32, #tpu.memory_space<vmem>>, %arg22: memref<128x384xbf16, #tpu.memory_space<vmem>>, %arg23: memref<1x384xf32, #tpu.memory_space<vmem>>, %arg24: memref<128x128xbf16, #tpu.memory_space<vmem>>, %arg25: memref<1x128xf32, #tpu.memory_space<vmem>>, %arg26: memref<128x64xbf16, #tpu.memory_space<vmem>>, %arg27: memref<1x64xf32, #tpu.memory_space<vmem>>, %arg28: memref<64x32xbf16, #tpu.memory_space<vmem>>, %arg29: memref<1x32xf32, #tpu.memory_space<vmem>>, %arg30: memref<32x128xbf16, #tpu.memory_space<vmem>>, %arg31: memref<1x128xf32, #tpu.memory_space<vmem>>, %arg32: memref<128x64xbf16, #tpu.memory_space<vmem>>, %arg33: memref<1x64xf32, #tpu.memory_space<vmem>>, %arg34: memref<64x1xbf16, #tpu.memory_space<vmem>>, %arg35: memref<1x1xf32, #tpu.memory_space<vmem>>, %arg36: memref<32x256xbf16, #tpu.memory_space<vmem>>, %arg37: memref<1x256xf32, #tpu.memory_space<vmem>>, %arg38: memref<256x128xbf16, #tpu.memory_space<vmem>>, %arg39: memref<1x128xf32, #tpu.memory_space<vmem>>, %arg40: memref<128x5xbf16, #tpu.memory_space<vmem>>, %arg41: memref<1x5xf32, #tpu.memory_space<vmem>>, %arg42: memref<2x32xf32, #tpu.memory_space<vmem>>, %arg43: memref<2x1xf32, #tpu.memory_space<vmem>>, %arg44: memref<2x5xf32, #tpu.memory_space<vmem>>, %arg45: memref<16x32xf32, #tpu.memory_space<vmem>>, %arg46: memref<16x128xf32, #tpu.memory_space<vmem>>, %arg47: memref<16x128xf32, #tpu.memory_space<vmem>>) attributes {dimension_semantics = [], scalar_prefetch = 0 : i64, scratch_operands = 3 : i64, tpu.core_type = #tpu.core_type<tc>} {
    %c0 = arith.constant 0 : index
    %c0_0 = arith.constant 0 : index
    %0 = memref.load %arg0[%c0, %c0_0] : memref<2x8xi32, #tpu.memory_space<smem>>
    %1 = arith.index_cast %0 : i32 to index
    %c0_1 = arith.constant 0 : index
    %2 = vector.load %arg1[%1, %c0_1] : memref<1000x32xf32, #tpu.memory_space<vmem>>, vector<1x32xf32>
    %c0_2 = arith.constant 0 : index
    %c0_3 = arith.constant 0 : index
    %3 = vector.load %arg45[%c0_2, %c0_3] : memref<16x32xf32, #tpu.memory_space<vmem>>, vector<1x32xf32>
    tpu.vector_store %arg45[%c0_2, %c0_3], %2 {strides = array<i32>} : memref<16x32xf32, #tpu.memory_space<vmem>>, vector<1x32xf32>,
    %c1 = arith.constant 1 : index
    %c0_4 = arith.constant 0 : index
    %4 = memref.load %arg0[%c1, %c0_4] : memref<2x8xi32, #tpu.memory_space<smem>>
    %5 = arith.index_cast %4 : i32 to index
    %c0_5 = arith.constant 0 : index
    %6 = vector.load %arg1[%5, %c0_5] : memref<1000x32xf32, #tpu.memory_space<vmem>>, vector<1x32xf32>
    %c1_6 = arith.constant 1 : index
    %c0_7 = arith.constant 0 : index
    %7 = vector.load %arg45[%c1_6, %c0_7] : memref<16x32xf32, #tpu.memory_space<vmem>>, vector<1x32xf32>
    tpu.vector_store %arg45[%c1_6, %c0_7], %6 {strides = array<i32>} : memref<16x32xf32, #tpu.memory_space<vmem>>, vector<1x32xf32>,
    %c0_8 = arith.constant 0 : index
    %c1_9 = arith.constant 1 : index
    %8 = memref.load %arg0[%c0_8, %c1_9] : memref<2x8xi32, #tpu.memory_space<smem>>
    %9 = arith.index_cast %8 : i32 to index
    %c0_10 = arith.constant 0 : index
    %10 = vector.load %arg1[%9, %c0_10] : memref<1000x32xf32, #tpu.memory_space<vmem>>, vector<1x32xf32>
    %c2 = arith.constant 2 : index
    %c0_11 = arith.constant 0 : index
    %11 = vector.load %arg45[%c2, %c0_11] : memref<16x32xf32, #tpu.memory_space<vmem>>, vector<1x32xf32>
    tpu.vector_store %arg45[%c2, %c0_11], %10 {strides = array<i32>} : memref<16x32xf32, #tpu.memory_space<vmem>>, vector<1x32xf32>,
    %c1_12 = arith.constant 1 : index
    %c1_13 = arith.constant 1 : index
    %12 = memref.load %arg0[%c1_12, %c1_13] : memref<2x8xi32, #tpu.memory_space<smem>>
    %13 = arith.index_cast %12 : i32 to index
    %c0_14 = arith.constant 0 : index
    %14 = vector.load %arg1[%13, %c0_14] : memref<1000x32xf32, #tpu.memory_space<vmem>>, vector<1x32xf32>
    %c3 = arith.constant 3 : index
    %c0_15 = arith.constant 0 : index
    %15 = vector.load %arg45[%c3, %c0_15] : memref<16x32xf32, #tpu.memory_space<vmem>>, vector<1x32xf32>
    tpu.vector_store %arg45[%c3, %c0_15], %14 {strides = array<i32>} : memref<16x32xf32, #tpu.memory_space<vmem>>, vector<1x32xf32>,
    %c0_16 = arith.constant 0 : index
    %c2_17 = arith.constant 2 : index
    %16 = memref.load %arg0[%c0_16, %c2_17] : memref<2x8xi32, #tpu.memory_space<smem>>
    %17 = arith.index_cast %16 : i32 to index
    %c0_18 = arith.constant 0 : index
    %18 = vector.load %arg1[%17, %c0_18] : memref<1000x32xf32, #tpu.memory_space<vmem>>, vector<1x32xf32>
    %c4 = arith.constant 4 : index
    %c0_19 = arith.constant 0 : index
    %19 = vector.load %arg45[%c4, %c0_19] : memref<16x32xf32, #tpu.memory_space<vmem>>, vector<1x32xf32>
    tpu.vector_store %arg45[%c4, %c0_19], %18 {strides = array<i32>} : memref<16x32xf32, #tpu.memory_space<vmem>>, vector<1x32xf32>,
    %c1_20 = arith.constant 1 : index
    %c2_21 = arith.constant 2 : index
    %20 = memref.load %arg0[%c1_20, %c2_21] : memref<2x8xi32, #tpu.memory_space<smem>>
    %21 = arith.index_cast %20 : i32 to index
    %c0_22 = arith.constant 0 : index
    %22 = vector.load %arg1[%21, %c0_22] : memref<1000x32xf32, #tpu.memory_space<vmem>>, vector<1x32xf32>
    %c5 = arith.constant 5 : index
    %c0_23 = arith.constant 0 : index
    %23 = vector.load %arg45[%c5, %c0_23] : memref<16x32xf32, #tpu.memory_space<vmem>>, vector<1x32xf32>
    tpu.vector_store %arg45[%c5, %c0_23], %22 {strides = array<i32>} : memref<16x32xf32, #tpu.memory_space<vmem>>, vector<1x32xf32>,
    %c0_24 = arith.constant 0 : index
    %c3_25 = arith.constant 3 : index
    %24 = memref.load %arg0[%c0_24, %c3_25] : memref<2x8xi32, #tpu.memory_space<smem>>
    %25 = arith.index_cast %24 : i32 to index
    %c0_26 = arith.constant 0 : index
    %26 = vector.load %arg1[%25, %c0_26] : memref<1000x32xf32, #tpu.memory_space<vmem>>, vector<1x32xf32>
    %c6 = arith.constant 6 : index
    %c0_27 = arith.constant 0 : index
    %27 = vector.load %arg45[%c6, %c0_27] : memref<16x32xf32, #tpu.memory_space<vmem>>, vector<1x32xf32>
    tpu.vector_store %arg45[%c6, %c0_27], %26 {strides = array<i32>} : memref<16x32xf32, #tpu.memory_space<vmem>>, vector<1x32xf32>,
    %c1_28 = arith.constant 1 : index
    %c3_29 = arith.constant 3 : index
    %28 = memref.load %arg0[%c1_28, %c3_29] : memref<2x8xi32, #tpu.memory_space<smem>>
    %29 = arith.index_cast %28 : i32 to index
    %c0_30 = arith.constant 0 : index
    %30 = vector.load %arg1[%29, %c0_30] : memref<1000x32xf32, #tpu.memory_space<vmem>>, vector<1x32xf32>
    %c7 = arith.constant 7 : index
    %c0_31 = arith.constant 0 : index
    %31 = vector.load %arg45[%c7, %c0_31] : memref<16x32xf32, #tpu.memory_space<vmem>>, vector<1x32xf32>
    tpu.vector_store %arg45[%c7, %c0_31], %30 {strides = array<i32>} : memref<16x32xf32, #tpu.memory_space<vmem>>, vector<1x32xf32>,
    %c0_32 = arith.constant 0 : index
    %c4_33 = arith.constant 4 : index
    %32 = memref.load %arg0[%c0_32, %c4_33] : memref<2x8xi32, #tpu.memory_space<smem>>
    %33 = arith.index_cast %32 : i32 to index
    %c0_34 = arith.constant 0 : index
    %34 = vector.load %arg1[%33, %c0_34] : memref<1000x32xf32, #tpu.memory_space<vmem>>, vector<1x32xf32>
    %c8 = arith.constant 8 : index
    %c0_35 = arith.constant 0 : index
    %35 = vector.load %arg45[%c8, %c0_35] : memref<16x32xf32, #tpu.memory_space<vmem>>, vector<1x32xf32>
    tpu.vector_store %arg45[%c8, %c0_35], %34 {strides = array<i32>} : memref<16x32xf32, #tpu.memory_space<vmem>>, vector<1x32xf32>,
    %c1_36 = arith.constant 1 : index
    %c4_37 = arith.constant 4 : index
    %36 = memref.load %arg0[%c1_36, %c4_37] : memref<2x8xi32, #tpu.memory_space<smem>>
    %37 = arith.index_cast %36 : i32 to index
    %c0_38 = arith.constant 0 : index
    %38 = vector.load %arg1[%37, %c0_38] : memref<1000x32xf32, #tpu.memory_space<vmem>>, vector<1x32xf32>
    %c9 = arith.constant 9 : index
    %c0_39 = arith.constant 0 : index
    %39 = vector.load %arg45[%c9, %c0_39] : memref<16x32xf32, #tpu.memory_space<vmem>>, vector<1x32xf32>
    tpu.vector_store %arg45[%c9, %c0_39], %38 {strides = array<i32>} : memref<16x32xf32, #tpu.memory_space<vmem>>, vector<1x32xf32>,
    %c0_40 = arith.constant 0 : index
    %c5_41 = arith.constant 5 : index
    %40 = memref.load %arg0[%c0_40, %c5_41] : memref<2x8xi32, #tpu.memory_space<smem>>
    %41 = arith.index_cast %40 : i32 to index
    %c0_42 = arith.constant 0 : index
    %42 = vector.load %arg1[%41, %c0_42] : memref<1000x32xf32, #tpu.memory_space<vmem>>, vector<1x32xf32>
    %c10 = arith.constant 10 : index
    %c0_43 = arith.constant 0 : index
    %43 = vector.load %arg45[%c10, %c0_43] : memref<16x32xf32, #tpu.memory_space<vmem>>, vector<1x32xf32>
    tpu.vector_store %arg45[%c10, %c0_43], %42 {strides = array<i32>} : memref<16x32xf32, #tpu.memory_space<vmem>>, vector<1x32xf32>,
    %c1_44 = arith.constant 1 : index
    %c5_45 = arith.constant 5 : index
    %44 = memref.load %arg0[%c1_44, %c5_45] : memref<2x8xi32, #tpu.memory_space<smem>>
    %45 = arith.index_cast %44 : i32 to index
    %c0_46 = arith.constant 0 : index
    %46 = vector.load %arg1[%45, %c0_46] : memref<1000x32xf32, #tpu.memory_space<vmem>>, vector<1x32xf32>
    %c11 = arith.constant 11 : index
    %c0_47 = arith.constant 0 : index
    %47 = vector.load %arg45[%c11, %c0_47] : memref<16x32xf32, #tpu.memory_space<vmem>>, vector<1x32xf32>
    tpu.vector_store %arg45[%c11, %c0_47], %46 {strides = array<i32>} : memref<16x32xf32, #tpu.memory_space<vmem>>, vector<1x32xf32>,
    %c0_48 = arith.constant 0 : index
    %c6_49 = arith.constant 6 : index
    %48 = memref.load %arg0[%c0_48, %c6_49] : memref<2x8xi32, #tpu.memory_space<smem>>
    %49 = arith.index_cast %48 : i32 to index
    %c0_50 = arith.constant 0 : index
    %50 = vector.load %arg1[%49, %c0_50] : memref<1000x32xf32, #tpu.memory_space<vmem>>, vector<1x32xf32>
    %c12 = arith.constant 12 : index
    %c0_51 = arith.constant 0 : index
    %51 = vector.load %arg45[%c12, %c0_51] : memref<16x32xf32, #tpu.memory_space<vmem>>, vector<1x32xf32>
    tpu.vector_store %arg45[%c12, %c0_51], %50 {strides = array<i32>} : memref<16x32xf32, #tpu.memory_space<vmem>>, vector<1x32xf32>,
    %c1_52 = arith.constant 1 : index
    %c6_53 = arith.constant 6 : index
    %52 = memref.load %arg0[%c1_52, %c6_53] : memref<2x8xi32, #tpu.memory_space<smem>>
    %53 = arith.index_cast %52 : i32 to index
    %c0_54 = arith.constant 0 : index
    %54 = vector.load %arg1[%53, %c0_54] : memref<1000x32xf32, #tpu.memory_space<vmem>>, vector<1x32xf32>
    %c13 = arith.constant 13 : index
    %c0_55 = arith.constant 0 : index
    %55 = vector.load %arg45[%c13, %c0_55] : memref<16x32xf32, #tpu.memory_space<vmem>>, vector<1x32xf32>
    tpu.vector_store %arg45[%c13, %c0_55], %54 {strides = array<i32>} : memref<16x32xf32, #tpu.memory_space<vmem>>, vector<1x32xf32>,
    %c0_56 = arith.constant 0 : index
    %c7_57 = arith.constant 7 : index
    %56 = memref.load %arg0[%c0_56, %c7_57] : memref<2x8xi32, #tpu.memory_space<smem>>
    %57 = arith.index_cast %56 : i32 to index
    %c0_58 = arith.constant 0 : index
    %58 = vector.load %arg1[%57, %c0_58] : memref<1000x32xf32, #tpu.memory_space<vmem>>, vector<1x32xf32>
    %c14 = arith.constant 14 : index
    %c0_59 = arith.constant 0 : index
    %59 = vector.load %arg45[%c14, %c0_59] : memref<16x32xf32, #tpu.memory_space<vmem>>, vector<1x32xf32>
    tpu.vector_store %arg45[%c14, %c0_59], %58 {strides = array<i32>} : memref<16x32xf32, #tpu.memory_space<vmem>>, vector<1x32xf32>,
    %c1_60 = arith.constant 1 : index
    %c7_61 = arith.constant 7 : index
    %60 = memref.load %arg0[%c1_60, %c7_61] : memref<2x8xi32, #tpu.memory_space<smem>>
    %61 = arith.index_cast %60 : i32 to index
    %c0_62 = arith.constant 0 : index
    %62 = vector.load %arg1[%61, %c0_62] : memref<1000x32xf32, #tpu.memory_space<vmem>>, vector<1x32xf32>
    %c15 = arith.constant 15 : index
    %c0_63 = arith.constant 0 : index
    %63 = vector.load %arg45[%c15, %c0_63] : memref<16x32xf32, #tpu.memory_space<vmem>>, vector<1x32xf32>
    tpu.vector_store %arg45[%c15, %c0_63], %62 {strides = array<i32>} : memref<16x32xf32, #tpu.memory_space<vmem>>, vector<1x32xf32>,
    %c0_64 = arith.constant 0 : index
    %c0_65 = arith.constant 0 : index
    %64 = vector.load %arg45[%c0_64, %c0_65] : memref<16x32xf32, #tpu.memory_space<vmem>>, vector<16x32xf32>
    %65 = arith.truncf %64 : vector<16x32xf32> to vector<16x32xbf16>
    %c0_66 = arith.constant 0 : index
    %c0_67 = arith.constant 0 : index
    %66 = vector.load %arg4[%c0_66, %c0_67] : memref<32x256xbf16, #tpu.memory_space<vmem>>, vector<32x256xbf16>
    %cst = arith.constant dense<0.000000e+00> : vector<16x256xf32>
    %67 = tpu.matmul %65, %66, %cst {dimension_numbers = #tpu.dot_dimension_numbers<[1], [0], [0], [1], [0, 0, 1, 1], [], []>} : vector<16x32xbf16>, vector<32x256xbf16>, vector<16x256xf32> -> vector<16x256xf32>
    %c0_68 = arith.constant 0 : index
    %c0_69 = arith.constant 0 : index
    %68 = vector.load %arg6[%c0_68, %c0_69] : memref<1x256xf32, #tpu.memory_space<vmem>>, vector<1x256xf32>
    %69 = vector.broadcast %68 : vector<1x256xf32> to vector<16x256xf32>
    %70 = arith.addf %67, %69 : vector<16x256xf32>
    %c0_70 = arith.constant 0 : index
    %c0_71 = arith.constant 0 : index
    %71 = vector.load %arg7[%c0_70, %c0_71] : memref<32x256xbf16, #tpu.memory_space<vmem>>, vector<32x256xbf16>
    %cst_72 = arith.constant dense<0.000000e+00> : vector<16x256xf32>
    %72 = tpu.matmul %65, %71, %cst_72 {dimension_numbers = #tpu.dot_dimension_numbers<[1], [0], [0], [1], [0, 0, 1, 1], [], []>} : vector<16x32xbf16>, vector<32x256xbf16>, vector<16x256xf32> -> vector<16x256xf32>
    %c0_73 = arith.constant 0 : index
    %c0_74 = arith.constant 0 : index
    %73 = vector.load %arg9[%c0_73, %c0_74] : memref<1x256xf32, #tpu.memory_space<vmem>>, vector<1x256xf32>
    %74 = vector.broadcast %73 : vector<1x256xf32> to vector<16x256xf32>
    %75 = arith.addf %72, %74 : vector<16x256xf32>
    %c0_75 = arith.constant 0 : index
    %c0_76 = arith.constant 0 : index
    %76 = vector.load %arg5[%c0_75, %c0_76] : memref<64x256xbf16, #tpu.memory_space<vmem>>, vector<64x256xbf16>
    %c0_77 = arith.constant 0 : index
    %c0_78 = arith.constant 0 : index
    %77 = vector.load %arg8[%c0_77, %c0_78] : memref<64x256xbf16, #tpu.memory_space<vmem>>, vector<64x256xbf16>
    %cst_79 = arith.constant 0.000000e+00 : f32
    %78 = vector.broadcast %cst_79 : f32 to vector<2x64xf32>
    %cst_80 = arith.constant 0.000000e+00 : f32
    %79 = vector.broadcast %cst_80 : f32 to vector<2x64xf32>
    %cst_81 = arith.constant 0.000000e+00 : f32
    %80 = vector.broadcast %cst_81 : f32 to vector<2x64xf32>
    %cst_82 = arith.constant 0.000000e+00 : f32
    %81 = vector.broadcast %cst_82 : f32 to vector<2x64xf32>
    %82 = vector.extract_strided_slice %70 {offsets = [0, 0], sizes = [2, 256], strides = [1, 1]} : vector<16x256xf32> to vector<2x256xf32>
    %83 = arith.truncf %78 : vector<2x64xf32> to vector<2x64xbf16>
    %cst_83 = arith.constant dense<0.000000e+00> : vector<2x256xf32>
    %84 = tpu.matmul %83, %76, %cst_83 {dimension_numbers = #tpu.dot_dimension_numbers<[1], [0], [0], [1], [0, 0, 1, 1], [], []>} : vector<2x64xbf16>, vector<64x256xbf16>, vector<2x256xf32> -> vector<2x256xf32>
    %85 = arith.addf %82, %84 : vector<2x256xf32>
    %86 = vector.extract_strided_slice %85 {offsets = [0, 0], sizes = [2, 128], strides = [1, 1]} : vector<2x256xf32> to vector<2x128xf32>
    %87 = arith.negf %86 : vector<2x128xf32>
    %88 = math.exp %87 : vector<2x128xf32>
    %cst_84 = arith.constant 1.000000e+00 : f32
    %89 = vector.broadcast %cst_84 : f32 to vector<2x128xf32>
    %90 = arith.addf %89, %88 : vector<2x128xf32>
    %91 = arith.divf %89, %90 : vector<2x128xf32>
    %92 = vector.extract_strided_slice %91 {offsets = [0, 0], sizes = [2, 64], strides = [1, 1]} : vector<2x128xf32> to vector<2x64xf32>
    %93 = vector.extract_strided_slice %91 {offsets = [0, 64], sizes = [2, 64], strides = [1, 1]} : vector<2x128xf32> to vector<2x64xf32>
    %94 = vector.extract_strided_slice %85 {offsets = [0, 128], sizes = [2, 64], strides = [1, 1]} : vector<2x256xf32> to vector<2x64xf32>
    %95 = math.tanh %94 : vector<2x64xf32>
    %96 = vector.extract_strided_slice %85 {offsets = [0, 192], sizes = [2, 64], strides = [1, 1]} : vector<2x256xf32> to vector<2x64xf32>
    %97 = arith.negf %96 : vector<2x64xf32>
    %98 = math.exp %97 : vector<2x64xf32>
    %cst_85 = arith.constant 1.000000e+00 : f32
    %99 = vector.broadcast %cst_85 : f32 to vector<2x64xf32>
    %100 = arith.addf %99, %98 : vector<2x64xf32>
    %101 = arith.divf %99, %100 : vector<2x64xf32>
    %102 = arith.mulf %93, %79 : vector<2x64xf32>
    %103 = arith.mulf %92, %95 : vector<2x64xf32>
    %104 = arith.addf %102, %103 : vector<2x64xf32>
    %105 = math.tanh %104 : vector<2x64xf32>
    %106 = arith.mulf %101, %105 : vector<2x64xf32>
    %c0_86 = arith.constant 0 : index
    %c0_87 = arith.constant 0 : index
    %107 = vector.load %arg46[%c0_86, %c0_87] : memref<16x128xf32, #tpu.memory_space<vmem>>, vector<2x64xf32>
    tpu.vector_store %arg46[%c0_86, %c0_87], %106 {strides = array<i32>} : memref<16x128xf32, #tpu.memory_space<vmem>>, vector<2x64xf32>,
    %108 = vector.extract_strided_slice %75 {offsets = [14, 0], sizes = [2, 256], strides = [1, 1]} : vector<16x256xf32> to vector<2x256xf32>
    %109 = arith.truncf %80 : vector<2x64xf32> to vector<2x64xbf16>
    %cst_88 = arith.constant dense<0.000000e+00> : vector<2x256xf32>
    %110 = tpu.matmul %109, %77, %cst_88 {dimension_numbers = #tpu.dot_dimension_numbers<[1], [0], [0], [1], [0, 0, 1, 1], [], []>} : vector<2x64xbf16>, vector<64x256xbf16>, vector<2x256xf32> -> vector<2x256xf32>
    %111 = arith.addf %108, %110 : vector<2x256xf32>
    %112 = vector.extract_strided_slice %111 {offsets = [0, 0], sizes = [2, 128], strides = [1, 1]} : vector<2x256xf32> to vector<2x128xf32>
    %113 = arith.negf %112 : vector<2x128xf32>
    %114 = math.exp %113 : vector<2x128xf32>
    %cst_89 = arith.constant 1.000000e+00 : f32
    %115 = vector.broadcast %cst_89 : f32 to vector<2x128xf32>
    %116 = arith.addf %115, %114 : vector<2x128xf32>
    %117 = arith.divf %115, %116 : vector<2x128xf32>
    %118 = vector.extract_strided_slice %117 {offsets = [0, 0], sizes = [2, 64], strides = [1, 1]} : vector<2x128xf32> to vector<2x64xf32>
    %119 = vector.extract_strided_slice %117 {offsets = [0, 64], sizes = [2, 64], strides = [1, 1]} : vector<2x128xf32> to vector<2x64xf32>
    %120 = vector.extract_strided_slice %111 {offsets = [0, 128], sizes = [2, 64], strides = [1, 1]} : vector<2x256xf32> to vector<2x64xf32>
    %121 = math.tanh %120 : vector<2x64xf32>
    %122 = vector.extract_strided_slice %111 {offsets = [0, 192], sizes = [2, 64], strides = [1, 1]} : vector<2x256xf32> to vector<2x64xf32>
    %123 = arith.negf %122 : vector<2x64xf32>
    %124 = math.exp %123 : vector<2x64xf32>
    %cst_90 = arith.constant 1.000000e+00 : f32
    %125 = vector.broadcast %cst_90 : f32 to vector<2x64xf32>
    %126 = arith.addf %125, %124 : vector<2x64xf32>
    %127 = arith.divf %125, %126 : vector<2x64xf32>
    %128 = arith.mulf %119, %81 : vector<2x64xf32>
    %129 = arith.mulf %118, %121 : vector<2x64xf32>
    %130 = arith.addf %128, %129 : vector<2x64xf32>
    %131 = math.tanh %130 : vector<2x64xf32>
    %132 = arith.mulf %127, %131 : vector<2x64xf32>
    %c14_91 = arith.constant 14 : index
    %c64 = arith.constant 64 : index
    %133 = vector.load %arg46[%c14_91, %c64] : memref<16x128xf32, #tpu.memory_space<vmem>>, vector<2x64xf32>
    tpu.vector_store %arg46[%c14_91, %c64], %132 {strides = array<i32>} : memref<16x128xf32, #tpu.memory_space<vmem>>, vector<2x64xf32>,
    %134 = vector.extract_strided_slice %70 {offsets = [2, 0], sizes = [2, 256], strides = [1, 1]} : vector<16x256xf32> to vector<2x256xf32>
    %135 = arith.truncf %106 : vector<2x64xf32> to vector<2x64xbf16>
    %cst_92 = arith.constant dense<0.000000e+00> : vector<2x256xf32>
    %136 = tpu.matmul %135, %76, %cst_92 {dimension_numbers = #tpu.dot_dimension_numbers<[1], [0], [0], [1], [0, 0, 1, 1], [], []>} : vector<2x64xbf16>, vector<64x256xbf16>, vector<2x256xf32> -> vector<2x256xf32>
    %137 = arith.addf %134, %136 : vector<2x256xf32>
    %138 = vector.extract_strided_slice %137 {offsets = [0, 0], sizes = [2, 128], strides = [1, 1]} : vector<2x256xf32> to vector<2x128xf32>
    %139 = arith.negf %138 : vector<2x128xf32>
    %140 = math.exp %139 : vector<2x128xf32>
    %cst_93 = arith.constant 1.000000e+00 : f32
    %141 = vector.broadcast %cst_93 : f32 to vector<2x128xf32>
    %142 = arith.addf %141, %140 : vector<2x128xf32>
    %143 = arith.divf %141, %142 : vector<2x128xf32>
    %144 = vector.extract_strided_slice %143 {offsets = [0, 0], sizes = [2, 64], strides = [1, 1]} : vector<2x128xf32> to vector<2x64xf32>
    %145 = vector.extract_strided_slice %143 {offsets = [0, 64], sizes = [2, 64], strides = [1, 1]} : vector<2x128xf32> to vector<2x64xf32>
    %146 = vector.extract_strided_slice %137 {offsets = [0, 128], sizes = [2, 64], strides = [1, 1]} : vector<2x256xf32> to vector<2x64xf32>
    %147 = math.tanh %146 : vector<2x64xf32>
    %148 = vector.extract_strided_slice %137 {offsets = [0, 192], sizes = [2, 64], strides = [1, 1]} : vector<2x256xf32> to vector<2x64xf32>
    %149 = arith.negf %148 : vector<2x64xf32>
    %150 = math.exp %149 : vector<2x64xf32>
    %cst_94 = arith.constant 1.000000e+00 : f32
    %151 = vector.broadcast %cst_94 : f32 to vector<2x64xf32>
    %152 = arith.addf %151, %150 : vector<2x64xf32>
    %153 = arith.divf %151, %152 : vector<2x64xf32>
    %154 = arith.mulf %145, %104 : vector<2x64xf32>
    %155 = arith.mulf %144, %147 : vector<2x64xf32>
    %156 = arith.addf %154, %155 : vector<2x64xf32>
    %157 = math.tanh %156 : vector<2x64xf32>
    %158 = arith.mulf %153, %157 : vector<2x64xf32>
    %c2_95 = arith.constant 2 : index
    %c0_96 = arith.constant 0 : index
    %159 = vector.load %arg46[%c2_95, %c0_96] : memref<16x128xf32, #tpu.memory_space<vmem>>, vector<2x64xf32>
    tpu.vector_store %arg46[%c2_95, %c0_96], %158 {strides = array<i32>} : memref<16x128xf32, #tpu.memory_space<vmem>>, vector<2x64xf32>,
    %160 = vector.extract_strided_slice %75 {offsets = [12, 0], sizes = [2, 256], strides = [1, 1]} : vector<16x256xf32> to vector<2x256xf32>
    %161 = arith.truncf %132 : vector<2x64xf32> to vector<2x64xbf16>
    %cst_97 = arith.constant dense<0.000000e+00> : vector<2x256xf32>
    %162 = tpu.matmul %161, %77, %cst_97 {dimension_numbers = #tpu.dot_dimension_numbers<[1], [0], [0], [1], [0, 0, 1, 1], [], []>} : vector<2x64xbf16>, vector<64x256xbf16>, vector<2x256xf32> -> vector<2x256xf32>
    %163 = arith.addf %160, %162 : vector<2x256xf32>
    %164 = vector.extract_strided_slice %163 {offsets = [0, 0], sizes = [2, 128], strides = [1, 1]} : vector<2x256xf32> to vector<2x128xf32>
    %165 = arith.negf %164 : vector<2x128xf32>
    %166 = math.exp %165 : vector<2x128xf32>
    %cst_98 = arith.constant 1.000000e+00 : f32
    %167 = vector.broadcast %cst_98 : f32 to vector<2x128xf32>
    %168 = arith.addf %167, %166 : vector<2x128xf32>
    %169 = arith.divf %167, %168 : vector<2x128xf32>
    %170 = vector.extract_strided_slice %169 {offsets = [0, 0], sizes = [2, 64], strides = [1, 1]} : vector<2x128xf32> to vector<2x64xf32>
    %171 = vector.extract_strided_slice %169 {offsets = [0, 64], sizes = [2, 64], strides = [1, 1]} : vector<2x128xf32> to vector<2x64xf32>
    %172 = vector.extract_strided_slice %163 {offsets = [0, 128], sizes = [2, 64], strides = [1, 1]} : vector<2x256xf32> to vector<2x64xf32>
    %173 = math.tanh %172 : vector<2x64xf32>
    %174 = vector.extract_strided_slice %163 {offsets = [0, 192], sizes = [2, 64], strides = [1, 1]} : vector<2x256xf32> to vector<2x64xf32>
    %175 = arith.negf %174 : vector<2x64xf32>
    %176 = math.exp %175 : vector<2x64xf32>
    %cst_99 = arith.constant 1.000000e+00 : f32
    %177 = vector.broadcast %cst_99 : f32 to vector<2x64xf32>
    %178 = arith.addf %177, %176 : vector<2x64xf32>
    %179 = arith.divf %177, %178 : vector<2x64xf32>
    %180 = arith.mulf %171, %130 : vector<2x64xf32>
    %181 = arith.mulf %170, %173 : vector<2x64xf32>
    %182 = arith.addf %180, %181 : vector<2x64xf32>
    %183 = math.tanh %182 : vector<2x64xf32>
    %184 = arith.mulf %179, %183 : vector<2x64xf32>
    %c12_100 = arith.constant 12 : index
    %c64_101 = arith.constant 64 : index
    %185 = vector.load %arg46[%c12_100, %c64_101] : memref<16x128xf32, #tpu.memory_space<vmem>>, vector<2x64xf32>
    tpu.vector_store %arg46[%c12_100, %c64_101], %184 {strides = array<i32>} : memref<16x128xf32, #tpu.memory_space<vmem>>, vector<2x64xf32>,
    %186 = vector.extract_strided_slice %70 {offsets = [4, 0], sizes = [2, 256], strides = [1, 1]} : vector<16x256xf32> to vector<2x256xf32>
    %187 = arith.truncf %158 : vector<2x64xf32> to vector<2x64xbf16>
    %cst_102 = arith.constant dense<0.000000e+00> : vector<2x256xf32>
    %188 = tpu.matmul %187, %76, %cst_102 {dimension_numbers = #tpu.dot_dimension_numbers<[1], [0], [0], [1], [0, 0, 1, 1], [], []>} : vector<2x64xbf16>, vector<64x256xbf16>, vector<2x256xf32> -> vector<2x256xf32>
    %189 = arith.addf %186, %188 : vector<2x256xf32>
    %190 = vector.extract_strided_slice %189 {offsets = [0, 0], sizes = [2, 128], strides = [1, 1]} : vector<2x256xf32> to vector<2x128xf32>
    %191 = arith.negf %190 : vector<2x128xf32>
    %192 = math.exp %191 : vector<2x128xf32>
    %cst_103 = arith.constant 1.000000e+00 : f32
    %193 = vector.broadcast %cst_103 : f32 to vector<2x128xf32>
    %194 = arith.addf %193, %192 : vector<2x128xf32>
    %195 = arith.divf %193, %194 : vector<2x128xf32>
    %196 = vector.extract_strided_slice %195 {offsets = [0, 0], sizes = [2, 64], strides = [1, 1]} : vector<2x128xf32> to vector<2x64xf32>
    %197 = vector.extract_strided_slice %195 {offsets = [0, 64], sizes = [2, 64], strides = [1, 1]} : vector<2x128xf32> to vector<2x64xf32>
    %198 = vector.extract_strided_slice %189 {offsets = [0, 128], sizes = [2, 64], strides = [1, 1]} : vector<2x256xf32> to vector<2x64xf32>
    %199 = math.tanh %198 : vector<2x64xf32>
    %200 = vector.extract_strided_slice %189 {offsets = [0, 192], sizes = [2, 64], strides = [1, 1]} : vector<2x256xf32> to vector<2x64xf32>
    %201 = arith.negf %200 : vector<2x64xf32>
    %202 = math.exp %201 : vector<2x64xf32>
    %cst_104 = arith.constant 1.000000e+00 : f32
    %203 = vector.broadcast %cst_104 : f32 to vector<2x64xf32>
    %204 = arith.addf %203, %202 : vector<2x64xf32>
    %205 = arith.divf %203, %204 : vector<2x64xf32>
    %206 = arith.mulf %197, %156 : vector<2x64xf32>
    %207 = arith.mulf %196, %199 : vector<2x64xf32>
    %208 = arith.addf %206, %207 : vector<2x64xf32>
    %209 = math.tanh %208 : vector<2x64xf32>
    %210 = arith.mulf %205, %209 : vector<2x64xf32>
    %c4_105 = arith.constant 4 : index
    %c0_106 = arith.constant 0 : index
    %211 = vector.load %arg46[%c4_105, %c0_106] : memref<16x128xf32, #tpu.memory_space<vmem>>, vector<2x64xf32>
    tpu.vector_store %arg46[%c4_105, %c0_106], %210 {strides = array<i32>} : memref<16x128xf32, #tpu.memory_space<vmem>>, vector<2x64xf32>,
    %212 = vector.extract_strided_slice %75 {offsets = [10, 0], sizes = [2, 256], strides = [1, 1]} : vector<16x256xf32> to vector<2x256xf32>
    %213 = arith.truncf %184 : vector<2x64xf32> to vector<2x64xbf16>
    %cst_107 = arith.constant dense<0.000000e+00> : vector<2x256xf32>
    %214 = tpu.matmul %213, %77, %cst_107 {dimension_numbers = #tpu.dot_dimension_numbers<[1], [0], [0], [1], [0, 0, 1, 1], [], []>} : vector<2x64xbf16>, vector<64x256xbf16>, vector<2x256xf32> -> vector<2x256xf32>
    %215 = arith.addf %212, %214 : vector<2x256xf32>
    %216 = vector.extract_strided_slice %215 {offsets = [0, 0], sizes = [2, 128], strides = [1, 1]} : vector<2x256xf32> to vector<2x128xf32>
    %217 = arith.negf %216 : vector<2x128xf32>
    %218 = math.exp %217 : vector<2x128xf32>
    %cst_108 = arith.constant 1.000000e+00 : f32
    %219 = vector.broadcast %cst_108 : f32 to vector<2x128xf32>
    %220 = arith.addf %219, %218 : vector<2x128xf32>
    %221 = arith.divf %219, %220 : vector<2x128xf32>
    %222 = vector.extract_strided_slice %221 {offsets = [0, 0], sizes = [2, 64], strides = [1, 1]} : vector<2x128xf32> to vector<2x64xf32>
    %223 = vector.extract_strided_slice %221 {offsets = [0, 64], sizes = [2, 64], strides = [1, 1]} : vector<2x128xf32> to vector<2x64xf32>
    %224 = vector.extract_strided_slice %215 {offsets = [0, 128], sizes = [2, 64], strides = [1, 1]} : vector<2x256xf32> to vector<2x64xf32>
    %225 = math.tanh %224 : vector<2x64xf32>
    %226 = vector.extract_strided_slice %215 {offsets = [0, 192], sizes = [2, 64], strides = [1, 1]} : vector<2x256xf32> to vector<2x64xf32>
    %227 = arith.negf %226 : vector<2x64xf32>
    %228 = math.exp %227 : vector<2x64xf32>
    %cst_109 = arith.constant 1.000000e+00 : f32
    %229 = vector.broadcast %cst_109 : f32 to vector<2x64xf32>
    %230 = arith.addf %229, %228 : vector<2x64xf32>
    %231 = arith.divf %229, %230 : vector<2x64xf32>
    %232 = arith.mulf %223, %182 : vector<2x64xf32>
    %233 = arith.mulf %222, %225 : vector<2x64xf32>
    %234 = arith.addf %232, %233 : vector<2x64xf32>
    %235 = math.tanh %234 : vector<2x64xf32>
    %236 = arith.mulf %231, %235 : vector<2x64xf32>
    %c10_110 = arith.constant 10 : index
    %c64_111 = arith.constant 64 : index
    %237 = vector.load %arg46[%c10_110, %c64_111] : memref<16x128xf32, #tpu.memory_space<vmem>>, vector<2x64xf32>
    tpu.vector_store %arg46[%c10_110, %c64_111], %236 {strides = array<i32>} : memref<16x128xf32, #tpu.memory_space<vmem>>, vector<2x64xf32>,
    %238 = vector.extract_strided_slice %70 {offsets = [6, 0], sizes = [2, 256], strides = [1, 1]} : vector<16x256xf32> to vector<2x256xf32>
    %239 = arith.truncf %210 : vector<2x64xf32> to vector<2x64xbf16>
    %cst_112 = arith.constant dense<0.000000e+00> : vector<2x256xf32>
    %240 = tpu.matmul %239, %76, %cst_112 {dimension_numbers = #tpu.dot_dimension_numbers<[1], [0], [0], [1], [0, 0, 1, 1], [], []>} : vector<2x64xbf16>, vector<64x256xbf16>, vector<2x256xf32> -> vector<2x256xf32>
    %241 = arith.addf %238, %240 : vector<2x256xf32>
    %242 = vector.extract_strided_slice %241 {offsets = [0, 0], sizes = [2, 128], strides = [1, 1]} : vector<2x256xf32> to vector<2x128xf32>
    %243 = arith.negf %242 : vector<2x128xf32>
    %244 = math.exp %243 : vector<2x128xf32>
    %cst_113 = arith.constant 1.000000e+00 : f32
    %245 = vector.broadcast %cst_113 : f32 to vector<2x128xf32>
    %246 = arith.addf %245, %244 : vector<2x128xf32>
    %247 = arith.divf %245, %246 : vector<2x128xf32>
    %248 = vector.extract_strided_slice %247 {offsets = [0, 0], sizes = [2, 64], strides = [1, 1]} : vector<2x128xf32> to vector<2x64xf32>
    %249 = vector.extract_strided_slice %247 {offsets = [0, 64], sizes = [2, 64], strides = [1, 1]} : vector<2x128xf32> to vector<2x64xf32>
    %250 = vector.extract_strided_slice %241 {offsets = [0, 128], sizes = [2, 64], strides = [1, 1]} : vector<2x256xf32> to vector<2x64xf32>
    %251 = math.tanh %250 : vector<2x64xf32>
    %252 = vector.extract_strided_slice %241 {offsets = [0, 192], sizes = [2, 64], strides = [1, 1]} : vector<2x256xf32> to vector<2x64xf32>
    %253 = arith.negf %252 : vector<2x64xf32>
    %254 = math.exp %253 : vector<2x64xf32>
    %cst_114 = arith.constant 1.000000e+00 : f32
    %255 = vector.broadcast %cst_114 : f32 to vector<2x64xf32>
    %256 = arith.addf %255, %254 : vector<2x64xf32>
    %257 = arith.divf %255, %256 : vector<2x64xf32>
    %258 = arith.mulf %249, %208 : vector<2x64xf32>
    %259 = arith.mulf %248, %251 : vector<2x64xf32>
    %260 = arith.addf %258, %259 : vector<2x64xf32>
    %261 = math.tanh %260 : vector<2x64xf32>
    %262 = arith.mulf %257, %261 : vector<2x64xf32>
    %c6_115 = arith.constant 6 : index
    %c0_116 = arith.constant 0 : index
    %263 = vector.load %arg46[%c6_115, %c0_116] : memref<16x128xf32, #tpu.memory_space<vmem>>, vector<2x64xf32>
    tpu.vector_store %arg46[%c6_115, %c0_116], %262 {strides = array<i32>} : memref<16x128xf32, #tpu.memory_space<vmem>>, vector<2x64xf32>,
    %264 = vector.extract_strided_slice %75 {offsets = [8, 0], sizes = [2, 256], strides = [1, 1]} : vector<16x256xf32> to vector<2x256xf32>
    %265 = arith.truncf %236 : vector<2x64xf32> to vector<2x64xbf16>
    %cst_117 = arith.constant dense<0.000000e+00> : vector<2x256xf32>
    %266 = tpu.matmul %265, %77, %cst_117 {dimension_numbers = #tpu.dot_dimension_numbers<[1], [0], [0], [1], [0, 0, 1, 1], [], []>} : vector<2x64xbf16>, vector<64x256xbf16>, vector<2x256xf32> -> vector<2x256xf32>
    %267 = arith.addf %264, %266 : vector<2x256xf32>
    %268 = vector.extract_strided_slice %267 {offsets = [0, 0], sizes = [2, 128], strides = [1, 1]} : vector<2x256xf32> to vector<2x128xf32>
    %269 = arith.negf %268 : vector<2x128xf32>
    %270 = math.exp %269 : vector<2x128xf32>
    %cst_118 = arith.constant 1.000000e+00 : f32
    %271 = vector.broadcast %cst_118 : f32 to vector<2x128xf32>
    %272 = arith.addf %271, %270 : vector<2x128xf32>
    %273 = arith.divf %271, %272 : vector<2x128xf32>
    %274 = vector.extract_strided_slice %273 {offsets = [0, 0], sizes = [2, 64], strides = [1, 1]} : vector<2x128xf32> to vector<2x64xf32>
    %275 = vector.extract_strided_slice %273 {offsets = [0, 64], sizes = [2, 64], strides = [1, 1]} : vector<2x128xf32> to vector<2x64xf32>
    %276 = vector.extract_strided_slice %267 {offsets = [0, 128], sizes = [2, 64], strides = [1, 1]} : vector<2x256xf32> to vector<2x64xf32>
    %277 = math.tanh %276 : vector<2x64xf32>
    %278 = vector.extract_strided_slice %267 {offsets = [0, 192], sizes = [2, 64], strides = [1, 1]} : vector<2x256xf32> to vector<2x64xf32>
    %279 = arith.negf %278 : vector<2x64xf32>
    %280 = math.exp %279 : vector<2x64xf32>
    %cst_119 = arith.constant 1.000000e+00 : f32
    %281 = vector.broadcast %cst_119 : f32 to vector<2x64xf32>
    %282 = arith.addf %281, %280 : vector<2x64xf32>
    %283 = arith.divf %281, %282 : vector<2x64xf32>
    %284 = arith.mulf %275, %234 : vector<2x64xf32>
    %285 = arith.mulf %274, %277 : vector<2x64xf32>
    %286 = arith.addf %284, %285 : vector<2x64xf32>
    %287 = math.tanh %286 : vector<2x64xf32>
    %288 = arith.mulf %283, %287 : vector<2x64xf32>
    %c8_120 = arith.constant 8 : index
    %c64_121 = arith.constant 64 : index
    %289 = vector.load %arg46[%c8_120, %c64_121] : memref<16x128xf32, #tpu.memory_space<vmem>>, vector<2x64xf32>
    tpu.vector_store %arg46[%c8_120, %c64_121], %288 {strides = array<i32>} : memref<16x128xf32, #tpu.memory_space<vmem>>, vector<2x64xf32>,
    %290 = vector.extract_strided_slice %70 {offsets = [8, 0], sizes = [2, 256], strides = [1, 1]} : vector<16x256xf32> to vector<2x256xf32>
    %291 = arith.truncf %262 : vector<2x64xf32> to vector<2x64xbf16>
    %cst_122 = arith.constant dense<0.000000e+00> : vector<2x256xf32>
    %292 = tpu.matmul %291, %76, %cst_122 {dimension_numbers = #tpu.dot_dimension_numbers<[1], [0], [0], [1], [0, 0, 1, 1], [], []>} : vector<2x64xbf16>, vector<64x256xbf16>, vector<2x256xf32> -> vector<2x256xf32>
    %293 = arith.addf %290, %292 : vector<2x256xf32>
    %294 = vector.extract_strided_slice %293 {offsets = [0, 0], sizes = [2, 128], strides = [1, 1]} : vector<2x256xf32> to vector<2x128xf32>
    %295 = arith.negf %294 : vector<2x128xf32>
    %296 = math.exp %295 : vector<2x128xf32>
    %cst_123 = arith.constant 1.000000e+00 : f32
    %297 = vector.broadcast %cst_123 : f32 to vector<2x128xf32>
    %298 = arith.addf %297, %296 : vector<2x128xf32>
    %299 = arith.divf %297, %298 : vector<2x128xf32>
    %300 = vector.extract_strided_slice %299 {offsets = [0, 0], sizes = [2, 64], strides = [1, 1]} : vector<2x128xf32> to vector<2x64xf32>
    %301 = vector.extract_strided_slice %299 {offsets = [0, 64], sizes = [2, 64], strides = [1, 1]} : vector<2x128xf32> to vector<2x64xf32>
    %302 = vector.extract_strided_slice %293 {offsets = [0, 128], sizes = [2, 64], strides = [1, 1]} : vector<2x256xf32> to vector<2x64xf32>
    %303 = math.tanh %302 : vector<2x64xf32>
    %304 = vector.extract_strided_slice %293 {offsets = [0, 192], sizes = [2, 64], strides = [1, 1]} : vector<2x256xf32> to vector<2x64xf32>
    %305 = arith.negf %304 : vector<2x64xf32>
    %306 = math.exp %305 : vector<2x64xf32>
    %cst_124 = arith.constant 1.000000e+00 : f32
    %307 = vector.broadcast %cst_124 : f32 to vector<2x64xf32>
    %308 = arith.addf %307, %306 : vector<2x64xf32>
    %309 = arith.divf %307, %308 : vector<2x64xf32>
    %310 = arith.mulf %301, %260 : vector<2x64xf32>
    %311 = arith.mulf %300, %303 : vector<2x64xf32>
    %312 = arith.addf %310, %311 : vector<2x64xf32>
    %313 = math.tanh %312 : vector<2x64xf32>
    %314 = arith.mulf %309, %313 : vector<2x64xf32>
    %c8_125 = arith.constant 8 : index
    %c0_126 = arith.constant 0 : index
    %315 = vector.load %arg46[%c8_125, %c0_126] : memref<16x128xf32, #tpu.memory_space<vmem>>, vector<2x64xf32>
    tpu.vector_store %arg46[%c8_125, %c0_126], %314 {strides = array<i32>} : memref<16x128xf32, #tpu.memory_space<vmem>>, vector<2x64xf32>,
    %316 = vector.extract_strided_slice %75 {offsets = [6, 0], sizes = [2, 256], strides = [1, 1]} : vector<16x256xf32> to vector<2x256xf32>
    %317 = arith.truncf %288 : vector<2x64xf32> to vector<2x64xbf16>
    %cst_127 = arith.constant dense<0.000000e+00> : vector<2x256xf32>
    %318 = tpu.matmul %317, %77, %cst_127 {dimension_numbers = #tpu.dot_dimension_numbers<[1], [0], [0], [1], [0, 0, 1, 1], [], []>} : vector<2x64xbf16>, vector<64x256xbf16>, vector<2x256xf32> -> vector<2x256xf32>
    %319 = arith.addf %316, %318 : vector<2x256xf32>
    %320 = vector.extract_strided_slice %319 {offsets = [0, 0], sizes = [2, 128], strides = [1, 1]} : vector<2x256xf32> to vector<2x128xf32>
    %321 = arith.negf %320 : vector<2x128xf32>
    %322 = math.exp %321 : vector<2x128xf32>
    %cst_128 = arith.constant 1.000000e+00 : f32
    %323 = vector.broadcast %cst_128 : f32 to vector<2x128xf32>
    %324 = arith.addf %323, %322 : vector<2x128xf32>
    %325 = arith.divf %323, %324 : vector<2x128xf32>
    %326 = vector.extract_strided_slice %325 {offsets = [0, 0], sizes = [2, 64], strides = [1, 1]} : vector<2x128xf32> to vector<2x64xf32>
    %327 = vector.extract_strided_slice %325 {offsets = [0, 64], sizes = [2, 64], strides = [1, 1]} : vector<2x128xf32> to vector<2x64xf32>
    %328 = vector.extract_strided_slice %319 {offsets = [0, 128], sizes = [2, 64], strides = [1, 1]} : vector<2x256xf32> to vector<2x64xf32>
    %329 = math.tanh %328 : vector<2x64xf32>
    %330 = vector.extract_strided_slice %319 {offsets = [0, 192], sizes = [2, 64], strides = [1, 1]} : vector<2x256xf32> to vector<2x64xf32>
    %331 = arith.negf %330 : vector<2x64xf32>
    %332 = math.exp %331 : vector<2x64xf32>
    %cst_129 = arith.constant 1.000000e+00 : f32
    %333 = vector.broadcast %cst_129 : f32 to vector<2x64xf32>
    %334 = arith.addf %333, %332 : vector<2x64xf32>
    %335 = arith.divf %333, %334 : vector<2x64xf32>
    %336 = arith.mulf %327, %286 : vector<2x64xf32>
    %337 = arith.mulf %326, %329 : vector<2x64xf32>
    %338 = arith.addf %336, %337 : vector<2x64xf32>
    %339 = math.tanh %338 : vector<2x64xf32>
    %340 = arith.mulf %335, %339 : vector<2x64xf32>
    %c6_130 = arith.constant 6 : index
    %c64_131 = arith.constant 64 : index
    %341 = vector.load %arg46[%c6_130, %c64_131] : memref<16x128xf32, #tpu.memory_space<vmem>>, vector<2x64xf32>
    tpu.vector_store %arg46[%c6_130, %c64_131], %340 {strides = array<i32>} : memref<16x128xf32, #tpu.memory_space<vmem>>, vector<2x64xf32>,
    %342 = vector.extract_strided_slice %70 {offsets = [10, 0], sizes = [2, 256], strides = [1, 1]} : vector<16x256xf32> to vector<2x256xf32>
    %343 = arith.truncf %314 : vector<2x64xf32> to vector<2x64xbf16>
    %cst_132 = arith.constant dense<0.000000e+00> : vector<2x256xf32>
    %344 = tpu.matmul %343, %76, %cst_132 {dimension_numbers = #tpu.dot_dimension_numbers<[1], [0], [0], [1], [0, 0, 1, 1], [], []>} : vector<2x64xbf16>, vector<64x256xbf16>, vector<2x256xf32> -> vector<2x256xf32>
    %345 = arith.addf %342, %344 : vector<2x256xf32>
    %346 = vector.extract_strided_slice %345 {offsets = [0, 0], sizes = [2, 128], strides = [1, 1]} : vector<2x256xf32> to vector<2x128xf32>
    %347 = arith.negf %346 : vector<2x128xf32>
    %348 = math.exp %347 : vector<2x128xf32>
    %cst_133 = arith.constant 1.000000e+00 : f32
    %349 = vector.broadcast %cst_133 : f32 to vector<2x128xf32>
    %350 = arith.addf %349, %348 : vector<2x128xf32>
    %351 = arith.divf %349, %350 : vector<2x128xf32>
    %352 = vector.extract_strided_slice %351 {offsets = [0, 0], sizes = [2, 64], strides = [1, 1]} : vector<2x128xf32> to vector<2x64xf32>
    %353 = vector.extract_strided_slice %351 {offsets = [0, 64], sizes = [2, 64], strides = [1, 1]} : vector<2x128xf32> to vector<2x64xf32>
    %354 = vector.extract_strided_slice %345 {offsets = [0, 128], sizes = [2, 64], strides = [1, 1]} : vector<2x256xf32> to vector<2x64xf32>
    %355 = math.tanh %354 : vector<2x64xf32>
    %356 = vector.extract_strided_slice %345 {offsets = [0, 192], sizes = [2, 64], strides = [1, 1]} : vector<2x256xf32> to vector<2x64xf32>
    %357 = arith.negf %356 : vector<2x64xf32>
    %358 = math.exp %357 : vector<2x64xf32>
    %cst_134 = arith.constant 1.000000e+00 : f32
    %359 = vector.broadcast %cst_134 : f32 to vector<2x64xf32>
    %360 = arith.addf %359, %358 : vector<2x64xf32>
    %361 = arith.divf %359, %360 : vector<2x64xf32>
    %362 = arith.mulf %353, %312 : vector<2x64xf32>
    %363 = arith.mulf %352, %355 : vector<2x64xf32>
    %364 = arith.addf %362, %363 : vector<2x64xf32>
    %365 = math.tanh %364 : vector<2x64xf32>
    %366 = arith.mulf %361, %365 : vector<2x64xf32>
    %c10_135 = arith.constant 10 : index
    %c0_136 = arith.constant 0 : index
    %367 = vector.load %arg46[%c10_135, %c0_136] : memref<16x128xf32, #tpu.memory_space<vmem>>, vector<2x64xf32>
    tpu.vector_store %arg46[%c10_135, %c0_136], %366 {strides = array<i32>} : memref<16x128xf32, #tpu.memory_space<vmem>>, vector<2x64xf32>,
    %368 = vector.extract_strided_slice %75 {offsets = [4, 0], sizes = [2, 256], strides = [1, 1]} : vector<16x256xf32> to vector<2x256xf32>
    %369 = arith.truncf %340 : vector<2x64xf32> to vector<2x64xbf16>
    %cst_137 = arith.constant dense<0.000000e+00> : vector<2x256xf32>
    %370 = tpu.matmul %369, %77, %cst_137 {dimension_numbers = #tpu.dot_dimension_numbers<[1], [0], [0], [1], [0, 0, 1, 1], [], []>} : vector<2x64xbf16>, vector<64x256xbf16>, vector<2x256xf32> -> vector<2x256xf32>
    %371 = arith.addf %368, %370 : vector<2x256xf32>
    %372 = vector.extract_strided_slice %371 {offsets = [0, 0], sizes = [2, 128], strides = [1, 1]} : vector<2x256xf32> to vector<2x128xf32>
    %373 = arith.negf %372 : vector<2x128xf32>
    %374 = math.exp %373 : vector<2x128xf32>
    %cst_138 = arith.constant 1.000000e+00 : f32
    %375 = vector.broadcast %cst_138 : f32 to vector<2x128xf32>
    %376 = arith.addf %375, %374 : vector<2x128xf32>
    %377 = arith.divf %375, %376 : vector<2x128xf32>
    %378 = vector.extract_strided_slice %377 {offsets = [0, 0], sizes = [2, 64], strides = [1, 1]} : vector<2x128xf32> to vector<2x64xf32>
    %379 = vector.extract_strided_slice %377 {offsets = [0, 64], sizes = [2, 64], strides = [1, 1]} : vector<2x128xf32> to vector<2x64xf32>
    %380 = vector.extract_strided_slice %371 {offsets = [0, 128], sizes = [2, 64], strides = [1, 1]} : vector<2x256xf32> to vector<2x64xf32>
    %381 = math.tanh %380 : vector<2x64xf32>
    %382 = vector.extract_strided_slice %371 {offsets = [0, 192], sizes = [2, 64], strides = [1, 1]} : vector<2x256xf32> to vector<2x64xf32>
    %383 = arith.negf %382 : vector<2x64xf32>
    %384 = math.exp %383 : vector<2x64xf32>
    %cst_139 = arith.constant 1.000000e+00 : f32
    %385 = vector.broadcast %cst_139 : f32 to vector<2x64xf32>
    %386 = arith.addf %385, %384 : vector<2x64xf32>
    %387 = arith.divf %385, %386 : vector<2x64xf32>
    %388 = arith.mulf %379, %338 : vector<2x64xf32>
    %389 = arith.mulf %378, %381 : vector<2x64xf32>
    %390 = arith.addf %388, %389 : vector<2x64xf32>
    %391 = math.tanh %390 : vector<2x64xf32>
    %392 = arith.mulf %387, %391 : vector<2x64xf32>
    %c4_140 = arith.constant 4 : index
    %c64_141 = arith.constant 64 : index
    %393 = vector.load %arg46[%c4_140, %c64_141] : memref<16x128xf32, #tpu.memory_space<vmem>>, vector<2x64xf32>
    tpu.vector_store %arg46[%c4_140, %c64_141], %392 {strides = array<i32>} : memref<16x128xf32, #tpu.memory_space<vmem>>, vector<2x64xf32>,
    %394 = vector.extract_strided_slice %70 {offsets = [12, 0], sizes = [2, 256], strides = [1, 1]} : vector<16x256xf32> to vector<2x256xf32>
    %395 = arith.truncf %366 : vector<2x64xf32> to vector<2x64xbf16>
    %cst_142 = arith.constant dense<0.000000e+00> : vector<2x256xf32>
    %396 = tpu.matmul %395, %76, %cst_142 {dimension_numbers = #tpu.dot_dimension_numbers<[1], [0], [0], [1], [0, 0, 1, 1], [], []>} : vector<2x64xbf16>, vector<64x256xbf16>, vector<2x256xf32> -> vector<2x256xf32>
    %397 = arith.addf %394, %396 : vector<2x256xf32>
    %398 = vector.extract_strided_slice %397 {offsets = [0, 0], sizes = [2, 128], strides = [1, 1]} : vector<2x256xf32> to vector<2x128xf32>
    %399 = arith.negf %398 : vector<2x128xf32>
    %400 = math.exp %399 : vector<2x128xf32>
    %cst_143 = arith.constant 1.000000e+00 : f32
    %401 = vector.broadcast %cst_143 : f32 to vector<2x128xf32>
    %402 = arith.addf %401, %400 : vector<2x128xf32>
    %403 = arith.divf %401, %402 : vector<2x128xf32>
    %404 = vector.extract_strided_slice %403 {offsets = [0, 0], sizes = [2, 64], strides = [1, 1]} : vector<2x128xf32> to vector<2x64xf32>
    %405 = vector.extract_strided_slice %403 {offsets = [0, 64], sizes = [2, 64], strides = [1, 1]} : vector<2x128xf32> to vector<2x64xf32>
    %406 = vector.extract_strided_slice %397 {offsets = [0, 128], sizes = [2, 64], strides = [1, 1]} : vector<2x256xf32> to vector<2x64xf32>
    %407 = math.tanh %406 : vector<2x64xf32>
    %408 = vector.extract_strided_slice %397 {offsets = [0, 192], sizes = [2, 64], strides = [1, 1]} : vector<2x256xf32> to vector<2x64xf32>
    %409 = arith.negf %408 : vector<2x64xf32>
    %410 = math.exp %409 : vector<2x64xf32>
    %cst_144 = arith.constant 1.000000e+00 : f32
    %411 = vector.broadcast %cst_144 : f32 to vector<2x64xf32>
    %412 = arith.addf %411, %410 : vector<2x64xf32>
    %413 = arith.divf %411, %412 : vector<2x64xf32>
    %414 = arith.mulf %405, %364 : vector<2x64xf32>
    %415 = arith.mulf %404, %407 : vector<2x64xf32>
    %416 = arith.addf %414, %415 : vector<2x64xf32>
    %417 = math.tanh %416 : vector<2x64xf32>
    %418 = arith.mulf %413, %417 : vector<2x64xf32>
    %c12_145 = arith.constant 12 : index
    %c0_146 = arith.constant 0 : index
    %419 = vector.load %arg46[%c12_145, %c0_146] : memref<16x128xf32, #tpu.memory_space<vmem>>, vector<2x64xf32>
    tpu.vector_store %arg46[%c12_145, %c0_146], %418 {strides = array<i32>} : memref<16x128xf32, #tpu.memory_space<vmem>>, vector<2x64xf32>,
    %420 = vector.extract_strided_slice %75 {offsets = [2, 0], sizes = [2, 256], strides = [1, 1]} : vector<16x256xf32> to vector<2x256xf32>
    %421 = arith.truncf %392 : vector<2x64xf32> to vector<2x64xbf16>
    %cst_147 = arith.constant dense<0.000000e+00> : vector<2x256xf32>
    %422 = tpu.matmul %421, %77, %cst_147 {dimension_numbers = #tpu.dot_dimension_numbers<[1], [0], [0], [1], [0, 0, 1, 1], [], []>} : vector<2x64xbf16>, vector<64x256xbf16>, vector<2x256xf32> -> vector<2x256xf32>
    %423 = arith.addf %420, %422 : vector<2x256xf32>
    %424 = vector.extract_strided_slice %423 {offsets = [0, 0], sizes = [2, 128], strides = [1, 1]} : vector<2x256xf32> to vector<2x128xf32>
    %425 = arith.negf %424 : vector<2x128xf32>
    %426 = math.exp %425 : vector<2x128xf32>
    %cst_148 = arith.constant 1.000000e+00 : f32
    %427 = vector.broadcast %cst_148 : f32 to vector<2x128xf32>
    %428 = arith.addf %427, %426 : vector<2x128xf32>
    %429 = arith.divf %427, %428 : vector<2x128xf32>
    %430 = vector.extract_strided_slice %429 {offsets = [0, 0], sizes = [2, 64], strides = [1, 1]} : vector<2x128xf32> to vector<2x64xf32>
    %431 = vector.extract_strided_slice %429 {offsets = [0, 64], sizes = [2, 64], strides = [1, 1]} : vector<2x128xf32> to vector<2x64xf32>
    %432 = vector.extract_strided_slice %423 {offsets = [0, 128], sizes = [2, 64], strides = [1, 1]} : vector<2x256xf32> to vector<2x64xf32>
    %433 = math.tanh %432 : vector<2x64xf32>
    %434 = vector.extract_strided_slice %423 {offsets = [0, 192], sizes = [2, 64], strides = [1, 1]} : vector<2x256xf32> to vector<2x64xf32>
    %435 = arith.negf %434 : vector<2x64xf32>
    %436 = math.exp %435 : vector<2x64xf32>
    %cst_149 = arith.constant 1.000000e+00 : f32
    %437 = vector.broadcast %cst_149 : f32 to vector<2x64xf32>
    %438 = arith.addf %437, %436 : vector<2x64xf32>
    %439 = arith.divf %437, %438 : vector<2x64xf32>
    %440 = arith.mulf %431, %390 : vector<2x64xf32>
    %441 = arith.mulf %430, %433 : vector<2x64xf32>
    %442 = arith.addf %440, %441 : vector<2x64xf32>
    %443 = math.tanh %442 : vector<2x64xf32>
    %444 = arith.mulf %439, %443 : vector<2x64xf32>
    %c2_150 = arith.constant 2 : index
    %c64_151 = arith.constant 64 : index
    %445 = vector.load %arg46[%c2_150, %c64_151] : memref<16x128xf32, #tpu.memory_space<vmem>>, vector<2x64xf32>
    tpu.vector_store %arg46[%c2_150, %c64_151], %444 {strides = array<i32>} : memref<16x128xf32, #tpu.memory_space<vmem>>, vector<2x64xf32>,
    %446 = vector.extract_strided_slice %70 {offsets = [14, 0], sizes = [2, 256], strides = [1, 1]} : vector<16x256xf32> to vector<2x256xf32>
    %447 = arith.truncf %418 : vector<2x64xf32> to vector<2x64xbf16>
    %cst_152 = arith.constant dense<0.000000e+00> : vector<2x256xf32>
    %448 = tpu.matmul %447, %76, %cst_152 {dimension_numbers = #tpu.dot_dimension_numbers<[1], [0], [0], [1], [0, 0, 1, 1], [], []>} : vector<2x64xbf16>, vector<64x256xbf16>, vector<2x256xf32> -> vector<2x256xf32>
    %449 = arith.addf %446, %448 : vector<2x256xf32>
    %450 = vector.extract_strided_slice %449 {offsets = [0, 0], sizes = [2, 128], strides = [1, 1]} : vector<2x256xf32> to vector<2x128xf32>
    %451 = arith.negf %450 : vector<2x128xf32>
    %452 = math.exp %451 : vector<2x128xf32>
    %cst_153 = arith.constant 1.000000e+00 : f32
    %453 = vector.broadcast %cst_153 : f32 to vector<2x128xf32>
    %454 = arith.addf %453, %452 : vector<2x128xf32>
    %455 = arith.divf %453, %454 : vector<2x128xf32>
    %456 = vector.extract_strided_slice %455 {offsets = [0, 0], sizes = [2, 64], strides = [1, 1]} : vector<2x128xf32> to vector<2x64xf32>
    %457 = vector.extract_strided_slice %455 {offsets = [0, 64], sizes = [2, 64], strides = [1, 1]} : vector<2x128xf32> to vector<2x64xf32>
    %458 = vector.extract_strided_slice %449 {offsets = [0, 128], sizes = [2, 64], strides = [1, 1]} : vector<2x256xf32> to vector<2x64xf32>
    %459 = math.tanh %458 : vector<2x64xf32>
    %460 = vector.extract_strided_slice %449 {offsets = [0, 192], sizes = [2, 64], strides = [1, 1]} : vector<2x256xf32> to vector<2x64xf32>
    %461 = arith.negf %460 : vector<2x64xf32>
    %462 = math.exp %461 : vector<2x64xf32>
    %cst_154 = arith.constant 1.000000e+00 : f32
    %463 = vector.broadcast %cst_154 : f32 to vector<2x64xf32>
    %464 = arith.addf %463, %462 : vector<2x64xf32>
    %465 = arith.divf %463, %464 : vector<2x64xf32>
    %466 = arith.mulf %457, %416 : vector<2x64xf32>
    %467 = arith.mulf %456, %459 : vector<2x64xf32>
    %468 = arith.addf %466, %467 : vector<2x64xf32>
    %469 = math.tanh %468 : vector<2x64xf32>
    %470 = arith.mulf %465, %469 : vector<2x64xf32>
    %c14_155 = arith.constant 14 : index
    %c0_156 = arith.constant 0 : index
    %471 = vector.load %arg46[%c14_155, %c0_156] : memref<16x128xf32, #tpu.memory_space<vmem>>, vector<2x64xf32>
    tpu.vector_store %arg46[%c14_155, %c0_156], %470 {strides = array<i32>} : memref<16x128xf32, #tpu.memory_space<vmem>>, vector<2x64xf32>,
    %472 = vector.extract_strided_slice %75 {offsets = [0, 0], sizes = [2, 256], strides = [1, 1]} : vector<16x256xf32> to vector<2x256xf32>
    %473 = arith.truncf %444 : vector<2x64xf32> to vector<2x64xbf16>
    %cst_157 = arith.constant dense<0.000000e+00> : vector<2x256xf32>
    %474 = tpu.matmul %473, %77, %cst_157 {dimension_numbers = #tpu.dot_dimension_numbers<[1], [0], [0], [1], [0, 0, 1, 1], [], []>} : vector<2x64xbf16>, vector<64x256xbf16>, vector<2x256xf32> -> vector<2x256xf32>
    %475 = arith.addf %472, %474 : vector<2x256xf32>
    %476 = vector.extract_strided_slice %475 {offsets = [0, 0], sizes = [2, 128], strides = [1, 1]} : vector<2x256xf32> to vector<2x128xf32>
    %477 = arith.negf %476 : vector<2x128xf32>
    %478 = math.exp %477 : vector<2x128xf32>
    %cst_158 = arith.constant 1.000000e+00 : f32
    %479 = vector.broadcast %cst_158 : f32 to vector<2x128xf32>
    %480 = arith.addf %479, %478 : vector<2x128xf32>
    %481 = arith.divf %479, %480 : vector<2x128xf32>
    %482 = vector.extract_strided_slice %481 {offsets = [0, 0], sizes = [2, 64], strides = [1, 1]} : vector<2x128xf32> to vector<2x64xf32>
    %483 = vector.extract_strided_slice %481 {offsets = [0, 64], sizes = [2, 64], strides = [1, 1]} : vector<2x128xf32> to vector<2x64xf32>
    %484 = vector.extract_strided_slice %475 {offsets = [0, 128], sizes = [2, 64], strides = [1, 1]} : vector<2x256xf32> to vector<2x64xf32>
    %485 = math.tanh %484 : vector<2x64xf32>
    %486 = vector.extract_strided_slice %475 {offsets = [0, 192], sizes = [2, 64], strides = [1, 1]} : vector<2x256xf32> to vector<2x64xf32>
    %487 = arith.negf %486 : vector<2x64xf32>
    %488 = math.exp %487 : vector<2x64xf32>
    %cst_159 = arith.constant 1.000000e+00 : f32
    %489 = vector.broadcast %cst_159 : f32 to vector<2x64xf32>
    %490 = arith.addf %489, %488 : vector<2x64xf32>
    %491 = arith.divf %489, %490 : vector<2x64xf32>
    %492 = arith.mulf %483, %442 : vector<2x64xf32>
    %493 = arith.mulf %482, %485 : vector<2x64xf32>
    %494 = arith.addf %492, %493 : vector<2x64xf32>
    %495 = math.tanh %494 : vector<2x64xf32>
    %496 = arith.mulf %491, %495 : vector<2x64xf32>
    %c0_160 = arith.constant 0 : index
    %c64_161 = arith.constant 64 : index
    %497 = vector.load %arg46[%c0_160, %c64_161] : memref<16x128xf32, #tpu.memory_space<vmem>>, vector<2x64xf32>
    tpu.vector_store %arg46[%c0_160, %c64_161], %496 {strides = array<i32>} : memref<16x128xf32, #tpu.memory_space<vmem>>, vector<2x64xf32>,
    %c0_162 = arith.constant 0 : index
    %c0_163 = arith.constant 0 : index
    %498 = vector.load %arg46[%c0_162, %c0_163] : memref<16x128xf32, #tpu.memory_space<vmem>>, vector<16x128xf32>
    %499 = arith.truncf %498 : vector<16x128xf32> to vector<16x128xbf16>
    %c0_164 = arith.constant 0 : index
    %c0_165 = arith.constant 0 : index
    %500 = vector.load %arg10[%c0_164, %c0_165] : memref<128x256xbf16, #tpu.memory_space<vmem>>, vector<128x256xbf16>
    %cst_166 = arith.constant dense<0.000000e+00> : vector<16x256xf32>
    %501 = tpu.matmul %499, %500, %cst_166 {dimension_numbers = #tpu.dot_dimension_numbers<[1], [0], [0], [1], [0, 0, 1, 1], [], []>} : vector<16x128xbf16>, vector<128x256xbf16>, vector<16x256xf32> -> vector<16x256xf32>
    %c0_167 = arith.constant 0 : index
    %c0_168 = arith.constant 0 : index
    %502 = vector.load %arg12[%c0_167, %c0_168] : memref<1x256xf32, #tpu.memory_space<vmem>>, vector<1x256xf32>
    %503 = vector.broadcast %502 : vector<1x256xf32> to vector<16x256xf32>
    %504 = arith.addf %501, %503 : vector<16x256xf32>
    %c0_169 = arith.constant 0 : index
    %c0_170 = arith.constant 0 : index
    %505 = vector.load %arg13[%c0_169, %c0_170] : memref<128x256xbf16, #tpu.memory_space<vmem>>, vector<128x256xbf16>
    %cst_171 = arith.constant dense<0.000000e+00> : vector<16x256xf32>
    %506 = tpu.matmul %499, %505, %cst_171 {dimension_numbers = #tpu.dot_dimension_numbers<[1], [0], [0], [1], [0, 0, 1, 1], [], []>} : vector<16x128xbf16>, vector<128x256xbf16>, vector<16x256xf32> -> vector<16x256xf32>
    %c0_172 = arith.constant 0 : index
    %c0_173 = arith.constant 0 : index
    %507 = vector.load %arg15[%c0_172, %c0_173] : memref<1x256xf32, #tpu.memory_space<vmem>>, vector<1x256xf32>
    %508 = vector.broadcast %507 : vector<1x256xf32> to vector<16x256xf32>
    %509 = arith.addf %506, %508 : vector<16x256xf32>
    %c0_174 = arith.constant 0 : index
    %c0_175 = arith.constant 0 : index
    %510 = vector.load %arg11[%c0_174, %c0_175] : memref<64x256xbf16, #tpu.memory_space<vmem>>, vector<64x256xbf16>
    %c0_176 = arith.constant 0 : index
    %c0_177 = arith.constant 0 : index
    %511 = vector.load %arg14[%c0_176, %c0_177] : memref<64x256xbf16, #tpu.memory_space<vmem>>, vector<64x256xbf16>
    %cst_178 = arith.constant 0.000000e+00 : f32
    %512 = vector.broadcast %cst_178 : f32 to vector<2x64xf32>
    %cst_179 = arith.constant 0.000000e+00 : f32
    %513 = vector.broadcast %cst_179 : f32 to vector<2x64xf32>
    %cst_180 = arith.constant 0.000000e+00 : f32
    %514 = vector.broadcast %cst_180 : f32 to vector<2x64xf32>
    %cst_181 = arith.constant 0.000000e+00 : f32
    %515 = vector.broadcast %cst_181 : f32 to vector<2x64xf32>
    %516 = vector.extract_strided_slice %504 {offsets = [0, 0], sizes = [2, 256], strides = [1, 1]} : vector<16x256xf32> to vector<2x256xf32>
    %517 = arith.truncf %512 : vector<2x64xf32> to vector<2x64xbf16>
    %cst_182 = arith.constant dense<0.000000e+00> : vector<2x256xf32>
    %518 = tpu.matmul %517, %510, %cst_182 {dimension_numbers = #tpu.dot_dimension_numbers<[1], [0], [0], [1], [0, 0, 1, 1], [], []>} : vector<2x64xbf16>, vector<64x256xbf16>, vector<2x256xf32> -> vector<2x256xf32>
    %519 = arith.addf %516, %518 : vector<2x256xf32>
    %520 = vector.extract_strided_slice %519 {offsets = [0, 0], sizes = [2, 128], strides = [1, 1]} : vector<2x256xf32> to vector<2x128xf32>
    %521 = arith.negf %520 : vector<2x128xf32>
    %522 = math.exp %521 : vector<2x128xf32>
    %cst_183 = arith.constant 1.000000e+00 : f32
    %523 = vector.broadcast %cst_183 : f32 to vector<2x128xf32>
    %524 = arith.addf %523, %522 : vector<2x128xf32>
    %525 = arith.divf %523, %524 : vector<2x128xf32>
    %526 = vector.extract_strided_slice %525 {offsets = [0, 0], sizes = [2, 64], strides = [1, 1]} : vector<2x128xf32> to vector<2x64xf32>
    %527 = vector.extract_strided_slice %525 {offsets = [0, 64], sizes = [2, 64], strides = [1, 1]} : vector<2x128xf32> to vector<2x64xf32>
    %528 = vector.extract_strided_slice %519 {offsets = [0, 128], sizes = [2, 64], strides = [1, 1]} : vector<2x256xf32> to vector<2x64xf32>
    %529 = math.tanh %528 : vector<2x64xf32>
    %530 = vector.extract_strided_slice %519 {offsets = [0, 192], sizes = [2, 64], strides = [1, 1]} : vector<2x256xf32> to vector<2x64xf32>
    %531 = arith.negf %530 : vector<2x64xf32>
    %532 = math.exp %531 : vector<2x64xf32>
    %cst_184 = arith.constant 1.000000e+00 : f32
    %533 = vector.broadcast %cst_184 : f32 to vector<2x64xf32>
    %534 = arith.addf %533, %532 : vector<2x64xf32>
    %535 = arith.divf %533, %534 : vector<2x64xf32>
    %536 = arith.mulf %527, %513 : vector<2x64xf32>
    %537 = arith.mulf %526, %529 : vector<2x64xf32>
    %538 = arith.addf %536, %537 : vector<2x64xf32>
    %539 = math.tanh %538 : vector<2x64xf32>
    %540 = arith.mulf %535, %539 : vector<2x64xf32>
    %c0_185 = arith.constant 0 : index
    %c0_186 = arith.constant 0 : index
    %541 = vector.load %arg46[%c0_185, %c0_186] : memref<16x128xf32, #tpu.memory_space<vmem>>, vector<2x64xf32>
    tpu.vector_store %arg46[%c0_185, %c0_186], %540 {strides = array<i32>} : memref<16x128xf32, #tpu.memory_space<vmem>>, vector<2x64xf32>,
    %542 = vector.extract_strided_slice %509 {offsets = [14, 0], sizes = [2, 256], strides = [1, 1]} : vector<16x256xf32> to vector<2x256xf32>
    %543 = arith.truncf %514 : vector<2x64xf32> to vector<2x64xbf16>
    %cst_187 = arith.constant dense<0.000000e+00> : vector<2x256xf32>
    %544 = tpu.matmul %543, %511, %cst_187 {dimension_numbers = #tpu.dot_dimension_numbers<[1], [0], [0], [1], [0, 0, 1, 1], [], []>} : vector<2x64xbf16>, vector<64x256xbf16>, vector<2x256xf32> -> vector<2x256xf32>
    %545 = arith.addf %542, %544 : vector<2x256xf32>
    %546 = vector.extract_strided_slice %545 {offsets = [0, 0], sizes = [2, 128], strides = [1, 1]} : vector<2x256xf32> to vector<2x128xf32>
    %547 = arith.negf %546 : vector<2x128xf32>
    %548 = math.exp %547 : vector<2x128xf32>
    %cst_188 = arith.constant 1.000000e+00 : f32
    %549 = vector.broadcast %cst_188 : f32 to vector<2x128xf32>
    %550 = arith.addf %549, %548 : vector<2x128xf32>
    %551 = arith.divf %549, %550 : vector<2x128xf32>
    %552 = vector.extract_strided_slice %551 {offsets = [0, 0], sizes = [2, 64], strides = [1, 1]} : vector<2x128xf32> to vector<2x64xf32>
    %553 = vector.extract_strided_slice %551 {offsets = [0, 64], sizes = [2, 64], strides = [1, 1]} : vector<2x128xf32> to vector<2x64xf32>
    %554 = vector.extract_strided_slice %545 {offsets = [0, 128], sizes = [2, 64], strides = [1, 1]} : vector<2x256xf32> to vector<2x64xf32>
    %555 = math.tanh %554 : vector<2x64xf32>
    %556 = vector.extract_strided_slice %545 {offsets = [0, 192], sizes = [2, 64], strides = [1, 1]} : vector<2x256xf32> to vector<2x64xf32>
    %557 = arith.negf %556 : vector<2x64xf32>
    %558 = math.exp %557 : vector<2x64xf32>
    %cst_189 = arith.constant 1.000000e+00 : f32
    %559 = vector.broadcast %cst_189 : f32 to vector<2x64xf32>
    %560 = arith.addf %559, %558 : vector<2x64xf32>
    %561 = arith.divf %559, %560 : vector<2x64xf32>
    %562 = arith.mulf %553, %515 : vector<2x64xf32>
    %563 = arith.mulf %552, %555 : vector<2x64xf32>
    %564 = arith.addf %562, %563 : vector<2x64xf32>
    %565 = math.tanh %564 : vector<2x64xf32>
    %566 = arith.mulf %561, %565 : vector<2x64xf32>
    %c14_190 = arith.constant 14 : index
    %c64_191 = arith.constant 64 : index
    %567 = vector.load %arg46[%c14_190, %c64_191] : memref<16x128xf32, #tpu.memory_space<vmem>>, vector<2x64xf32>
    tpu.vector_store %arg46[%c14_190, %c64_191], %566 {strides = array<i32>} : memref<16x128xf32, #tpu.memory_space<vmem>>, vector<2x64xf32>,
    %568 = vector.extract_strided_slice %504 {offsets = [2, 0], sizes = [2, 256], strides = [1, 1]} : vector<16x256xf32> to vector<2x256xf32>
    %569 = arith.truncf %540 : vector<2x64xf32> to vector<2x64xbf16>
    %cst_192 = arith.constant dense<0.000000e+00> : vector<2x256xf32>
    %570 = tpu.matmul %569, %510, %cst_192 {dimension_numbers = #tpu.dot_dimension_numbers<[1], [0], [0], [1], [0, 0, 1, 1], [], []>} : vector<2x64xbf16>, vector<64x256xbf16>, vector<2x256xf32> -> vector<2x256xf32>
    %571 = arith.addf %568, %570 : vector<2x256xf32>
    %572 = vector.extract_strided_slice %571 {offsets = [0, 0], sizes = [2, 128], strides = [1, 1]} : vector<2x256xf32> to vector<2x128xf32>
    %573 = arith.negf %572 : vector<2x128xf32>
    %574 = math.exp %573 : vector<2x128xf32>
    %cst_193 = arith.constant 1.000000e+00 : f32
    %575 = vector.broadcast %cst_193 : f32 to vector<2x128xf32>
    %576 = arith.addf %575, %574 : vector<2x128xf32>
    %577 = arith.divf %575, %576 : vector<2x128xf32>
    %578 = vector.extract_strided_slice %577 {offsets = [0, 0], sizes = [2, 64], strides = [1, 1]} : vector<2x128xf32> to vector<2x64xf32>
    %579 = vector.extract_strided_slice %577 {offsets = [0, 64], sizes = [2, 64], strides = [1, 1]} : vector<2x128xf32> to vector<2x64xf32>
    %580 = vector.extract_strided_slice %571 {offsets = [0, 128], sizes = [2, 64], strides = [1, 1]} : vector<2x256xf32> to vector<2x64xf32>
    %581 = math.tanh %580 : vector<2x64xf32>
    %582 = vector.extract_strided_slice %571 {offsets = [0, 192], sizes = [2, 64], strides = [1, 1]} : vector<2x256xf32> to vector<2x64xf32>
    %583 = arith.negf %582 : vector<2x64xf32>
    %584 = math.exp %583 : vector<2x64xf32>
    %cst_194 = arith.constant 1.000000e+00 : f32
    %585 = vector.broadcast %cst_194 : f32 to vector<2x64xf32>
    %586 = arith.addf %585, %584 : vector<2x64xf32>
    %587 = arith.divf %585, %586 : vector<2x64xf32>
    %588 = arith.mulf %579, %538 : vector<2x64xf32>
    %589 = arith.mulf %578, %581 : vector<2x64xf32>
    %590 = arith.addf %588, %589 : vector<2x64xf32>
    %591 = math.tanh %590 : vector<2x64xf32>
    %592 = arith.mulf %587, %591 : vector<2x64xf32>
    %c2_195 = arith.constant 2 : index
    %c0_196 = arith.constant 0 : index
    %593 = vector.load %arg46[%c2_195, %c0_196] : memref<16x128xf32, #tpu.memory_space<vmem>>, vector<2x64xf32>
    tpu.vector_store %arg46[%c2_195, %c0_196], %592 {strides = array<i32>} : memref<16x128xf32, #tpu.memory_space<vmem>>, vector<2x64xf32>,
    %594 = vector.extract_strided_slice %509 {offsets = [12, 0], sizes = [2, 256], strides = [1, 1]} : vector<16x256xf32> to vector<2x256xf32>
    %595 = arith.truncf %566 : vector<2x64xf32> to vector<2x64xbf16>
    %cst_197 = arith.constant dense<0.000000e+00> : vector<2x256xf32>
    %596 = tpu.matmul %595, %511, %cst_197 {dimension_numbers = #tpu.dot_dimension_numbers<[1], [0], [0], [1], [0, 0, 1, 1], [], []>} : vector<2x64xbf16>, vector<64x256xbf16>, vector<2x256xf32> -> vector<2x256xf32>
    %597 = arith.addf %594, %596 : vector<2x256xf32>
    %598 = vector.extract_strided_slice %597 {offsets = [0, 0], sizes = [2, 128], strides = [1, 1]} : vector<2x256xf32> to vector<2x128xf32>
    %599 = arith.negf %598 : vector<2x128xf32>
    %600 = math.exp %599 : vector<2x128xf32>
    %cst_198 = arith.constant 1.000000e+00 : f32
    %601 = vector.broadcast %cst_198 : f32 to vector<2x128xf32>
    %602 = arith.addf %601, %600 : vector<2x128xf32>
    %603 = arith.divf %601, %602 : vector<2x128xf32>
    %604 = vector.extract_strided_slice %603 {offsets = [0, 0], sizes = [2, 64], strides = [1, 1]} : vector<2x128xf32> to vector<2x64xf32>
    %605 = vector.extract_strided_slice %603 {offsets = [0, 64], sizes = [2, 64], strides = [1, 1]} : vector<2x128xf32> to vector<2x64xf32>
    %606 = vector.extract_strided_slice %597 {offsets = [0, 128], sizes = [2, 64], strides = [1, 1]} : vector<2x256xf32> to vector<2x64xf32>
    %607 = math.tanh %606 : vector<2x64xf32>
    %608 = vector.extract_strided_slice %597 {offsets = [0, 192], sizes = [2, 64], strides = [1, 1]} : vector<2x256xf32> to vector<2x64xf32>
    %609 = arith.negf %608 : vector<2x64xf32>
    %610 = math.exp %609 : vector<2x64xf32>
    %cst_199 = arith.constant 1.000000e+00 : f32
    %611 = vector.broadcast %cst_199 : f32 to vector<2x64xf32>
    %612 = arith.addf %611, %610 : vector<2x64xf32>
    %613 = arith.divf %611, %612 : vector<2x64xf32>
    %614 = arith.mulf %605, %564 : vector<2x64xf32>
    %615 = arith.mulf %604, %607 : vector<2x64xf32>
    %616 = arith.addf %614, %615 : vector<2x64xf32>
    %617 = math.tanh %616 : vector<2x64xf32>
    %618 = arith.mulf %613, %617 : vector<2x64xf32>
    %c12_200 = arith.constant 12 : index
    %c64_201 = arith.constant 64 : index
    %619 = vector.load %arg46[%c12_200, %c64_201] : memref<16x128xf32, #tpu.memory_space<vmem>>, vector<2x64xf32>
    tpu.vector_store %arg46[%c12_200, %c64_201], %618 {strides = array<i32>} : memref<16x128xf32, #tpu.memory_space<vmem>>, vector<2x64xf32>,
    %620 = vector.extract_strided_slice %504 {offsets = [4, 0], sizes = [2, 256], strides = [1, 1]} : vector<16x256xf32> to vector<2x256xf32>
    %621 = arith.truncf %592 : vector<2x64xf32> to vector<2x64xbf16>
    %cst_202 = arith.constant dense<0.000000e+00> : vector<2x256xf32>
    %622 = tpu.matmul %621, %510, %cst_202 {dimension_numbers = #tpu.dot_dimension_numbers<[1], [0], [0], [1], [0, 0, 1, 1], [], []>} : vector<2x64xbf16>, vector<64x256xbf16>, vector<2x256xf32> -> vector<2x256xf32>
    %623 = arith.addf %620, %622 : vector<2x256xf32>
    %624 = vector.extract_strided_slice %623 {offsets = [0, 0], sizes = [2, 128], strides = [1, 1]} : vector<2x256xf32> to vector<2x128xf32>
    %625 = arith.negf %624 : vector<2x128xf32>
    %626 = math.exp %625 : vector<2x128xf32>
    %cst_203 = arith.constant 1.000000e+00 : f32
    %627 = vector.broadcast %cst_203 : f32 to vector<2x128xf32>
    %628 = arith.addf %627, %626 : vector<2x128xf32>
    %629 = arith.divf %627, %628 : vector<2x128xf32>
    %630 = vector.extract_strided_slice %629 {offsets = [0, 0], sizes = [2, 64], strides = [1, 1]} : vector<2x128xf32> to vector<2x64xf32>
    %631 = vector.extract_strided_slice %629 {offsets = [0, 64], sizes = [2, 64], strides = [1, 1]} : vector<2x128xf32> to vector<2x64xf32>
    %632 = vector.extract_strided_slice %623 {offsets = [0, 128], sizes = [2, 64], strides = [1, 1]} : vector<2x256xf32> to vector<2x64xf32>
    %633 = math.tanh %632 : vector<2x64xf32>
    %634 = vector.extract_strided_slice %623 {offsets = [0, 192], sizes = [2, 64], strides = [1, 1]} : vector<2x256xf32> to vector<2x64xf32>
    %635 = arith.negf %634 : vector<2x64xf32>
    %636 = math.exp %635 : vector<2x64xf32>
    %cst_204 = arith.constant 1.000000e+00 : f32
    %637 = vector.broadcast %cst_204 : f32 to vector<2x64xf32>
    %638 = arith.addf %637, %636 : vector<2x64xf32>
    %639 = arith.divf %637, %638 : vector<2x64xf32>
    %640 = arith.mulf %631, %590 : vector<2x64xf32>
    %641 = arith.mulf %630, %633 : vector<2x64xf32>
    %642 = arith.addf %640, %641 : vector<2x64xf32>
    %643 = math.tanh %642 : vector<2x64xf32>
    %644 = arith.mulf %639, %643 : vector<2x64xf32>
    %c4_205 = arith.constant 4 : index
    %c0_206 = arith.constant 0 : index
    %645 = vector.load %arg46[%c4_205, %c0_206] : memref<16x128xf32, #tpu.memory_space<vmem>>, vector<2x64xf32>
    tpu.vector_store %arg46[%c4_205, %c0_206], %644 {strides = array<i32>} : memref<16x128xf32, #tpu.memory_space<vmem>>, vector<2x64xf32>,
    %646 = vector.extract_strided_slice %509 {offsets = [10, 0], sizes = [2, 256], strides = [1, 1]} : vector<16x256xf32> to vector<2x256xf32>
    %647 = arith.truncf %618 : vector<2x64xf32> to vector<2x64xbf16>
    %cst_207 = arith.constant dense<0.000000e+00> : vector<2x256xf32>
    %648 = tpu.matmul %647, %511, %cst_207 {dimension_numbers = #tpu.dot_dimension_numbers<[1], [0], [0], [1], [0, 0, 1, 1], [], []>} : vector<2x64xbf16>, vector<64x256xbf16>, vector<2x256xf32> -> vector<2x256xf32>
    %649 = arith.addf %646, %648 : vector<2x256xf32>
    %650 = vector.extract_strided_slice %649 {offsets = [0, 0], sizes = [2, 128], strides = [1, 1]} : vector<2x256xf32> to vector<2x128xf32>
    %651 = arith.negf %650 : vector<2x128xf32>
    %652 = math.exp %651 : vector<2x128xf32>
    %cst_208 = arith.constant 1.000000e+00 : f32
    %653 = vector.broadcast %cst_208 : f32 to vector<2x128xf32>
    %654 = arith.addf %653, %652 : vector<2x128xf32>
    %655 = arith.divf %653, %654 : vector<2x128xf32>
    %656 = vector.extract_strided_slice %655 {offsets = [0, 0], sizes = [2, 64], strides = [1, 1]} : vector<2x128xf32> to vector<2x64xf32>
    %657 = vector.extract_strided_slice %655 {offsets = [0, 64], sizes = [2, 64], strides = [1, 1]} : vector<2x128xf32> to vector<2x64xf32>
    %658 = vector.extract_strided_slice %649 {offsets = [0, 128], sizes = [2, 64], strides = [1, 1]} : vector<2x256xf32> to vector<2x64xf32>
    %659 = math.tanh %658 : vector<2x64xf32>
    %660 = vector.extract_strided_slice %649 {offsets = [0, 192], sizes = [2, 64], strides = [1, 1]} : vector<2x256xf32> to vector<2x64xf32>
    %661 = arith.negf %660 : vector<2x64xf32>
    %662 = math.exp %661 : vector<2x64xf32>
    %cst_209 = arith.constant 1.000000e+00 : f32
    %663 = vector.broadcast %cst_209 : f32 to vector<2x64xf32>
    %664 = arith.addf %663, %662 : vector<2x64xf32>
    %665 = arith.divf %663, %664 : vector<2x64xf32>
    %666 = arith.mulf %657, %616 : vector<2x64xf32>
    %667 = arith.mulf %656, %659 : vector<2x64xf32>
    %668 = arith.addf %666, %667 : vector<2x64xf32>
    %669 = math.tanh %668 : vector<2x64xf32>
    %670 = arith.mulf %665, %669 : vector<2x64xf32>
    %c10_210 = arith.constant 10 : index
    %c64_211 = arith.constant 64 : index
    %671 = vector.load %arg46[%c10_210, %c64_211] : memref<16x128xf32, #tpu.memory_space<vmem>>, vector<2x64xf32>
    tpu.vector_store %arg46[%c10_210, %c64_211], %670 {strides = array<i32>} : memref<16x128xf32, #tpu.memory_space<vmem>>, vector<2x64xf32>,
    %672 = vector.extract_strided_slice %504 {offsets = [6, 0], sizes = [2, 256], strides = [1, 1]} : vector<16x256xf32> to vector<2x256xf32>
    %673 = arith.truncf %644 : vector<2x64xf32> to vector<2x64xbf16>
    %cst_212 = arith.constant dense<0.000000e+00> : vector<2x256xf32>
    %674 = tpu.matmul %673, %510, %cst_212 {dimension_numbers = #tpu.dot_dimension_numbers<[1], [0], [0], [1], [0, 0, 1, 1], [], []>} : vector<2x64xbf16>, vector<64x256xbf16>, vector<2x256xf32> -> vector<2x256xf32>
    %675 = arith.addf %672, %674 : vector<2x256xf32>
    %676 = vector.extract_strided_slice %675 {offsets = [0, 0], sizes = [2, 128], strides = [1, 1]} : vector<2x256xf32> to vector<2x128xf32>
    %677 = arith.negf %676 : vector<2x128xf32>
    %678 = math.exp %677 : vector<2x128xf32>
    %cst_213 = arith.constant 1.000000e+00 : f32
    %679 = vector.broadcast %cst_213 : f32 to vector<2x128xf32>
    %680 = arith.addf %679, %678 : vector<2x128xf32>
    %681 = arith.divf %679, %680 : vector<2x128xf32>
    %682 = vector.extract_strided_slice %681 {offsets = [0, 0], sizes = [2, 64], strides = [1, 1]} : vector<2x128xf32> to vector<2x64xf32>
    %683 = vector.extract_strided_slice %681 {offsets = [0, 64], sizes = [2, 64], strides = [1, 1]} : vector<2x128xf32> to vector<2x64xf32>
    %684 = vector.extract_strided_slice %675 {offsets = [0, 128], sizes = [2, 64], strides = [1, 1]} : vector<2x256xf32> to vector<2x64xf32>
    %685 = math.tanh %684 : vector<2x64xf32>
    %686 = vector.extract_strided_slice %675 {offsets = [0, 192], sizes = [2, 64], strides = [1, 1]} : vector<2x256xf32> to vector<2x64xf32>
    %687 = arith.negf %686 : vector<2x64xf32>
    %688 = math.exp %687 : vector<2x64xf32>
    %cst_214 = arith.constant 1.000000e+00 : f32
    %689 = vector.broadcast %cst_214 : f32 to vector<2x64xf32>
    %690 = arith.addf %689, %688 : vector<2x64xf32>
    %691 = arith.divf %689, %690 : vector<2x64xf32>
    %692 = arith.mulf %683, %642 : vector<2x64xf32>
    %693 = arith.mulf %682, %685 : vector<2x64xf32>
    %694 = arith.addf %692, %693 : vector<2x64xf32>
    %695 = math.tanh %694 : vector<2x64xf32>
    %696 = arith.mulf %691, %695 : vector<2x64xf32>
    %c6_215 = arith.constant 6 : index
    %c0_216 = arith.constant 0 : index
    %697 = vector.load %arg46[%c6_215, %c0_216] : memref<16x128xf32, #tpu.memory_space<vmem>>, vector<2x64xf32>
    tpu.vector_store %arg46[%c6_215, %c0_216], %696 {strides = array<i32>} : memref<16x128xf32, #tpu.memory_space<vmem>>, vector<2x64xf32>,
    %698 = vector.extract_strided_slice %509 {offsets = [8, 0], sizes = [2, 256], strides = [1, 1]} : vector<16x256xf32> to vector<2x256xf32>
    %699 = arith.truncf %670 : vector<2x64xf32> to vector<2x64xbf16>
    %cst_217 = arith.constant dense<0.000000e+00> : vector<2x256xf32>
    %700 = tpu.matmul %699, %511, %cst_217 {dimension_numbers = #tpu.dot_dimension_numbers<[1], [0], [0], [1], [0, 0, 1, 1], [], []>} : vector<2x64xbf16>, vector<64x256xbf16>, vector<2x256xf32> -> vector<2x256xf32>
    %701 = arith.addf %698, %700 : vector<2x256xf32>
    %702 = vector.extract_strided_slice %701 {offsets = [0, 0], sizes = [2, 128], strides = [1, 1]} : vector<2x256xf32> to vector<2x128xf32>
    %703 = arith.negf %702 : vector<2x128xf32>
    %704 = math.exp %703 : vector<2x128xf32>
    %cst_218 = arith.constant 1.000000e+00 : f32
    %705 = vector.broadcast %cst_218 : f32 to vector<2x128xf32>
    %706 = arith.addf %705, %704 : vector<2x128xf32>
    %707 = arith.divf %705, %706 : vector<2x128xf32>
    %708 = vector.extract_strided_slice %707 {offsets = [0, 0], sizes = [2, 64], strides = [1, 1]} : vector<2x128xf32> to vector<2x64xf32>
    %709 = vector.extract_strided_slice %707 {offsets = [0, 64], sizes = [2, 64], strides = [1, 1]} : vector<2x128xf32> to vector<2x64xf32>
    %710 = vector.extract_strided_slice %701 {offsets = [0, 128], sizes = [2, 64], strides = [1, 1]} : vector<2x256xf32> to vector<2x64xf32>
    %711 = math.tanh %710 : vector<2x64xf32>
    %712 = vector.extract_strided_slice %701 {offsets = [0, 192], sizes = [2, 64], strides = [1, 1]} : vector<2x256xf32> to vector<2x64xf32>
    %713 = arith.negf %712 : vector<2x64xf32>
    %714 = math.exp %713 : vector<2x64xf32>
    %cst_219 = arith.constant 1.000000e+00 : f32
    %715 = vector.broadcast %cst_219 : f32 to vector<2x64xf32>
    %716 = arith.addf %715, %714 : vector<2x64xf32>
    %717 = arith.divf %715, %716 : vector<2x64xf32>
    %718 = arith.mulf %709, %668 : vector<2x64xf32>
    %719 = arith.mulf %708, %711 : vector<2x64xf32>
    %720 = arith.addf %718, %719 : vector<2x64xf32>
    %721 = math.tanh %720 : vector<2x64xf32>
    %722 = arith.mulf %717, %721 : vector<2x64xf32>
    %c8_220 = arith.constant 8 : index
    %c64_221 = arith.constant 64 : index
    %723 = vector.load %arg46[%c8_220, %c64_221] : memref<16x128xf32, #tpu.memory_space<vmem>>, vector<2x64xf32>
    tpu.vector_store %arg46[%c8_220, %c64_221], %722 {strides = array<i32>} : memref<16x128xf32, #tpu.memory_space<vmem>>, vector<2x64xf32>,
    %724 = vector.extract_strided_slice %504 {offsets = [8, 0], sizes = [2, 256], strides = [1, 1]} : vector<16x256xf32> to vector<2x256xf32>
    %725 = arith.truncf %696 : vector<2x64xf32> to vector<2x64xbf16>
    %cst_222 = arith.constant dense<0.000000e+00> : vector<2x256xf32>
    %726 = tpu.matmul %725, %510, %cst_222 {dimension_numbers = #tpu.dot_dimension_numbers<[1], [0], [0], [1], [0, 0, 1, 1], [], []>} : vector<2x64xbf16>, vector<64x256xbf16>, vector<2x256xf32> -> vector<2x256xf32>
    %727 = arith.addf %724, %726 : vector<2x256xf32>
    %728 = vector.extract_strided_slice %727 {offsets = [0, 0], sizes = [2, 128], strides = [1, 1]} : vector<2x256xf32> to vector<2x128xf32>
    %729 = arith.negf %728 : vector<2x128xf32>
    %730 = math.exp %729 : vector<2x128xf32>
    %cst_223 = arith.constant 1.000000e+00 : f32
    %731 = vector.broadcast %cst_223 : f32 to vector<2x128xf32>
    %732 = arith.addf %731, %730 : vector<2x128xf32>
    %733 = arith.divf %731, %732 : vector<2x128xf32>
    %734 = vector.extract_strided_slice %733 {offsets = [0, 0], sizes = [2, 64], strides = [1, 1]} : vector<2x128xf32> to vector<2x64xf32>
    %735 = vector.extract_strided_slice %733 {offsets = [0, 64], sizes = [2, 64], strides = [1, 1]} : vector<2x128xf32> to vector<2x64xf32>
    %736 = vector.extract_strided_slice %727 {offsets = [0, 128], sizes = [2, 64], strides = [1, 1]} : vector<2x256xf32> to vector<2x64xf32>
    %737 = math.tanh %736 : vector<2x64xf32>
    %738 = vector.extract_strided_slice %727 {offsets = [0, 192], sizes = [2, 64], strides = [1, 1]} : vector<2x256xf32> to vector<2x64xf32>
    %739 = arith.negf %738 : vector<2x64xf32>
    %740 = math.exp %739 : vector<2x64xf32>
    %cst_224 = arith.constant 1.000000e+00 : f32
    %741 = vector.broadcast %cst_224 : f32 to vector<2x64xf32>
    %742 = arith.addf %741, %740 : vector<2x64xf32>
    %743 = arith.divf %741, %742 : vector<2x64xf32>
    %744 = arith.mulf %735, %694 : vector<2x64xf32>
    %745 = arith.mulf %734, %737 : vector<2x64xf32>
    %746 = arith.addf %744, %745 : vector<2x64xf32>
    %747 = math.tanh %746 : vector<2x64xf32>
    %748 = arith.mulf %743, %747 : vector<2x64xf32>
    %c8_225 = arith.constant 8 : index
    %c0_226 = arith.constant 0 : index
    %749 = vector.load %arg46[%c8_225, %c0_226] : memref<16x128xf32, #tpu.memory_space<vmem>>, vector<2x64xf32>
    tpu.vector_store %arg46[%c8_225, %c0_226], %748 {strides = array<i32>} : memref<16x128xf32, #tpu.memory_space<vmem>>, vector<2x64xf32>,
    %750 = vector.extract_strided_slice %509 {offsets = [6, 0], sizes = [2, 256], strides = [1, 1]} : vector<16x256xf32> to vector<2x256xf32>
    %751 = arith.truncf %722 : vector<2x64xf32> to vector<2x64xbf16>
    %cst_227 = arith.constant dense<0.000000e+00> : vector<2x256xf32>
    %752 = tpu.matmul %751, %511, %cst_227 {dimension_numbers = #tpu.dot_dimension_numbers<[1], [0], [0], [1], [0, 0, 1, 1], [], []>} : vector<2x64xbf16>, vector<64x256xbf16>, vector<2x256xf32> -> vector<2x256xf32>
    %753 = arith.addf %750, %752 : vector<2x256xf32>
    %754 = vector.extract_strided_slice %753 {offsets = [0, 0], sizes = [2, 128], strides = [1, 1]} : vector<2x256xf32> to vector<2x128xf32>
    %755 = arith.negf %754 : vector<2x128xf32>
    %756 = math.exp %755 : vector<2x128xf32>
    %cst_228 = arith.constant 1.000000e+00 : f32
    %757 = vector.broadcast %cst_228 : f32 to vector<2x128xf32>
    %758 = arith.addf %757, %756 : vector<2x128xf32>
    %759 = arith.divf %757, %758 : vector<2x128xf32>
    %760 = vector.extract_strided_slice %759 {offsets = [0, 0], sizes = [2, 64], strides = [1, 1]} : vector<2x128xf32> to vector<2x64xf32>
    %761 = vector.extract_strided_slice %759 {offsets = [0, 64], sizes = [2, 64], strides = [1, 1]} : vector<2x128xf32> to vector<2x64xf32>
    %762 = vector.extract_strided_slice %753 {offsets = [0, 128], sizes = [2, 64], strides = [1, 1]} : vector<2x256xf32> to vector<2x64xf32>
    %763 = math.tanh %762 : vector<2x64xf32>
    %764 = vector.extract_strided_slice %753 {offsets = [0, 192], sizes = [2, 64], strides = [1, 1]} : vector<2x256xf32> to vector<2x64xf32>
    %765 = arith.negf %764 : vector<2x64xf32>
    %766 = math.exp %765 : vector<2x64xf32>
    %cst_229 = arith.constant 1.000000e+00 : f32
    %767 = vector.broadcast %cst_229 : f32 to vector<2x64xf32>
    %768 = arith.addf %767, %766 : vector<2x64xf32>
    %769 = arith.divf %767, %768 : vector<2x64xf32>
    %770 = arith.mulf %761, %720 : vector<2x64xf32>
    %771 = arith.mulf %760, %763 : vector<2x64xf32>
    %772 = arith.addf %770, %771 : vector<2x64xf32>
    %773 = math.tanh %772 : vector<2x64xf32>
    %774 = arith.mulf %769, %773 : vector<2x64xf32>
    %c6_230 = arith.constant 6 : index
    %c64_231 = arith.constant 64 : index
    %775 = vector.load %arg46[%c6_230, %c64_231] : memref<16x128xf32, #tpu.memory_space<vmem>>, vector<2x64xf32>
    tpu.vector_store %arg46[%c6_230, %c64_231], %774 {strides = array<i32>} : memref<16x128xf32, #tpu.memory_space<vmem>>, vector<2x64xf32>,
    %776 = vector.extract_strided_slice %504 {offsets = [10, 0], sizes = [2, 256], strides = [1, 1]} : vector<16x256xf32> to vector<2x256xf32>
    %777 = arith.truncf %748 : vector<2x64xf32> to vector<2x64xbf16>
    %cst_232 = arith.constant dense<0.000000e+00> : vector<2x256xf32>
    %778 = tpu.matmul %777, %510, %cst_232 {dimension_numbers = #tpu.dot_dimension_numbers<[1], [0], [0], [1], [0, 0, 1, 1], [], []>} : vector<2x64xbf16>, vector<64x256xbf16>, vector<2x256xf32> -> vector<2x256xf32>
    %779 = arith.addf %776, %778 : vector<2x256xf32>
    %780 = vector.extract_strided_slice %779 {offsets = [0, 0], sizes = [2, 128], strides = [1, 1]} : vector<2x256xf32> to vector<2x128xf32>
    %781 = arith.negf %780 : vector<2x128xf32>
    %782 = math.exp %781 : vector<2x128xf32>
    %cst_233 = arith.constant 1.000000e+00 : f32
    %783 = vector.broadcast %cst_233 : f32 to vector<2x128xf32>
    %784 = arith.addf %783, %782 : vector<2x128xf32>
    %785 = arith.divf %783, %784 : vector<2x128xf32>
    %786 = vector.extract_strided_slice %785 {offsets = [0, 0], sizes = [2, 64], strides = [1, 1]} : vector<2x128xf32> to vector<2x64xf32>
    %787 = vector.extract_strided_slice %785 {offsets = [0, 64], sizes = [2, 64], strides = [1, 1]} : vector<2x128xf32> to vector<2x64xf32>
    %788 = vector.extract_strided_slice %779 {offsets = [0, 128], sizes = [2, 64], strides = [1, 1]} : vector<2x256xf32> to vector<2x64xf32>
    %789 = math.tanh %788 : vector<2x64xf32>
    %790 = vector.extract_strided_slice %779 {offsets = [0, 192], sizes = [2, 64], strides = [1, 1]} : vector<2x256xf32> to vector<2x64xf32>
    %791 = arith.negf %790 : vector<2x64xf32>
    %792 = math.exp %791 : vector<2x64xf32>
    %cst_234 = arith.constant 1.000000e+00 : f32
    %793 = vector.broadcast %cst_234 : f32 to vector<2x64xf32>
    %794 = arith.addf %793, %792 : vector<2x64xf32>
    %795 = arith.divf %793, %794 : vector<2x64xf32>
    %796 = arith.mulf %787, %746 : vector<2x64xf32>
    %797 = arith.mulf %786, %789 : vector<2x64xf32>
    %798 = arith.addf %796, %797 : vector<2x64xf32>
    %799 = math.tanh %798 : vector<2x64xf32>
    %800 = arith.mulf %795, %799 : vector<2x64xf32>
    %c10_235 = arith.constant 10 : index
    %c0_236 = arith.constant 0 : index
    %801 = vector.load %arg46[%c10_235, %c0_236] : memref<16x128xf32, #tpu.memory_space<vmem>>, vector<2x64xf32>
    tpu.vector_store %arg46[%c10_235, %c0_236], %800 {strides = array<i32>} : memref<16x128xf32, #tpu.memory_space<vmem>>, vector<2x64xf32>,
    %802 = vector.extract_strided_slice %509 {offsets = [4, 0], sizes = [2, 256], strides = [1, 1]} : vector<16x256xf32> to vector<2x256xf32>
    %803 = arith.truncf %774 : vector<2x64xf32> to vector<2x64xbf16>
    %cst_237 = arith.constant dense<0.000000e+00> : vector<2x256xf32>
    %804 = tpu.matmul %803, %511, %cst_237 {dimension_numbers = #tpu.dot_dimension_numbers<[1], [0], [0], [1], [0, 0, 1, 1], [], []>} : vector<2x64xbf16>, vector<64x256xbf16>, vector<2x256xf32> -> vector<2x256xf32>
    %805 = arith.addf %802, %804 : vector<2x256xf32>
    %806 = vector.extract_strided_slice %805 {offsets = [0, 0], sizes = [2, 128], strides = [1, 1]} : vector<2x256xf32> to vector<2x128xf32>
    %807 = arith.negf %806 : vector<2x128xf32>
    %808 = math.exp %807 : vector<2x128xf32>
    %cst_238 = arith.constant 1.000000e+00 : f32
    %809 = vector.broadcast %cst_238 : f32 to vector<2x128xf32>
    %810 = arith.addf %809, %808 : vector<2x128xf32>
    %811 = arith.divf %809, %810 : vector<2x128xf32>
    %812 = vector.extract_strided_slice %811 {offsets = [0, 0], sizes = [2, 64], strides = [1, 1]} : vector<2x128xf32> to vector<2x64xf32>
    %813 = vector.extract_strided_slice %811 {offsets = [0, 64], sizes = [2, 64], strides = [1, 1]} : vector<2x128xf32> to vector<2x64xf32>
    %814 = vector.extract_strided_slice %805 {offsets = [0, 128], sizes = [2, 64], strides = [1, 1]} : vector<2x256xf32> to vector<2x64xf32>
    %815 = math.tanh %814 : vector<2x64xf32>
    %816 = vector.extract_strided_slice %805 {offsets = [0, 192], sizes = [2, 64], strides = [1, 1]} : vector<2x256xf32> to vector<2x64xf32>
    %817 = arith.negf %816 : vector<2x64xf32>
    %818 = math.exp %817 : vector<2x64xf32>
    %cst_239 = arith.constant 1.000000e+00 : f32
    %819 = vector.broadcast %cst_239 : f32 to vector<2x64xf32>
    %820 = arith.addf %819, %818 : vector<2x64xf32>
    %821 = arith.divf %819, %820 : vector<2x64xf32>
    %822 = arith.mulf %813, %772 : vector<2x64xf32>
    %823 = arith.mulf %812, %815 : vector<2x64xf32>
    %824 = arith.addf %822, %823 : vector<2x64xf32>
    %825 = math.tanh %824 : vector<2x64xf32>
    %826 = arith.mulf %821, %825 : vector<2x64xf32>
    %c4_240 = arith.constant 4 : index
    %c64_241 = arith.constant 64 : index
    %827 = vector.load %arg46[%c4_240, %c64_241] : memref<16x128xf32, #tpu.memory_space<vmem>>, vector<2x64xf32>
    tpu.vector_store %arg46[%c4_240, %c64_241], %826 {strides = array<i32>} : memref<16x128xf32, #tpu.memory_space<vmem>>, vector<2x64xf32>,
    %828 = vector.extract_strided_slice %504 {offsets = [12, 0], sizes = [2, 256], strides = [1, 1]} : vector<16x256xf32> to vector<2x256xf32>
    %829 = arith.truncf %800 : vector<2x64xf32> to vector<2x64xbf16>
    %cst_242 = arith.constant dense<0.000000e+00> : vector<2x256xf32>
    %830 = tpu.matmul %829, %510, %cst_242 {dimension_numbers = #tpu.dot_dimension_numbers<[1], [0], [0], [1], [0, 0, 1, 1], [], []>} : vector<2x64xbf16>, vector<64x256xbf16>, vector<2x256xf32> -> vector<2x256xf32>
    %831 = arith.addf %828, %830 : vector<2x256xf32>
    %832 = vector.extract_strided_slice %831 {offsets = [0, 0], sizes = [2, 128], strides = [1, 1]} : vector<2x256xf32> to vector<2x128xf32>
    %833 = arith.negf %832 : vector<2x128xf32>
    %834 = math.exp %833 : vector<2x128xf32>
    %cst_243 = arith.constant 1.000000e+00 : f32
    %835 = vector.broadcast %cst_243 : f32 to vector<2x128xf32>
    %836 = arith.addf %835, %834 : vector<2x128xf32>
    %837 = arith.divf %835, %836 : vector<2x128xf32>
    %838 = vector.extract_strided_slice %837 {offsets = [0, 0], sizes = [2, 64], strides = [1, 1]} : vector<2x128xf32> to vector<2x64xf32>
    %839 = vector.extract_strided_slice %837 {offsets = [0, 64], sizes = [2, 64], strides = [1, 1]} : vector<2x128xf32> to vector<2x64xf32>
    %840 = vector.extract_strided_slice %831 {offsets = [0, 128], sizes = [2, 64], strides = [1, 1]} : vector<2x256xf32> to vector<2x64xf32>
    %841 = math.tanh %840 : vector<2x64xf32>
    %842 = vector.extract_strided_slice %831 {offsets = [0, 192], sizes = [2, 64], strides = [1, 1]} : vector<2x256xf32> to vector<2x64xf32>
    %843 = arith.negf %842 : vector<2x64xf32>
    %844 = math.exp %843 : vector<2x64xf32>
    %cst_244 = arith.constant 1.000000e+00 : f32
    %845 = vector.broadcast %cst_244 : f32 to vector<2x64xf32>
    %846 = arith.addf %845, %844 : vector<2x64xf32>
    %847 = arith.divf %845, %846 : vector<2x64xf32>
    %848 = arith.mulf %839, %798 : vector<2x64xf32>
    %849 = arith.mulf %838, %841 : vector<2x64xf32>
    %850 = arith.addf %848, %849 : vector<2x64xf32>
    %851 = math.tanh %850 : vector<2x64xf32>
    %852 = arith.mulf %847, %851 : vector<2x64xf32>
    %c12_245 = arith.constant 12 : index
    %c0_246 = arith.constant 0 : index
    %853 = vector.load %arg46[%c12_245, %c0_246] : memref<16x128xf32, #tpu.memory_space<vmem>>, vector<2x64xf32>
    tpu.vector_store %arg46[%c12_245, %c0_246], %852 {strides = array<i32>} : memref<16x128xf32, #tpu.memory_space<vmem>>, vector<2x64xf32>,
    %854 = vector.extract_strided_slice %509 {offsets = [2, 0], sizes = [2, 256], strides = [1, 1]} : vector<16x256xf32> to vector<2x256xf32>
    %855 = arith.truncf %826 : vector<2x64xf32> to vector<2x64xbf16>
    %cst_247 = arith.constant dense<0.000000e+00> : vector<2x256xf32>
    %856 = tpu.matmul %855, %511, %cst_247 {dimension_numbers = #tpu.dot_dimension_numbers<[1], [0], [0], [1], [0, 0, 1, 1], [], []>} : vector<2x64xbf16>, vector<64x256xbf16>, vector<2x256xf32> -> vector<2x256xf32>
    %857 = arith.addf %854, %856 : vector<2x256xf32>
    %858 = vector.extract_strided_slice %857 {offsets = [0, 0], sizes = [2, 128], strides = [1, 1]} : vector<2x256xf32> to vector<2x128xf32>
    %859 = arith.negf %858 : vector<2x128xf32>
    %860 = math.exp %859 : vector<2x128xf32>
    %cst_248 = arith.constant 1.000000e+00 : f32
    %861 = vector.broadcast %cst_248 : f32 to vector<2x128xf32>
    %862 = arith.addf %861, %860 : vector<2x128xf32>
    %863 = arith.divf %861, %862 : vector<2x128xf32>
    %864 = vector.extract_strided_slice %863 {offsets = [0, 0], sizes = [2, 64], strides = [1, 1]} : vector<2x128xf32> to vector<2x64xf32>
    %865 = vector.extract_strided_slice %863 {offsets = [0, 64], sizes = [2, 64], strides = [1, 1]} : vector<2x128xf32> to vector<2x64xf32>
    %866 = vector.extract_strided_slice %857 {offsets = [0, 128], sizes = [2, 64], strides = [1, 1]} : vector<2x256xf32> to vector<2x64xf32>
    %867 = math.tanh %866 : vector<2x64xf32>
    %868 = vector.extract_strided_slice %857 {offsets = [0, 192], sizes = [2, 64], strides = [1, 1]} : vector<2x256xf32> to vector<2x64xf32>
    %869 = arith.negf %868 : vector<2x64xf32>
    %870 = math.exp %869 : vector<2x64xf32>
    %cst_249 = arith.constant 1.000000e+00 : f32
    %871 = vector.broadcast %cst_249 : f32 to vector<2x64xf32>
    %872 = arith.addf %871, %870 : vector<2x64xf32>
    %873 = arith.divf %871, %872 : vector<2x64xf32>
    %874 = arith.mulf %865, %824 : vector<2x64xf32>
    %875 = arith.mulf %864, %867 : vector<2x64xf32>
    %876 = arith.addf %874, %875 : vector<2x64xf32>
    %877 = math.tanh %876 : vector<2x64xf32>
    %878 = arith.mulf %873, %877 : vector<2x64xf32>
    %c2_250 = arith.constant 2 : index
    %c64_251 = arith.constant 64 : index
    %879 = vector.load %arg46[%c2_250, %c64_251] : memref<16x128xf32, #tpu.memory_space<vmem>>, vector<2x64xf32>
    tpu.vector_store %arg46[%c2_250, %c64_251], %878 {strides = array<i32>} : memref<16x128xf32, #tpu.memory_space<vmem>>, vector<2x64xf32>,
    %880 = vector.extract_strided_slice %504 {offsets = [14, 0], sizes = [2, 256], strides = [1, 1]} : vector<16x256xf32> to vector<2x256xf32>
    %881 = arith.truncf %852 : vector<2x64xf32> to vector<2x64xbf16>
    %cst_252 = arith.constant dense<0.000000e+00> : vector<2x256xf32>
    %882 = tpu.matmul %881, %510, %cst_252 {dimension_numbers = #tpu.dot_dimension_numbers<[1], [0], [0], [1], [0, 0, 1, 1], [], []>} : vector<2x64xbf16>, vector<64x256xbf16>, vector<2x256xf32> -> vector<2x256xf32>
    %883 = arith.addf %880, %882 : vector<2x256xf32>
    %884 = vector.extract_strided_slice %883 {offsets = [0, 0], sizes = [2, 128], strides = [1, 1]} : vector<2x256xf32> to vector<2x128xf32>
    %885 = arith.negf %884 : vector<2x128xf32>
    %886 = math.exp %885 : vector<2x128xf32>
    %cst_253 = arith.constant 1.000000e+00 : f32
    %887 = vector.broadcast %cst_253 : f32 to vector<2x128xf32>
    %888 = arith.addf %887, %886 : vector<2x128xf32>
    %889 = arith.divf %887, %888 : vector<2x128xf32>
    %890 = vector.extract_strided_slice %889 {offsets = [0, 0], sizes = [2, 64], strides = [1, 1]} : vector<2x128xf32> to vector<2x64xf32>
    %891 = vector.extract_strided_slice %889 {offsets = [0, 64], sizes = [2, 64], strides = [1, 1]} : vector<2x128xf32> to vector<2x64xf32>
    %892 = vector.extract_strided_slice %883 {offsets = [0, 128], sizes = [2, 64], strides = [1, 1]} : vector<2x256xf32> to vector<2x64xf32>
    %893 = math.tanh %892 : vector<2x64xf32>
    %894 = vector.extract_strided_slice %883 {offsets = [0, 192], sizes = [2, 64], strides = [1, 1]} : vector<2x256xf32> to vector<2x64xf32>
    %895 = arith.negf %894 : vector<2x64xf32>
    %896 = math.exp %895 : vector<2x64xf32>
    %cst_254 = arith.constant 1.000000e+00 : f32
    %897 = vector.broadcast %cst_254 : f32 to vector<2x64xf32>
    %898 = arith.addf %897, %896 : vector<2x64xf32>
    %899 = arith.divf %897, %898 : vector<2x64xf32>
    %900 = arith.mulf %891, %850 : vector<2x64xf32>
    %901 = arith.mulf %890, %893 : vector<2x64xf32>
    %902 = arith.addf %900, %901 : vector<2x64xf32>
    %903 = math.tanh %902 : vector<2x64xf32>
    %904 = arith.mulf %899, %903 : vector<2x64xf32>
    %c14_255 = arith.constant 14 : index
    %c0_256 = arith.constant 0 : index
    %905 = vector.load %arg46[%c14_255, %c0_256] : memref<16x128xf32, #tpu.memory_space<vmem>>, vector<2x64xf32>
    tpu.vector_store %arg46[%c14_255, %c0_256], %904 {strides = array<i32>} : memref<16x128xf32, #tpu.memory_space<vmem>>, vector<2x64xf32>,
    %906 = vector.extract_strided_slice %509 {offsets = [0, 0], sizes = [2, 256], strides = [1, 1]} : vector<16x256xf32> to vector<2x256xf32>
    %907 = arith.truncf %878 : vector<2x64xf32> to vector<2x64xbf16>
    %cst_257 = arith.constant dense<0.000000e+00> : vector<2x256xf32>
    %908 = tpu.matmul %907, %511, %cst_257 {dimension_numbers = #tpu.dot_dimension_numbers<[1], [0], [0], [1], [0, 0, 1, 1], [], []>} : vector<2x64xbf16>, vector<64x256xbf16>, vector<2x256xf32> -> vector<2x256xf32>
    %909 = arith.addf %906, %908 : vector<2x256xf32>
    %910 = vector.extract_strided_slice %909 {offsets = [0, 0], sizes = [2, 128], strides = [1, 1]} : vector<2x256xf32> to vector<2x128xf32>
    %911 = arith.negf %910 : vector<2x128xf32>
    %912 = math.exp %911 : vector<2x128xf32>
    %cst_258 = arith.constant 1.000000e+00 : f32
    %913 = vector.broadcast %cst_258 : f32 to vector<2x128xf32>
    %914 = arith.addf %913, %912 : vector<2x128xf32>
    %915 = arith.divf %913, %914 : vector<2x128xf32>
    %916 = vector.extract_strided_slice %915 {offsets = [0, 0], sizes = [2, 64], strides = [1, 1]} : vector<2x128xf32> to vector<2x64xf32>
    %917 = vector.extract_strided_slice %915 {offsets = [0, 64], sizes = [2, 64], strides = [1, 1]} : vector<2x128xf32> to vector<2x64xf32>
    %918 = vector.extract_strided_slice %909 {offsets = [0, 128], sizes = [2, 64], strides = [1, 1]} : vector<2x256xf32> to vector<2x64xf32>
    %919 = math.tanh %918 : vector<2x64xf32>
    %920 = vector.extract_strided_slice %909 {offsets = [0, 192], sizes = [2, 64], strides = [1, 1]} : vector<2x256xf32> to vector<2x64xf32>
    %921 = arith.negf %920 : vector<2x64xf32>
    %922 = math.exp %921 : vector<2x64xf32>
    %cst_259 = arith.constant 1.000000e+00 : f32
    %923 = vector.broadcast %cst_259 : f32 to vector<2x64xf32>
    %924 = arith.addf %923, %922 : vector<2x64xf32>
    %925 = arith.divf %923, %924 : vector<2x64xf32>
    %926 = arith.mulf %917, %876 : vector<2x64xf32>
    %927 = arith.mulf %916, %919 : vector<2x64xf32>
    %928 = arith.addf %926, %927 : vector<2x64xf32>
    %929 = math.tanh %928 : vector<2x64xf32>
    %930 = arith.mulf %925, %929 : vector<2x64xf32>
    %c0_260 = arith.constant 0 : index
    %c64_261 = arith.constant 64 : index
    %931 = vector.load %arg46[%c0_260, %c64_261] : memref<16x128xf32, #tpu.memory_space<vmem>>, vector<2x64xf32>
    tpu.vector_store %arg46[%c0_260, %c64_261], %930 {strides = array<i32>} : memref<16x128xf32, #tpu.memory_space<vmem>>, vector<2x64xf32>,
    %c0_262 = arith.constant 0 : index
    %c0_263 = arith.constant 0 : index
    %932 = vector.load %arg46[%c0_262, %c0_263] : memref<16x128xf32, #tpu.memory_space<vmem>>, vector<16x128xf32>
    %933 = arith.truncf %932 : vector<16x128xf32> to vector<16x128xbf16>
    %c0_264 = arith.constant 0 : index
    %c0_265 = arith.constant 0 : index
    %934 = vector.load %arg16[%c0_264, %c0_265] : memref<128x256xbf16, #tpu.memory_space<vmem>>, vector<128x256xbf16>
    %cst_266 = arith.constant dense<0.000000e+00> : vector<16x256xf32>
    %935 = tpu.matmul %933, %934, %cst_266 {dimension_numbers = #tpu.dot_dimension_numbers<[1], [0], [0], [1], [0, 0, 1, 1], [], []>} : vector<16x128xbf16>, vector<128x256xbf16>, vector<16x256xf32> -> vector<16x256xf32>
    %c0_267 = arith.constant 0 : index
    %c0_268 = arith.constant 0 : index
    %936 = vector.load %arg18[%c0_267, %c0_268] : memref<1x256xf32, #tpu.memory_space<vmem>>, vector<1x256xf32>
    %937 = vector.broadcast %936 : vector<1x256xf32> to vector<16x256xf32>
    %938 = arith.addf %935, %937 : vector<16x256xf32>
    %c0_269 = arith.constant 0 : index
    %c0_270 = arith.constant 0 : index
    %939 = vector.load %arg19[%c0_269, %c0_270] : memref<128x256xbf16, #tpu.memory_space<vmem>>, vector<128x256xbf16>
    %cst_271 = arith.constant dense<0.000000e+00> : vector<16x256xf32>
    %940 = tpu.matmul %933, %939, %cst_271 {dimension_numbers = #tpu.dot_dimension_numbers<[1], [0], [0], [1], [0, 0, 1, 1], [], []>} : vector<16x128xbf16>, vector<128x256xbf16>, vector<16x256xf32> -> vector<16x256xf32>
    %c0_272 = arith.constant 0 : index
    %c0_273 = arith.constant 0 : index
    %941 = vector.load %arg21[%c0_272, %c0_273] : memref<1x256xf32, #tpu.memory_space<vmem>>, vector<1x256xf32>
    %942 = vector.broadcast %941 : vector<1x256xf32> to vector<16x256xf32>
    %943 = arith.addf %940, %942 : vector<16x256xf32>
    %c0_274 = arith.constant 0 : index
    %c0_275 = arith.constant 0 : index
    %944 = vector.load %arg17[%c0_274, %c0_275] : memref<64x256xbf16, #tpu.memory_space<vmem>>, vector<64x256xbf16>
    %c0_276 = arith.constant 0 : index
    %c0_277 = arith.constant 0 : index
    %945 = vector.load %arg20[%c0_276, %c0_277] : memref<64x256xbf16, #tpu.memory_space<vmem>>, vector<64x256xbf16>
    %cst_278 = arith.constant 0.000000e+00 : f32
    %946 = vector.broadcast %cst_278 : f32 to vector<2x64xf32>
    %cst_279 = arith.constant 0.000000e+00 : f32
    %947 = vector.broadcast %cst_279 : f32 to vector<2x64xf32>
    %cst_280 = arith.constant 0.000000e+00 : f32
    %948 = vector.broadcast %cst_280 : f32 to vector<2x64xf32>
    %cst_281 = arith.constant 0.000000e+00 : f32
    %949 = vector.broadcast %cst_281 : f32 to vector<2x64xf32>
    %950 = vector.extract_strided_slice %938 {offsets = [0, 0], sizes = [2, 256], strides = [1, 1]} : vector<16x256xf32> to vector<2x256xf32>
    %951 = arith.truncf %946 : vector<2x64xf32> to vector<2x64xbf16>
    %cst_282 = arith.constant dense<0.000000e+00> : vector<2x256xf32>
    %952 = tpu.matmul %951, %944, %cst_282 {dimension_numbers = #tpu.dot_dimension_numbers<[1], [0], [0], [1], [0, 0, 1, 1], [], []>} : vector<2x64xbf16>, vector<64x256xbf16>, vector<2x256xf32> -> vector<2x256xf32>
    %953 = arith.addf %950, %952 : vector<2x256xf32>
    %954 = vector.extract_strided_slice %953 {offsets = [0, 0], sizes = [2, 128], strides = [1, 1]} : vector<2x256xf32> to vector<2x128xf32>
    %955 = arith.negf %954 : vector<2x128xf32>
    %956 = math.exp %955 : vector<2x128xf32>
    %cst_283 = arith.constant 1.000000e+00 : f32
    %957 = vector.broadcast %cst_283 : f32 to vector<2x128xf32>
    %958 = arith.addf %957, %956 : vector<2x128xf32>
    %959 = arith.divf %957, %958 : vector<2x128xf32>
    %960 = vector.extract_strided_slice %959 {offsets = [0, 0], sizes = [2, 64], strides = [1, 1]} : vector<2x128xf32> to vector<2x64xf32>
    %961 = vector.extract_strided_slice %959 {offsets = [0, 64], sizes = [2, 64], strides = [1, 1]} : vector<2x128xf32> to vector<2x64xf32>
    %962 = vector.extract_strided_slice %953 {offsets = [0, 128], sizes = [2, 64], strides = [1, 1]} : vector<2x256xf32> to vector<2x64xf32>
    %963 = math.tanh %962 : vector<2x64xf32>
    %964 = vector.extract_strided_slice %953 {offsets = [0, 192], sizes = [2, 64], strides = [1, 1]} : vector<2x256xf32> to vector<2x64xf32>
    %965 = arith.negf %964 : vector<2x64xf32>
    %966 = math.exp %965 : vector<2x64xf32>
    %cst_284 = arith.constant 1.000000e+00 : f32
    %967 = vector.broadcast %cst_284 : f32 to vector<2x64xf32>
    %968 = arith.addf %967, %966 : vector<2x64xf32>
    %969 = arith.divf %967, %968 : vector<2x64xf32>
    %970 = arith.mulf %961, %947 : vector<2x64xf32>
    %971 = arith.mulf %960, %963 : vector<2x64xf32>
    %972 = arith.addf %970, %971 : vector<2x64xf32>
    %973 = math.tanh %972 : vector<2x64xf32>
    %974 = arith.mulf %969, %973 : vector<2x64xf32>
    %c0_285 = arith.constant 0 : index
    %c0_286 = arith.constant 0 : index
    %975 = vector.load %arg46[%c0_285, %c0_286] : memref<16x128xf32, #tpu.memory_space<vmem>>, vector<2x64xf32>
    tpu.vector_store %arg46[%c0_285, %c0_286], %974 {strides = array<i32>} : memref<16x128xf32, #tpu.memory_space<vmem>>, vector<2x64xf32>,
    %976 = vector.extract_strided_slice %943 {offsets = [14, 0], sizes = [2, 256], strides = [1, 1]} : vector<16x256xf32> to vector<2x256xf32>
    %977 = arith.truncf %948 : vector<2x64xf32> to vector<2x64xbf16>
    %cst_287 = arith.constant dense<0.000000e+00> : vector<2x256xf32>
    %978 = tpu.matmul %977, %945, %cst_287 {dimension_numbers = #tpu.dot_dimension_numbers<[1], [0], [0], [1], [0, 0, 1, 1], [], []>} : vector<2x64xbf16>, vector<64x256xbf16>, vector<2x256xf32> -> vector<2x256xf32>
    %979 = arith.addf %976, %978 : vector<2x256xf32>
    %980 = vector.extract_strided_slice %979 {offsets = [0, 0], sizes = [2, 128], strides = [1, 1]} : vector<2x256xf32> to vector<2x128xf32>
    %981 = arith.negf %980 : vector<2x128xf32>
    %982 = math.exp %981 : vector<2x128xf32>
    %cst_288 = arith.constant 1.000000e+00 : f32
    %983 = vector.broadcast %cst_288 : f32 to vector<2x128xf32>
    %984 = arith.addf %983, %982 : vector<2x128xf32>
    %985 = arith.divf %983, %984 : vector<2x128xf32>
    %986 = vector.extract_strided_slice %985 {offsets = [0, 0], sizes = [2, 64], strides = [1, 1]} : vector<2x128xf32> to vector<2x64xf32>
    %987 = vector.extract_strided_slice %985 {offsets = [0, 64], sizes = [2, 64], strides = [1, 1]} : vector<2x128xf32> to vector<2x64xf32>
    %988 = vector.extract_strided_slice %979 {offsets = [0, 128], sizes = [2, 64], strides = [1, 1]} : vector<2x256xf32> to vector<2x64xf32>
    %989 = math.tanh %988 : vector<2x64xf32>
    %990 = vector.extract_strided_slice %979 {offsets = [0, 192], sizes = [2, 64], strides = [1, 1]} : vector<2x256xf32> to vector<2x64xf32>
    %991 = arith.negf %990 : vector<2x64xf32>
    %992 = math.exp %991 : vector<2x64xf32>
    %cst_289 = arith.constant 1.000000e+00 : f32
    %993 = vector.broadcast %cst_289 : f32 to vector<2x64xf32>
    %994 = arith.addf %993, %992 : vector<2x64xf32>
    %995 = arith.divf %993, %994 : vector<2x64xf32>
    %996 = arith.mulf %987, %949 : vector<2x64xf32>
    %997 = arith.mulf %986, %989 : vector<2x64xf32>
    %998 = arith.addf %996, %997 : vector<2x64xf32>
    %999 = math.tanh %998 : vector<2x64xf32>
    %1000 = arith.mulf %995, %999 : vector<2x64xf32>
    %c14_290 = arith.constant 14 : index
    %c64_291 = arith.constant 64 : index
    %1001 = vector.load %arg46[%c14_290, %c64_291] : memref<16x128xf32, #tpu.memory_space<vmem>>, vector<2x64xf32>
    tpu.vector_store %arg46[%c14_290, %c64_291], %1000 {strides = array<i32>} : memref<16x128xf32, #tpu.memory_space<vmem>>, vector<2x64xf32>,
    %1002 = vector.extract_strided_slice %938 {offsets = [2, 0], sizes = [2, 256], strides = [1, 1]} : vector<16x256xf32> to vector<2x256xf32>
    %1003 = arith.truncf %974 : vector<2x64xf32> to vector<2x64xbf16>
    %cst_292 = arith.constant dense<0.000000e+00> : vector<2x256xf32>
    %1004 = tpu.matmul %1003, %944, %cst_292 {dimension_numbers = #tpu.dot_dimension_numbers<[1], [0], [0], [1], [0, 0, 1, 1], [], []>} : vector<2x64xbf16>, vector<64x256xbf16>, vector<2x256xf32> -> vector<2x256xf32>
    %1005 = arith.addf %1002, %1004 : vector<2x256xf32>
    %1006 = vector.extract_strided_slice %1005 {offsets = [0, 0], sizes = [2, 128], strides = [1, 1]} : vector<2x256xf32> to vector<2x128xf32>
    %1007 = arith.negf %1006 : vector<2x128xf32>
    %1008 = math.exp %1007 : vector<2x128xf32>
    %cst_293 = arith.constant 1.000000e+00 : f32
    %1009 = vector.broadcast %cst_293 : f32 to vector<2x128xf32>
    %1010 = arith.addf %1009, %1008 : vector<2x128xf32>
    %1011 = arith.divf %1009, %1010 : vector<2x128xf32>
    %1012 = vector.extract_strided_slice %1011 {offsets = [0, 0], sizes = [2, 64], strides = [1, 1]} : vector<2x128xf32> to vector<2x64xf32>
    %1013 = vector.extract_strided_slice %1011 {offsets = [0, 64], sizes = [2, 64], strides = [1, 1]} : vector<2x128xf32> to vector<2x64xf32>
    %1014 = vector.extract_strided_slice %1005 {offsets = [0, 128], sizes = [2, 64], strides = [1, 1]} : vector<2x256xf32> to vector<2x64xf32>
    %1015 = math.tanh %1014 : vector<2x64xf32>
    %1016 = vector.extract_strided_slice %1005 {offsets = [0, 192], sizes = [2, 64], strides = [1, 1]} : vector<2x256xf32> to vector<2x64xf32>
    %1017 = arith.negf %1016 : vector<2x64xf32>
    %1018 = math.exp %1017 : vector<2x64xf32>
    %cst_294 = arith.constant 1.000000e+00 : f32
    %1019 = vector.broadcast %cst_294 : f32 to vector<2x64xf32>
    %1020 = arith.addf %1019, %1018 : vector<2x64xf32>
    %1021 = arith.divf %1019, %1020 : vector<2x64xf32>
    %1022 = arith.mulf %1013, %972 : vector<2x64xf32>
    %1023 = arith.mulf %1012, %1015 : vector<2x64xf32>
    %1024 = arith.addf %1022, %1023 : vector<2x64xf32>
    %1025 = math.tanh %1024 : vector<2x64xf32>
    %1026 = arith.mulf %1021, %1025 : vector<2x64xf32>
    %c2_295 = arith.constant 2 : index
    %c0_296 = arith.constant 0 : index
    %1027 = vector.load %arg46[%c2_295, %c0_296] : memref<16x128xf32, #tpu.memory_space<vmem>>, vector<2x64xf32>
    tpu.vector_store %arg46[%c2_295, %c0_296], %1026 {strides = array<i32>} : memref<16x128xf32, #tpu.memory_space<vmem>>, vector<2x64xf32>,
    %1028 = vector.extract_strided_slice %943 {offsets = [12, 0], sizes = [2, 256], strides = [1, 1]} : vector<16x256xf32> to vector<2x256xf32>
    %1029 = arith.truncf %1000 : vector<2x64xf32> to vector<2x64xbf16>
    %cst_297 = arith.constant dense<0.000000e+00> : vector<2x256xf32>
    %1030 = tpu.matmul %1029, %945, %cst_297 {dimension_numbers = #tpu.dot_dimension_numbers<[1], [0], [0], [1], [0, 0, 1, 1], [], []>} : vector<2x64xbf16>, vector<64x256xbf16>, vector<2x256xf32> -> vector<2x256xf32>
    %1031 = arith.addf %1028, %1030 : vector<2x256xf32>
    %1032 = vector.extract_strided_slice %1031 {offsets = [0, 0], sizes = [2, 128], strides = [1, 1]} : vector<2x256xf32> to vector<2x128xf32>
    %1033 = arith.negf %1032 : vector<2x128xf32>
    %1034 = math.exp %1033 : vector<2x128xf32>
    %cst_298 = arith.constant 1.000000e+00 : f32
    %1035 = vector.broadcast %cst_298 : f32 to vector<2x128xf32>
    %1036 = arith.addf %1035, %1034 : vector<2x128xf32>
    %1037 = arith.divf %1035, %1036 : vector<2x128xf32>
    %1038 = vector.extract_strided_slice %1037 {offsets = [0, 0], sizes = [2, 64], strides = [1, 1]} : vector<2x128xf32> to vector<2x64xf32>
    %1039 = vector.extract_strided_slice %1037 {offsets = [0, 64], sizes = [2, 64], strides = [1, 1]} : vector<2x128xf32> to vector<2x64xf32>
    %1040 = vector.extract_strided_slice %1031 {offsets = [0, 128], sizes = [2, 64], strides = [1, 1]} : vector<2x256xf32> to vector<2x64xf32>
    %1041 = math.tanh %1040 : vector<2x64xf32>
    %1042 = vector.extract_strided_slice %1031 {offsets = [0, 192], sizes = [2, 64], strides = [1, 1]} : vector<2x256xf32> to vector<2x64xf32>
    %1043 = arith.negf %1042 : vector<2x64xf32>
    %1044 = math.exp %1043 : vector<2x64xf32>
    %cst_299 = arith.constant 1.000000e+00 : f32
    %1045 = vector.broadcast %cst_299 : f32 to vector<2x64xf32>
    %1046 = arith.addf %1045, %1044 : vector<2x64xf32>
    %1047 = arith.divf %1045, %1046 : vector<2x64xf32>
    %1048 = arith.mulf %1039, %998 : vector<2x64xf32>
    %1049 = arith.mulf %1038, %1041 : vector<2x64xf32>
    %1050 = arith.addf %1048, %1049 : vector<2x64xf32>
    %1051 = math.tanh %1050 : vector<2x64xf32>
    %1052 = arith.mulf %1047, %1051 : vector<2x64xf32>
    %c12_300 = arith.constant 12 : index
    %c64_301 = arith.constant 64 : index
    %1053 = vector.load %arg46[%c12_300, %c64_301] : memref<16x128xf32, #tpu.memory_space<vmem>>, vector<2x64xf32>
    tpu.vector_store %arg46[%c12_300, %c64_301], %1052 {strides = array<i32>} : memref<16x128xf32, #tpu.memory_space<vmem>>, vector<2x64xf32>,
    %1054 = vector.extract_strided_slice %938 {offsets = [4, 0], sizes = [2, 256], strides = [1, 1]} : vector<16x256xf32> to vector<2x256xf32>
    %1055 = arith.truncf %1026 : vector<2x64xf32> to vector<2x64xbf16>
    %cst_302 = arith.constant dense<0.000000e+00> : vector<2x256xf32>
    %1056 = tpu.matmul %1055, %944, %cst_302 {dimension_numbers = #tpu.dot_dimension_numbers<[1], [0], [0], [1], [0, 0, 1, 1], [], []>} : vector<2x64xbf16>, vector<64x256xbf16>, vector<2x256xf32> -> vector<2x256xf32>
    %1057 = arith.addf %1054, %1056 : vector<2x256xf32>
    %1058 = vector.extract_strided_slice %1057 {offsets = [0, 0], sizes = [2, 128], strides = [1, 1]} : vector<2x256xf32> to vector<2x128xf32>
    %1059 = arith.negf %1058 : vector<2x128xf32>
    %1060 = math.exp %1059 : vector<2x128xf32>
    %cst_303 = arith.constant 1.000000e+00 : f32
    %1061 = vector.broadcast %cst_303 : f32 to vector<2x128xf32>
    %1062 = arith.addf %1061, %1060 : vector<2x128xf32>
    %1063 = arith.divf %1061, %1062 : vector<2x128xf32>
    %1064 = vector.extract_strided_slice %1063 {offsets = [0, 0], sizes = [2, 64], strides = [1, 1]} : vector<2x128xf32> to vector<2x64xf32>
    %1065 = vector.extract_strided_slice %1063 {offsets = [0, 64], sizes = [2, 64], strides = [1, 1]} : vector<2x128xf32> to vector<2x64xf32>
    %1066 = vector.extract_strided_slice %1057 {offsets = [0, 128], sizes = [2, 64], strides = [1, 1]} : vector<2x256xf32> to vector<2x64xf32>
    %1067 = math.tanh %1066 : vector<2x64xf32>
    %1068 = vector.extract_strided_slice %1057 {offsets = [0, 192], sizes = [2, 64], strides = [1, 1]} : vector<2x256xf32> to vector<2x64xf32>
    %1069 = arith.negf %1068 : vector<2x64xf32>
    %1070 = math.exp %1069 : vector<2x64xf32>
    %cst_304 = arith.constant 1.000000e+00 : f32
    %1071 = vector.broadcast %cst_304 : f32 to vector<2x64xf32>
    %1072 = arith.addf %1071, %1070 : vector<2x64xf32>
    %1073 = arith.divf %1071, %1072 : vector<2x64xf32>
    %1074 = arith.mulf %1065, %1024 : vector<2x64xf32>
    %1075 = arith.mulf %1064, %1067 : vector<2x64xf32>
    %1076 = arith.addf %1074, %1075 : vector<2x64xf32>
    %1077 = math.tanh %1076 : vector<2x64xf32>
    %1078 = arith.mulf %1073, %1077 : vector<2x64xf32>
    %c4_305 = arith.constant 4 : index
    %c0_306 = arith.constant 0 : index
    %1079 = vector.load %arg46[%c4_305, %c0_306] : memref<16x128xf32, #tpu.memory_space<vmem>>, vector<2x64xf32>
    tpu.vector_store %arg46[%c4_305, %c0_306], %1078 {strides = array<i32>} : memref<16x128xf32, #tpu.memory_space<vmem>>, vector<2x64xf32>,
    %1080 = vector.extract_strided_slice %943 {offsets = [10, 0], sizes = [2, 256], strides = [1, 1]} : vector<16x256xf32> to vector<2x256xf32>
    %1081 = arith.truncf %1052 : vector<2x64xf32> to vector<2x64xbf16>
    %cst_307 = arith.constant dense<0.000000e+00> : vector<2x256xf32>
    %1082 = tpu.matmul %1081, %945, %cst_307 {dimension_numbers = #tpu.dot_dimension_numbers<[1], [0], [0], [1], [0, 0, 1, 1], [], []>} : vector<2x64xbf16>, vector<64x256xbf16>, vector<2x256xf32> -> vector<2x256xf32>
    %1083 = arith.addf %1080, %1082 : vector<2x256xf32>
    %1084 = vector.extract_strided_slice %1083 {offsets = [0, 0], sizes = [2, 128], strides = [1, 1]} : vector<2x256xf32> to vector<2x128xf32>
    %1085 = arith.negf %1084 : vector<2x128xf32>
    %1086 = math.exp %1085 : vector<2x128xf32>
    %cst_308 = arith.constant 1.000000e+00 : f32
    %1087 = vector.broadcast %cst_308 : f32 to vector<2x128xf32>
    %1088 = arith.addf %1087, %1086 : vector<2x128xf32>
    %1089 = arith.divf %1087, %1088 : vector<2x128xf32>
    %1090 = vector.extract_strided_slice %1089 {offsets = [0, 0], sizes = [2, 64], strides = [1, 1]} : vector<2x128xf32> to vector<2x64xf32>
    %1091 = vector.extract_strided_slice %1089 {offsets = [0, 64], sizes = [2, 64], strides = [1, 1]} : vector<2x128xf32> to vector<2x64xf32>
    %1092 = vector.extract_strided_slice %1083 {offsets = [0, 128], sizes = [2, 64], strides = [1, 1]} : vector<2x256xf32> to vector<2x64xf32>
    %1093 = math.tanh %1092 : vector<2x64xf32>
    %1094 = vector.extract_strided_slice %1083 {offsets = [0, 192], sizes = [2, 64], strides = [1, 1]} : vector<2x256xf32> to vector<2x64xf32>
    %1095 = arith.negf %1094 : vector<2x64xf32>
    %1096 = math.exp %1095 : vector<2x64xf32>
    %cst_309 = arith.constant 1.000000e+00 : f32
    %1097 = vector.broadcast %cst_309 : f32 to vector<2x64xf32>
    %1098 = arith.addf %1097, %1096 : vector<2x64xf32>
    %1099 = arith.divf %1097, %1098 : vector<2x64xf32>
    %1100 = arith.mulf %1091, %1050 : vector<2x64xf32>
    %1101 = arith.mulf %1090, %1093 : vector<2x64xf32>
    %1102 = arith.addf %1100, %1101 : vector<2x64xf32>
    %1103 = math.tanh %1102 : vector<2x64xf32>
    %1104 = arith.mulf %1099, %1103 : vector<2x64xf32>
    %c10_310 = arith.constant 10 : index
    %c64_311 = arith.constant 64 : index
    %1105 = vector.load %arg46[%c10_310, %c64_311] : memref<16x128xf32, #tpu.memory_space<vmem>>, vector<2x64xf32>
    tpu.vector_store %arg46[%c10_310, %c64_311], %1104 {strides = array<i32>} : memref<16x128xf32, #tpu.memory_space<vmem>>, vector<2x64xf32>,
    %1106 = vector.extract_strided_slice %938 {offsets = [6, 0], sizes = [2, 256], strides = [1, 1]} : vector<16x256xf32> to vector<2x256xf32>
    %1107 = arith.truncf %1078 : vector<2x64xf32> to vector<2x64xbf16>
    %cst_312 = arith.constant dense<0.000000e+00> : vector<2x256xf32>
    %1108 = tpu.matmul %1107, %944, %cst_312 {dimension_numbers = #tpu.dot_dimension_numbers<[1], [0], [0], [1], [0, 0, 1, 1], [], []>} : vector<2x64xbf16>, vector<64x256xbf16>, vector<2x256xf32> -> vector<2x256xf32>
    %1109 = arith.addf %1106, %1108 : vector<2x256xf32>
    %1110 = vector.extract_strided_slice %1109 {offsets = [0, 0], sizes = [2, 128], strides = [1, 1]} : vector<2x256xf32> to vector<2x128xf32>
    %1111 = arith.negf %1110 : vector<2x128xf32>
    %1112 = math.exp %1111 : vector<2x128xf32>
    %cst_313 = arith.constant 1.000000e+00 : f32
    %1113 = vector.broadcast %cst_313 : f32 to vector<2x128xf32>
    %1114 = arith.addf %1113, %1112 : vector<2x128xf32>
    %1115 = arith.divf %1113, %1114 : vector<2x128xf32>
    %1116 = vector.extract_strided_slice %1115 {offsets = [0, 0], sizes = [2, 64], strides = [1, 1]} : vector<2x128xf32> to vector<2x64xf32>
    %1117 = vector.extract_strided_slice %1115 {offsets = [0, 64], sizes = [2, 64], strides = [1, 1]} : vector<2x128xf32> to vector<2x64xf32>
    %1118 = vector.extract_strided_slice %1109 {offsets = [0, 128], sizes = [2, 64], strides = [1, 1]} : vector<2x256xf32> to vector<2x64xf32>
    %1119 = math.tanh %1118 : vector<2x64xf32>
    %1120 = vector.extract_strided_slice %1109 {offsets = [0, 192], sizes = [2, 64], strides = [1, 1]} : vector<2x256xf32> to vector<2x64xf32>
    %1121 = arith.negf %1120 : vector<2x64xf32>
    %1122 = math.exp %1121 : vector<2x64xf32>
    %cst_314 = arith.constant 1.000000e+00 : f32
    %1123 = vector.broadcast %cst_314 : f32 to vector<2x64xf32>
    %1124 = arith.addf %1123, %1122 : vector<2x64xf32>
    %1125 = arith.divf %1123, %1124 : vector<2x64xf32>
    %1126 = arith.mulf %1117, %1076 : vector<2x64xf32>
    %1127 = arith.mulf %1116, %1119 : vector<2x64xf32>
    %1128 = arith.addf %1126, %1127 : vector<2x64xf32>
    %1129 = math.tanh %1128 : vector<2x64xf32>
    %1130 = arith.mulf %1125, %1129 : vector<2x64xf32>
    %c6_315 = arith.constant 6 : index
    %c0_316 = arith.constant 0 : index
    %1131 = vector.load %arg46[%c6_315, %c0_316] : memref<16x128xf32, #tpu.memory_space<vmem>>, vector<2x64xf32>
    tpu.vector_store %arg46[%c6_315, %c0_316], %1130 {strides = array<i32>} : memref<16x128xf32, #tpu.memory_space<vmem>>, vector<2x64xf32>,
    %1132 = vector.extract_strided_slice %943 {offsets = [8, 0], sizes = [2, 256], strides = [1, 1]} : vector<16x256xf32> to vector<2x256xf32>
    %1133 = arith.truncf %1104 : vector<2x64xf32> to vector<2x64xbf16>
    %cst_317 = arith.constant dense<0.000000e+00> : vector<2x256xf32>
    %1134 = tpu.matmul %1133, %945, %cst_317 {dimension_numbers = #tpu.dot_dimension_numbers<[1], [0], [0], [1], [0, 0, 1, 1], [], []>} : vector<2x64xbf16>, vector<64x256xbf16>, vector<2x256xf32> -> vector<2x256xf32>
    %1135 = arith.addf %1132, %1134 : vector<2x256xf32>
    %1136 = vector.extract_strided_slice %1135 {offsets = [0, 0], sizes = [2, 128], strides = [1, 1]} : vector<2x256xf32> to vector<2x128xf32>
    %1137 = arith.negf %1136 : vector<2x128xf32>
    %1138 = math.exp %1137 : vector<2x128xf32>
    %cst_318 = arith.constant 1.000000e+00 : f32
    %1139 = vector.broadcast %cst_318 : f32 to vector<2x128xf32>
    %1140 = arith.addf %1139, %1138 : vector<2x128xf32>
    %1141 = arith.divf %1139, %1140 : vector<2x128xf32>
    %1142 = vector.extract_strided_slice %1141 {offsets = [0, 0], sizes = [2, 64], strides = [1, 1]} : vector<2x128xf32> to vector<2x64xf32>
    %1143 = vector.extract_strided_slice %1141 {offsets = [0, 64], sizes = [2, 64], strides = [1, 1]} : vector<2x128xf32> to vector<2x64xf32>
    %1144 = vector.extract_strided_slice %1135 {offsets = [0, 128], sizes = [2, 64], strides = [1, 1]} : vector<2x256xf32> to vector<2x64xf32>
    %1145 = math.tanh %1144 : vector<2x64xf32>
    %1146 = vector.extract_strided_slice %1135 {offsets = [0, 192], sizes = [2, 64], strides = [1, 1]} : vector<2x256xf32> to vector<2x64xf32>
    %1147 = arith.negf %1146 : vector<2x64xf32>
    %1148 = math.exp %1147 : vector<2x64xf32>
    %cst_319 = arith.constant 1.000000e+00 : f32
    %1149 = vector.broadcast %cst_319 : f32 to vector<2x64xf32>
    %1150 = arith.addf %1149, %1148 : vector<2x64xf32>
    %1151 = arith.divf %1149, %1150 : vector<2x64xf32>
    %1152 = arith.mulf %1143, %1102 : vector<2x64xf32>
    %1153 = arith.mulf %1142, %1145 : vector<2x64xf32>
    %1154 = arith.addf %1152, %1153 : vector<2x64xf32>
    %1155 = math.tanh %1154 : vector<2x64xf32>
    %1156 = arith.mulf %1151, %1155 : vector<2x64xf32>
    %c8_320 = arith.constant 8 : index
    %c64_321 = arith.constant 64 : index
    %1157 = vector.load %arg46[%c8_320, %c64_321] : memref<16x128xf32, #tpu.memory_space<vmem>>, vector<2x64xf32>
    tpu.vector_store %arg46[%c8_320, %c64_321], %1156 {strides = array<i32>} : memref<16x128xf32, #tpu.memory_space<vmem>>, vector<2x64xf32>,
    %1158 = vector.extract_strided_slice %938 {offsets = [8, 0], sizes = [2, 256], strides = [1, 1]} : vector<16x256xf32> to vector<2x256xf32>
    %1159 = arith.truncf %1130 : vector<2x64xf32> to vector<2x64xbf16>
    %cst_322 = arith.constant dense<0.000000e+00> : vector<2x256xf32>
    %1160 = tpu.matmul %1159, %944, %cst_322 {dimension_numbers = #tpu.dot_dimension_numbers<[1], [0], [0], [1], [0, 0, 1, 1], [], []>} : vector<2x64xbf16>, vector<64x256xbf16>, vector<2x256xf32> -> vector<2x256xf32>
    %1161 = arith.addf %1158, %1160 : vector<2x256xf32>
    %1162 = vector.extract_strided_slice %1161 {offsets = [0, 0], sizes = [2, 128], strides = [1, 1]} : vector<2x256xf32> to vector<2x128xf32>
    %1163 = arith.negf %1162 : vector<2x128xf32>
    %1164 = math.exp %1163 : vector<2x128xf32>
    %cst_323 = arith.constant 1.000000e+00 : f32
    %1165 = vector.broadcast %cst_323 : f32 to vector<2x128xf32>
    %1166 = arith.addf %1165, %1164 : vector<2x128xf32>
    %1167 = arith.divf %1165, %1166 : vector<2x128xf32>
    %1168 = vector.extract_strided_slice %1167 {offsets = [0, 0], sizes = [2, 64], strides = [1, 1]} : vector<2x128xf32> to vector<2x64xf32>
    %1169 = vector.extract_strided_slice %1167 {offsets = [0, 64], sizes = [2, 64], strides = [1, 1]} : vector<2x128xf32> to vector<2x64xf32>
    %1170 = vector.extract_strided_slice %1161 {offsets = [0, 128], sizes = [2, 64], strides = [1, 1]} : vector<2x256xf32> to vector<2x64xf32>
    %1171 = math.tanh %1170 : vector<2x64xf32>
    %1172 = vector.extract_strided_slice %1161 {offsets = [0, 192], sizes = [2, 64], strides = [1, 1]} : vector<2x256xf32> to vector<2x64xf32>
    %1173 = arith.negf %1172 : vector<2x64xf32>
    %1174 = math.exp %1173 : vector<2x64xf32>
    %cst_324 = arith.constant 1.000000e+00 : f32
    %1175 = vector.broadcast %cst_324 : f32 to vector<2x64xf32>
    %1176 = arith.addf %1175, %1174 : vector<2x64xf32>
    %1177 = arith.divf %1175, %1176 : vector<2x64xf32>
    %1178 = arith.mulf %1169, %1128 : vector<2x64xf32>
    %1179 = arith.mulf %1168, %1171 : vector<2x64xf32>
    %1180 = arith.addf %1178, %1179 : vector<2x64xf32>
    %1181 = math.tanh %1180 : vector<2x64xf32>
    %1182 = arith.mulf %1177, %1181 : vector<2x64xf32>
    %c8_325 = arith.constant 8 : index
    %c0_326 = arith.constant 0 : index
    %1183 = vector.load %arg46[%c8_325, %c0_326] : memref<16x128xf32, #tpu.memory_space<vmem>>, vector<2x64xf32>
    tpu.vector_store %arg46[%c8_325, %c0_326], %1182 {strides = array<i32>} : memref<16x128xf32, #tpu.memory_space<vmem>>, vector<2x64xf32>,
    %1184 = vector.extract_strided_slice %943 {offsets = [6, 0], sizes = [2, 256], strides = [1, 1]} : vector<16x256xf32> to vector<2x256xf32>
    %1185 = arith.truncf %1156 : vector<2x64xf32> to vector<2x64xbf16>
    %cst_327 = arith.constant dense<0.000000e+00> : vector<2x256xf32>
    %1186 = tpu.matmul %1185, %945, %cst_327 {dimension_numbers = #tpu.dot_dimension_numbers<[1], [0], [0], [1], [0, 0, 1, 1], [], []>} : vector<2x64xbf16>, vector<64x256xbf16>, vector<2x256xf32> -> vector<2x256xf32>
    %1187 = arith.addf %1184, %1186 : vector<2x256xf32>
    %1188 = vector.extract_strided_slice %1187 {offsets = [0, 0], sizes = [2, 128], strides = [1, 1]} : vector<2x256xf32> to vector<2x128xf32>
    %1189 = arith.negf %1188 : vector<2x128xf32>
    %1190 = math.exp %1189 : vector<2x128xf32>
    %cst_328 = arith.constant 1.000000e+00 : f32
    %1191 = vector.broadcast %cst_328 : f32 to vector<2x128xf32>
    %1192 = arith.addf %1191, %1190 : vector<2x128xf32>
    %1193 = arith.divf %1191, %1192 : vector<2x128xf32>
    %1194 = vector.extract_strided_slice %1193 {offsets = [0, 0], sizes = [2, 64], strides = [1, 1]} : vector<2x128xf32> to vector<2x64xf32>
    %1195 = vector.extract_strided_slice %1193 {offsets = [0, 64], sizes = [2, 64], strides = [1, 1]} : vector<2x128xf32> to vector<2x64xf32>
    %1196 = vector.extract_strided_slice %1187 {offsets = [0, 128], sizes = [2, 64], strides = [1, 1]} : vector<2x256xf32> to vector<2x64xf32>
    %1197 = math.tanh %1196 : vector<2x64xf32>
    %1198 = vector.extract_strided_slice %1187 {offsets = [0, 192], sizes = [2, 64], strides = [1, 1]} : vector<2x256xf32> to vector<2x64xf32>
    %1199 = arith.negf %1198 : vector<2x64xf32>
    %1200 = math.exp %1199 : vector<2x64xf32>
    %cst_329 = arith.constant 1.000000e+00 : f32
    %1201 = vector.broadcast %cst_329 : f32 to vector<2x64xf32>
    %1202 = arith.addf %1201, %1200 : vector<2x64xf32>
    %1203 = arith.divf %1201, %1202 : vector<2x64xf32>
    %1204 = arith.mulf %1195, %1154 : vector<2x64xf32>
    %1205 = arith.mulf %1194, %1197 : vector<2x64xf32>
    %1206 = arith.addf %1204, %1205 : vector<2x64xf32>
    %1207 = math.tanh %1206 : vector<2x64xf32>
    %1208 = arith.mulf %1203, %1207 : vector<2x64xf32>
    %c6_330 = arith.constant 6 : index
    %c64_331 = arith.constant 64 : index
    %1209 = vector.load %arg46[%c6_330, %c64_331] : memref<16x128xf32, #tpu.memory_space<vmem>>, vector<2x64xf32>
    tpu.vector_store %arg46[%c6_330, %c64_331], %1208 {strides = array<i32>} : memref<16x128xf32, #tpu.memory_space<vmem>>, vector<2x64xf32>,
    %1210 = vector.extract_strided_slice %938 {offsets = [10, 0], sizes = [2, 256], strides = [1, 1]} : vector<16x256xf32> to vector<2x256xf32>
    %1211 = arith.truncf %1182 : vector<2x64xf32> to vector<2x64xbf16>
    %cst_332 = arith.constant dense<0.000000e+00> : vector<2x256xf32>
    %1212 = tpu.matmul %1211, %944, %cst_332 {dimension_numbers = #tpu.dot_dimension_numbers<[1], [0], [0], [1], [0, 0, 1, 1], [], []>} : vector<2x64xbf16>, vector<64x256xbf16>, vector<2x256xf32> -> vector<2x256xf32>
    %1213 = arith.addf %1210, %1212 : vector<2x256xf32>
    %1214 = vector.extract_strided_slice %1213 {offsets = [0, 0], sizes = [2, 128], strides = [1, 1]} : vector<2x256xf32> to vector<2x128xf32>
    %1215 = arith.negf %1214 : vector<2x128xf32>
    %1216 = math.exp %1215 : vector<2x128xf32>
    %cst_333 = arith.constant 1.000000e+00 : f32
    %1217 = vector.broadcast %cst_333 : f32 to vector<2x128xf32>
    %1218 = arith.addf %1217, %1216 : vector<2x128xf32>
    %1219 = arith.divf %1217, %1218 : vector<2x128xf32>
    %1220 = vector.extract_strided_slice %1219 {offsets = [0, 0], sizes = [2, 64], strides = [1, 1]} : vector<2x128xf32> to vector<2x64xf32>
    %1221 = vector.extract_strided_slice %1219 {offsets = [0, 64], sizes = [2, 64], strides = [1, 1]} : vector<2x128xf32> to vector<2x64xf32>
    %1222 = vector.extract_strided_slice %1213 {offsets = [0, 128], sizes = [2, 64], strides = [1, 1]} : vector<2x256xf32> to vector<2x64xf32>
    %1223 = math.tanh %1222 : vector<2x64xf32>
    %1224 = vector.extract_strided_slice %1213 {offsets = [0, 192], sizes = [2, 64], strides = [1, 1]} : vector<2x256xf32> to vector<2x64xf32>
    %1225 = arith.negf %1224 : vector<2x64xf32>
    %1226 = math.exp %1225 : vector<2x64xf32>
    %cst_334 = arith.constant 1.000000e+00 : f32
    %1227 = vector.broadcast %cst_334 : f32 to vector<2x64xf32>
    %1228 = arith.addf %1227, %1226 : vector<2x64xf32>
    %1229 = arith.divf %1227, %1228 : vector<2x64xf32>
    %1230 = arith.mulf %1221, %1180 : vector<2x64xf32>
    %1231 = arith.mulf %1220, %1223 : vector<2x64xf32>
    %1232 = arith.addf %1230, %1231 : vector<2x64xf32>
    %1233 = math.tanh %1232 : vector<2x64xf32>
    %1234 = arith.mulf %1229, %1233 : vector<2x64xf32>
    %c10_335 = arith.constant 10 : index
    %c0_336 = arith.constant 0 : index
    %1235 = vector.load %arg46[%c10_335, %c0_336] : memref<16x128xf32, #tpu.memory_space<vmem>>, vector<2x64xf32>
    tpu.vector_store %arg46[%c10_335, %c0_336], %1234 {strides = array<i32>} : memref<16x128xf32, #tpu.memory_space<vmem>>, vector<2x64xf32>,
    %1236 = vector.extract_strided_slice %943 {offsets = [4, 0], sizes = [2, 256], strides = [1, 1]} : vector<16x256xf32> to vector<2x256xf32>
    %1237 = arith.truncf %1208 : vector<2x64xf32> to vector<2x64xbf16>
    %cst_337 = arith.constant dense<0.000000e+00> : vector<2x256xf32>
    %1238 = tpu.matmul %1237, %945, %cst_337 {dimension_numbers = #tpu.dot_dimension_numbers<[1], [0], [0], [1], [0, 0, 1, 1], [], []>} : vector<2x64xbf16>, vector<64x256xbf16>, vector<2x256xf32> -> vector<2x256xf32>
    %1239 = arith.addf %1236, %1238 : vector<2x256xf32>
    %1240 = vector.extract_strided_slice %1239 {offsets = [0, 0], sizes = [2, 128], strides = [1, 1]} : vector<2x256xf32> to vector<2x128xf32>
    %1241 = arith.negf %1240 : vector<2x128xf32>
    %1242 = math.exp %1241 : vector<2x128xf32>
    %cst_338 = arith.constant 1.000000e+00 : f32
    %1243 = vector.broadcast %cst_338 : f32 to vector<2x128xf32>
    %1244 = arith.addf %1243, %1242 : vector<2x128xf32>
    %1245 = arith.divf %1243, %1244 : vector<2x128xf32>
    %1246 = vector.extract_strided_slice %1245 {offsets = [0, 0], sizes = [2, 64], strides = [1, 1]} : vector<2x128xf32> to vector<2x64xf32>
    %1247 = vector.extract_strided_slice %1245 {offsets = [0, 64], sizes = [2, 64], strides = [1, 1]} : vector<2x128xf32> to vector<2x64xf32>
    %1248 = vector.extract_strided_slice %1239 {offsets = [0, 128], sizes = [2, 64], strides = [1, 1]} : vector<2x256xf32> to vector<2x64xf32>
    %1249 = math.tanh %1248 : vector<2x64xf32>
    %1250 = vector.extract_strided_slice %1239 {offsets = [0, 192], sizes = [2, 64], strides = [1, 1]} : vector<2x256xf32> to vector<2x64xf32>
    %1251 = arith.negf %1250 : vector<2x64xf32>
    %1252 = math.exp %1251 : vector<2x64xf32>
    %cst_339 = arith.constant 1.000000e+00 : f32
    %1253 = vector.broadcast %cst_339 : f32 to vector<2x64xf32>
    %1254 = arith.addf %1253, %1252 : vector<2x64xf32>
    %1255 = arith.divf %1253, %1254 : vector<2x64xf32>
    %1256 = arith.mulf %1247, %1206 : vector<2x64xf32>
    %1257 = arith.mulf %1246, %1249 : vector<2x64xf32>
    %1258 = arith.addf %1256, %1257 : vector<2x64xf32>
    %1259 = math.tanh %1258 : vector<2x64xf32>
    %1260 = arith.mulf %1255, %1259 : vector<2x64xf32>
    %c4_340 = arith.constant 4 : index
    %c64_341 = arith.constant 64 : index
    %1261 = vector.load %arg46[%c4_340, %c64_341] : memref<16x128xf32, #tpu.memory_space<vmem>>, vector<2x64xf32>
    tpu.vector_store %arg46[%c4_340, %c64_341], %1260 {strides = array<i32>} : memref<16x128xf32, #tpu.memory_space<vmem>>, vector<2x64xf32>,
    %1262 = vector.extract_strided_slice %938 {offsets = [12, 0], sizes = [2, 256], strides = [1, 1]} : vector<16x256xf32> to vector<2x256xf32>
    %1263 = arith.truncf %1234 : vector<2x64xf32> to vector<2x64xbf16>
    %cst_342 = arith.constant dense<0.000000e+00> : vector<2x256xf32>
    %1264 = tpu.matmul %1263, %944, %cst_342 {dimension_numbers = #tpu.dot_dimension_numbers<[1], [0], [0], [1], [0, 0, 1, 1], [], []>} : vector<2x64xbf16>, vector<64x256xbf16>, vector<2x256xf32> -> vector<2x256xf32>
    %1265 = arith.addf %1262, %1264 : vector<2x256xf32>
    %1266 = vector.extract_strided_slice %1265 {offsets = [0, 0], sizes = [2, 128], strides = [1, 1]} : vector<2x256xf32> to vector<2x128xf32>
    %1267 = arith.negf %1266 : vector<2x128xf32>
    %1268 = math.exp %1267 : vector<2x128xf32>
    %cst_343 = arith.constant 1.000000e+00 : f32
    %1269 = vector.broadcast %cst_343 : f32 to vector<2x128xf32>
    %1270 = arith.addf %1269, %1268 : vector<2x128xf32>
    %1271 = arith.divf %1269, %1270 : vector<2x128xf32>
    %1272 = vector.extract_strided_slice %1271 {offsets = [0, 0], sizes = [2, 64], strides = [1, 1]} : vector<2x128xf32> to vector<2x64xf32>
    %1273 = vector.extract_strided_slice %1271 {offsets = [0, 64], sizes = [2, 64], strides = [1, 1]} : vector<2x128xf32> to vector<2x64xf32>
    %1274 = vector.extract_strided_slice %1265 {offsets = [0, 128], sizes = [2, 64], strides = [1, 1]} : vector<2x256xf32> to vector<2x64xf32>
    %1275 = math.tanh %1274 : vector<2x64xf32>
    %1276 = vector.extract_strided_slice %1265 {offsets = [0, 192], sizes = [2, 64], strides = [1, 1]} : vector<2x256xf32> to vector<2x64xf32>
    %1277 = arith.negf %1276 : vector<2x64xf32>
    %1278 = math.exp %1277 : vector<2x64xf32>
    %cst_344 = arith.constant 1.000000e+00 : f32
    %1279 = vector.broadcast %cst_344 : f32 to vector<2x64xf32>
    %1280 = arith.addf %1279, %1278 : vector<2x64xf32>
    %1281 = arith.divf %1279, %1280 : vector<2x64xf32>
    %1282 = arith.mulf %1273, %1232 : vector<2x64xf32>
    %1283 = arith.mulf %1272, %1275 : vector<2x64xf32>
    %1284 = arith.addf %1282, %1283 : vector<2x64xf32>
    %1285 = math.tanh %1284 : vector<2x64xf32>
    %1286 = arith.mulf %1281, %1285 : vector<2x64xf32>
    %c12_345 = arith.constant 12 : index
    %c0_346 = arith.constant 0 : index
    %1287 = vector.load %arg46[%c12_345, %c0_346] : memref<16x128xf32, #tpu.memory_space<vmem>>, vector<2x64xf32>
    tpu.vector_store %arg46[%c12_345, %c0_346], %1286 {strides = array<i32>} : memref<16x128xf32, #tpu.memory_space<vmem>>, vector<2x64xf32>,
    %1288 = vector.extract_strided_slice %943 {offsets = [2, 0], sizes = [2, 256], strides = [1, 1]} : vector<16x256xf32> to vector<2x256xf32>
    %1289 = arith.truncf %1260 : vector<2x64xf32> to vector<2x64xbf16>
    %cst_347 = arith.constant dense<0.000000e+00> : vector<2x256xf32>
    %1290 = tpu.matmul %1289, %945, %cst_347 {dimension_numbers = #tpu.dot_dimension_numbers<[1], [0], [0], [1], [0, 0, 1, 1], [], []>} : vector<2x64xbf16>, vector<64x256xbf16>, vector<2x256xf32> -> vector<2x256xf32>
    %1291 = arith.addf %1288, %1290 : vector<2x256xf32>
    %1292 = vector.extract_strided_slice %1291 {offsets = [0, 0], sizes = [2, 128], strides = [1, 1]} : vector<2x256xf32> to vector<2x128xf32>
    %1293 = arith.negf %1292 : vector<2x128xf32>
    %1294 = math.exp %1293 : vector<2x128xf32>
    %cst_348 = arith.constant 1.000000e+00 : f32
    %1295 = vector.broadcast %cst_348 : f32 to vector<2x128xf32>
    %1296 = arith.addf %1295, %1294 : vector<2x128xf32>
    %1297 = arith.divf %1295, %1296 : vector<2x128xf32>
    %1298 = vector.extract_strided_slice %1297 {offsets = [0, 0], sizes = [2, 64], strides = [1, 1]} : vector<2x128xf32> to vector<2x64xf32>
    %1299 = vector.extract_strided_slice %1297 {offsets = [0, 64], sizes = [2, 64], strides = [1, 1]} : vector<2x128xf32> to vector<2x64xf32>
    %1300 = vector.extract_strided_slice %1291 {offsets = [0, 128], sizes = [2, 64], strides = [1, 1]} : vector<2x256xf32> to vector<2x64xf32>
    %1301 = math.tanh %1300 : vector<2x64xf32>
    %1302 = vector.extract_strided_slice %1291 {offsets = [0, 192], sizes = [2, 64], strides = [1, 1]} : vector<2x256xf32> to vector<2x64xf32>
    %1303 = arith.negf %1302 : vector<2x64xf32>
    %1304 = math.exp %1303 : vector<2x64xf32>
    %cst_349 = arith.constant 1.000000e+00 : f32
    %1305 = vector.broadcast %cst_349 : f32 to vector<2x64xf32>
    %1306 = arith.addf %1305, %1304 : vector<2x64xf32>
    %1307 = arith.divf %1305, %1306 : vector<2x64xf32>
    %1308 = arith.mulf %1299, %1258 : vector<2x64xf32>
    %1309 = arith.mulf %1298, %1301 : vector<2x64xf32>
    %1310 = arith.addf %1308, %1309 : vector<2x64xf32>
    %1311 = math.tanh %1310 : vector<2x64xf32>
    %1312 = arith.mulf %1307, %1311 : vector<2x64xf32>
    %c2_350 = arith.constant 2 : index
    %c64_351 = arith.constant 64 : index
    %1313 = vector.load %arg46[%c2_350, %c64_351] : memref<16x128xf32, #tpu.memory_space<vmem>>, vector<2x64xf32>
    tpu.vector_store %arg46[%c2_350, %c64_351], %1312 {strides = array<i32>} : memref<16x128xf32, #tpu.memory_space<vmem>>, vector<2x64xf32>,
    %1314 = vector.extract_strided_slice %938 {offsets = [14, 0], sizes = [2, 256], strides = [1, 1]} : vector<16x256xf32> to vector<2x256xf32>
    %1315 = arith.truncf %1286 : vector<2x64xf32> to vector<2x64xbf16>
    %cst_352 = arith.constant dense<0.000000e+00> : vector<2x256xf32>
    %1316 = tpu.matmul %1315, %944, %cst_352 {dimension_numbers = #tpu.dot_dimension_numbers<[1], [0], [0], [1], [0, 0, 1, 1], [], []>} : vector<2x64xbf16>, vector<64x256xbf16>, vector<2x256xf32> -> vector<2x256xf32>
    %1317 = arith.addf %1314, %1316 : vector<2x256xf32>
    %1318 = vector.extract_strided_slice %1317 {offsets = [0, 0], sizes = [2, 128], strides = [1, 1]} : vector<2x256xf32> to vector<2x128xf32>
    %1319 = arith.negf %1318 : vector<2x128xf32>
    %1320 = math.exp %1319 : vector<2x128xf32>
    %cst_353 = arith.constant 1.000000e+00 : f32
    %1321 = vector.broadcast %cst_353 : f32 to vector<2x128xf32>
    %1322 = arith.addf %1321, %1320 : vector<2x128xf32>
    %1323 = arith.divf %1321, %1322 : vector<2x128xf32>
    %1324 = vector.extract_strided_slice %1323 {offsets = [0, 0], sizes = [2, 64], strides = [1, 1]} : vector<2x128xf32> to vector<2x64xf32>
    %1325 = vector.extract_strided_slice %1323 {offsets = [0, 64], sizes = [2, 64], strides = [1, 1]} : vector<2x128xf32> to vector<2x64xf32>
    %1326 = vector.extract_strided_slice %1317 {offsets = [0, 128], sizes = [2, 64], strides = [1, 1]} : vector<2x256xf32> to vector<2x64xf32>
    %1327 = math.tanh %1326 : vector<2x64xf32>
    %1328 = vector.extract_strided_slice %1317 {offsets = [0, 192], sizes = [2, 64], strides = [1, 1]} : vector<2x256xf32> to vector<2x64xf32>
    %1329 = arith.negf %1328 : vector<2x64xf32>
    %1330 = math.exp %1329 : vector<2x64xf32>
    %cst_354 = arith.constant 1.000000e+00 : f32
    %1331 = vector.broadcast %cst_354 : f32 to vector<2x64xf32>
    %1332 = arith.addf %1331, %1330 : vector<2x64xf32>
    %1333 = arith.divf %1331, %1332 : vector<2x64xf32>
    %1334 = arith.mulf %1325, %1284 : vector<2x64xf32>
    %1335 = arith.mulf %1324, %1327 : vector<2x64xf32>
    %1336 = arith.addf %1334, %1335 : vector<2x64xf32>
    %1337 = math.tanh %1336 : vector<2x64xf32>
    %1338 = arith.mulf %1333, %1337 : vector<2x64xf32>
    %c14_355 = arith.constant 14 : index
    %c0_356 = arith.constant 0 : index
    %1339 = vector.load %arg46[%c14_355, %c0_356] : memref<16x128xf32, #tpu.memory_space<vmem>>, vector<2x64xf32>
    tpu.vector_store %arg46[%c14_355, %c0_356], %1338 {strides = array<i32>} : memref<16x128xf32, #tpu.memory_space<vmem>>, vector<2x64xf32>,
    %1340 = vector.extract_strided_slice %943 {offsets = [0, 0], sizes = [2, 256], strides = [1, 1]} : vector<16x256xf32> to vector<2x256xf32>
    %1341 = arith.truncf %1312 : vector<2x64xf32> to vector<2x64xbf16>
    %cst_357 = arith.constant dense<0.000000e+00> : vector<2x256xf32>
    %1342 = tpu.matmul %1341, %945, %cst_357 {dimension_numbers = #tpu.dot_dimension_numbers<[1], [0], [0], [1], [0, 0, 1, 1], [], []>} : vector<2x64xbf16>, vector<64x256xbf16>, vector<2x256xf32> -> vector<2x256xf32>
    %1343 = arith.addf %1340, %1342 : vector<2x256xf32>
    %1344 = vector.extract_strided_slice %1343 {offsets = [0, 0], sizes = [2, 128], strides = [1, 1]} : vector<2x256xf32> to vector<2x128xf32>
    %1345 = arith.negf %1344 : vector<2x128xf32>
    %1346 = math.exp %1345 : vector<2x128xf32>
    %cst_358 = arith.constant 1.000000e+00 : f32
    %1347 = vector.broadcast %cst_358 : f32 to vector<2x128xf32>
    %1348 = arith.addf %1347, %1346 : vector<2x128xf32>
    %1349 = arith.divf %1347, %1348 : vector<2x128xf32>
    %1350 = vector.extract_strided_slice %1349 {offsets = [0, 0], sizes = [2, 64], strides = [1, 1]} : vector<2x128xf32> to vector<2x64xf32>
    %1351 = vector.extract_strided_slice %1349 {offsets = [0, 64], sizes = [2, 64], strides = [1, 1]} : vector<2x128xf32> to vector<2x64xf32>
    %1352 = vector.extract_strided_slice %1343 {offsets = [0, 128], sizes = [2, 64], strides = [1, 1]} : vector<2x256xf32> to vector<2x64xf32>
    %1353 = math.tanh %1352 : vector<2x64xf32>
    %1354 = vector.extract_strided_slice %1343 {offsets = [0, 192], sizes = [2, 64], strides = [1, 1]} : vector<2x256xf32> to vector<2x64xf32>
    %1355 = arith.negf %1354 : vector<2x64xf32>
    %1356 = math.exp %1355 : vector<2x64xf32>
    %cst_359 = arith.constant 1.000000e+00 : f32
    %1357 = vector.broadcast %cst_359 : f32 to vector<2x64xf32>
    %1358 = arith.addf %1357, %1356 : vector<2x64xf32>
    %1359 = arith.divf %1357, %1358 : vector<2x64xf32>
    %1360 = arith.mulf %1351, %1310 : vector<2x64xf32>
    %1361 = arith.mulf %1350, %1353 : vector<2x64xf32>
    %1362 = arith.addf %1360, %1361 : vector<2x64xf32>
    %1363 = math.tanh %1362 : vector<2x64xf32>
    %1364 = arith.mulf %1359, %1363 : vector<2x64xf32>
    %c0_360 = arith.constant 0 : index
    %c64_361 = arith.constant 64 : index
    %1365 = vector.load %arg46[%c0_360, %c64_361] : memref<16x128xf32, #tpu.memory_space<vmem>>, vector<2x64xf32>
    tpu.vector_store %arg46[%c0_360, %c64_361], %1364 {strides = array<i32>} : memref<16x128xf32, #tpu.memory_space<vmem>>, vector<2x64xf32>,
    %c0_362 = arith.constant 0 : index
    %c0_363 = arith.constant 0 : index
    %1366 = vector.load %arg46[%c0_362, %c0_363] : memref<16x128xf32, #tpu.memory_space<vmem>>, vector<16x128xf32>
    %1367 = arith.truncf %1366 : vector<16x128xf32> to vector<16x128xbf16>
    %c0_364 = arith.constant 0 : index
    %c0_365 = arith.constant 0 : index
    %1368 = vector.load %arg22[%c0_364, %c0_365] : memref<128x384xbf16, #tpu.memory_space<vmem>>, vector<128x384xbf16>
    %cst_366 = arith.constant dense<0.000000e+00> : vector<16x384xf32>
    %1369 = tpu.matmul %1367, %1368, %cst_366 {dimension_numbers = #tpu.dot_dimension_numbers<[1], [0], [0], [1], [0, 0, 1, 1], [], []>} : vector<16x128xbf16>, vector<128x384xbf16>, vector<16x384xf32> -> vector<16x384xf32>
    %c0_367 = arith.constant 0 : index
    %c0_368 = arith.constant 0 : index
    %1370 = vector.load %arg23[%c0_367, %c0_368] : memref<1x384xf32, #tpu.memory_space<vmem>>, vector<1x384xf32>
    %1371 = vector.broadcast %1370 : vector<1x384xf32> to vector<16x384xf32>
    %1372 = arith.addf %1369, %1371 : vector<16x384xf32>
    %c0_369 = arith.constant 0 : index
    %c0_370 = arith.constant 0 : index
    %1373 = vector.load %arg3[%c0_369, %c0_370] : memref<16x16xf32, #tpu.memory_space<vmem>>, vector<16x16xf32>
    %1374 = vector.extract_strided_slice %1372 {offsets = [0, 0], sizes = [16, 16], strides = [1, 1]} : vector<16x384xf32> to vector<16x16xf32>
    %1375 = arith.truncf %1374 : vector<16x16xf32> to vector<16x16xbf16>
    %1376 = vector.extract_strided_slice %1372 {offsets = [0, 128], sizes = [16, 16], strides = [1, 1]} : vector<16x384xf32> to vector<16x16xf32>
    %1377 = arith.truncf %1376 : vector<16x16xf32> to vector<16x16xbf16>
    %1378 = vector.extract_strided_slice %1372 {offsets = [0, 256], sizes = [16, 16], strides = [1, 1]} : vector<16x384xf32> to vector<16x16xf32>
    %1379 = arith.truncf %1378 : vector<16x16xf32> to vector<16x16xbf16>
    %cst_371 = arith.constant dense<0.000000e+00> : vector<16x16xf32>
    %1380 = tpu.matmul %1375, %1377, %cst_371 {dimension_numbers = #tpu.dot_dimension_numbers<[1], [1], [0], [0], [0, 0, 1, 0], [], []>} : vector<16x16xbf16>, vector<16x16xbf16>, vector<16x16xf32> -> vector<16x16xf32>
    %1381 = arith.addf %1380, %1373 : vector<16x16xf32>
    %cst_372 = arith.constant dense<0xFF800000> : vector<16xf32>
    %1382 = vector.multi_reduction <maximumf>, %1381, %cst_372 [1] : vector<16x16xf32> to vector<16xf32>
    %1383 = vector.shape_cast %1382 : vector<16xf32> to vector<16x1xf32>
    %1384 = vector.broadcast %1383 : vector<16x1xf32> to vector<16x16xf32>
    %1385 = arith.subf %1381, %1384 : vector<16x16xf32>
    %1386 = math.exp %1385 : vector<16x16xf32>
    %cst_373 = arith.constant dense<0.000000e+00> : vector<16xf32>
    %1387 = vector.multi_reduction <add>, %1386, %cst_373 [1] : vector<16x16xf32> to vector<16xf32>
    %1388 = vector.shape_cast %1387 : vector<16xf32> to vector<16x1xf32>
    %1389 = tpu.reciprocal %1388 {approx = true} : vector<16x1xf32> -> vector<16x1xf32>
    %1390 = vector.broadcast %1389 : vector<16x1xf32> to vector<16x16xf32>
    %1391 = arith.mulf %1386, %1390 : vector<16x16xf32>
    %1392 = arith.truncf %1391 : vector<16x16xf32> to vector<16x16xbf16>
    %cst_374 = arith.constant dense<0.000000e+00> : vector<16x16xf32>
    %1393 = tpu.matmul %1392, %1379, %cst_374 {dimension_numbers = #tpu.dot_dimension_numbers<[1], [0], [0], [1], [0, 0, 1, 1], [], []>} : vector<16x16xbf16>, vector<16x16xbf16>, vector<16x16xf32> -> vector<16x16xf32>
    %c0_375 = arith.constant 0 : index
    %c0_376 = arith.constant 0 : index
    %1394 = vector.load %arg47[%c0_375, %c0_376] : memref<16x128xf32, #tpu.memory_space<vmem>>, vector<16x16xf32>
    tpu.vector_store %arg47[%c0_375, %c0_376], %1393 {strides = array<i32>} : memref<16x128xf32, #tpu.memory_space<vmem>>, vector<16x16xf32>,
    %1395 = vector.extract_strided_slice %1372 {offsets = [0, 16], sizes = [16, 16], strides = [1, 1]} : vector<16x384xf32> to vector<16x16xf32>
    %1396 = arith.truncf %1395 : vector<16x16xf32> to vector<16x16xbf16>
    %1397 = vector.extract_strided_slice %1372 {offsets = [0, 144], sizes = [16, 16], strides = [1, 1]} : vector<16x384xf32> to vector<16x16xf32>
    %1398 = arith.truncf %1397 : vector<16x16xf32> to vector<16x16xbf16>
    %1399 = vector.extract_strided_slice %1372 {offsets = [0, 272], sizes = [16, 16], strides = [1, 1]} : vector<16x384xf32> to vector<16x16xf32>
    %1400 = arith.truncf %1399 : vector<16x16xf32> to vector<16x16xbf16>
    %cst_377 = arith.constant dense<0.000000e+00> : vector<16x16xf32>
    %1401 = tpu.matmul %1396, %1398, %cst_377 {dimension_numbers = #tpu.dot_dimension_numbers<[1], [1], [0], [0], [0, 0, 1, 0], [], []>} : vector<16x16xbf16>, vector<16x16xbf16>, vector<16x16xf32> -> vector<16x16xf32>
    %1402 = arith.addf %1401, %1373 : vector<16x16xf32>
    %cst_378 = arith.constant dense<0xFF800000> : vector<16xf32>
    %1403 = vector.multi_reduction <maximumf>, %1402, %cst_378 [1] : vector<16x16xf32> to vector<16xf32>
    %1404 = vector.shape_cast %1403 : vector<16xf32> to vector<16x1xf32>
    %1405 = vector.broadcast %1404 : vector<16x1xf32> to vector<16x16xf32>
    %1406 = arith.subf %1402, %1405 : vector<16x16xf32>
    %1407 = math.exp %1406 : vector<16x16xf32>
    %cst_379 = arith.constant dense<0.000000e+00> : vector<16xf32>
    %1408 = vector.multi_reduction <add>, %1407, %cst_379 [1] : vector<16x16xf32> to vector<16xf32>
    %1409 = vector.shape_cast %1408 : vector<16xf32> to vector<16x1xf32>
    %1410 = tpu.reciprocal %1409 {approx = true} : vector<16x1xf32> -> vector<16x1xf32>
    %1411 = vector.broadcast %1410 : vector<16x1xf32> to vector<16x16xf32>
    %1412 = arith.mulf %1407, %1411 : vector<16x16xf32>
    %1413 = arith.truncf %1412 : vector<16x16xf32> to vector<16x16xbf16>
    %cst_380 = arith.constant dense<0.000000e+00> : vector<16x16xf32>
    %1414 = tpu.matmul %1413, %1400, %cst_380 {dimension_numbers = #tpu.dot_dimension_numbers<[1], [0], [0], [1], [0, 0, 1, 1], [], []>} : vector<16x16xbf16>, vector<16x16xbf16>, vector<16x16xf32> -> vector<16x16xf32>
    %c0_381 = arith.constant 0 : index
    %c16 = arith.constant 16 : index
    %1415 = vector.load %arg47[%c0_381, %c16] : memref<16x128xf32, #tpu.memory_space<vmem>>, vector<16x16xf32>
    tpu.vector_store %arg47[%c0_381, %c16], %1414 {strides = array<i32>} : memref<16x128xf32, #tpu.memory_space<vmem>>, vector<16x16xf32>,
    %1416 = vector.extract_strided_slice %1372 {offsets = [0, 32], sizes = [16, 16], strides = [1, 1]} : vector<16x384xf32> to vector<16x16xf32>
    %1417 = arith.truncf %1416 : vector<16x16xf32> to vector<16x16xbf16>
    %1418 = vector.extract_strided_slice %1372 {offsets = [0, 160], sizes = [16, 16], strides = [1, 1]} : vector<16x384xf32> to vector<16x16xf32>
    %1419 = arith.truncf %1418 : vector<16x16xf32> to vector<16x16xbf16>
    %1420 = vector.extract_strided_slice %1372 {offsets = [0, 288], sizes = [16, 16], strides = [1, 1]} : vector<16x384xf32> to vector<16x16xf32>
    %1421 = arith.truncf %1420 : vector<16x16xf32> to vector<16x16xbf16>
    %cst_382 = arith.constant dense<0.000000e+00> : vector<16x16xf32>
    %1422 = tpu.matmul %1417, %1419, %cst_382 {dimension_numbers = #tpu.dot_dimension_numbers<[1], [1], [0], [0], [0, 0, 1, 0], [], []>} : vector<16x16xbf16>, vector<16x16xbf16>, vector<16x16xf32> -> vector<16x16xf32>
    %1423 = arith.addf %1422, %1373 : vector<16x16xf32>
    %cst_383 = arith.constant dense<0xFF800000> : vector<16xf32>
    %1424 = vector.multi_reduction <maximumf>, %1423, %cst_383 [1] : vector<16x16xf32> to vector<16xf32>
    %1425 = vector.shape_cast %1424 : vector<16xf32> to vector<16x1xf32>
    %1426 = vector.broadcast %1425 : vector<16x1xf32> to vector<16x16xf32>
    %1427 = arith.subf %1423, %1426 : vector<16x16xf32>
    %1428 = math.exp %1427 : vector<16x16xf32>
    %cst_384 = arith.constant dense<0.000000e+00> : vector<16xf32>
    %1429 = vector.multi_reduction <add>, %1428, %cst_384 [1] : vector<16x16xf32> to vector<16xf32>
    %1430 = vector.shape_cast %1429 : vector<16xf32> to vector<16x1xf32>
    %1431 = tpu.reciprocal %1430 {approx = true} : vector<16x1xf32> -> vector<16x1xf32>
    %1432 = vector.broadcast %1431 : vector<16x1xf32> to vector<16x16xf32>
    %1433 = arith.mulf %1428, %1432 : vector<16x16xf32>
    %1434 = arith.truncf %1433 : vector<16x16xf32> to vector<16x16xbf16>
    %cst_385 = arith.constant dense<0.000000e+00> : vector<16x16xf32>
    %1435 = tpu.matmul %1434, %1421, %cst_385 {dimension_numbers = #tpu.dot_dimension_numbers<[1], [0], [0], [1], [0, 0, 1, 1], [], []>} : vector<16x16xbf16>, vector<16x16xbf16>, vector<16x16xf32> -> vector<16x16xf32>
    %c0_386 = arith.constant 0 : index
    %c32 = arith.constant 32 : index
    %1436 = vector.load %arg47[%c0_386, %c32] : memref<16x128xf32, #tpu.memory_space<vmem>>, vector<16x16xf32>
    tpu.vector_store %arg47[%c0_386, %c32], %1435 {strides = array<i32>} : memref<16x128xf32, #tpu.memory_space<vmem>>, vector<16x16xf32>,
    %1437 = vector.extract_strided_slice %1372 {offsets = [0, 48], sizes = [16, 16], strides = [1, 1]} : vector<16x384xf32> to vector<16x16xf32>
    %1438 = arith.truncf %1437 : vector<16x16xf32> to vector<16x16xbf16>
    %1439 = vector.extract_strided_slice %1372 {offsets = [0, 176], sizes = [16, 16], strides = [1, 1]} : vector<16x384xf32> to vector<16x16xf32>
    %1440 = arith.truncf %1439 : vector<16x16xf32> to vector<16x16xbf16>
    %1441 = vector.extract_strided_slice %1372 {offsets = [0, 304], sizes = [16, 16], strides = [1, 1]} : vector<16x384xf32> to vector<16x16xf32>
    %1442 = arith.truncf %1441 : vector<16x16xf32> to vector<16x16xbf16>
    %cst_387 = arith.constant dense<0.000000e+00> : vector<16x16xf32>
    %1443 = tpu.matmul %1438, %1440, %cst_387 {dimension_numbers = #tpu.dot_dimension_numbers<[1], [1], [0], [0], [0, 0, 1, 0], [], []>} : vector<16x16xbf16>, vector<16x16xbf16>, vector<16x16xf32> -> vector<16x16xf32>
    %1444 = arith.addf %1443, %1373 : vector<16x16xf32>
    %cst_388 = arith.constant dense<0xFF800000> : vector<16xf32>
    %1445 = vector.multi_reduction <maximumf>, %1444, %cst_388 [1] : vector<16x16xf32> to vector<16xf32>
    %1446 = vector.shape_cast %1445 : vector<16xf32> to vector<16x1xf32>
    %1447 = vector.broadcast %1446 : vector<16x1xf32> to vector<16x16xf32>
    %1448 = arith.subf %1444, %1447 : vector<16x16xf32>
    %1449 = math.exp %1448 : vector<16x16xf32>
    %cst_389 = arith.constant dense<0.000000e+00> : vector<16xf32>
    %1450 = vector.multi_reduction <add>, %1449, %cst_389 [1] : vector<16x16xf32> to vector<16xf32>
    %1451 = vector.shape_cast %1450 : vector<16xf32> to vector<16x1xf32>
    %1452 = tpu.reciprocal %1451 {approx = true} : vector<16x1xf32> -> vector<16x1xf32>
    %1453 = vector.broadcast %1452 : vector<16x1xf32> to vector<16x16xf32>
    %1454 = arith.mulf %1449, %1453 : vector<16x16xf32>
    %1455 = arith.truncf %1454 : vector<16x16xf32> to vector<16x16xbf16>
    %cst_390 = arith.constant dense<0.000000e+00> : vector<16x16xf32>
    %1456 = tpu.matmul %1455, %1442, %cst_390 {dimension_numbers = #tpu.dot_dimension_numbers<[1], [0], [0], [1], [0, 0, 1, 1], [], []>} : vector<16x16xbf16>, vector<16x16xbf16>, vector<16x16xf32> -> vector<16x16xf32>
    %c0_391 = arith.constant 0 : index
    %c48 = arith.constant 48 : index
    %1457 = vector.load %arg47[%c0_391, %c48] : memref<16x128xf32, #tpu.memory_space<vmem>>, vector<16x16xf32>
    tpu.vector_store %arg47[%c0_391, %c48], %1456 {strides = array<i32>} : memref<16x128xf32, #tpu.memory_space<vmem>>, vector<16x16xf32>,
    %1458 = vector.extract_strided_slice %1372 {offsets = [0, 64], sizes = [16, 16], strides = [1, 1]} : vector<16x384xf32> to vector<16x16xf32>
    %1459 = arith.truncf %1458 : vector<16x16xf32> to vector<16x16xbf16>
    %1460 = vector.extract_strided_slice %1372 {offsets = [0, 192], sizes = [16, 16], strides = [1, 1]} : vector<16x384xf32> to vector<16x16xf32>
    %1461 = arith.truncf %1460 : vector<16x16xf32> to vector<16x16xbf16>
    %1462 = vector.extract_strided_slice %1372 {offsets = [0, 320], sizes = [16, 16], strides = [1, 1]} : vector<16x384xf32> to vector<16x16xf32>
    %1463 = arith.truncf %1462 : vector<16x16xf32> to vector<16x16xbf16>
    %cst_392 = arith.constant dense<0.000000e+00> : vector<16x16xf32>
    %1464 = tpu.matmul %1459, %1461, %cst_392 {dimension_numbers = #tpu.dot_dimension_numbers<[1], [1], [0], [0], [0, 0, 1, 0], [], []>} : vector<16x16xbf16>, vector<16x16xbf16>, vector<16x16xf32> -> vector<16x16xf32>
    %1465 = arith.addf %1464, %1373 : vector<16x16xf32>
    %cst_393 = arith.constant dense<0xFF800000> : vector<16xf32>
    %1466 = vector.multi_reduction <maximumf>, %1465, %cst_393 [1] : vector<16x16xf32> to vector<16xf32>
    %1467 = vector.shape_cast %1466 : vector<16xf32> to vector<16x1xf32>
    %1468 = vector.broadcast %1467 : vector<16x1xf32> to vector<16x16xf32>
    %1469 = arith.subf %1465, %1468 : vector<16x16xf32>
    %1470 = math.exp %1469 : vector<16x16xf32>
    %cst_394 = arith.constant dense<0.000000e+00> : vector<16xf32>
    %1471 = vector.multi_reduction <add>, %1470, %cst_394 [1] : vector<16x16xf32> to vector<16xf32>
    %1472 = vector.shape_cast %1471 : vector<16xf32> to vector<16x1xf32>
    %1473 = tpu.reciprocal %1472 {approx = true} : vector<16x1xf32> -> vector<16x1xf32>
    %1474 = vector.broadcast %1473 : vector<16x1xf32> to vector<16x16xf32>
    %1475 = arith.mulf %1470, %1474 : vector<16x16xf32>
    %1476 = arith.truncf %1475 : vector<16x16xf32> to vector<16x16xbf16>
    %cst_395 = arith.constant dense<0.000000e+00> : vector<16x16xf32>
    %1477 = tpu.matmul %1476, %1463, %cst_395 {dimension_numbers = #tpu.dot_dimension_numbers<[1], [0], [0], [1], [0, 0, 1, 1], [], []>} : vector<16x16xbf16>, vector<16x16xbf16>, vector<16x16xf32> -> vector<16x16xf32>
    %c0_396 = arith.constant 0 : index
    %c64_397 = arith.constant 64 : index
    %1478 = vector.load %arg47[%c0_396, %c64_397] : memref<16x128xf32, #tpu.memory_space<vmem>>, vector<16x16xf32>
    tpu.vector_store %arg47[%c0_396, %c64_397], %1477 {strides = array<i32>} : memref<16x128xf32, #tpu.memory_space<vmem>>, vector<16x16xf32>,
    %1479 = vector.extract_strided_slice %1372 {offsets = [0, 80], sizes = [16, 16], strides = [1, 1]} : vector<16x384xf32> to vector<16x16xf32>
    %1480 = arith.truncf %1479 : vector<16x16xf32> to vector<16x16xbf16>
    %1481 = vector.extract_strided_slice %1372 {offsets = [0, 208], sizes = [16, 16], strides = [1, 1]} : vector<16x384xf32> to vector<16x16xf32>
    %1482 = arith.truncf %1481 : vector<16x16xf32> to vector<16x16xbf16>
    %1483 = vector.extract_strided_slice %1372 {offsets = [0, 336], sizes = [16, 16], strides = [1, 1]} : vector<16x384xf32> to vector<16x16xf32>
    %1484 = arith.truncf %1483 : vector<16x16xf32> to vector<16x16xbf16>
    %cst_398 = arith.constant dense<0.000000e+00> : vector<16x16xf32>
    %1485 = tpu.matmul %1480, %1482, %cst_398 {dimension_numbers = #tpu.dot_dimension_numbers<[1], [1], [0], [0], [0, 0, 1, 0], [], []>} : vector<16x16xbf16>, vector<16x16xbf16>, vector<16x16xf32> -> vector<16x16xf32>
    %1486 = arith.addf %1485, %1373 : vector<16x16xf32>
    %cst_399 = arith.constant dense<0xFF800000> : vector<16xf32>
    %1487 = vector.multi_reduction <maximumf>, %1486, %cst_399 [1] : vector<16x16xf32> to vector<16xf32>
    %1488 = vector.shape_cast %1487 : vector<16xf32> to vector<16x1xf32>
    %1489 = vector.broadcast %1488 : vector<16x1xf32> to vector<16x16xf32>
    %1490 = arith.subf %1486, %1489 : vector<16x16xf32>
    %1491 = math.exp %1490 : vector<16x16xf32>
    %cst_400 = arith.constant dense<0.000000e+00> : vector<16xf32>
    %1492 = vector.multi_reduction <add>, %1491, %cst_400 [1] : vector<16x16xf32> to vector<16xf32>
    %1493 = vector.shape_cast %1492 : vector<16xf32> to vector<16x1xf32>
    %1494 = tpu.reciprocal %1493 {approx = true} : vector<16x1xf32> -> vector<16x1xf32>
    %1495 = vector.broadcast %1494 : vector<16x1xf32> to vector<16x16xf32>
    %1496 = arith.mulf %1491, %1495 : vector<16x16xf32>
    %1497 = arith.truncf %1496 : vector<16x16xf32> to vector<16x16xbf16>
    %cst_401 = arith.constant dense<0.000000e+00> : vector<16x16xf32>
    %1498 = tpu.matmul %1497, %1484, %cst_401 {dimension_numbers = #tpu.dot_dimension_numbers<[1], [0], [0], [1], [0, 0, 1, 1], [], []>} : vector<16x16xbf16>, vector<16x16xbf16>, vector<16x16xf32> -> vector<16x16xf32>
    %c0_402 = arith.constant 0 : index
    %c80 = arith.constant 80 : index
    %1499 = vector.load %arg47[%c0_402, %c80] : memref<16x128xf32, #tpu.memory_space<vmem>>, vector<16x16xf32>
    tpu.vector_store %arg47[%c0_402, %c80], %1498 {strides = array<i32>} : memref<16x128xf32, #tpu.memory_space<vmem>>, vector<16x16xf32>,
    %1500 = vector.extract_strided_slice %1372 {offsets = [0, 96], sizes = [16, 16], strides = [1, 1]} : vector<16x384xf32> to vector<16x16xf32>
    %1501 = arith.truncf %1500 : vector<16x16xf32> to vector<16x16xbf16>
    %1502 = vector.extract_strided_slice %1372 {offsets = [0, 224], sizes = [16, 16], strides = [1, 1]} : vector<16x384xf32> to vector<16x16xf32>
    %1503 = arith.truncf %1502 : vector<16x16xf32> to vector<16x16xbf16>
    %1504 = vector.extract_strided_slice %1372 {offsets = [0, 352], sizes = [16, 16], strides = [1, 1]} : vector<16x384xf32> to vector<16x16xf32>
    %1505 = arith.truncf %1504 : vector<16x16xf32> to vector<16x16xbf16>
    %cst_403 = arith.constant dense<0.000000e+00> : vector<16x16xf32>
    %1506 = tpu.matmul %1501, %1503, %cst_403 {dimension_numbers = #tpu.dot_dimension_numbers<[1], [1], [0], [0], [0, 0, 1, 0], [], []>} : vector<16x16xbf16>, vector<16x16xbf16>, vector<16x16xf32> -> vector<16x16xf32>
    %1507 = arith.addf %1506, %1373 : vector<16x16xf32>
    %cst_404 = arith.constant dense<0xFF800000> : vector<16xf32>
    %1508 = vector.multi_reduction <maximumf>, %1507, %cst_404 [1] : vector<16x16xf32> to vector<16xf32>
    %1509 = vector.shape_cast %1508 : vector<16xf32> to vector<16x1xf32>
    %1510 = vector.broadcast %1509 : vector<16x1xf32> to vector<16x16xf32>
    %1511 = arith.subf %1507, %1510 : vector<16x16xf32>
    %1512 = math.exp %1511 : vector<16x16xf32>
    %cst_405 = arith.constant dense<0.000000e+00> : vector<16xf32>
    %1513 = vector.multi_reduction <add>, %1512, %cst_405 [1] : vector<16x16xf32> to vector<16xf32>
    %1514 = vector.shape_cast %1513 : vector<16xf32> to vector<16x1xf32>
    %1515 = tpu.reciprocal %1514 {approx = true} : vector<16x1xf32> -> vector<16x1xf32>
    %1516 = vector.broadcast %1515 : vector<16x1xf32> to vector<16x16xf32>
    %1517 = arith.mulf %1512, %1516 : vector<16x16xf32>
    %1518 = arith.truncf %1517 : vector<16x16xf32> to vector<16x16xbf16>
    %cst_406 = arith.constant dense<0.000000e+00> : vector<16x16xf32>
    %1519 = tpu.matmul %1518, %1505, %cst_406 {dimension_numbers = #tpu.dot_dimension_numbers<[1], [0], [0], [1], [0, 0, 1, 1], [], []>} : vector<16x16xbf16>, vector<16x16xbf16>, vector<16x16xf32> -> vector<16x16xf32>
    %c0_407 = arith.constant 0 : index
    %c96 = arith.constant 96 : index
    %1520 = vector.load %arg47[%c0_407, %c96] : memref<16x128xf32, #tpu.memory_space<vmem>>, vector<16x16xf32>
    tpu.vector_store %arg47[%c0_407, %c96], %1519 {strides = array<i32>} : memref<16x128xf32, #tpu.memory_space<vmem>>, vector<16x16xf32>,
    %1521 = vector.extract_strided_slice %1372 {offsets = [0, 112], sizes = [16, 16], strides = [1, 1]} : vector<16x384xf32> to vector<16x16xf32>
    %1522 = arith.truncf %1521 : vector<16x16xf32> to vector<16x16xbf16>
    %1523 = vector.extract_strided_slice %1372 {offsets = [0, 240], sizes = [16, 16], strides = [1, 1]} : vector<16x384xf32> to vector<16x16xf32>
    %1524 = arith.truncf %1523 : vector<16x16xf32> to vector<16x16xbf16>
    %1525 = vector.extract_strided_slice %1372 {offsets = [0, 368], sizes = [16, 16], strides = [1, 1]} : vector<16x384xf32> to vector<16x16xf32>
    %1526 = arith.truncf %1525 : vector<16x16xf32> to vector<16x16xbf16>
    %cst_408 = arith.constant dense<0.000000e+00> : vector<16x16xf32>
    %1527 = tpu.matmul %1522, %1524, %cst_408 {dimension_numbers = #tpu.dot_dimension_numbers<[1], [1], [0], [0], [0, 0, 1, 0], [], []>} : vector<16x16xbf16>, vector<16x16xbf16>, vector<16x16xf32> -> vector<16x16xf32>
    %1528 = arith.addf %1527, %1373 : vector<16x16xf32>
    %cst_409 = arith.constant dense<0xFF800000> : vector<16xf32>
    %1529 = vector.multi_reduction <maximumf>, %1528, %cst_409 [1] : vector<16x16xf32> to vector<16xf32>
    %1530 = vector.shape_cast %1529 : vector<16xf32> to vector<16x1xf32>
    %1531 = vector.broadcast %1530 : vector<16x1xf32> to vector<16x16xf32>
    %1532 = arith.subf %1528, %1531 : vector<16x16xf32>
    %1533 = math.exp %1532 : vector<16x16xf32>
    %cst_410 = arith.constant dense<0.000000e+00> : vector<16xf32>
    %1534 = vector.multi_reduction <add>, %1533, %cst_410 [1] : vector<16x16xf32> to vector<16xf32>
    %1535 = vector.shape_cast %1534 : vector<16xf32> to vector<16x1xf32>
    %1536 = tpu.reciprocal %1535 {approx = true} : vector<16x1xf32> -> vector<16x1xf32>
    %1537 = vector.broadcast %1536 : vector<16x1xf32> to vector<16x16xf32>
    %1538 = arith.mulf %1533, %1537 : vector<16x16xf32>
    %1539 = arith.truncf %1538 : vector<16x16xf32> to vector<16x16xbf16>
    %cst_411 = arith.constant dense<0.000000e+00> : vector<16x16xf32>
    %1540 = tpu.matmul %1539, %1526, %cst_411 {dimension_numbers = #tpu.dot_dimension_numbers<[1], [0], [0], [1], [0, 0, 1, 1], [], []>} : vector<16x16xbf16>, vector<16x16xbf16>, vector<16x16xf32> -> vector<16x16xf32>
    %c0_412 = arith.constant 0 : index
    %c112 = arith.constant 112 : index
    %1541 = vector.load %arg47[%c0_412, %c112] : memref<16x128xf32, #tpu.memory_space<vmem>>, vector<16x16xf32>
    tpu.vector_store %arg47[%c0_412, %c112], %1540 {strides = array<i32>} : memref<16x128xf32, #tpu.memory_space<vmem>>, vector<16x16xf32>,
    %c0_413 = arith.constant 0 : index
    %c0_414 = arith.constant 0 : index
    %1542 = vector.load %arg47[%c0_413, %c0_414] : memref<16x128xf32, #tpu.memory_space<vmem>>, vector<16x128xf32>
    %1543 = arith.truncf %1542 : vector<16x128xf32> to vector<16x128xbf16>
    %c0_415 = arith.constant 0 : index
    %c0_416 = arith.constant 0 : index
    %1544 = vector.load %arg24[%c0_415, %c0_416] : memref<128x128xbf16, #tpu.memory_space<vmem>>, vector<128x128xbf16>
    %cst_417 = arith.constant dense<0.000000e+00> : vector<16x128xf32>
    %1545 = tpu.matmul %1543, %1544, %cst_417 {dimension_numbers = #tpu.dot_dimension_numbers<[1], [0], [0], [1], [0, 0, 1, 1], [], []>} : vector<16x128xbf16>, vector<128x128xbf16>, vector<16x128xf32> -> vector<16x128xf32>
    %c0_418 = arith.constant 0 : index
    %c0_419 = arith.constant 0 : index
    %1546 = vector.load %arg25[%c0_418, %c0_419] : memref<1x128xf32, #tpu.memory_space<vmem>>, vector<1x128xf32>
    %1547 = vector.broadcast %1546 : vector<1x128xf32> to vector<16x128xf32>
    %1548 = arith.addf %1545, %1547 : vector<16x128xf32>
    %c0_420 = arith.constant 0 : index
    %c0_421 = arith.constant 0 : index
    %1549 = vector.load %arg2[%c0_420, %c0_421] : memref<2x16xf32, #tpu.memory_space<vmem>>, vector<2x16xf32>
    %cst_422 = arith.constant dense<0.000000e+00> : vector<2x128xf32>
    %1550 = tpu.matmul %1549, %1548, %cst_422 {dimension_numbers = #tpu.dot_dimension_numbers<[1], [0], [0], [1], [0, 0, 1, 1], [], []>} : vector<2x16xf32>, vector<16x128xf32>, vector<2x128xf32> -> vector<2x128xf32>
    %1551 = arith.truncf %1550 : vector<2x128xf32> to vector<2x128xbf16>
    %c0_423 = arith.constant 0 : index
    %c0_424 = arith.constant 0 : index
    %1552 = vector.load %arg26[%c0_423, %c0_424] : memref<128x64xbf16, #tpu.memory_space<vmem>>, vector<128x64xbf16>
    %cst_425 = arith.constant dense<0.000000e+00> : vector<2x64xf32>
    %1553 = tpu.matmul %1551, %1552, %cst_425 {dimension_numbers = #tpu.dot_dimension_numbers<[1], [0], [0], [1], [0, 0, 1, 1], [], []>} : vector<2x128xbf16>, vector<128x64xbf16>, vector<2x64xf32> -> vector<2x64xf32>
    %c0_426 = arith.constant 0 : index
    %c0_427 = arith.constant 0 : index
    %1554 = vector.load %arg27[%c0_426, %c0_427] : memref<1x64xf32, #tpu.memory_space<vmem>>, vector<1x64xf32>
    %1555 = vector.broadcast %1554 : vector<1x64xf32> to vector<2x64xf32>
    %1556 = arith.addf %1553, %1555 : vector<2x64xf32>
    %cst_428 = arith.constant 0.000000e+00 : f32
    %1557 = vector.broadcast %cst_428 : f32 to vector<2x64xf32>
    %1558 = arith.maximumf %1556, %1557 : vector<2x64xf32>
    %1559 = arith.truncf %1558 : vector<2x64xf32> to vector<2x64xbf16>
    %c0_429 = arith.constant 0 : index
    %c0_430 = arith.constant 0 : index
    %1560 = vector.load %arg28[%c0_429, %c0_430] : memref<64x32xbf16, #tpu.memory_space<vmem>>, vector<64x32xbf16>
    %cst_431 = arith.constant dense<0.000000e+00> : vector<2x32xf32>
    %1561 = tpu.matmul %1559, %1560, %cst_431 {dimension_numbers = #tpu.dot_dimension_numbers<[1], [0], [0], [1], [0, 0, 1, 1], [], []>} : vector<2x64xbf16>, vector<64x32xbf16>, vector<2x32xf32> -> vector<2x32xf32>
    %c0_432 = arith.constant 0 : index
    %c0_433 = arith.constant 0 : index
    %1562 = vector.load %arg29[%c0_432, %c0_433] : memref<1x32xf32, #tpu.memory_space<vmem>>, vector<1x32xf32>
    %1563 = vector.broadcast %1562 : vector<1x32xf32> to vector<2x32xf32>
    %1564 = arith.addf %1561, %1563 : vector<2x32xf32>
    %cst_434 = arith.constant 0.000000e+00 : f32
    %1565 = vector.broadcast %cst_434 : f32 to vector<2x32xf32>
    %1566 = arith.maximumf %1564, %1565 : vector<2x32xf32>
    %c0_435 = arith.constant 0 : index
    %c0_436 = arith.constant 0 : index
    %1567 = vector.load %arg42[%c0_435, %c0_436] : memref<2x32xf32, #tpu.memory_space<vmem>>, vector<2x32xf32>
    tpu.vector_store %arg42[%c0_435, %c0_436], %1566 {strides = array<i32>} : memref<2x32xf32, #tpu.memory_space<vmem>>, vector<2x32xf32>,
    %1568 = arith.truncf %1566 : vector<2x32xf32> to vector<2x32xbf16>
    %c0_437 = arith.constant 0 : index
    %c0_438 = arith.constant 0 : index
    %1569 = vector.load %arg30[%c0_437, %c0_438] : memref<32x128xbf16, #tpu.memory_space<vmem>>, vector<32x128xbf16>
    %cst_439 = arith.constant dense<0.000000e+00> : vector<2x128xf32>
    %1570 = tpu.matmul %1568, %1569, %cst_439 {dimension_numbers = #tpu.dot_dimension_numbers<[1], [0], [0], [1], [0, 0, 1, 1], [], []>} : vector<2x32xbf16>, vector<32x128xbf16>, vector<2x128xf32> -> vector<2x128xf32>
    %c0_440 = arith.constant 0 : index
    %c0_441 = arith.constant 0 : index
    %1571 = vector.load %arg31[%c0_440, %c0_441] : memref<1x128xf32, #tpu.memory_space<vmem>>, vector<1x128xf32>
    %1572 = vector.broadcast %1571 : vector<1x128xf32> to vector<2x128xf32>
    %1573 = arith.addf %1570, %1572 : vector<2x128xf32>
    %cst_442 = arith.constant 0.000000e+00 : f32
    %1574 = vector.broadcast %cst_442 : f32 to vector<2x128xf32>
    %1575 = arith.maximumf %1573, %1574 : vector<2x128xf32>
    %1576 = arith.truncf %1575 : vector<2x128xf32> to vector<2x128xbf16>
    %c0_443 = arith.constant 0 : index
    %c0_444 = arith.constant 0 : index
    %1577 = vector.load %arg32[%c0_443, %c0_444] : memref<128x64xbf16, #tpu.memory_space<vmem>>, vector<128x64xbf16>
    %cst_445 = arith.constant dense<0.000000e+00> : vector<2x64xf32>
    %1578 = tpu.matmul %1576, %1577, %cst_445 {dimension_numbers = #tpu.dot_dimension_numbers<[1], [0], [0], [1], [0, 0, 1, 1], [], []>} : vector<2x128xbf16>, vector<128x64xbf16>, vector<2x64xf32> -> vector<2x64xf32>
    %c0_446 = arith.constant 0 : index
    %c0_447 = arith.constant 0 : index
    %1579 = vector.load %arg33[%c0_446, %c0_447] : memref<1x64xf32, #tpu.memory_space<vmem>>, vector<1x64xf32>
    %1580 = vector.broadcast %1579 : vector<1x64xf32> to vector<2x64xf32>
    %1581 = arith.addf %1578, %1580 : vector<2x64xf32>
    %cst_448 = arith.constant 0.000000e+00 : f32
    %1582 = vector.broadcast %cst_448 : f32 to vector<2x64xf32>
    %1583 = arith.maximumf %1581, %1582 : vector<2x64xf32>
    %1584 = arith.truncf %1583 : vector<2x64xf32> to vector<2x64xbf16>
    %c0_449 = arith.constant 0 : index
    %c0_450 = arith.constant 0 : index
    %1585 = vector.load %arg34[%c0_449, %c0_450] : memref<64x1xbf16, #tpu.memory_space<vmem>>, vector<64x1xbf16>
    %cst_451 = arith.constant dense<0.000000e+00> : vector<2x1xf32>
    %1586 = tpu.matmul %1584, %1585, %cst_451 {dimension_numbers = #tpu.dot_dimension_numbers<[1], [0], [0], [1], [0, 0, 1, 1], [], []>} : vector<2x64xbf16>, vector<64x1xbf16>, vector<2x1xf32> -> vector<2x1xf32>
    %c0_452 = arith.constant 0 : index
    %c0_453 = arith.constant 0 : index
    %1587 = vector.load %arg35[%c0_452, %c0_453] : memref<1x1xf32, #tpu.memory_space<vmem>>, vector<1x1xf32>
    %1588 = vector.broadcast %1587 : vector<1x1xf32> to vector<2x1xf32>
    %1589 = arith.addf %1586, %1588 : vector<2x1xf32>
    %1590 = arith.negf %1589 : vector<2x1xf32>
    %1591 = math.exp %1590 : vector<2x1xf32>
    %cst_454 = arith.constant 1.000000e+00 : f32
    %1592 = vector.broadcast %cst_454 : f32 to vector<2x1xf32>
    %1593 = arith.addf %1592, %1591 : vector<2x1xf32>
    %1594 = arith.divf %1592, %1593 : vector<2x1xf32>
    %c0_455 = arith.constant 0 : index
    %c0_456 = arith.constant 0 : index
    %1595 = vector.load %arg43[%c0_455, %c0_456] : memref<2x1xf32, #tpu.memory_space<vmem>>, vector<2x1xf32>
    tpu.vector_store %arg43[%c0_455, %c0_456], %1594 {strides = array<i32>} : memref<2x1xf32, #tpu.memory_space<vmem>>, vector<2x1xf32>,
    %1596 = arith.truncf %1566 : vector<2x32xf32> to vector<2x32xbf16>
    %c0_457 = arith.constant 0 : index
    %c0_458 = arith.constant 0 : index
    %1597 = vector.load %arg36[%c0_457, %c0_458] : memref<32x256xbf16, #tpu.memory_space<vmem>>, vector<32x256xbf16>
    %cst_459 = arith.constant dense<0.000000e+00> : vector<2x256xf32>
    %1598 = tpu.matmul %1596, %1597, %cst_459 {dimension_numbers = #tpu.dot_dimension_numbers<[1], [0], [0], [1], [0, 0, 1, 1], [], []>} : vector<2x32xbf16>, vector<32x256xbf16>, vector<2x256xf32> -> vector<2x256xf32>
    %c0_460 = arith.constant 0 : index
    %c0_461 = arith.constant 0 : index
    %1599 = vector.load %arg37[%c0_460, %c0_461] : memref<1x256xf32, #tpu.memory_space<vmem>>, vector<1x256xf32>
    %1600 = vector.broadcast %1599 : vector<1x256xf32> to vector<2x256xf32>
    %1601 = arith.addf %1598, %1600 : vector<2x256xf32>
    %cst_462 = arith.constant 0.000000e+00 : f32
    %1602 = vector.broadcast %cst_462 : f32 to vector<2x256xf32>
    %1603 = arith.maximumf %1601, %1602 : vector<2x256xf32>
    %1604 = arith.truncf %1603 : vector<2x256xf32> to vector<2x256xbf16>
    %c0_463 = arith.constant 0 : index
    %c0_464 = arith.constant 0 : index
    %1605 = vector.load %arg38[%c0_463, %c0_464] : memref<256x128xbf16, #tpu.memory_space<vmem>>, vector<256x128xbf16>
    %cst_465 = arith.constant dense<0.000000e+00> : vector<2x128xf32>
    %1606 = tpu.matmul %1604, %1605, %cst_465 {dimension_numbers = #tpu.dot_dimension_numbers<[1], [0], [0], [1], [0, 0, 1, 1], [], []>} : vector<2x256xbf16>, vector<256x128xbf16>, vector<2x128xf32> -> vector<2x128xf32>
    %c0_466 = arith.constant 0 : index
    %c0_467 = arith.constant 0 : index
    %1607 = vector.load %arg39[%c0_466, %c0_467] : memref<1x128xf32, #tpu.memory_space<vmem>>, vector<1x128xf32>
    %1608 = vector.broadcast %1607 : vector<1x128xf32> to vector<2x128xf32>
    %1609 = arith.addf %1606, %1608 : vector<2x128xf32>
    %cst_468 = arith.constant 0.000000e+00 : f32
    %1610 = vector.broadcast %cst_468 : f32 to vector<2x128xf32>
    %1611 = arith.maximumf %1609, %1610 : vector<2x128xf32>
    %1612 = arith.truncf %1611 : vector<2x128xf32> to vector<2x128xbf16>
    %c0_469 = arith.constant 0 : index
    %c0_470 = arith.constant 0 : index
    %1613 = vector.load %arg40[%c0_469, %c0_470] : memref<128x5xbf16, #tpu.memory_space<vmem>>, vector<128x5xbf16>
    %cst_471 = arith.constant dense<0.000000e+00> : vector<2x5xf32>
    %1614 = tpu.matmul %1612, %1613, %cst_471 {dimension_numbers = #tpu.dot_dimension_numbers<[1], [0], [0], [1], [0, 0, 1, 1], [], []>} : vector<2x128xbf16>, vector<128x5xbf16>, vector<2x5xf32> -> vector<2x5xf32>
    %c0_472 = arith.constant 0 : index
    %c0_473 = arith.constant 0 : index
    %1615 = vector.load %arg41[%c0_472, %c0_473] : memref<1x5xf32, #tpu.memory_space<vmem>>, vector<1x5xf32>
    %1616 = vector.broadcast %1615 : vector<1x5xf32> to vector<2x5xf32>
    %1617 = arith.addf %1614, %1616 : vector<2x5xf32>
    %c0_474 = arith.constant 0 : index
    %c0_475 = arith.constant 0 : index
    %1618 = vector.load %arg44[%c0_474, %c0_475] : memref<2x5xf32, #tpu.memory_space<vmem>>, vector<2x5xf32>
    tpu.vector_store %arg44[%c0_474, %c0_475], %1617 {strides = array<i32>} : memref<2x5xf32, #tpu.memory_space<vmem>>, vector<2x5xf32>,
    return
  }
}

</mosaic_0001>

<llo_original>
// kernel: tpu_custom_call.1
$region0: #{tpu_custom_call.1}
  #allocation0 [shape = 'u32[]', space=smem, size = 0x4, offset = 0x4, fixed_abs, tag = 'smem constant byte address 0x4 - core index']
  #allocation1 [shape = 'u32[144,128]{1,0:T(1,128)}', space=vmem, size = 0x12000, scoped, tag = 'internal scratch']
  #allocation2 [shape = 'f32[16,32]{1,0:T(8,128)}', space=vmem, size = 0x2000, scoped, tag = 'scratch operand']
  #allocation3 [shape = 'f32[16,128]{1,0:T(8,128)}', space=vmem, size = 0x2000, scoped, tag = 'scratch operand']
  #allocation4 [shape = 'f32[16,128]{1,0:T(8,128)}', space=vmem, size = 0x2000, scoped, tag = 'scratch operand']
  #allocation5 [shape = 'f32[1,1]{1,0:T(1,128)S(1)}', space=vmem, size = 0x200, scoped, tag = 'scoped memory for tpu_custom_call.1']
  %s0 = inlined_call_operand.smem [shape: u32[45], index: -1, kind: input, shape index: {}]
  %s1 = sld [smem:[%s0]]
  %s2 = scalar_lea.smem %s0, 1
  %s3 = sld [smem:[%s2]]
  %s4 = scalar_lea.smem %s0, 2
  %s5 = sld [smem:[%s4]]
  %s6 = scalar_lea.smem %s0, 3
  %s7 = sld [smem:[%s6]]
  %s8 = scalar_lea.smem %s0, 4
  %s9 = sld [smem:[%s8]]
  %s10 = scalar_lea.smem %s0, 5
  %s11 = sld [smem:[%s10]]
  %s12 = scalar_lea.smem %s0, 6
  %s13 = sld [smem:[%s12]]
  %s14 = scalar_lea.smem %s0, 7
  %s15 = sld [smem:[%s14]]
  %s16 = scalar_lea.smem %s0, 8
  %s17 = sld [smem:[%s16]]
  %s18 = scalar_lea.smem %s0, 9
  %s19 = sld [smem:[%s18]]
  %s20 = scalar_lea.smem %s0, 10
  %s21 = sld [smem:[%s20]]
  %s22 = scalar_lea.smem %s0, 11
  %s23 = sld [smem:[%s22]]
  %s24 = scalar_lea.smem %s0, 12
  %s25 = sld [smem:[%s24]]
  %s26 = scalar_lea.smem %s0, 13
  %s27 = sld [smem:[%s26]]
  %s28 = scalar_lea.smem %s0, 14
  %s29 = sld [smem:[%s28]]
  %s30 = scalar_lea.smem %s0, 15
  %s31 = sld [smem:[%s30]]
  %s32 = scalar_lea.smem %s0, 16
  %s33 = sld [smem:[%s32]]
  %s34 = scalar_lea.smem %s0, 17
  %s35 = sld [smem:[%s34]]
  %s36 = scalar_lea.smem %s0, 18
  %s37 = sld [smem:[%s36]]
  %s38 = scalar_lea.smem %s0, 19
  %s39 = sld [smem:[%s38]]
  %s40 = scalar_lea.smem %s0, 20
  %s41 = sld [smem:[%s40]]
  %s42 = scalar_lea.smem %s0, 21
  %s43 = sld [smem:[%s42]]
  %s44 = scalar_lea.smem %s0, 22
  %s45 = sld [smem:[%s44]]
  %s46 = scalar_lea.smem %s0, 23
  %s47 = sld [smem:[%s46]]
  %s48 = scalar_lea.smem %s0, 24
  %s49 = sld [smem:[%s48]]
  %s50 = scalar_lea.smem %s0, 25
  %s51 = sld [smem:[%s50]]
  %s52 = scalar_lea.smem %s0, 26
  %s53 = sld [smem:[%s52]]
  %s54 = scalar_lea.smem %s0, 27
  %s55 = sld [smem:[%s54]]
  %s56 = scalar_lea.smem %s0, 28
  %s57 = sld [smem:[%s56]]
  %s58 = scalar_lea.smem %s0, 29
  %s59 = sld [smem:[%s58]]
  %s60 = scalar_lea.smem %s0, 30
  %s61 = sld [smem:[%s60]]
  %s62 = scalar_lea.smem %s0, 31
  %s63 = sld [smem:[%s62]]
  %s64 = scalar_lea.smem %s0, 32
  %s65 = sld [smem:[%s64]]
  %s66 = scalar_lea.smem %s0, 33
  %s67 = sld [smem:[%s66]]
  %s68 = scalar_lea.smem %s0, 34
  %s69 = sld [smem:[%s68]]
  %s70 = scalar_lea.smem %s0, 35
  %s71 = sld [smem:[%s70]]
  %s72 = scalar_lea.smem %s0, 36
  %s73 = sld [smem:[%s72]]
  %s74 = scalar_lea.smem %s0, 37
  %s75 = sld [smem:[%s74]]
  %s76 = scalar_lea.smem %s0, 38
  %s77 = sld [smem:[%s76]]
  %s78 = scalar_lea.smem %s0, 39
  %s79 = sld [smem:[%s78]]
  %s80 = scalar_lea.smem %s0, 40
  %s81 = sld [smem:[%s80]]
  %s82 = scalar_lea.smem %s0, 41
  %s83 = sld [smem:[%s82]]
  %s84 = scalar_lea.smem %s0, 42
  %s85 = sld [smem:[%s84]]
  %s86 = scalar_lea.smem %s0, 43
  %s87 = sld [smem:[%s86]]
  %s88 = scalar_lea.smem %s0, 44
  %s89 = sld [smem:[%s88]]
  %90 = xla_tuple %s85, %s87, %s89
  %s91 = sld [smem:[#allocation0]]
  $region242: #{tpu_custom_call.1} parent=0
    _
  %s93 = ssub.s32 1, %s91
  %s94 = scalar_select 0, %s93, %s91
  %v95 = vstv %s71
  %96 = vst [vmem:[#allocation5] sm:$0x1] %v95
  $region1: #{tpu_custom_call.1} parent=0
    #allocation6 [shape = 'u8[1024]{0}', space=smem, size = 0x400, scoped, tag = 'input window, operand 0, single buffered']
    #allocation7 [shape = 's32[1]{0}', space=sflag, size = 0x4, scoped, tag = 'scoped memory for tpu_custom_call.1']
    #allocation8 [shape = 's32[1]{0}', space=sflag, size = 0x4, scoped, tag = 'scoped memory for tpu_custom_call.1']
    #allocation9 [shape = 's32[1]{0}', space=sflag, size = 0x4, scoped, tag = 'scoped memory for tpu_custom_call.1']
    #allocation10 [shape = 'u8[1024]{0}', space=vmem, size = 0x400, scoped, tag = 'input window, operand 2, single buffered']
    #allocation11 [shape = 'u8[8192]{0}', space=vmem, size = 0x2000, scoped, tag = 'input window, operand 3, single buffered']
    #allocation12 [shape = 's32[1]{0}', space=sflag, size = 0x4, scoped, tag = 'scoped memory for tpu_custom_call.1']
    #allocation13 [shape = 'u8[1024]{0}', space=vmem, size = 0x400, scoped, tag = 'input window, operand 6, single buffered']
    #allocation14 [shape = 'u8[1024]{0}', space=vmem, size = 0x400, scoped, tag = 'input window, operand 9, single buffered']
    #allocation15 [shape = 's32[1]{0}', space=sflag, size = 0x4, scoped, tag = 'scoped memory for tpu_custom_call.1']
    #allocation16 [shape = 'u8[1024]{0}', space=vmem, size = 0x400, scoped, tag = 'input window, operand 12, single buffered']
    #allocation17 [shape = 'u8[1024]{0}', space=vmem, size = 0x400, scoped, tag = 'input window, operand 15, single buffered']
    #allocation18 [shape = 's32[1]{0}', space=sflag, size = 0x4, scoped, tag = 'scoped memory for tpu_custom_call.1']
    #allocation19 [shape = 'u8[1024]{0}', space=vmem, size = 0x400, scoped, tag = 'input window, operand 18, single buffered']
    #allocation20 [shape = 'u8[1024]{0}', space=vmem, size = 0x400, scoped, tag = 'input window, operand 21, single buffered']
    #allocation21 [shape = 's32[1]{0}', space=sflag, size = 0x4, scoped, tag = 'scoped memory for tpu_custom_call.1']
    #allocation22 [shape = 'u8[512]{0}', space=vmem, size = 0x400, scoped, tag = 'input window, operand 25, single buffered']
    #allocation23 [shape = 'u8[512]{0}', space=vmem, size = 0x400, scoped, tag = 'input window, operand 27, single buffered']
    #allocation24 [shape = 's32[1]{0}', space=sflag, size = 0x4, scoped, tag = 'scoped memory for tpu_custom_call.1']
    #allocation25 [shape = 'u8[8192]{0}', space=vmem, size = 0x2000, scoped, tag = 'input window, operand 30, single buffered']
    #allocation26 [shape = 'u8[1024]{0}', space=vmem, size = 0x400, scoped, tag = 'output window, operand 0, single buffered']
    #allocation27 [shape = 'u8[1024]{0}', space=vmem, size = 0x400, scoped, tag = 'output window, operand 2, single buffered']
    #allocation28 [shape = 's32[1]{0}', space=sflag, size = 0x4, scoped, tag = 'scoped memory for tpu_custom_call.1']
    %97 = vsyncpa [#allocation9], 0
    %98 = vsyncpa [#allocation7], 0
    %99 = vsyncpa [#allocation12], 0
    %100 = vsyncpa [#allocation15], 0
    %101 = vsyncpa [#allocation18], 0
    %102 = vsyncpa [#allocation21], 0
    %103 = vsyncpa [#allocation24], 0
    %104 = vsyncpa [#allocation8], 0
    %105 = vsyncpa [#allocation28], 0
    // Predicated region
    $region2: #{tpu_custom_call.1} parent=1 // pred_check
      _
    $region3: #{tpu_custom_call.1} parent=1 // pred_check_branch
      %107 = sbr.rel (0) target = $region5
    $region4: #{tpu_custom_call.1} parent=1 // pred_region
      %s109 = ssub.s32 32, 32
      %110 = vsyncadd [#allocation9], %s109
      %113 = dma.hbm_to_smem %s1, 32, [#allocation6], [#allocation9]
    $region5: #{tpu_custom_call.1} parent=1 // pred_fallthru
      _
    // Predicated region
    $region6: #{tpu_custom_call.1} parent=1 // pred_check
      _
    $region7: #{tpu_custom_call.1} parent=1 // pred_check_branch
      %115 = sbr.rel (0) target = $region9
    $region8: #{tpu_custom_call.1} parent=1 // pred_region
      _
    $region9: #{tpu_custom_call.1} parent=1 // pred_fallthru
      _
    // Predicated region
    $region10: #{tpu_custom_call.1} parent=1 // pred_check
      _
    $region11: #{tpu_custom_call.1} parent=1 // pred_check_branch
      %117 = sbr.rel (0) target = $region13
    $region12: #{tpu_custom_call.1} parent=1 // pred_region
      %s119 = ssub.s32 32, 32
      %120 = vsyncadd [#allocation7], %s119
      %s122 = sshll.u32 [#allocation10], 4
      %s123 = int_to_ptr.vmem [resolvable:$true] %s122
      %125 = dma.hbm_to_vmem [thread:$0]  %s5, 32, %s123, [#allocation7]
    $region13: #{tpu_custom_call.1} parent=1 // pred_fallthru
      _
    // Predicated region
    $region14: #{tpu_custom_call.1} parent=1 // pred_check
      _
    $region15: #{tpu_custom_call.1} parent=1 // pred_check_branch
      %127 = sbr.rel (0) target = $region17
    $region16: #{tpu_custom_call.1} parent=1 // pred_region
      %s129 = ssub.s32 256, 256
      %130 = vsyncadd [#allocation12], %s129
      %s131 = sshll.u32 [#allocation11], 4
      %s132 = int_to_ptr.vmem [resolvable:$true] %s131
      %137 = dma.hbm_to_vmem [thread:$0]  %s7, 256, %s132, [#allocation12], 128, 128, 8
    $region17: #{tpu_custom_call.1} parent=1 // pred_fallthru
      _
    // Predicated region
    $region18: #{tpu_custom_call.1} parent=1 // pred_check
      _
    $region19: #{tpu_custom_call.1} parent=1 // pred_check_branch
      %139 = sbr.rel (0) target = $region21
    $region20: #{tpu_custom_call.1} parent=1 // pred_region
      _
    $region21: #{tpu_custom_call.1} parent=1 // pred_fallthru
      _
    // Predicated region
    $region22: #{tpu_custom_call.1} parent=1 // pred_check
      _
    $region23: #{tpu_custom_call.1} parent=1 // pred_check_branch
      %141 = sbr.rel (0) target = $region25
    $region24: #{tpu_custom_call.1} parent=1 // pred_region
      _
    $region25: #{tpu_custom_call.1} parent=1 // pred_fallthru
      _
    // Predicated region
    $region26: #{tpu_custom_call.1} parent=1 // pred_check
      _
    $region27: #{tpu_custom_call.1} parent=1 // pred_check_branch
      %143 = sbr.rel (0) target = $region29
    $region28: #{tpu_custom_call.1} parent=1 // pred_region
      %s145 = ssub.s32 32, 32
      %146 = vsyncadd [#allocation12], %s145
      %s148 = sshll.u32 [#allocation13], 4
      %s149 = int_to_ptr.vmem [resolvable:$true] %s148
      %151 = dma.hbm_to_vmem [thread:$0]  %s13, 32, %s149, [#allocation12]
    $region29: #{tpu_custom_call.1} parent=1 // pred_fallthru
      _
    // Predicated region
    $region30: #{tpu_custom_call.1} parent=1 // pred_check
      _
    $region31: #{tpu_custom_call.1} parent=1 // pred_check_branch
      %153 = sbr.rel (0) target = $region33
    $region32: #{tpu_custom_call.1} parent=1 // pred_region
      _
    $region33: #{tpu_custom_call.1} parent=1 // pred_fallthru
      _
    // Predicated region
    $region34: #{tpu_custom_call.1} parent=1 // pred_check
      _
    $region35: #{tpu_custom_call.1} parent=1 // pred_check_branch
      %155 = sbr.rel (0) target = $region37
    $region36: #{tpu_custom_call.1} parent=1 // pred_region
      _
    $region37: #{tpu_custom_call.1} parent=1 // pred_fallthru
      _
    // Predicated region
    $region38: #{tpu_custom_call.1} parent=1 // pred_check
      _
    $region39: #{tpu_custom_call.1} parent=1 // pred_check_branch
      %157 = sbr.rel (0) target = $region41
    $region40: #{tpu_custom_call.1} parent=1 // pred_region
      %s159 = ssub.s32 32, 32
      %160 = vsyncadd [#allocation15], %s159
      %s162 = sshll.u32 [#allocation14], 4
      %s163 = int_to_ptr.vmem [resolvable:$true] %s162
      %165 = dma.hbm_to_vmem [thread:$0]  %s19, 32, %s163, [#allocation15]
    $region41: #{tpu_custom_call.1} parent=1 // pred_fallthru
      _
    // Predicated region
    $region42: #{tpu_custom_call.1} parent=1 // pred_check
      _
    $region43: #{tpu_custom_call.1} parent=1 // pred_check_branch
      %167 = sbr.rel (0) target = $region45
    $region44: #{tpu_custom_call.1} parent=1 // pred_region
      _
    $region45: #{tpu_custom_call.1} parent=1 // pred_fallthru
      _
    // Predicated region
    $region46: #{tpu_custom_call.1} parent=1 // pred_check
      _
    $region47: #{tpu_custom_call.1} parent=1 // pred_check_branch
      %169 = sbr.rel (0) target = $region49
    $region48: #{tpu_custom_call.1} parent=1 // pred_region
      _
    $region49: #{tpu_custom_call.1} parent=1 // pred_fallthru
      _
    // Predicated region
    $region50: #{tpu_custom_call.1} parent=1 // pred_check
      _
    $region51: #{tpu_custom_call.1} parent=1 // pred_check_branch
      %171 = sbr.rel (0) target = $region53
    $region52: #{tpu_custom_call.1} parent=1 // pred_region
      %s173 = ssub.s32 32, 32
      %174 = vsyncadd [#allocation15], %s173
      %s176 = sshll.u32 [#allocation16], 4
      %s177 = int_to_ptr.vmem [resolvable:$true] %s176
      %179 = dma.hbm_to_vmem [thread:$0]  %s25, 32, %s177, [#allocation15]
    $region53: #{tpu_custom_call.1} parent=1 // pred_fallthru
      _
    // Predicated region
    $region54: #{tpu_custom_call.1} parent=1 // pred_check
      _
    $region55: #{tpu_custom_call.1} parent=1 // pred_check_branch
      %181 = sbr.rel (0) target = $region57
    $region56: #{tpu_custom_call.1} parent=1 // pred_region
      _
    $region57: #{tpu_custom_call.1} parent=1 // pred_fallthru
      _
    // Predicated region
    $region58: #{tpu_custom_call.1} parent=1 // pred_check
      _
    $region59: #{tpu_custom_call.1} parent=1 // pred_check_branch
      %183 = sbr.rel (0) target = $region61
    $region60: #{tpu_custom_call.1} parent=1 // pred_region
      _
    $region61: #{tpu_custom_call.1} parent=1 // pred_fallthru
      _
    // Predicated region
    $region62: #{tpu_custom_call.1} parent=1 // pred_check
      _
    $region63: #{tpu_custom_call.1} parent=1 // pred_check_branch
      %185 = sbr.rel (0) target = $region65
    $region64: #{tpu_custom_call.1} parent=1 // pred_region
      %s187 = ssub.s32 32, 32
      %188 = vsyncadd [#allocation18], %s187
      %s190 = sshll.u32 [#allocation17], 4
      %s191 = int_to_ptr.vmem [resolvable:$true] %s190
      %193 = dma.hbm_to_vmem [thread:$0]  %s31, 32, %s191, [#allocation18]
    $region65: #{tpu_custom_call.1} parent=1 // pred_fallthru
      _
    // Predicated region
    $region66: #{tpu_custom_call.1} parent=1 // pred_check
      _
    $region67: #{tpu_custom_call.1} parent=1 // pred_check_branch
      %195 = sbr.rel (0) target = $region69
    $region68: #{tpu_custom_call.1} parent=1 // pred_region
      _
    $region69: #{tpu_custom_call.1} parent=1 // pred_fallthru
      _
    // Predicated region
    $region70: #{tpu_custom_call.1} parent=1 // pred_check
      _
    $region71: #{tpu_custom_call.1} parent=1 // pred_check_branch
      %197 = sbr.rel (0) target = $region73
    $region72: #{tpu_custom_call.1} parent=1 // pred_region
      _
    $region73: #{tpu_custom_call.1} parent=1 // pred_fallthru
      _
    // Predicated region
    $region74: #{tpu_custom_call.1} parent=1 // pred_check
      _
    $region75: #{tpu_custom_call.1} parent=1 // pred_check_branch
      %199 = sbr.rel (0) target = $region77
    $region76: #{tpu_custom_call.1} parent=1 // pred_region
      %s201 = ssub.s32 32, 32
      %202 = vsyncadd [#allocation18], %s201
      %s204 = sshll.u32 [#allocation19], 4
      %s205 = int_to_ptr.vmem [resolvable:$true] %s204
      %207 = dma.hbm_to_vmem [thread:$0]  %s37, 32, %s205, [#allocation18]
    $region77: #{tpu_custom_call.1} parent=1 // pred_fallthru
      _
    // Predicated region
    $region78: #{tpu_custom_call.1} parent=1 // pred_check
      _
    $region79: #{tpu_custom_call.1} parent=1 // pred_check_branch
      %209 = sbr.rel (0) target = $region81
    $region80: #{tpu_custom_call.1} parent=1 // pred_region
      _
    $region81: #{tpu_custom_call.1} parent=1 // pred_fallthru
      _
    // Predicated region
    $region82: #{tpu_custom_call.1} parent=1 // pred_check
      _
    $region83: #{tpu_custom_call.1} parent=1 // pred_check_branch
      %211 = sbr.rel (0) target = $region85
    $region84: #{tpu_custom_call.1} parent=1 // pred_region
      _
    $region85: #{tpu_custom_call.1} parent=1 // pred_fallthru
      _
    // Predicated region
    $region86: #{tpu_custom_call.1} parent=1 // pred_check
      _
    $region87: #{tpu_custom_call.1} parent=1 // pred_check_branch
      %213 = sbr.rel (0) target = $region89
    $region88: #{tpu_custom_call.1} parent=1 // pred_region
      %s215 = ssub.s32 32, 32
      %216 = vsyncadd [#allocation21], %s215
      %s218 = sshll.u32 [#allocation20], 4
      %s219 = int_to_ptr.vmem [resolvable:$true] %s218
      %221 = dma.hbm_to_vmem [thread:$0]  %s43, 32, %s219, [#allocation21]
    $region89: #{tpu_custom_call.1} parent=1 // pred_fallthru
      _
    // Predicated region
    $region90: #{tpu_custom_call.1} parent=1 // pred_check
      _
    $region91: #{tpu_custom_call.1} parent=1 // pred_check_branch
      %223 = sbr.rel (0) target = $region93
    $region92: #{tpu_custom_call.1} parent=1 // pred_region
      _
    $region93: #{tpu_custom_call.1} parent=1 // pred_fallthru
      _
    // Predicated region
    $region94: #{tpu_custom_call.1} parent=1 // pred_check
      _
    $region95: #{tpu_custom_call.1} parent=1 // pred_check_branch
      %225 = sbr.rel (0) target = $region97
    $region96: #{tpu_custom_call.1} parent=1 // pred_region
      _
    $region97: #{tpu_custom_call.1} parent=1 // pred_fallthru
      _
    // Predicated region
    $region98: #{tpu_custom_call.1} parent=1 // pred_check
      _
    $region99: #{tpu_custom_call.1} parent=1 // pred_check_branch
      %227 = sbr.rel (0) target = $region101
    $region100: #{tpu_custom_call.1} parent=1 // pred_region
      _
    $region101: #{tpu_custom_call.1} parent=1 // pred_fallthru
      _
    // Predicated region
    $region102: #{tpu_custom_call.1} parent=1 // pred_check
      _
    $region103: #{tpu_custom_call.1} parent=1 // pred_check_branch
      %229 = sbr.rel (0) target = $region105
    $region104: #{tpu_custom_call.1} parent=1 // pred_region
      %s231 = ssub.s32 16, 16
      %232 = vsyncadd [#allocation21], %s231
      %s234 = sshll.u32 [#allocation22], 4
      %s235 = int_to_ptr.vmem [resolvable:$true] %s234
      %237 = dma.hbm_to_vmem [thread:$0]  %s51, 16, %s235, [#allocation21]
    $region105: #{tpu_custom_call.1} parent=1 // pred_fallthru
      _
    // Predicated region
    $region106: #{tpu_custom_call.1} parent=1 // pred_check
      _
    $region107: #{tpu_custom_call.1} parent=1 // pred_check_branch
      %239 = sbr.rel (0) target = $region109
    $region108: #{tpu_custom_call.1} parent=1 // pred_region
      _
    $region109: #{tpu_custom_call.1} parent=1 // pred_fallthru
      _
    // Predicated region
    $region110: #{tpu_custom_call.1} parent=1 // pred_check
      _
    $region111: #{tpu_custom_call.1} parent=1 // pred_check_branch
      %241 = sbr.rel (0) target = $region113
    $region112: #{tpu_custom_call.1} parent=1 // pred_region
      %s243 = ssub.s32 16, 16
      %244 = vsyncadd [#allocation24], %s243
      %s246 = sshll.u32 [#allocation23], 4
      %s247 = int_to_ptr.vmem [resolvable:$true] %s246
      %249 = dma.hbm_to_vmem [thread:$0]  %s55, 16, %s247, [#allocation24]
    $region113: #{tpu_custom_call.1} parent=1 // pred_fallthru
      _
    // Predicated region
    $region114: #{tpu_custom_call.1} parent=1 // pred_check
      _
    $region115: #{tpu_custom_call.1} parent=1 // pred_check_branch
      %251 = sbr.rel (0) target = $region117
    $region116: #{tpu_custom_call.1} parent=1 // pred_region
      _
    $region117: #{tpu_custom_call.1} parent=1 // pred_fallthru
      _
    // Predicated region
    $region118: #{tpu_custom_call.1} parent=1 // pred_check
      _
    $region119: #{tpu_custom_call.1} parent=1 // pred_check_branch
      %253 = sbr.rel (0) target = $region121
    $region120: #{tpu_custom_call.1} parent=1 // pred_region
      _
    $region121: #{tpu_custom_call.1} parent=1 // pred_fallthru
      _
    // Predicated region
    $region122: #{tpu_custom_call.1} parent=1 // pred_check
      _
    $region123: #{tpu_custom_call.1} parent=1 // pred_check_branch
      %255 = sbr.rel (0) target = $region125
    $region124: #{tpu_custom_call.1} parent=1 // pred_region
      %s257 = ssub.s32 256, 256
      %258 = vsyncadd [#allocation24], %s257
      %s259 = sshll.u32 [#allocation25], 4
      %s260 = int_to_ptr.vmem [resolvable:$true] %s259
      %265 = dma.hbm_to_vmem [thread:$0]  %s61, 256, %s260, [#allocation24], 64, 64, 4
    $region125: #{tpu_custom_call.1} parent=1 // pred_fallthru
      _
    // Predicated region
    $region126: #{tpu_custom_call.1} parent=1 // pred_check
      _
    $region127: #{tpu_custom_call.1} parent=1 // pred_check_branch
      %267 = sbr.rel (0) target = $region129
    $region128: #{tpu_custom_call.1} parent=1 // pred_region
      _
    $region129: #{tpu_custom_call.1} parent=1 // pred_fallthru
      _
    // Predicated region
    $region130: #{tpu_custom_call.1} parent=1 // pred_check
      _
    $region131: #{tpu_custom_call.1} parent=1 // pred_check_branch
      %269 = sbr.rel (0) target = $region133
    $region132: #{tpu_custom_call.1} parent=1 // pred_region
      _
    $region133: #{tpu_custom_call.1} parent=1 // pred_fallthru
      _
    // Predicated region
    $region134: #{tpu_custom_call.1} parent=1 // pred_check
      _
    $region135: #{tpu_custom_call.1} parent=1 // pred_check_branch
      %271 = sbr.rel (0) target = $region137
    $region136: #{tpu_custom_call.1} parent=1 // pred_region
      _
    $region137: #{tpu_custom_call.1} parent=1 // pred_fallthru
      _
    // Predicated region
    $region138: #{tpu_custom_call.1} parent=1 // pred_check
      _
    $region139: #{tpu_custom_call.1} parent=1 // pred_check_branch
      %273 = sbr.rel (0) target = $region141
    $region140: #{tpu_custom_call.1} parent=1 // pred_region
      _
    $region141: #{tpu_custom_call.1} parent=1 // pred_fallthru
      _
    // Predicated region
    $region142: #{tpu_custom_call.1} parent=1 // pred_check
      _
    $region143: #{tpu_custom_call.1} parent=1 // pred_check_branch
      %275 = sbr.rel (0) target = $region145
    $region144: #{tpu_custom_call.1} parent=1 // pred_region
      _
    $region145: #{tpu_custom_call.1} parent=1 // pred_fallthru
      _
    // Predicated region
    $region146: #{tpu_custom_call.1} parent=1 // pred_check
      _
    $region147: #{tpu_custom_call.1} parent=1 // pred_check_branch
      %277 = sbr.rel (0) target = $region149
    $region148: #{tpu_custom_call.1} parent=1 // pred_region
      _
    $region149: #{tpu_custom_call.1} parent=1 // pred_fallthru
      _
    // Predicated region
    $region150: #{tpu_custom_call.1} parent=1 // pred_check
      _
    $region151: #{tpu_custom_call.1} parent=1 // pred_check_branch
      %279 = sbr.rel (0) target = $region153
    $region152: #{tpu_custom_call.1} parent=1 // pred_region
      _
    $region153: #{tpu_custom_call.1} parent=1 // pred_fallthru
      _
    // Predicated region
    $region154: #{tpu_custom_call.1} parent=1 // pred_check
      _
    $region155: #{tpu_custom_call.1} parent=1 // pred_check_branch
      %281 = sbr.rel (0) target = $region157
    $region156: #{tpu_custom_call.1} parent=1 // pred_region
      _
    $region157: #{tpu_custom_call.1} parent=1 // pred_fallthru
      _
    // Predicated region
    $region158: #{tpu_custom_call.1} parent=1 // pred_check
      _
    $region159: #{tpu_custom_call.1} parent=1 // pred_check_branch
      %283 = sbr.rel (0) target = $region161
    $region160: #{tpu_custom_call.1} parent=1 // pred_region
      _
    $region161: #{tpu_custom_call.1} parent=1 // pred_fallthru
      _
    // Predicated region
    $region162: #{tpu_custom_call.1} parent=1 // pred_check
      _
    $region163: #{tpu_custom_call.1} parent=1 // pred_check_branch
      %285 = sbr.rel (0) target = $region165
    $region164: #{tpu_custom_call.1} parent=1 // pred_region
      _
    $region165: #{tpu_custom_call.1} parent=1 // pred_fallthru
      _
    // Predicated region
    $region166: #{tpu_custom_call.1} parent=1 // pred_check
      _
    $region167: #{tpu_custom_call.1} parent=1 // pred_check_branch
      %287 = sbr.rel (0) target = $region169
    $region168: #{tpu_custom_call.1} parent=1 // pred_region
      _
    $region169: #{tpu_custom_call.1} parent=1 // pred_fallthru
      _
    // Predicated region
    $region170: #{tpu_custom_call.1} parent=1 // pred_check
      _
    $region171: #{tpu_custom_call.1} parent=1 // pred_check_branch
      %289 = sbr.rel (0) target = $region173
    $region172: #{tpu_custom_call.1} parent=1 // pred_region
      %290 = dma.done [#allocation9], 32
    $region173: #{tpu_custom_call.1} parent=1 // pred_fallthru
      _
    // Predicated region
    $region174: #{tpu_custom_call.1} parent=1 // pred_check
      _
    $region175: #{tpu_custom_call.1} parent=1 // pred_check_branch
      %292 = sbr.rel (0) target = $region177
    $region176: #{tpu_custom_call.1} parent=1 // pred_region
      %293 = dma.done [#allocation7], 32
    $region177: #{tpu_custom_call.1} parent=1 // pred_fallthru
      _
    // Predicated region
    $region178: #{tpu_custom_call.1} parent=1 // pred_check
      _
    $region179: #{tpu_custom_call.1} parent=1 // pred_check_branch
      %295 = sbr.rel (0) target = $region181
    $region180: #{tpu_custom_call.1} parent=1 // pred_region
      %296 = dma.done [#allocation12], 256
    $region181: #{tpu_custom_call.1} parent=1 // pred_fallthru
      _
    // Predicated region
    $region182: #{tpu_custom_call.1} parent=1 // pred_check
      _
    $region183: #{tpu_custom_call.1} parent=1 // pred_check_branch
      %298 = sbr.rel (0) target = $region185
    $region184: #{tpu_custom_call.1} parent=1 // pred_region
      %299 = dma.done [#allocation12], 32
    $region185: #{tpu_custom_call.1} parent=1 // pred_fallthru
      _
    // Predicated region
    $region186: #{tpu_custom_call.1} parent=1 // pred_check
      _
    $region187: #{tpu_custom_call.1} parent=1 // pred_check_branch
      %301 = sbr.rel (0) target = $region189
    $region188: #{tpu_custom_call.1} parent=1 // pred_region
      %302 = dma.done [#allocation15], 32
    $region189: #{tpu_custom_call.1} parent=1 // pred_fallthru
      _
    // Predicated region
    $region190: #{tpu_custom_call.1} parent=1 // pred_check
      _
    $region191: #{tpu_custom_call.1} parent=1 // pred_check_branch
      %304 = sbr.rel (0) target = $region193
    $region192: #{tpu_custom_call.1} parent=1 // pred_region
      %305 = dma.done [#allocation15], 32
    $region193: #{tpu_custom_call.1} parent=1 // pred_fallthru
      _
    // Predicated region
    $region194: #{tpu_custom_call.1} parent=1 // pred_check
      _
    $region195: #{tpu_custom_call.1} parent=1 // pred_check_branch
      %307 = sbr.rel (0) target = $region197
    $region196: #{tpu_custom_call.1} parent=1 // pred_region
      %308 = dma.done [#allocation18], 32
    $region197: #{tpu_custom_call.1} parent=1 // pred_fallthru
      _
    // Predicated region
    $region198: #{tpu_custom_call.1} parent=1 // pred_check
      _
    $region199: #{tpu_custom_call.1} parent=1 // pred_check_branch
      %310 = sbr.rel (0) target = $region201
    $region200: #{tpu_custom_call.1} parent=1 // pred_region
      %311 = dma.done [#allocation18], 32
    $region201: #{tpu_custom_call.1} parent=1 // pred_fallthru
      _
    // Predicated region
    $region202: #{tpu_custom_call.1} parent=1 // pred_check
      _
    $region203: #{tpu_custom_call.1} parent=1 // pred_check_branch
      %313 = sbr.rel (0) target = $region205
    $region204: #{tpu_custom_call.1} parent=1 // pred_region
      %314 = dma.done [#allocation21], 32
    $region205: #{tpu_custom_call.1} parent=1 // pred_fallthru
      _
    // Predicated region
    $region206: #{tpu_custom_call.1} parent=1 // pred_check
      _
    $region207: #{tpu_custom_call.1} parent=1 // pred_check_branch
      %316 = sbr.rel (0) target = $region209
    $region208: #{tpu_custom_call.1} parent=1 // pred_region
      %317 = dma.done [#allocation21], 16
    $region209: #{tpu_custom_call.1} parent=1 // pred_fallthru
      _
    // Predicated region
    $region210: #{tpu_custom_call.1} parent=1 // pred_check
      _
    $region211: #{tpu_custom_call.1} parent=1 // pred_check_branch
      %319 = sbr.rel (0) target = $region213
    $region212: #{tpu_custom_call.1} parent=1 // pred_region
      %320 = dma.done [#allocation24], 16
    $region213: #{tpu_custom_call.1} parent=1 // pred_fallthru
      _
    // Predicated region
    $region214: #{tpu_custom_call.1} parent=1 // pred_check
      _
    $region215: #{tpu_custom_call.1} parent=1 // pred_check_branch
      %322 = sbr.rel (0) target = $region217
    $region216: #{tpu_custom_call.1} parent=1 // pred_region
      %323 = dma.done [#allocation24], 256
    $region217: #{tpu_custom_call.1} parent=1 // pred_fallthru
      _
    %324 = sfence
    %s326 = sld [smem:[#allocation6]]
    %s327 = scalar_lea.vmem %s3, %s326
    %v328 = vld [vmem:[%s327] sm:$0x1]
    %vm329 = vcmask 253952
    %330 = vst.msk [vmem:[#allocation2] sm:$0x1] %vm329, %v328
    %s331 = sld [smem:[#allocation6 + $0x80]]
    %s332 = scalar_lea.vmem %s3, %s331
    %v333 = vld [vmem:[%s332] sm:$0x1]
    %334 = vst.msk [vmem:[#allocation2 + $0x1] sm:$0x1] %vm329, %v333
    %s335 = sld [smem:[#allocation6 + $0x1]]
    %s336 = scalar_lea.vmem %s3, %s335
    %v337 = vld [vmem:[%s336] sm:$0x1]
    %338 = vst.msk [vmem:[#allocation2 + $0x2] sm:$0x1] %vm329, %v337
    %s339 = sld [smem:[#allocation6 + $0x81]]
    %s340 = scalar_lea.vmem %s3, %s339
    %v341 = vld [vmem:[%s340] sm:$0x1]
    %342 = vst.msk [vmem:[#allocation2 + $0x3] sm:$0x1] %vm329, %v341
    %s343 = sld [smem:[#allocation6 + $0x2]]
    %s344 = scalar_lea.vmem %s3, %s343
    %v345 = vld [vmem:[%s344] sm:$0x1]
    %346 = vst.msk [vmem:[#allocation2 + $0x4] sm:$0x1] %vm329, %v345
    %s347 = sld [smem:[#allocation6 + $0x82]]
    %s348 = scalar_lea.vmem %s3, %s347
    %v349 = vld [vmem:[%s348] sm:$0x1]
    %350 = vst.msk [vmem:[#allocation2 + $0x5] sm:$0x1] %vm329, %v349
    %s351 = sld [smem:[#allocation6 + $0x3]]
    %s352 = scalar_lea.vmem %s3, %s351
    %v353 = vld [vmem:[%s352] sm:$0x1]
    %354 = vst.msk [vmem:[#allocation2 + $0x6] sm:$0x1] %vm329, %v353
    %s355 = sld [smem:[#allocation6 + $0x83]]
    %s356 = scalar_lea.vmem %s3, %s355
    %v357 = vld [vmem:[%s356] sm:$0x1]
    %358 = vst.msk [vmem:[#allocation2 + $0x7] sm:$0x1] %vm329, %v357
    %s359 = sld [smem:[#allocation6 + $0x4]]
    %s360 = scalar_lea.vmem %s3, %s359
    %v361 = vld [vmem:[%s360] sm:$0x1]
    %362 = vst.msk [vmem:[#allocation2 + $0x8] sm:$0x1] %vm329, %v361
    %s363 = sld [smem:[#allocation6 + $0x84]]
    %s364 = scalar_lea.vmem %s3, %s363
    %v365 = vld [vmem:[%s364] sm:$0x1]
    %366 = vst.msk [vmem:[#allocation2 + $0x9] sm:$0x1] %vm329, %v365
    %s367 = sld [smem:[#allocation6 + $0x5]]
    %s368 = scalar_lea.vmem %s3, %s367
    %v369 = vld [vmem:[%s368] sm:$0x1]
    %370 = vst.msk [vmem:[#allocation2 + $0xa] sm:$0x1] %vm329, %v369
    %s371 = sld [smem:[#allocation6 + $0x85]]
    %s372 = scalar_lea.vmem %s3, %s371
    %v373 = vld [vmem:[%s372] sm:$0x1]
    %374 = vst.msk [vmem:[#allocation2 + $0xb] sm:$0x1] %vm329, %v373
    %s375 = sld [smem:[#allocation6 + $0x6]]
    %s376 = scalar_lea.vmem %s3, %s375
    %v377 = vld [vmem:[%s376] sm:$0x1]
    %378 = vst.msk [vmem:[#allocation2 + $0xc] sm:$0x1] %vm329, %v377
    %s379 = sld [smem:[#allocation6 + $0x86]]
    %s380 = scalar_lea.vmem %s3, %s379
    %v381 = vld [vmem:[%s380] sm:$0x1]
    %382 = vst.msk [vmem:[#allocation2 + $0xd] sm:$0x1] %vm329, %v381
    %s383 = sld [smem:[#allocation6 + $0x7]]
    %s384 = scalar_lea.vmem %s3, %s383
    %v385 = vld [vmem:[%s384] sm:$0x1]
    %386 = vst.msk [vmem:[#allocation2 + $0xe] sm:$0x1] %vm329, %v385
    %s387 = sld [smem:[#allocation6 + $0x87]]
    %s388 = scalar_lea.vmem %s3, %s387
    %v389 = vld [vmem:[%s388] sm:$0x1]
    %390 = vst.msk [vmem:[#allocation2 + $0xf] sm:$0x1] %vm329, %v389
    %v391 = vld [vmem:[#allocation2] sm:$0xff]
    %v392 = vld [vmem:[#allocation2 + $0x8] sm:$0xff]
    %v393 = vpack.c.bf16 %v392, %v391
    %v394 = vld [vmem:[%s9] sm:$0xff]
    %v395 = vld [vmem:[%s9 + $0x8] sm:$0xff]
    %v396 = vld [vmem:[%s9 + $0x10] sm:$0xff]
    %v397 = vld [vmem:[%s9 + $0x18] sm:$0xff]
    %v398 = vld [vmem:[#allocation13] sm:$0x3]
    %v400 = vlaneseq
    %v401 = vshrl.u32 %v400, 7
    %v402 = vsub.s32 0, %v401
    %v403 = vrot.slane %v398, %v402
    %v404 = vlaneseq
    %v405 = vshrl.u32 %v404, 7
    %v406 = vsub.s32 1, %v405
    %v407 = vrot.slane %v398, %v406
    %v414 = vunpack.c.l.b16 %v394
    %v415 = vunpack.c.h.b16 %v394
    %v416 = vunpack.c.l.b16 %v395
    %v417 = vunpack.c.h.b16 %v395
    %v418 = vunpack.c.l.b16 %v396
    %v419 = vunpack.c.h.b16 %v396
    %v420 = vunpack.c.l.b16 %v397
    %v421 = vunpack.c.h.b16 %v397
    %v422 = vpack.c.b16 %v416, %v414
    %v423 = vpack.c.b16 %v417, %v415
    %v424 = vpack.c.b16 %v420, %v418
    %v425 = vpack.c.b16 %v421, %v419
    %vm430 = vcmask 261120
    %v432 = vsel %vm430, %v393, 0
    %434 = vmatprep.subr.bf16.mxu0 %v423
    %435 = vmatpush1.bf16.msra.mxu0 %v422
    %436 = vmatprep.subr.bf16.mxu0 %v425
    %437 = vmatpush1.bf16.msra.mxu0 %v424
    %438 = vmatprep.subr.bf16.mxu0 0
    %439 = vmatpush1.bf16.msra.mxu0 0
    %440 = vmatprep.subr.bf16.mxu0 0
    %441 = vmatpush1.bf16.msra.mxu0 0
    %442 = vmatprep.subr.bf16.mxu0 0
    %443 = vmatpush1.bf16.msra.mxu0 0
    %444 = vmatprep.subr.bf16.mxu0 0
    %445 = vmatpush1.bf16.msra.mxu0 0
    %446 = vmatprep.subr.bf16.mxu0 0
    %447 = vmatpush1.bf16.msra.mxu0 0
    %448 = vmatprep.subr.bf16.mxu0 0
    %449 = vmatpush1.bf16.msra.mxu0 0
    %450 = vmatprep.subr.bf16.mxu0 0
    %451 = vmatpush1.bf16.msra.mxu0 0
    %452 = vmatprep.subr.bf16.mxu0 0
    %453 = vmatpush1.bf16.msra.mxu0 0
    %454 = vmatprep.subr.bf16.mxu0 0
    %455 = vmatpush1.bf16.msra.mxu0 0
    %456 = vmatprep.subr.bf16.mxu0 0
    %457 = vmatpush1.bf16.msra.mxu0 0
    %458 = vmatprep.subr.bf16.mxu0 0
    %459 = vmatpush1.bf16.msra.mxu0 0
    %460 = vmatprep.subr.bf16.mxu0 0
    %461 = vmatpush1.bf16.msra.mxu0 0
    %462 = vmatprep.subr.bf16.mxu0 0
    %463 = vmatpush1.bf16.msra.mxu0 0
    %464 = vmatprep.subr.bf16.mxu0 0
    %465 = vmatpush1.bf16.msra.mxu0 0
    %466 = vmatprep.mubr.bf16.mxu0 0
    %467 = vmatmul.mubr.bf16.gmra.mrb[0].mxu0 %v432
    %v468 = vpop.f32.mrb[0].mxu0
    %v469 = vadd.f32 %v403, %v468
    %v470 = vpop.f32.mrb[0].mxu0
    %v471 = vadd.f32 %v407, %v470
    %v472 = vpop.f32.mrb[0].mxu0
    %v473 = vadd.f32 %v403, %v472
    %v474 = vpop.f32.mrb[0].mxu0
    %v475 = vadd.f32 %v407, %v474
    %476 = vdwg.mxu0
    %v477 = vld [vmem:[%s15] sm:$0xff]
    %v478 = vld [vmem:[%s15 + $0x8] sm:$0xff]
    %v479 = vld [vmem:[%s15 + $0x10] sm:$0xff]
    %v480 = vld [vmem:[%s15 + $0x18] sm:$0xff]
    %v481 = vld [vmem:[#allocation14] sm:$0x3]
    %v483 = vlaneseq
    %v484 = vshrl.u32 %v483, 7
    %v485 = vsub.s32 0, %v484
    %v486 = vrot.slane %v481, %v485
    %v487 = vlaneseq
    %v488 = vshrl.u32 %v487, 7
    %v489 = vsub.s32 1, %v488
    %v490 = vrot.slane %v481, %v489
    %v497 = vunpack.c.l.b16 %v477
    %v498 = vunpack.c.h.b16 %v477
    %v499 = vunpack.c.l.b16 %v478
    %v500 = vunpack.c.h.b16 %v478
    %v501 = vunpack.c.l.b16 %v479
    %v502 = vunpack.c.h.b16 %v479
    %v503 = vunpack.c.l.b16 %v480
    %v504 = vunpack.c.h.b16 %v480
    %v505 = vpack.c.b16 %v499, %v497
    %v506 = vpack.c.b16 %v500, %v498
    %v507 = vpack.c.b16 %v503, %v501
    %v508 = vpack.c.b16 %v504, %v502
    %513 = vmatprep.subr.bf16.mxu0 %v506
    %514 = vmatpush1.bf16.msra.mxu0 %v505
    %515 = vmatprep.subr.bf16.mxu0 %v508
    %516 = vmatpush1.bf16.msra.mxu0 %v507
    %517 = vmatprep.subr.bf16.mxu0 0
    %518 = vmatpush1.bf16.msra.mxu0 0
    %519 = vmatprep.subr.bf16.mxu0 0
    %520 = vmatpush1.bf16.msra.mxu0 0
    %521 = vmatprep.subr.bf16.mxu0 0
    %522 = vmatpush1.bf16.msra.mxu0 0
    %523 = vmatprep.subr.bf16.mxu0 0
    %524 = vmatpush1.bf16.msra.mxu0 0
    %525 = vmatprep.subr.bf16.mxu0 0
    %526 = vmatpush1.bf16.msra.mxu0 0
    %527 = vmatprep.subr.bf16.mxu0 0
    %528 = vmatpush1.bf16.msra.mxu0 0
    %529 = vmatprep.subr.bf16.mxu0 0
    %530 = vmatpush1.bf16.msra.mxu0 0
    %531 = vmatprep.subr.bf16.mxu0 0
    %532 = vmatpush1.bf16.msra.mxu0 0
    %533 = vmatprep.subr.bf16.mxu0 0
    %534 = vmatpush1.bf16.msra.mxu0 0
    %535 = vmatprep.subr.bf16.mxu0 0
    %536 = vmatpush1.bf16.msra.mxu0 0
    %537 = vmatprep.subr.bf16.mxu0 0
    %538 = vmatpush1.bf16.msra.mxu0 0
    %539 = vmatprep.subr.bf16.mxu0 0
    %540 = vmatpush1.bf16.msra.mxu0 0
    %541 = vmatprep.subr.bf16.mxu0 0
    %542 = vmatpush1.bf16.msra.mxu0 0
    %543 = vmatprep.subr.bf16.mxu0 0
    %544 = vmatpush1.bf16.msra.mxu0 0
    %545 = vmatprep.mubr.bf16.mxu0 0
    %546 = vmatmul.mubr.bf16.gmra.mrb[0].mxu0 %v432
    %v547 = vpop.f32.mrb[0].mxu0
    %v548 = vadd.f32 %v486, %v547
    %v549 = vpop.f32.mrb[0].mxu0
    %v550 = vadd.f32 %v490, %v549
    %v551 = vpop.f32.mrb[0].mxu0
    %v552 = vadd.f32 %v486, %v551
    %v553 = vpop.f32.mrb[0].mxu0
    %v554 = vadd.f32 %v490, %v553
    %555 = vdwg.mxu0
    %v556 = vld [vmem:[%s11] sm:$0xff]
    %v557 = vld [vmem:[%s11 + $0x8] sm:$0xff]
    %v558 = vld [vmem:[%s11 + $0x10] sm:$0xff]
    %v559 = vld [vmem:[%s11 + $0x18] sm:$0xff]
    %v560 = vld [vmem:[%s11 + $0x20] sm:$0xff]
    %v561 = vld [vmem:[%s11 + $0x28] sm:$0xff]
    %v562 = vld [vmem:[%s11 + $0x30] sm:$0xff]
    %v563 = vld [vmem:[%s11 + $0x38] sm:$0xff]
    %v564 = vld [vmem:[%s17] sm:$0xff]
    %v565 = vld [vmem:[%s17 + $0x8] sm:$0xff]
    %v566 = vld [vmem:[%s17 + $0x10] sm:$0xff]
    %v567 = vld [vmem:[%s17 + $0x18] sm:$0xff]
    %v568 = vld [vmem:[%s17 + $0x20] sm:$0xff]
    %v569 = vld [vmem:[%s17 + $0x28] sm:$0xff]
    %v570 = vld [vmem:[%s17 + $0x30] sm:$0xff]
    %v571 = vld [vmem:[%s17 + $0x38] sm:$0xff]
    %v580 = vunpack.c.l.b16 %v556
    %v581 = vunpack.c.h.b16 %v556
    %v582 = vunpack.c.l.b16 %v557
    %v583 = vunpack.c.h.b16 %v557
    %v584 = vunpack.c.l.b16 %v558
    %v585 = vunpack.c.h.b16 %v558
    %v586 = vunpack.c.l.b16 %v559
    %v587 = vunpack.c.h.b16 %v559
    %v588 = vunpack.c.l.b16 %v560
    %v589 = vunpack.c.h.b16 %v560
    %v590 = vunpack.c.l.b16 %v561
    %v591 = vunpack.c.h.b16 %v561
    %v592 = vunpack.c.l.b16 %v562
    %v593 = vunpack.c.h.b16 %v562
    %v594 = vunpack.c.l.b16 %v563
    %v595 = vunpack.c.h.b16 %v563
    %v596 = vpack.c.b16 %v582, %v580
    %v597 = vpack.c.b16 %v583, %v581
    %v598 = vpack.c.b16 %v586, %v584
    %v599 = vpack.c.b16 %v587, %v585
    %v600 = vpack.c.b16 %v590, %v588
    %v601 = vpack.c.b16 %v591, %v589
    %v602 = vpack.c.b16 %v594, %v592
    %v603 = vpack.c.b16 %v595, %v593
    %vm612 = vcmask 523264
    %v614 = vsel %vm612, 0, 0
    %616 = vmatprep.subr.bf16.mxu0 %v597
    %617 = vmatpush1.bf16.msra.mxu0 %v596
    %618 = vmatprep.subr.bf16.mxu0 %v599
    %619 = vmatpush1.bf16.msra.mxu0 %v598
    %620 = vmatprep.subr.bf16.mxu0 %v601
    %621 = vmatpush1.bf16.msra.mxu0 %v600
    %622 = vmatprep.subr.bf16.mxu0 %v603
    %623 = vmatpush1.bf16.msra.mxu0 %v602
    %624 = vmatprep.subr.bf16.mxu0 0
    %625 = vmatpush1.bf16.msra.mxu0 0
    %626 = vmatprep.subr.bf16.mxu0 0
    %627 = vmatpush1.bf16.msra.mxu0 0
    %628 = vmatprep.subr.bf16.mxu0 0
    %629 = vmatpush1.bf16.msra.mxu0 0
    %630 = vmatprep.subr.bf16.mxu0 0
    %631 = vmatpush1.bf16.msra.mxu0 0
    %632 = vmatprep.subr.bf16.mxu0 0
    %633 = vmatpush1.bf16.msra.mxu0 0
    %634 = vmatprep.subr.bf16.mxu0 0
    %635 = vmatpush1.bf16.msra.mxu0 0
    %636 = vmatprep.subr.bf16.mxu0 0
    %637 = vmatpush1.bf16.msra.mxu0 0
    %638 = vmatprep.subr.bf16.mxu0 0
    %639 = vmatpush1.bf16.msra.mxu0 0
    %640 = vmatprep.subr.bf16.mxu0 0
    %641 = vmatpush1.bf16.msra.mxu0 0
    %642 = vmatprep.subr.bf16.mxu0 0
    %643 = vmatpush1.bf16.msra.mxu0 0
    %644 = vmatprep.subr.bf16.mxu0 0
    %645 = vmatpush1.bf16.msra.mxu0 0
    %646 = vmatprep.subr.bf16.mxu0 0
    %647 = vmatpush1.bf16.msra.mxu0 0
    %648 = vmatprep.mubr.bf16.mxu0 0
    %649 = vmatmul.mubr.bf16.gmra.mrb[0].mxu0 %v614
    %v650 = vpop.f32.mrb[0].mxu0
    %v651 = vadd.f32 0.0, %v650
    %v652 = vpop.f32.mrb[0].mxu0
    %v653 = vadd.f32 0.0, %v652
    %v654 = vpop.f32.mrb[0].mxu0
    %v655 = vpop.f32.mrb[0].mxu0
    %656 = vdwg.mxu0
    %v657 = vadd.f32 %v469, %v651
    %v658 = vadd.f32 %v471, %v653
    %v659 = vxor.u32 %v657, 2147483648
    %v660 = vmul.f32 %v659, 1.442695
    %v661 = vpow.pop %v660
    %v662 = vadd.f32 %v661, 1.0
    %v663 = vrcp.pop %v662
    %v664 = vmul.f32 1.0, %v663
    %v665 = vtanh.pop %v658
    %v666 = vxor.u32 %v658, 2147483648
    %v667 = vmul.f32 %v666, 1.442695
    %v668 = vpow.pop %v667
    %v669 = vadd.f32 %v668, 1.0
    %v670 = vrcp.pop %v669
    %v671 = vmul.f32 1.0, %v670
    %v672 = vmul.f32 %v664, 0.0
    %v673 = vmul.f32 %v664, %v665
    %675 = vrot.lane.b32.xlu0 %v673, 64
    %v676 = vpop.permute.xlu0 %675
    %v678 = vadd.f32 %v672, %v676
    %v679 = vtanh.pop %v678
    %v680 = vmul.f32 %v671, %v679
    %682 = vrot.lane.b32.xlu0 %v680, 64
    %v683 = vpop.permute.xlu0 %682
    %vm685 = vcmask 517120
    %686 = vst.msk [vmem:[#allocation3] sm:$0x3] %vm685, %v683
    %v695 = vunpack.c.l.b16 %v564
    %v696 = vunpack.c.h.b16 %v564
    %v697 = vunpack.c.l.b16 %v565
    %v698 = vunpack.c.h.b16 %v565
    %v699 = vunpack.c.l.b16 %v566
    %v700 = vunpack.c.h.b16 %v566
    %v701 = vunpack.c.l.b16 %v567
    %v702 = vunpack.c.h.b16 %v567
    %v703 = vunpack.c.l.b16 %v568
    %v704 = vunpack.c.h.b16 %v568
    %v705 = vunpack.c.l.b16 %v569
    %v706 = vunpack.c.h.b16 %v569
    %v707 = vunpack.c.l.b16 %v570
    %v708 = vunpack.c.h.b16 %v570
    %v709 = vunpack.c.l.b16 %v571
    %v710 = vunpack.c.h.b16 %v571
    %v711 = vpack.c.b16 %v697, %v695
    %v712 = vpack.c.b16 %v698, %v696
    %v713 = vpack.c.b16 %v701, %v699
    %v714 = vpack.c.b16 %v702, %v700
    %v715 = vpack.c.b16 %v705, %v703
    %v716 = vpack.c.b16 %v706, %v704
    %v717 = vpack.c.b16 %v709, %v707
    %v718 = vpack.c.b16 %v710, %v708
    %727 = vmatprep.subr.bf16.mxu0 %v712
    %728 = vmatpush1.bf16.msra.mxu0 %v711
    %729 = vmatprep.subr.bf16.mxu0 %v714
    %730 = vmatpush1.bf16.msra.mxu0 %v713
    %731 = vmatprep.subr.bf16.mxu0 %v716
    %732 = vmatpush1.bf16.msra.mxu0 %v715
    %733 = vmatprep.subr.bf16.mxu0 %v718
    %734 = vmatpush1.bf16.msra.mxu0 %v717
    %735 = vmatprep.subr.bf16.mxu0 0
    %736 = vmatpush1.bf16.msra.mxu0 0
    %737 = vmatprep.subr.bf16.mxu0 0
    %738 = vmatpush1.bf16.msra.mxu0 0
    %739 = vmatprep.subr.bf16.mxu0 0
    %740 = vmatpush1.bf16.msra.mxu0 0
    %741 = vmatprep.subr.bf16.mxu0 0
    %742 = vmatpush1.bf16.msra.mxu0 0
    %743 = vmatprep.subr.bf16.mxu0 0
    %744 = vmatpush1.bf16.msra.mxu0 0
    %745 = vmatprep.subr.bf16.mxu0 0
    %746 = vmatpush1.bf16.msra.mxu0 0
    %747 = vmatprep.subr.bf16.mxu0 0
    %748 = vmatpush1.bf16.msra.mxu0 0
    %749 = vmatprep.subr.bf16.mxu0 0
    %750 = vmatpush1.bf16.msra.mxu0 0
    %751 = vmatprep.subr.bf16.mxu0 0
    %752 = vmatpush1.bf16.msra.mxu0 0
    %753 = vmatprep.subr.bf16.mxu0 0
    %754 = vmatpush1.bf16.msra.mxu0 0
    %755 = vmatprep.subr.bf16.mxu0 0
    %756 = vmatpush1.bf16.msra.mxu0 0
    %757 = vmatprep.subr.bf16.mxu0 0
    %758 = vmatpush1.bf16.msra.mxu0 0
    %759 = vmatprep.mubr.bf16.mxu0 0
    %760 = vmatmul.mubr.bf16.gmra.mrb[0].mxu0 %v614
    %v761 = vpop.f32.mrb[0].mxu0
    %v762 = vadd.f32 0.0, %v761
    %v763 = vpop.f32.mrb[0].mxu0
    %v764 = vadd.f32 0.0, %v763
    %v765 = vpop.f32.mrb[0].mxu0
    %v766 = vpop.f32.mrb[0].mxu0
    %767 = vdwg.mxu0
    %v770 = vrot.slane %v762, 2
    %v771 = vrot.slane %v764, 2
    %v774 = vadd.f32 %v552, %v770
    %v775 = vadd.f32 %v554, %v771
    %v776 = vxor.u32 %v774, 2147483648
    %v777 = vmul.f32 %v776, 1.442695
    %v778 = vpow.pop %v777
    %v779 = vadd.f32 %v778, 1.0
    %v780 = vrcp.pop %v779
    %v781 = vmul.f32 1.0, %v780
    %v782 = vtanh.pop %v775
    %v783 = vxor.u32 %v775, 2147483648
    %v784 = vmul.f32 %v783, 1.442695
    %v785 = vpow.pop %v784
    %v786 = vadd.f32 %v785, 1.0
    %v787 = vrcp.pop %v786
    %v788 = vmul.f32 1.0, %v787
    %v789 = vmul.f32 %v781, 0.0
    %v790 = vmul.f32 %v781, %v782
    %792 = vrot.lane.b32.xlu0 %v790, 64
    %v793 = vpop.permute.xlu0 %792
    %v795 = vadd.f32 %v789, %v793
    %v796 = vtanh.pop %v795
    %v797 = vmul.f32 %v788, %v796
    %vm798 = vcmask 1048070
    %799 = vst.msk [vmem:[#allocation3 + $0x8] sm:$0xc0] %vm798, %v797
    %v800 = vpack.c.bf16 %v680, %v680
    %802 = vrot.lane.b32.xlu0 %v800, 64
    %v803 = vpop.permute.xlu0 %802
    %v805 = vsel %vm612, %v803, 0
    %807 = vmatprep.subr.bf16.mxu0 %v597
    %808 = vmatpush1.bf16.msra.mxu0 %v596
    %809 = vmatprep.subr.bf16.mxu0 %v599
    %810 = vmatpush1.bf16.msra.mxu0 %v598
    %811 = vmatprep.subr.bf16.mxu0 %v601
    %812 = vmatpush1.bf16.msra.mxu0 %v600
    %813 = vmatprep.subr.bf16.mxu0 %v603
    %814 = vmatpush1.bf16.msra.mxu0 %v602
    %815 = vmatprep.subr.bf16.mxu0 0
    %816 = vmatpush1.bf16.msra.mxu0 0
    %817 = vmatprep.subr.bf16.mxu0 0
    %818 = vmatpush1.bf16.msra.mxu0 0
    %819 = vmatprep.subr.bf16.mxu0 0
    %820 = vmatpush1.bf16.msra.mxu0 0
    %821 = vmatprep.subr.bf16.mxu0 0
    %822 = vmatpush1.bf16.msra.mxu0 0
    %823 = vmatprep.subr.bf16.mxu0 0
    %824 = vmatpush1.bf16.msra.mxu0 0
    %825 = vmatprep.subr.bf16.mxu0 0
    %826 = vmatpush1.bf16.msra.mxu0 0
    %827 = vmatprep.subr.bf16.mxu0 0
    %828 = vmatpush1.bf16.msra.mxu0 0
    %829 = vmatprep.subr.bf16.mxu0 0
    %830 = vmatpush1.bf16.msra.mxu0 0
    %831 = vmatprep.subr.bf16.mxu0 0
    %832 = vmatpush1.bf16.msra.mxu0 0
    %833 = vmatprep.subr.bf16.mxu0 0
    %834 = vmatpush1.bf16.msra.mxu0 0
    %835 = vmatprep.subr.bf16.mxu0 0
    %836 = vmatpush1.bf16.msra.mxu0 0
    %837 = vmatprep.subr.bf16.mxu0 0
    %838 = vmatpush1.bf16.msra.mxu0 0
    %839 = vmatprep.mubr.bf16.mxu0 0
    %840 = vmatmul.mubr.bf16.gmra.mrb[0].mxu0 %v805
    %v841 = vpop.f32.mrb[0].mxu0
    %v842 = vadd.f32 0.0, %v841
    %v843 = vpop.f32.mrb[0].mxu0
    %v844 = vadd.f32 0.0, %v843
    %v845 = vpop.f32.mrb[0].mxu0
    %v846 = vpop.f32.mrb[0].mxu0
    %847 = vdwg.mxu0
    %v850 = vrot.slane %v842, 6
    %v851 = vrot.slane %v844, 6
    %v854 = vadd.f32 %v469, %v850
    %v855 = vadd.f32 %v471, %v851
    %v856 = vxor.u32 %v854, 2147483648
    %v857 = vmul.f32 %v856, 1.442695
    %v858 = vpow.pop %v857
    %v859 = vadd.f32 %v858, 1.0
    %v860 = vrcp.pop %v859
    %v861 = vmul.f32 1.0, %v860
    %v862 = vtanh.pop %v855
    %v863 = vxor.u32 %v855, 2147483648
    %v864 = vmul.f32 %v863, 1.442695
    %v865 = vpow.pop %v864
    %v866 = vadd.f32 %v865, 1.0
    %v867 = vrcp.pop %v866
    %v868 = vmul.f32 1.0, %v867
    %v870 = vrot.slane %v678, 6
    %v872 = vmul.f32 %v861, %v870
    %v873 = vmul.f32 %v861, %v862
    %875 = vrot.lane.b32.xlu0 %v873, 64
    %v876 = vpop.permute.xlu0 %875
    %v878 = vadd.f32 %v872, %v876
    %v879 = vtanh.pop %v878
    %v880 = vmul.f32 %v868, %v879
    %882 = vrot.lane.b32.xlu0 %v880, 64
    %v883 = vpop.permute.xlu0 %882
    %vm885 = vcmask 519170
    %886 = vst.msk [vmem:[#allocation3] sm:$0xc] %vm885, %v883
    %v887 = vpack.c.bf16 %v797, %v797
    %v889 = vrot.slane %v887, 3
    %890 = vrot.lane.b32.xlu0 %v889, 64
    %v891 = vpop.permute.xlu0 %890
    %v893 = vsel %vm612, %v891, 0
    %895 = vmatprep.subr.bf16.mxu0 %v712
    %896 = vmatpush1.bf16.msra.mxu0 %v711
    %897 = vmatprep.subr.bf16.mxu0 %v714
    %898 = vmatpush1.bf16.msra.mxu0 %v713
    %899 = vmatprep.subr.bf16.mxu0 %v716
    %900 = vmatpush1.bf16.msra.mxu0 %v715
    %901 = vmatprep.subr.bf16.mxu0 %v718
    %902 = vmatpush1.bf16.msra.mxu0 %v717
    %903 = vmatprep.subr.bf16.mxu0 0
    %904 = vmatpush1.bf16.msra.mxu0 0
    %905 = vmatprep.subr.bf16.mxu0 0
    %906 = vmatpush1.bf16.msra.mxu0 0
    %907 = vmatprep.subr.bf16.mxu0 0
    %908 = vmatpush1.bf16.msra.mxu0 0
    %909 = vmatprep.subr.bf16.mxu0 0
    %910 = vmatpush1.bf16.msra.mxu0 0
    %911 = vmatprep.subr.bf16.mxu0 0
    %912 = vmatpush1.bf16.msra.mxu0 0
    %913 = vmatprep.subr.bf16.mxu0 0
    %914 = vmatpush1.bf16.msra.mxu0 0
    %915 = vmatprep.subr.bf16.mxu0 0
    %916 = vmatpush1.bf16.msra.mxu0 0
    %917 = vmatprep.subr.bf16.mxu0 0
    %918 = vmatpush1.bf16.msra.mxu0 0
    %919 = vmatprep.subr.bf16.mxu0 0
    %920 = vmatpush1.bf16.msra.mxu0 0
    %921 = vmatprep.subr.bf16.mxu0 0
    %922 = vmatpush1.bf16.msra.mxu0 0
    %923 = vmatprep.subr.bf16.mxu0 0
    %924 = vmatpush1.bf16.msra.mxu0 0
    %925 = vmatprep.subr.bf16.mxu0 0
    %926 = vmatpush1.bf16.msra.mxu0 0
    %927 = vmatprep.mubr.bf16.mxu0 0
    %928 = vmatmul.mubr.bf16.gmra.mrb[0].mxu0 %v893
    %v929 = vpop.f32.mrb[0].mxu0
    %v930 = vadd.f32 0.0, %v929
    %v931 = vpop.f32.mrb[0].mxu0
    %v932 = vadd.f32 0.0, %v931
    %v933 = vpop.f32.mrb[0].mxu0
    %v934 = vpop.f32.mrb[0].mxu0
    %935 = vdwg.mxu0
    %v938 = vrot.slane %v930, 4
    %v939 = vrot.slane %v932, 4
    %v942 = vadd.f32 %v552, %v938
    %v943 = vadd.f32 %v554, %v939
    %v944 = vxor.u32 %v942, 2147483648
    %v945 = vmul.f32 %v944, 1.442695
    %v946 = vpow.pop %v945
    %v947 = vadd.f32 %v946, 1.0
    %v948 = vrcp.pop %v947
    %v949 = vmul.f32 1.0, %v948
    %v950 = vtanh.pop %v943
    %v951 = vxor.u32 %v943, 2147483648
    %v952 = vmul.f32 %v951, 1.442695
    %v953 = vpow.pop %v952
    %v954 = vadd.f32 %v953, 1.0
    %v955 = vrcp.pop %v954
    %v956 = vmul.f32 1.0, %v955
    %v958 = vrot.slane %v795, 2
    %v960 = vmul.f32 %v949, %v958
    %v961 = vmul.f32 %v949, %v950
    %963 = vrot.lane.b32.xlu0 %v961, 64
    %v964 = vpop.permute.xlu0 %963
    %v966 = vadd.f32 %v960, %v964
    %v967 = vtanh.pop %v966
    %v968 = vmul.f32 %v956, %v967
    %vm969 = vcmask 1046020
    %970 = vst.msk [vmem:[#allocation3 + $0x8] sm:$0x30] %vm969, %v968
    %v971 = vpack.c.bf16 %v880, %v880
    %v973 = vrot.slane %v971, 1
    %974 = vrot.lane.b32.xlu0 %v973, 64
    %v975 = vpop.permute.xlu0 %974
    %v977 = vsel %vm612, %v975, 0
    %979 = vmatprep.subr.bf16.mxu0 %v597
    %980 = vmatpush1.bf16.msra.mxu0 %v596
    %981 = vmatprep.subr.bf16.mxu0 %v599
    %982 = vmatpush1.bf16.msra.mxu0 %v598
    %983 = vmatprep.subr.bf16.mxu0 %v601
    %984 = vmatpush1.bf16.msra.mxu0 %v600
    %985 = vmatprep.subr.bf16.mxu0 %v603
    %986 = vmatpush1.bf16.msra.mxu0 %v602
    %987 = vmatprep.subr.bf16.mxu0 0
    %988 = vmatpush1.bf16.msra.mxu0 0
    %989 = vmatprep.subr.bf16.mxu0 0
    %990 = vmatpush1.bf16.msra.mxu0 0
    %991 = vmatprep.subr.bf16.mxu0 0
    %992 = vmatpush1.bf16.msra.mxu0 0
    %993 = vmatprep.subr.bf16.mxu0 0
    %994 = vmatpush1.bf16.msra.mxu0 0
    %995 = vmatprep.subr.bf16.mxu0 0
    %996 = vmatpush1.bf16.msra.mxu0 0
    %997 = vmatprep.subr.bf16.mxu0 0
    %998 = vmatpush1.bf16.msra.mxu0 0
    %999 = vmatprep.subr.bf16.mxu0 0
    %1000 = vmatpush1.bf16.msra.mxu0 0
    %1001 = vmatprep.subr.bf16.mxu0 0
    %1002 = vmatpush1.bf16.msra.mxu0 0
    %1003 = vmatprep.subr.bf16.mxu0 0
    %1004 = vmatpush1.bf16.msra.mxu0 0
    %1005 = vmatprep.subr.bf16.mxu0 0
    %1006 = vmatpush1.bf16.msra.mxu0 0
    %1007 = vmatprep.subr.bf16.mxu0 0
    %1008 = vmatpush1.bf16.msra.mxu0 0
    %1009 = vmatprep.subr.bf16.mxu0 0
    %1010 = vmatpush1.bf16.msra.mxu0 0
    %1011 = vmatprep.mubr.bf16.mxu0 0
    %1012 = vmatmul.mubr.bf16.gmra.mrb[0].mxu0 %v977
    %v1013 = vpop.f32.mrb[0].mxu0
    %v1014 = vadd.f32 0.0, %v1013
    %v1015 = vpop.f32.mrb[0].mxu0
    %v1016 = vadd.f32 0.0, %v1015
    %v1017 = vpop.f32.mrb[0].mxu0
    %v1018 = vpop.f32.mrb[0].mxu0
    %1019 = vdwg.mxu0
    %v1022 = vrot.slane %v1014, 4
    %v1023 = vrot.slane %v1016, 4
    %v1026 = vadd.f32 %v469, %v1022
    %v1027 = vadd.f32 %v471, %v1023
    %v1028 = vxor.u32 %v1026, 2147483648
    %v1029 = vmul.f32 %v1028, 1.442695
    %v1030 = vpow.pop %v1029
    %v1031 = vadd.f32 %v1030, 1.0
    %v1032 = vrcp.pop %v1031
    %v1033 = vmul.f32 1.0, %v1032
    %v1034 = vtanh.pop %v1027
    %v1035 = vxor.u32 %v1027, 2147483648
    %v1036 = vmul.f32 %v1035, 1.442695
    %v1037 = vpow.pop %v1036
    %v1038 = vadd.f32 %v1037, 1.0
    %v1039 = vrcp.pop %v1038
    %v1040 = vmul.f32 1.0, %v1039
    %v1042 = vrot.slane %v878, 6
    %v1044 = vmul.f32 %v1033, %v1042
    %v1045 = vmul.f32 %v1033, %v1034
    %1047 = vrot.lane.b32.xlu0 %v1045, 64
    %v1048 = vpop.permute.xlu0 %1047
    %v1050 = vadd.f32 %v1044, %v1048
    %v1051 = vtanh.pop %v1050
    %v1052 = vmul.f32 %v1040, %v1051
    %1054 = vrot.lane.b32.xlu0 %v1052, 64
    %v1055 = vpop.permute.xlu0 %1054
    %vm1057 = vcmask 521220
    %1058 = vst.msk [vmem:[#allocation3] sm:$0x30] %vm1057, %v1055
    %v1059 = vpack.c.bf16 %v968, %v968
    %v1061 = vrot.slane %v1059, 2
    %1062 = vrot.lane.b32.xlu0 %v1061, 64
    %v1063 = vpop.permute.xlu0 %1062
    %v1065 = vsel %vm612, %v1063, 0
    %1067 = vmatprep.subr.bf16.mxu0 %v712
    %1068 = vmatpush1.bf16.msra.mxu0 %v711
    %1069 = vmatprep.subr.bf16.mxu0 %v714
    %1070 = vmatpush1.bf16.msra.mxu0 %v713
    %1071 = vmatprep.subr.bf16.mxu0 %v716
    %1072 = vmatpush1.bf16.msra.mxu0 %v715
    %1073 = vmatprep.subr.bf16.mxu0 %v718
    %1074 = vmatpush1.bf16.msra.mxu0 %v717
    %1075 = vmatprep.subr.bf16.mxu0 0
    %1076 = vmatpush1.bf16.msra.mxu0 0
    %1077 = vmatprep.subr.bf16.mxu0 0
    %1078 = vmatpush1.bf16.msra.mxu0 0
    %1079 = vmatprep.subr.bf16.mxu0 0
    %1080 = vmatpush1.bf16.msra.mxu0 0
    %1081 = vmatprep.subr.bf16.mxu0 0
    %1082 = vmatpush1.bf16.msra.mxu0 0
    %1083 = vmatprep.subr.bf16.mxu0 0
    %1084 = vmatpush1.bf16.msra.mxu0 0
    %1085 = vmatprep.subr.bf16.mxu0 0
    %1086 = vmatpush1.bf16.msra.mxu0 0
    %1087 = vmatprep.subr.bf16.mxu0 0
    %1088 = vmatpush1.bf16.msra.mxu0 0
    %1089 = vmatprep.subr.bf16.mxu0 0
    %1090 = vmatpush1.bf16.msra.mxu0 0
    %1091 = vmatprep.subr.bf16.mxu0 0
    %1092 = vmatpush1.bf16.msra.mxu0 0
    %1093 = vmatprep.subr.bf16.mxu0 0
    %1094 = vmatpush1.bf16.msra.mxu0 0
    %1095 = vmatprep.subr.bf16.mxu0 0
    %1096 = vmatpush1.bf16.msra.mxu0 0
    %1097 = vmatprep.subr.bf16.mxu0 0
    %1098 = vmatpush1.bf16.msra.mxu0 0
    %1099 = vmatprep.mubr.bf16.mxu0 0
    %1100 = vmatmul.mubr.bf16.gmra.mrb[0].mxu0 %v1065
    %v1101 = vpop.f32.mrb[0].mxu0
    %v1102 = vadd.f32 0.0, %v1101
    %v1103 = vpop.f32.mrb[0].mxu0
    %v1104 = vadd.f32 0.0, %v1103
    %v1105 = vpop.f32.mrb[0].mxu0
    %v1106 = vpop.f32.mrb[0].mxu0
    %1107 = vdwg.mxu0
    %v1110 = vrot.slane %v1102, 6
    %v1111 = vrot.slane %v1104, 6
    %v1114 = vadd.f32 %v552, %v1110
    %v1115 = vadd.f32 %v554, %v1111
    %v1116 = vxor.u32 %v1114, 2147483648
    %v1117 = vmul.f32 %v1116, 1.442695
    %v1118 = vpow.pop %v1117
    %v1119 = vadd.f32 %v1118, 1.0
    %v1120 = vrcp.pop %v1119
    %v1121 = vmul.f32 1.0, %v1120
    %v1122 = vtanh.pop %v1115
    %v1123 = vxor.u32 %v1115, 2147483648
    %v1124 = vmul.f32 %v1123, 1.442695
    %v1125 = vpow.pop %v1124
    %v1126 = vadd.f32 %v1125, 1.0
    %v1127 = vrcp.pop %v1126
    %v1128 = vmul.f32 1.0, %v1127
    %v1130 = vrot.slane %v966, 2
    %v1132 = vmul.f32 %v1121, %v1130
    %v1133 = vmul.f32 %v1121, %v1122
    %1135 = vrot.lane.b32.xlu0 %v1133, 64
    %v1136 = vpop.permute.xlu0 %1135
    %v1138 = vadd.f32 %v1132, %v1136
    %v1139 = vtanh.pop %v1138
    %v1140 = vmul.f32 %v1128, %v1139
    %vm1141 = vcmask 1043970
    %1142 = vst.msk [vmem:[#allocation3 + $0x8] sm:$0xc] %vm1141, %v1140
    %v1143 = vpack.c.bf16 %v1052, %v1052
    %v1145 = vrot.slane %v1143, 2
    %1146 = vrot.lane.b32.xlu0 %v1145, 64
    %v1147 = vpop.permute.xlu0 %1146
    %v1149 = vsel %vm612, %v1147, 0
    %1151 = vmatprep.subr.bf16.mxu0 %v597
    %1152 = vmatpush1.bf16.msra.mxu0 %v596
    %1153 = vmatprep.subr.bf16.mxu0 %v599
    %1154 = vmatpush1.bf16.msra.mxu0 %v598
    %1155 = vmatprep.subr.bf16.mxu0 %v601
    %1156 = vmatpush1.bf16.msra.mxu0 %v600
    %1157 = vmatprep.subr.bf16.mxu0 %v603
    %1158 = vmatpush1.bf16.msra.mxu0 %v602
    %1159 = vmatprep.subr.bf16.mxu0 0
    %1160 = vmatpush1.bf16.msra.mxu0 0
    %1161 = vmatprep.subr.bf16.mxu0 0
    %1162 = vmatpush1.bf16.msra.mxu0 0
    %1163 = vmatprep.subr.bf16.mxu0 0
    %1164 = vmatpush1.bf16.msra.mxu0 0
    %1165 = vmatprep.subr.bf16.mxu0 0
    %1166 = vmatpush1.bf16.msra.mxu0 0
    %1167 = vmatprep.subr.bf16.mxu0 0
    %1168 = vmatpush1.bf16.msra.mxu0 0
    %1169 = vmatprep.subr.bf16.mxu0 0
    %1170 = vmatpush1.bf16.msra.mxu0 0
    %1171 = vmatprep.subr.bf16.mxu0 0
    %1172 = vmatpush1.bf16.msra.mxu0 0
    %1173 = vmatprep.subr.bf16.mxu0 0
    %1174 = vmatpush1.bf16.msra.mxu0 0
    %1175 = vmatprep.subr.bf16.mxu0 0
    %1176 = vmatpush1.bf16.msra.mxu0 0
    %1177 = vmatprep.subr.bf16.mxu0 0
    %1178 = vmatpush1.bf16.msra.mxu0 0
    %1179 = vmatprep.subr.bf16.mxu0 0
    %1180 = vmatpush1.bf16.msra.mxu0 0
    %1181 = vmatprep.subr.bf16.mxu0 0
    %1182 = vmatpush1.bf16.msra.mxu0 0
    %1183 = vmatprep.mubr.bf16.mxu0 0
    %1184 = vmatmul.mubr.bf16.gmra.mrb[0].mxu0 %v1149
    %v1185 = vpop.f32.mrb[0].mxu0
    %v1186 = vadd.f32 0.0, %v1185
    %v1187 = vpop.f32.mrb[0].mxu0
    %v1188 = vadd.f32 0.0, %v1187
    %v1189 = vpop.f32.mrb[0].mxu0
    %v1190 = vpop.f32.mrb[0].mxu0
    %1191 = vdwg.mxu0
    %v1194 = vrot.slane %v1186, 2
    %v1195 = vrot.slane %v1188, 2
    %v1198 = vadd.f32 %v469, %v1194
    %v1199 = vadd.f32 %v471, %v1195
    %v1200 = vxor.u32 %v1198, 2147483648
    %v1201 = vmul.f32 %v1200, 1.442695
    %v1202 = vpow.pop %v1201
    %v1203 = vadd.f32 %v1202, 1.0
    %v1204 = vrcp.pop %v1203
    %v1205 = vmul.f32 1.0, %v1204
    %v1206 = vtanh.pop %v1199
    %v1207 = vxor.u32 %v1199, 2147483648
    %v1208 = vmul.f32 %v1207, 1.442695
    %v1209 = vpow.pop %v1208
    %v1210 = vadd.f32 %v1209, 1.0
    %v1211 = vrcp.pop %v1210
    %v1212 = vmul.f32 1.0, %v1211
    %v1214 = vrot.slane %v1050, 6
    %v1216 = vmul.f32 %v1205, %v1214
    %v1217 = vmul.f32 %v1205, %v1206
    %1219 = vrot.lane.b32.xlu0 %v1217, 64
    %v1220 = vpop.permute.xlu0 %1219
    %v1222 = vadd.f32 %v1216, %v1220
    %v1223 = vtanh.pop %v1222
    %v1224 = vmul.f32 %v1212, %v1223
    %1226 = vrot.lane.b32.xlu0 %v1224, 64
    %v1227 = vpop.permute.xlu0 %1226
    %vm1229 = vcmask 523270
    %1230 = vst.msk [vmem:[#allocation3] sm:$0xc0] %vm1229, %v1227
    %v1231 = vpack.c.bf16 %v1140, %v1140
    %v1233 = vrot.slane %v1231, 1
    %1234 = vrot.lane.b32.xlu0 %v1233, 64
    %v1235 = vpop.permute.xlu0 %1234
    %v1237 = vsel %vm612, %v1235, 0
    %1239 = vmatprep.subr.bf16.mxu0 %v712
    %1240 = vmatpush1.bf16.msra.mxu0 %v711
    %1241 = vmatprep.subr.bf16.mxu0 %v714
    %1242 = vmatpush1.bf16.msra.mxu0 %v713
    %1243 = vmatprep.subr.bf16.mxu0 %v716
    %1244 = vmatpush1.bf16.msra.mxu0 %v715
    %1245 = vmatprep.subr.bf16.mxu0 %v718
    %1246 = vmatpush1.bf16.msra.mxu0 %v717
    %1247 = vmatprep.subr.bf16.mxu0 0
    %1248 = vmatpush1.bf16.msra.mxu0 0
    %1249 = vmatprep.subr.bf16.mxu0 0
    %1250 = vmatpush1.bf16.msra.mxu0 0
    %1251 = vmatprep.subr.bf16.mxu0 0
    %1252 = vmatpush1.bf16.msra.mxu0 0
    %1253 = vmatprep.subr.bf16.mxu0 0
    %1254 = vmatpush1.bf16.msra.mxu0 0
    %1255 = vmatprep.subr.bf16.mxu0 0
    %1256 = vmatpush1.bf16.msra.mxu0 0
    %1257 = vmatprep.subr.bf16.mxu0 0
    %1258 = vmatpush1.bf16.msra.mxu0 0
    %1259 = vmatprep.subr.bf16.mxu0 0
    %1260 = vmatpush1.bf16.msra.mxu0 0
    %1261 = vmatprep.subr.bf16.mxu0 0
    %1262 = vmatpush1.bf16.msra.mxu0 0
    %1263 = vmatprep.subr.bf16.mxu0 0
    %1264 = vmatpush1.bf16.msra.mxu0 0
    %1265 = vmatprep.subr.bf16.mxu0 0
    %1266 = vmatpush1.bf16.msra.mxu0 0
    %1267 = vmatprep.subr.bf16.mxu0 0
    %1268 = vmatpush1.bf16.msra.mxu0 0
    %1269 = vmatprep.subr.bf16.mxu0 0
    %1270 = vmatpush1.bf16.msra.mxu0 0
    %1271 = vmatprep.mubr.bf16.mxu0 0
    %1272 = vmatmul.mubr.bf16.gmra.mrb[0].mxu0 %v1237
    %v1273 = vpop.f32.mrb[0].mxu0
    %v1274 = vadd.f32 0.0, %v1273
    %v1275 = vpop.f32.mrb[0].mxu0
    %v1276 = vadd.f32 0.0, %v1275
    %v1277 = vpop.f32.mrb[0].mxu0
    %v1278 = vpop.f32.mrb[0].mxu0
    %1279 = vdwg.mxu0
    %v1280 = vadd.f32 %v552, %v1274
    %v1281 = vadd.f32 %v554, %v1276
    %v1282 = vxor.u32 %v1280, 2147483648
    %v1283 = vmul.f32 %v1282, 1.442695
    %v1284 = vpow.pop %v1283
    %v1285 = vadd.f32 %v1284, 1.0
    %v1286 = vrcp.pop %v1285
    %v1287 = vmul.f32 1.0, %v1286
    %v1288 = vtanh.pop %v1281
    %v1289 = vxor.u32 %v1281, 2147483648
    %v1290 = vmul.f32 %v1289, 1.442695
    %v1291 = vpow.pop %v1290
    %v1292 = vadd.f32 %v1291, 1.0
    %v1293 = vrcp.pop %v1292
    %v1294 = vmul.f32 1.0, %v1293
    %v1296 = vrot.slane %v1138, 2
    %v1298 = vmul.f32 %v1287, %v1296
    %v1299 = vmul.f32 %v1287, %v1288
    %1301 = vrot.lane.b32.xlu0 %v1299, 64
    %v1302 = vpop.permute.xlu0 %1301
    %v1304 = vadd.f32 %v1298, %v1302
    %v1305 = vtanh.pop %v1304
    %v1306 = vmul.f32 %v1294, %v1305
    %vm1307 = vcmask 1041920
    %1308 = vst.msk [vmem:[#allocation3 + $0x8] sm:$0x3] %vm1307, %v1306
    %v1309 = vpack.c.bf16 %v1224, %v1224
    %v1311 = vrot.slane %v1309, 3
    %1312 = vrot.lane.b32.xlu0 %v1311, 64
    %v1313 = vpop.permute.xlu0 %1312
    %v1315 = vsel %vm612, %v1313, 0
    %1317 = vmatprep.subr.bf16.mxu0 %v597
    %1318 = vmatpush1.bf16.msra.mxu0 %v596
    %1319 = vmatprep.subr.bf16.mxu0 %v599
    %1320 = vmatpush1.bf16.msra.mxu0 %v598
    %1321 = vmatprep.subr.bf16.mxu0 %v601
    %1322 = vmatpush1.bf16.msra.mxu0 %v600
    %1323 = vmatprep.subr.bf16.mxu0 %v603
    %1324 = vmatpush1.bf16.msra.mxu0 %v602
    %1325 = vmatprep.subr.bf16.mxu0 0
    %1326 = vmatpush1.bf16.msra.mxu0 0
    %1327 = vmatprep.subr.bf16.mxu0 0
    %1328 = vmatpush1.bf16.msra.mxu0 0
    %1329 = vmatprep.subr.bf16.mxu0 0
    %1330 = vmatpush1.bf16.msra.mxu0 0
    %1331 = vmatprep.subr.bf16.mxu0 0
    %1332 = vmatpush1.bf16.msra.mxu0 0
    %1333 = vmatprep.subr.bf16.mxu0 0
    %1334 = vmatpush1.bf16.msra.mxu0 0
    %1335 = vmatprep.subr.bf16.mxu0 0
    %1336 = vmatpush1.bf16.msra.mxu0 0
    %1337 = vmatprep.subr.bf16.mxu0 0
    %1338 = vmatpush1.bf16.msra.mxu0 0
    %1339 = vmatprep.subr.bf16.mxu0 0
    %1340 = vmatpush1.bf16.msra.mxu0 0
    %1341 = vmatprep.subr.bf16.mxu0 0
    %1342 = vmatpush1.bf16.msra.mxu0 0
    %1343 = vmatprep.subr.bf16.mxu0 0
    %1344 = vmatpush1.bf16.msra.mxu0 0
    %1345 = vmatprep.subr.bf16.mxu0 0
    %1346 = vmatpush1.bf16.msra.mxu0 0
    %1347 = vmatprep.subr.bf16.mxu0 0
    %1348 = vmatpush1.bf16.msra.mxu0 0
    %1349 = vmatprep.mubr.bf16.mxu0 0
    %1350 = vmatmul.mubr.bf16.gmra.mrb[0].mxu0 %v1315
    %v1351 = vpop.f32.mrb[0].mxu0
    %v1352 = vadd.f32 0.0, %v1351
    %v1353 = vpop.f32.mrb[0].mxu0
    %v1354 = vadd.f32 0.0, %v1353
    %v1355 = vpop.f32.mrb[0].mxu0
    %v1356 = vpop.f32.mrb[0].mxu0
    %1357 = vdwg.mxu0
    %v1358 = vadd.f32 %v473, %v1352
    %v1359 = vadd.f32 %v475, %v1354
    %v1360 = vxor.u32 %v1358, 2147483648
    %v1361 = vmul.f32 %v1360, 1.442695
    %v1362 = vpow.pop %v1361
    %v1363 = vadd.f32 %v1362, 1.0
    %v1364 = vrcp.pop %v1363
    %v1365 = vmul.f32 1.0, %v1364
    %v1366 = vtanh.pop %v1359
    %v1367 = vxor.u32 %v1359, 2147483648
    %v1368 = vmul.f32 %v1367, 1.442695
    %v1369 = vpow.pop %v1368
    %v1370 = vadd.f32 %v1369, 1.0
    %v1371 = vrcp.pop %v1370
    %v1372 = vmul.f32 1.0, %v1371
    %v1374 = vrot.slane %v1222, 6
    %v1376 = vmul.f32 %v1365, %v1374
    %v1377 = vmul.f32 %v1365, %v1366
    %1379 = vrot.lane.b32.xlu0 %v1377, 64
    %v1380 = vpop.permute.xlu0 %1379
    %v1382 = vadd.f32 %v1376, %v1380
    %v1383 = vtanh.pop %v1382
    %v1384 = vmul.f32 %v1372, %v1383
    %1386 = vrot.lane.b32.xlu0 %v1384, 64
    %v1387 = vpop.permute.xlu0 %1386
    %1389 = vst.msk [vmem:[#allocation3 + $0x8] sm:$0x3] %vm685, %v1387
    %v1390 = vpack.c.bf16 %v1306, %v1306
    %1392 = vrot.lane.b32.xlu0 %v1390, 64
    %v1393 = vpop.permute.xlu0 %1392
    %v1395 = vsel %vm612, %v1393, 0
    %1397 = vmatprep.subr.bf16.mxu0 %v712
    %1398 = vmatpush1.bf16.msra.mxu0 %v711
    %1399 = vmatprep.subr.bf16.mxu0 %v714
    %1400 = vmatpush1.bf16.msra.mxu0 %v713
    %1401 = vmatprep.subr.bf16.mxu0 %v716
    %1402 = vmatpush1.bf16.msra.mxu0 %v715
    %1403 = vmatprep.subr.bf16.mxu0 %v718
    %1404 = vmatpush1.bf16.msra.mxu0 %v717
    %1405 = vmatprep.subr.bf16.mxu0 0
    %1406 = vmatpush1.bf16.msra.mxu0 0
    %1407 = vmatprep.subr.bf16.mxu0 0
    %1408 = vmatpush1.bf16.msra.mxu0 0
    %1409 = vmatprep.subr.bf16.mxu0 0
    %1410 = vmatpush1.bf16.msra.mxu0 0
    %1411 = vmatprep.subr.bf16.mxu0 0
    %1412 = vmatpush1.bf16.msra.mxu0 0
    %1413 = vmatprep.subr.bf16.mxu0 0
    %1414 = vmatpush1.bf16.msra.mxu0 0
    %1415 = vmatprep.subr.bf16.mxu0 0
    %1416 = vmatpush1.bf16.msra.mxu0 0
    %1417 = vmatprep.subr.bf16.mxu0 0
    %1418 = vmatpush1.bf16.msra.mxu0 0
    %1419 = vmatprep.subr.bf16.mxu0 0
    %1420 = vmatpush1.bf16.msra.mxu0 0
    %1421 = vmatprep.subr.bf16.mxu0 0
    %1422 = vmatpush1.bf16.msra.mxu0 0
    %1423 = vmatprep.subr.bf16.mxu0 0
    %1424 = vmatpush1.bf16.msra.mxu0 0
    %1425 = vmatprep.subr.bf16.mxu0 0
    %1426 = vmatpush1.bf16.msra.mxu0 0
    %1427 = vmatprep.subr.bf16.mxu0 0
    %1428 = vmatpush1.bf16.msra.mxu0 0
    %1429 = vmatprep.mubr.bf16.mxu0 0
    %1430 = vmatmul.mubr.bf16.gmra.mrb[0].mxu0 %v1395
    %v1431 = vpop.f32.mrb[0].mxu0
    %v1432 = vadd.f32 0.0, %v1431
    %v1433 = vpop.f32.mrb[0].mxu0
    %v1434 = vadd.f32 0.0, %v1433
    %v1435 = vpop.f32.mrb[0].mxu0
    %v1436 = vpop.f32.mrb[0].mxu0
    %1437 = vdwg.mxu0
    %v1440 = vrot.slane %v1432, 2
    %v1441 = vrot.slane %v1434, 2
    %v1444 = vadd.f32 %v548, %v1440
    %v1445 = vadd.f32 %v550, %v1441
    %v1446 = vxor.u32 %v1444, 2147483648
    %v1447 = vmul.f32 %v1446, 1.442695
    %v1448 = vpow.pop %v1447
    %v1449 = vadd.f32 %v1448, 1.0
    %v1450 = vrcp.pop %v1449
    %v1451 = vmul.f32 1.0, %v1450
    %v1452 = vtanh.pop %v1445
    %v1453 = vxor.u32 %v1445, 2147483648
    %v1454 = vmul.f32 %v1453, 1.442695
    %v1455 = vpow.pop %v1454
    %v1456 = vadd.f32 %v1455, 1.0
    %v1457 = vrcp.pop %v1456
    %v1458 = vmul.f32 1.0, %v1457
    %v1460 = vrot.slane %v1304, 2
    %v1462 = vmul.f32 %v1451, %v1460
    %v1463 = vmul.f32 %v1451, %v1452
    %1465 = vrot.lane.b32.xlu0 %v1463, 64
    %v1466 = vpop.permute.xlu0 %1465
    %v1468 = vadd.f32 %v1462, %v1466
    %v1469 = vtanh.pop %v1468
    %v1470 = vmul.f32 %v1458, %v1469
    %1471 = vst.msk [vmem:[#allocation3] sm:$0xc0] %vm798, %v1470
    %v1472 = vpack.c.bf16 %v1384, %v1384
    %1474 = vrot.lane.b32.xlu0 %v1472, 64
    %v1475 = vpop.permute.xlu0 %1474
    %v1477 = vsel %vm612, %v1475, 0
    %1479 = vmatprep.subr.bf16.mxu0 %v597
    %1480 = vmatpush1.bf16.msra.mxu0 %v596
    %1481 = vmatprep.subr.bf16.mxu0 %v599
    %1482 = vmatpush1.bf16.msra.mxu0 %v598
    %1483 = vmatprep.subr.bf16.mxu0 %v601
    %1484 = vmatpush1.bf16.msra.mxu0 %v600
    %1485 = vmatprep.subr.bf16.mxu0 %v603
    %1486 = vmatpush1.bf16.msra.mxu0 %v602
    %1487 = vmatprep.subr.bf16.mxu0 0
    %1488 = vmatpush1.bf16.msra.mxu0 0
    %1489 = vmatprep.subr.bf16.mxu0 0
    %1490 = vmatpush1.bf16.msra.mxu0 0
    %1491 = vmatprep.subr.bf16.mxu0 0
    %1492 = vmatpush1.bf16.msra.mxu0 0
    %1493 = vmatprep.subr.bf16.mxu0 0
    %1494 = vmatpush1.bf16.msra.mxu0 0
    %1495 = vmatprep.subr.bf16.mxu0 0
    %1496 = vmatpush1.bf16.msra.mxu0 0
    %1497 = vmatprep.subr.bf16.mxu0 0
    %1498 = vmatpush1.bf16.msra.mxu0 0
    %1499 = vmatprep.subr.bf16.mxu0 0
    %1500 = vmatpush1.bf16.msra.mxu0 0
    %1501 = vmatprep.subr.bf16.mxu0 0
    %1502 = vmatpush1.bf16.msra.mxu0 0
    %1503 = vmatprep.subr.bf16.mxu0 0
    %1504 = vmatpush1.bf16.msra.mxu0 0
    %1505 = vmatprep.subr.bf16.mxu0 0
    %1506 = vmatpush1.bf16.msra.mxu0 0
    %1507 = vmatprep.subr.bf16.mxu0 0
    %1508 = vmatpush1.bf16.msra.mxu0 0
    %1509 = vmatprep.subr.bf16.mxu0 0
    %1510 = vmatpush1.bf16.msra.mxu0 0
    %1511 = vmatprep.mubr.bf16.mxu0 0
    %1512 = vmatmul.mubr.bf16.gmra.mrb[0].mxu0 %v1477
    %v1513 = vpop.f32.mrb[0].mxu0
    %v1514 = vadd.f32 0.0, %v1513
    %v1515 = vpop.f32.mrb[0].mxu0
    %v1516 = vadd.f32 0.0, %v1515
    %v1517 = vpop.f32.mrb[0].mxu0
    %v1518 = vpop.f32.mrb[0].mxu0
    %1519 = vdwg.mxu0
    %v1522 = vrot.slane %v1514, 6
    %v1523 = vrot.slane %v1516, 6
    %v1526 = vadd.f32 %v473, %v1522
    %v1527 = vadd.f32 %v475, %v1523
    %v1528 = vxor.u32 %v1526, 2147483648
    %v1529 = vmul.f32 %v1528, 1.442695
    %v1530 = vpow.pop %v1529
    %v1531 = vadd.f32 %v1530, 1.0
    %v1532 = vrcp.pop %v1531
    %v1533 = vmul.f32 1.0, %v1532
    %v1534 = vtanh.pop %v1527
    %v1535 = vxor.u32 %v1527, 2147483648
    %v1536 = vmul.f32 %v1535, 1.442695
    %v1537 = vpow.pop %v1536
    %v1538 = vadd.f32 %v1537, 1.0
    %v1539 = vrcp.pop %v1538
    %v1540 = vmul.f32 1.0, %v1539
    %v1542 = vrot.slane %v1382, 6
    %v1544 = vmul.f32 %v1533, %v1542
    %v1545 = vmul.f32 %v1533, %v1534
    %1547 = vrot.lane.b32.xlu0 %v1545, 64
    %v1548 = vpop.permute.xlu0 %1547
    %v1550 = vadd.f32 %v1544, %v1548
    %v1551 = vtanh.pop %v1550
    %v1552 = vmul.f32 %v1540, %v1551
    %1554 = vrot.lane.b32.xlu0 %v1552, 64
    %v1555 = vpop.permute.xlu0 %1554
    %1557 = vst.msk [vmem:[#allocation3 + $0x8] sm:$0xc] %vm885, %v1555
    %v1558 = vpack.c.bf16 %v1470, %v1470
    %v1560 = vrot.slane %v1558, 3
    %1561 = vrot.lane.b32.xlu0 %v1560, 64
    %v1562 = vpop.permute.xlu0 %1561
    %v1564 = vsel %vm612, %v1562, 0
    %1566 = vmatprep.subr.bf16.mxu0 %v712
    %1567 = vmatpush1.bf16.msra.mxu0 %v711
    %1568 = vmatprep.subr.bf16.mxu0 %v714
    %1569 = vmatpush1.bf16.msra.mxu0 %v713
    %1570 = vmatprep.subr.bf16.mxu0 %v716
    %1571 = vmatpush1.bf16.msra.mxu0 %v715
    %1572 = vmatprep.subr.bf16.mxu0 %v718
    %1573 = vmatpush1.bf16.msra.mxu0 %v717
    %1574 = vmatprep.subr.bf16.mxu0 0
    %1575 = vmatpush1.bf16.msra.mxu0 0
    %1576 = vmatprep.subr.bf16.mxu0 0
    %1577 = vmatpush1.bf16.msra.mxu0 0
    %1578 = vmatprep.subr.bf16.mxu0 0
    %1579 = vmatpush1.bf16.msra.mxu0 0
    %1580 = vmatprep.subr.bf16.mxu0 0
    %1581 = vmatpush1.bf16.msra.mxu0 0
    %1582 = vmatprep.subr.bf16.mxu0 0
    %1583 = vmatpush1.bf16.msra.mxu0 0
    %1584 = vmatprep.subr.bf16.mxu0 0
    %1585 = vmatpush1.bf16.msra.mxu0 0
    %1586 = vmatprep.subr.bf16.mxu0 0
    %1587 = vmatpush1.bf16.msra.mxu0 0
    %1588 = vmatprep.subr.bf16.mxu0 0
    %1589 = vmatpush1.bf16.msra.mxu0 0
    %1590 = vmatprep.subr.bf16.mxu0 0
    %1591 = vmatpush1.bf16.msra.mxu0 0
    %1592 = vmatprep.subr.bf16.mxu0 0
    %1593 = vmatpush1.bf16.msra.mxu0 0
    %1594 = vmatprep.subr.bf16.mxu0 0
    %1595 = vmatpush1.bf16.msra.mxu0 0
    %1596 = vmatprep.subr.bf16.mxu0 0
    %1597 = vmatpush1.bf16.msra.mxu0 0
    %1598 = vmatprep.mubr.bf16.mxu0 0
    %1599 = vmatmul.mubr.bf16.gmra.mrb[0].mxu0 %v1564
    %v1600 = vpop.f32.mrb[0].mxu0
    %v1601 = vadd.f32 0.0, %v1600
    %v1602 = vpop.f32.mrb[0].mxu0
    %v1603 = vadd.f32 0.0, %v1602
    %v1604 = vpop.f32.mrb[0].mxu0
    %v1605 = vpop.f32.mrb[0].mxu0
    %1606 = vdwg.mxu0
    %v1609 = vrot.slane %v1601, 4
    %v1610 = vrot.slane %v1603, 4
    %v1613 = vadd.f32 %v548, %v1609
    %v1614 = vadd.f32 %v550, %v1610
    %v1615 = vxor.u32 %v1613, 2147483648
    %v1616 = vmul.f32 %v1615, 1.442695
    %v1617 = vpow.pop %v1616
    %v1618 = vadd.f32 %v1617, 1.0
    %v1619 = vrcp.pop %v1618
    %v1620 = vmul.f32 1.0, %v1619
    %v1621 = vtanh.pop %v1614
    %v1622 = vxor.u32 %v1614, 2147483648
    %v1623 = vmul.f32 %v1622, 1.442695
    %v1624 = vpow.pop %v1623
    %v1625 = vadd.f32 %v1624, 1.0
    %v1626 = vrcp.pop %v1625
    %v1627 = vmul.f32 1.0, %v1626
    %v1629 = vrot.slane %v1468, 2
    %v1631 = vmul.f32 %v1620, %v1629
    %v1632 = vmul.f32 %v1620, %v1621
    %1634 = vrot.lane.b32.xlu0 %v1632, 64
    %v1635 = vpop.permute.xlu0 %1634
    %v1637 = vadd.f32 %v1631, %v1635
    %v1638 = vtanh.pop %v1637
    %v1639 = vmul.f32 %v1627, %v1638
    %1640 = vst.msk [vmem:[#allocation3] sm:$0x30] %vm969, %v1639
    %v1641 = vpack.c.bf16 %v1552, %v1552
    %v1643 = vrot.slane %v1641, 1
    %1644 = vrot.lane.b32.xlu0 %v1643, 64
    %v1645 = vpop.permute.xlu0 %1644
    %v1647 = vsel %vm612, %v1645, 0
    %1649 = vmatprep.subr.bf16.mxu0 %v597
    %1650 = vmatpush1.bf16.msra.mxu0 %v596
    %1651 = vmatprep.subr.bf16.mxu0 %v599
    %1652 = vmatpush1.bf16.msra.mxu0 %v598
    %1653 = vmatprep.subr.bf16.mxu0 %v601
    %1654 = vmatpush1.bf16.msra.mxu0 %v600
    %1655 = vmatprep.subr.bf16.mxu0 %v603
    %1656 = vmatpush1.bf16.msra.mxu0 %v602
    %1657 = vmatprep.subr.bf16.mxu0 0
    %1658 = vmatpush1.bf16.msra.mxu0 0
    %1659 = vmatprep.subr.bf16.mxu0 0
    %1660 = vmatpush1.bf16.msra.mxu0 0
    %1661 = vmatprep.subr.bf16.mxu0 0
    %1662 = vmatpush1.bf16.msra.mxu0 0
    %1663 = vmatprep.subr.bf16.mxu0 0
    %1664 = vmatpush1.bf16.msra.mxu0 0
    %1665 = vmatprep.subr.bf16.mxu0 0
    %1666 = vmatpush1.bf16.msra.mxu0 0
    %1667 = vmatprep.subr.bf16.mxu0 0
    %1668 = vmatpush1.bf16.msra.mxu0 0
    %1669 = vmatprep.subr.bf16.mxu0 0
    %1670 = vmatpush1.bf16.msra.mxu0 0
    %1671 = vmatprep.subr.bf16.mxu0 0
    %1672 = vmatpush1.bf16.msra.mxu0 0
    %1673 = vmatprep.subr.bf16.mxu0 0
    %1674 = vmatpush1.bf16.msra.mxu0 0
    %1675 = vmatprep.subr.bf16.mxu0 0
    %1676 = vmatpush1.bf16.msra.mxu0 0
    %1677 = vmatprep.subr.bf16.mxu0 0
    %1678 = vmatpush1.bf16.msra.mxu0 0
    %1679 = vmatprep.subr.bf16.mxu0 0
    %1680 = vmatpush1.bf16.msra.mxu0 0
    %1681 = vmatprep.mubr.bf16.mxu0 0
    %1682 = vmatmul.mubr.bf16.gmra.mrb[0].mxu0 %v1647
    %v1683 = vpop.f32.mrb[0].mxu0
    %v1684 = vadd.f32 0.0, %v1683
    %v1685 = vpop.f32.mrb[0].mxu0
    %v1686 = vadd.f32 0.0, %v1685
    %v1687 = vpop.f32.mrb[0].mxu0
    %v1688 = vpop.f32.mrb[0].mxu0
    %1689 = vdwg.mxu0
    %v1692 = vrot.slane %v1684, 4
    %v1693 = vrot.slane %v1686, 4
    %v1696 = vadd.f32 %v473, %v1692
    %v1697 = vadd.f32 %v475, %v1693
    %v1698 = vxor.u32 %v1696, 2147483648
    %v1699 = vmul.f32 %v1698, 1.442695
    %v1700 = vpow.pop %v1699
    %v1701 = vadd.f32 %v1700, 1.0
    %v1702 = vrcp.pop %v1701
    %v1703 = vmul.f32 1.0, %v1702
    %v1704 = vtanh.pop %v1697
    %v1705 = vxor.u32 %v1697, 2147483648
    %v1706 = vmul.f32 %v1705, 1.442695
    %v1707 = vpow.pop %v1706
    %v1708 = vadd.f32 %v1707, 1.0
    %v1709 = vrcp.pop %v1708
    %v1710 = vmul.f32 1.0, %v1709
    %v1712 = vrot.slane %v1550, 6
    %v1714 = vmul.f32 %v1703, %v1712
    %v1715 = vmul.f32 %v1703, %v1704
    %1717 = vrot.lane.b32.xlu0 %v1715, 64
    %v1718 = vpop.permute.xlu0 %1717
    %v1720 = vadd.f32 %v1714, %v1718
    %v1721 = vtanh.pop %v1720
    %v1722 = vmul.f32 %v1710, %v1721
    %1724 = vrot.lane.b32.xlu0 %v1722, 64
    %v1725 = vpop.permute.xlu0 %1724
    %1727 = vst.msk [vmem:[#allocation3 + $0x8] sm:$0x30] %vm1057, %v1725
    %v1728 = vpack.c.bf16 %v1639, %v1639
    %v1730 = vrot.slane %v1728, 2
    %1731 = vrot.lane.b32.xlu0 %v1730, 64
    %v1732 = vpop.permute.xlu0 %1731
    %v1734 = vsel %vm612, %v1732, 0
    %1736 = vmatprep.subr.bf16.mxu0 %v712
    %1737 = vmatpush1.bf16.msra.mxu0 %v711
    %1738 = vmatprep.subr.bf16.mxu0 %v714
    %1739 = vmatpush1.bf16.msra.mxu0 %v713
    %1740 = vmatprep.subr.bf16.mxu0 %v716
    %1741 = vmatpush1.bf16.msra.mxu0 %v715
    %1742 = vmatprep.subr.bf16.mxu0 %v718
    %1743 = vmatpush1.bf16.msra.mxu0 %v717
    %1744 = vmatprep.subr.bf16.mxu0 0
    %1745 = vmatpush1.bf16.msra.mxu0 0
    %1746 = vmatprep.subr.bf16.mxu0 0
    %1747 = vmatpush1.bf16.msra.mxu0 0
    %1748 = vmatprep.subr.bf16.mxu0 0
    %1749 = vmatpush1.bf16.msra.mxu0 0
    %1750 = vmatprep.subr.bf16.mxu0 0
    %1751 = vmatpush1.bf16.msra.mxu0 0
    %1752 = vmatprep.subr.bf16.mxu0 0
    %1753 = vmatpush1.bf16.msra.mxu0 0
    %1754 = vmatprep.subr.bf16.mxu0 0
    %1755 = vmatpush1.bf16.msra.mxu0 0
    %1756 = vmatprep.subr.bf16.mxu0 0
    %1757 = vmatpush1.bf16.msra.mxu0 0
    %1758 = vmatprep.subr.bf16.mxu0 0
    %1759 = vmatpush1.bf16.msra.mxu0 0
    %1760 = vmatprep.subr.bf16.mxu0 0
    %1761 = vmatpush1.bf16.msra.mxu0 0
    %1762 = vmatprep.subr.bf16.mxu0 0
    %1763 = vmatpush1.bf16.msra.mxu0 0
    %1764 = vmatprep.subr.bf16.mxu0 0
    %1765 = vmatpush1.bf16.msra.mxu0 0
    %1766 = vmatprep.subr.bf16.mxu0 0
    %1767 = vmatpush1.bf16.msra.mxu0 0
    %1768 = vmatprep.mubr.bf16.mxu0 0
    %1769 = vmatmul.mubr.bf16.gmra.mrb[0].mxu0 %v1734
    %v1770 = vpop.f32.mrb[0].mxu0
    %v1771 = vadd.f32 0.0, %v1770
    %v1772 = vpop.f32.mrb[0].mxu0
    %v1773 = vadd.f32 0.0, %v1772
    %v1774 = vpop.f32.mrb[0].mxu0
    %v1775 = vpop.f32.mrb[0].mxu0
    %1776 = vdwg.mxu0
    %v1779 = vrot.slane %v1771, 6
    %v1780 = vrot.slane %v1773, 6
    %v1783 = vadd.f32 %v548, %v1779
    %v1784 = vadd.f32 %v550, %v1780
    %v1785 = vxor.u32 %v1783, 2147483648
    %v1786 = vmul.f32 %v1785, 1.442695
    %v1787 = vpow.pop %v1786
    %v1788 = vadd.f32 %v1787, 1.0
    %v1789 = vrcp.pop %v1788
    %v1790 = vmul.f32 1.0, %v1789
    %v1791 = vtanh.pop %v1784
    %v1792 = vxor.u32 %v1784, 2147483648
    %v1793 = vmul.f32 %v1792, 1.442695
    %v1794 = vpow.pop %v1793
    %v1795 = vadd.f32 %v1794, 1.0
    %v1796 = vrcp.pop %v1795
    %v1797 = vmul.f32 1.0, %v1796
    %v1799 = vrot.slane %v1637, 2
    %v1801 = vmul.f32 %v1790, %v1799
    %v1802 = vmul.f32 %v1790, %v1791
    %1804 = vrot.lane.b32.xlu0 %v1802, 64
    %v1805 = vpop.permute.xlu0 %1804
    %v1807 = vadd.f32 %v1801, %v1805
    %v1808 = vtanh.pop %v1807
    %v1809 = vmul.f32 %v1797, %v1808
    %1810 = vst.msk [vmem:[#allocation3] sm:$0xc] %vm1141, %v1809
    %v1811 = vpack.c.bf16 %v1722, %v1722
    %v1813 = vrot.slane %v1811, 2
    %1814 = vrot.lane.b32.xlu0 %v1813, 64
    %v1815 = vpop.permute.xlu0 %1814
    %v1817 = vsel %vm612, %v1815, 0
    %1819 = vmatprep.subr.bf16.mxu0 %v597
    %1820 = vmatpush1.bf16.msra.mxu0 %v596
    %1821 = vmatprep.subr.bf16.mxu0 %v599
    %1822 = vmatpush1.bf16.msra.mxu0 %v598
    %1823 = vmatprep.subr.bf16.mxu0 %v601
    %1824 = vmatpush1.bf16.msra.mxu0 %v600
    %1825 = vmatprep.subr.bf16.mxu0 %v603
    %1826 = vmatpush1.bf16.msra.mxu0 %v602
    %1827 = vmatprep.subr.bf16.mxu0 0
    %1828 = vmatpush1.bf16.msra.mxu0 0
    %1829 = vmatprep.subr.bf16.mxu0 0
    %1830 = vmatpush1.bf16.msra.mxu0 0
    %1831 = vmatprep.subr.bf16.mxu0 0
    %1832 = vmatpush1.bf16.msra.mxu0 0
    %1833 = vmatprep.subr.bf16.mxu0 0
    %1834 = vmatpush1.bf16.msra.mxu0 0
    %1835 = vmatprep.subr.bf16.mxu0 0
    %1836 = vmatpush1.bf16.msra.mxu0 0
    %1837 = vmatprep.subr.bf16.mxu0 0
    %1838 = vmatpush1.bf16.msra.mxu0 0
    %1839 = vmatprep.subr.bf16.mxu0 0
    %1840 = vmatpush1.bf16.msra.mxu0 0
    %1841 = vmatprep.subr.bf16.mxu0 0
    %1842 = vmatpush1.bf16.msra.mxu0 0
    %1843 = vmatprep.subr.bf16.mxu0 0
    %1844 = vmatpush1.bf16.msra.mxu0 0
    %1845 = vmatprep.subr.bf16.mxu0 0
    %1846 = vmatpush1.bf16.msra.mxu0 0
    %1847 = vmatprep.subr.bf16.mxu0 0
    %1848 = vmatpush1.bf16.msra.mxu0 0
    %1849 = vmatprep.subr.bf16.mxu0 0
    %1850 = vmatpush1.bf16.msra.mxu0 0
    %1851 = vmatprep.mubr.bf16.mxu0 0
    %1852 = vmatmul.mubr.bf16.gmra.mrb[0].mxu0 %v1817
    %v1853 = vpop.f32.mrb[0].mxu0
    %v1854 = vadd.f32 0.0, %v1853
    %v1855 = vpop.f32.mrb[0].mxu0
    %v1856 = vadd.f32 0.0, %v1855
    %v1857 = vpop.f32.mrb[0].mxu0
    %v1858 = vpop.f32.mrb[0].mxu0
    %1859 = vdwg.mxu0
    %v1862 = vrot.slane %v1854, 2
    %v1863 = vrot.slane %v1856, 2
    %v1866 = vadd.f32 %v473, %v1862
    %v1867 = vadd.f32 %v475, %v1863
    %v1868 = vxor.u32 %v1866, 2147483648
    %v1869 = vmul.f32 %v1868, 1.442695
    %v1870 = vpow.pop %v1869
    %v1871 = vadd.f32 %v1870, 1.0
    %v1872 = vrcp.pop %v1871
    %v1873 = vmul.f32 1.0, %v1872
    %v1874 = vtanh.pop %v1867
    %v1875 = vxor.u32 %v1867, 2147483648
    %v1876 = vmul.f32 %v1875, 1.442695
    %v1877 = vpow.pop %v1876
    %v1878 = vadd.f32 %v1877, 1.0
    %v1879 = vrcp.pop %v1878
    %v1880 = vmul.f32 1.0, %v1879
    %v1882 = vrot.slane %v1720, 6
    %v1884 = vmul.f32 %v1873, %v1882
    %v1885 = vmul.f32 %v1873, %v1874
    %1887 = vrot.lane.b32.xlu0 %v1885, 64
    %v1888 = vpop.permute.xlu0 %1887
    %v1890 = vadd.f32 %v1884, %v1888
    %v1891 = vtanh.pop %v1890
    %v1892 = vmul.f32 %v1880, %v1891
    %1894 = vrot.lane.b32.xlu0 %v1892, 64
    %v1895 = vpop.permute.xlu0 %1894
    %1897 = vst.msk [vmem:[#allocation3 + $0x8] sm:$0xc0] %vm1229, %v1895
    %v1898 = vpack.c.bf16 %v1809, %v1809
    %v1900 = vrot.slane %v1898, 1
    %1901 = vrot.lane.b32.xlu0 %v1900, 64
    %v1902 = vpop.permute.xlu0 %1901
    %v1904 = vsel %vm612, %v1902, 0
    %1906 = vmatprep.subr.bf16.mxu0 %v712
    %1907 = vmatpush1.bf16.msra.mxu0 %v711
    %1908 = vmatprep.subr.bf16.mxu0 %v714
    %1909 = vmatpush1.bf16.msra.mxu0 %v713
    %1910 = vmatprep.subr.bf16.mxu0 %v716
    %1911 = vmatpush1.bf16.msra.mxu0 %v715
    %1912 = vmatprep.subr.bf16.mxu0 %v718
    %1913 = vmatpush1.bf16.msra.mxu0 %v717
    %1914 = vmatprep.subr.bf16.mxu0 0
    %1915 = vmatpush1.bf16.msra.mxu0 0
    %1916 = vmatprep.subr.bf16.mxu0 0
    %1917 = vmatpush1.bf16.msra.mxu0 0
    %1918 = vmatprep.subr.bf16.mxu0 0
    %1919 = vmatpush1.bf16.msra.mxu0 0
    %1920 = vmatprep.subr.bf16.mxu0 0
    %1921 = vmatpush1.bf16.msra.mxu0 0
    %1922 = vmatprep.subr.bf16.mxu0 0
    %1923 = vmatpush1.bf16.msra.mxu0 0
    %1924 = vmatprep.subr.bf16.mxu0 0
    %1925 = vmatpush1.bf16.msra.mxu0 0
    %1926 = vmatprep.subr.bf16.mxu0 0
    %1927 = vmatpush1.bf16.msra.mxu0 0
    %1928 = vmatprep.subr.bf16.mxu0 0
    %1929 = vmatpush1.bf16.msra.mxu0 0
    %1930 = vmatprep.subr.bf16.mxu0 0
    %1931 = vmatpush1.bf16.msra.mxu0 0
    %1932 = vmatprep.subr.bf16.mxu0 0
    %1933 = vmatpush1.bf16.msra.mxu0 0
    %1934 = vmatprep.subr.bf16.mxu0 0
    %1935 = vmatpush1.bf16.msra.mxu0 0
    %1936 = vmatprep.subr.bf16.mxu0 0
    %1937 = vmatpush1.bf16.msra.mxu0 0
    %1938 = vmatprep.mubr.bf16.mxu0 0
    %1939 = vmatmul.mubr.bf16.gmra.mrb[0].mxu0 %v1904
    %v1940 = vpop.f32.mrb[0].mxu0
    %v1941 = vadd.f32 0.0, %v1940
    %v1942 = vpop.f32.mrb[0].mxu0
    %v1943 = vadd.f32 0.0, %v1942
    %v1944 = vpop.f32.mrb[0].mxu0
    %v1945 = vpop.f32.mrb[0].mxu0
    %1946 = vdwg.mxu0
    %v1947 = vadd.f32 %v548, %v1941
    %v1948 = vadd.f32 %v550, %v1943
    %v1949 = vxor.u32 %v1947, 2147483648
    %v1950 = vmul.f32 %v1949, 1.442695
    %v1951 = vpow.pop %v1950
    %v1952 = vadd.f32 %v1951, 1.0
    %v1953 = vrcp.pop %v1952
    %v1954 = vmul.f32 1.0, %v1953
    %v1955 = vtanh.pop %v1948
    %v1956 = vxor.u32 %v1948, 2147483648
    %v1957 = vmul.f32 %v1956, 1.442695
    %v1958 = vpow.pop %v1957
    %v1959 = vadd.f32 %v1958, 1.0
    %v1960 = vrcp.pop %v1959
    %v1961 = vmul.f32 1.0, %v1960
    %v1963 = vrot.slane %v1807, 2
    %v1965 = vmul.f32 %v1954, %v1963
    %v1966 = vmul.f32 %v1954, %v1955
    %1968 = vrot.lane.b32.xlu0 %v1966, 64
    %v1969 = vpop.permute.xlu0 %1968
    %v1971 = vadd.f32 %v1965, %v1969
    %v1972 = vtanh.pop %v1971
    %v1973 = vmul.f32 %v1961, %v1972
    %1974 = vst.msk [vmem:[#allocation3] sm:$0x3] %vm1307, %v1973
    %v1975 = vld [vmem:[#allocation3] sm:$0xff]
    %v1976 = vld [vmem:[#allocation3 + $0x8] sm:$0xff]
    %v1977 = vpack.c.bf16 %v1976, %v1975
    %v1978 = vld [vmem:[%s21] sm:$0xff]
    %v1979 = vld [vmem:[%s21 + $0x8] sm:$0xff]
    %v1980 = vld [vmem:[%s21 + $0x10] sm:$0xff]
    %v1981 = vld [vmem:[%s21 + $0x18] sm:$0xff]
    %v1982 = vld [vmem:[%s21 + $0x20] sm:$0xff]
    %v1983 = vld [vmem:[%s21 + $0x28] sm:$0xff]
    %v1984 = vld [vmem:[%s21 + $0x30] sm:$0xff]
    %v1985 = vld [vmem:[%s21 + $0x38] sm:$0xff]
    %v1986 = vld [vmem:[%s21 + $0x40] sm:$0xff]
    %v1987 = vld [vmem:[%s21 + $0x48] sm:$0xff]
    %v1988 = vld [vmem:[%s21 + $0x50] sm:$0xff]
    %v1989 = vld [vmem:[%s21 + $0x58] sm:$0xff]
    %v1990 = vld [vmem:[%s21 + $0x60] sm:$0xff]
    %v1991 = vld [vmem:[%s21 + $0x68] sm:$0xff]
    %v1992 = vld [vmem:[%s21 + $0x70] sm:$0xff]
    %v1993 = vld [vmem:[%s21 + $0x78] sm:$0xff]
    %v1994 = vld [vmem:[#allocation16] sm:$0x3]
    %v1996 = vlaneseq
    %v1997 = vshrl.u32 %v1996, 7
    %v1998 = vsub.s32 0, %v1997
    %v1999 = vrot.slane %v1994, %v1998
    %v2000 = vlaneseq
    %v2001 = vshrl.u32 %v2000, 7
    %v2002 = vsub.s32 1, %v2001
    %v2003 = vrot.slane %v1994, %v2002
    %v2022 = vunpack.c.l.b16 %v1978
    %v2023 = vunpack.c.h.b16 %v1978
    %v2024 = vunpack.c.l.b16 %v1979
    %v2025 = vunpack.c.h.b16 %v1979
    %v2026 = vunpack.c.l.b16 %v1980
    %v2027 = vunpack.c.h.b16 %v1980
    %v2028 = vunpack.c.l.b16 %v1981
    %v2029 = vunpack.c.h.b16 %v1981
    %v2030 = vunpack.c.l.b16 %v1982
    %v2031 = vunpack.c.h.b16 %v1982
    %v2032 = vunpack.c.l.b16 %v1983
    %v2033 = vunpack.c.h.b16 %v1983
    %v2034 = vunpack.c.l.b16 %v1984
    %v2035 = vunpack.c.h.b16 %v1984
    %v2036 = vunpack.c.l.b16 %v1985
    %v2037 = vunpack.c.h.b16 %v1985
    %v2038 = vunpack.c.l.b16 %v1986
    %v2039 = vunpack.c.h.b16 %v1986
    %v2040 = vunpack.c.l.b16 %v1987
    %v2041 = vunpack.c.h.b16 %v1987
    %v2042 = vunpack.c.l.b16 %v1988
    %v2043 = vunpack.c.h.b16 %v1988
    %v2044 = vunpack.c.l.b16 %v1989
    %v2045 = vunpack.c.h.b16 %v1989
    %v2046 = vunpack.c.l.b16 %v1990
    %v2047 = vunpack.c.h.b16 %v1990
    %v2048 = vunpack.c.l.b16 %v1991
    %v2049 = vunpack.c.h.b16 %v1991
    %v2050 = vunpack.c.l.b16 %v1992
    %v2051 = vunpack.c.h.b16 %v1992
    %v2052 = vunpack.c.l.b16 %v1993
    %v2053 = vunpack.c.h.b16 %v1993
    %v2054 = vpack.c.b16 %v2024, %v2022
    %v2055 = vpack.c.b16 %v2025, %v2023
    %v2056 = vpack.c.b16 %v2028, %v2026
    %v2057 = vpack.c.b16 %v2029, %v2027
    %v2058 = vpack.c.b16 %v2032, %v2030
    %v2059 = vpack.c.b16 %v2033, %v2031
    %v2060 = vpack.c.b16 %v2036, %v2034
    %v2061 = vpack.c.b16 %v2037, %v2035
    %v2062 = vpack.c.b16 %v2040, %v2038
    %v2063 = vpack.c.b16 %v2041, %v2039
    %v2064 = vpack.c.b16 %v2044, %v2042
    %v2065 = vpack.c.b16 %v2045, %v2043
    %v2066 = vpack.c.b16 %v2048, %v2046
    %v2067 = vpack.c.b16 %v2049, %v2047
    %v2068 = vpack.c.b16 %v2052, %v2050
    %v2069 = vpack.c.b16 %v2053, %v2051
    %2086 = vmatprep.subr.bf16.mxu0 %v2055
    %2087 = vmatpush1.bf16.msra.mxu0 %v2054
    %2088 = vmatprep.subr.bf16.mxu0 %v2057
    %2089 = vmatpush1.bf16.msra.mxu0 %v2056
    %2090 = vmatprep.subr.bf16.mxu0 %v2059
    %2091 = vmatpush1.bf16.msra.mxu0 %v2058
    %2092 = vmatprep.subr.bf16.mxu0 %v2061
    %2093 = vmatpush1.bf16.msra.mxu0 %v2060
    %2094 = vmatprep.subr.bf16.mxu0 %v2063
    %2095 = vmatpush1.bf16.msra.mxu0 %v2062
    %2096 = vmatprep.subr.bf16.mxu0 %v2065
    %2097 = vmatpush1.bf16.msra.mxu0 %v2064
    %2098 = vmatprep.subr.bf16.mxu0 %v2067
    %2099 = vmatpush1.bf16.msra.mxu0 %v2066
    %2100 = vmatprep.subr.bf16.mxu0 %v2069
    %2101 = vmatpush1.bf16.msra.mxu0 %v2068
    %2102 = vmatprep.subr.bf16.mxu0 0
    %2103 = vmatpush1.bf16.msra.mxu0 0
    %2104 = vmatprep.subr.bf16.mxu0 0
    %2105 = vmatpush1.bf16.msra.mxu0 0
    %2106 = vmatprep.subr.bf16.mxu0 0
    %2107 = vmatpush1.bf16.msra.mxu0 0
    %2108 = vmatprep.subr.bf16.mxu0 0
    %2109 = vmatpush1.bf16.msra.mxu0 0
    %2110 = vmatprep.subr.bf16.mxu0 0
    %2111 = vmatpush1.bf16.msra.mxu0 0
    %2112 = vmatprep.subr.bf16.mxu0 0
    %2113 = vmatpush1.bf16.msra.mxu0 0
    %2114 = vmatprep.subr.bf16.mxu0 0
    %2115 = vmatpush1.bf16.msra.mxu0 0
    %2116 = vmatprep.subr.bf16.mxu0 0
    %2117 = vmatpush1.bf16.msra.mxu0 0
    %2118 = vmatprep.mubr.bf16.mxu0 0
    %2119 = vmatmul.mubr.bf16.gmra.mrb[0].mxu0 %v1977
    %v2120 = vpop.f32.mrb[0].mxu0
    %v2121 = vadd.f32 %v1999, %v2120
    %v2122 = vpop.f32.mrb[0].mxu0
    %v2123 = vadd.f32 %v2003, %v2122
    %v2124 = vpop.f32.mrb[0].mxu0
    %v2125 = vadd.f32 %v1999, %v2124
    %v2126 = vpop.f32.mrb[0].mxu0
    %v2127 = vadd.f32 %v2003, %v2126
    %2128 = vdwg.mxu0
    %v2129 = vld [vmem:[%s27] sm:$0xff]
    %v2130 = vld [vmem:[%s27 + $0x8] sm:$0xff]
    %v2131 = vld [vmem:[%s27 + $0x10] sm:$0xff]
    %v2132 = vld [vmem:[%s27 + $0x18] sm:$0xff]
    %v2133 = vld [vmem:[%s27 + $0x20] sm:$0xff]
    %v2134 = vld [vmem:[%s27 + $0x28] sm:$0xff]
    %v2135 = vld [vmem:[%s27 + $0x30] sm:$0xff]
    %v2136 = vld [vmem:[%s27 + $0x38] sm:$0xff]
    %v2137 = vld [vmem:[%s27 + $0x40] sm:$0xff]
    %v2138 = vld [vmem:[%s27 + $0x48] sm:$0xff]
    %v2139 = vld [vmem:[%s27 + $0x50] sm:$0xff]
    %v2140 = vld [vmem:[%s27 + $0x58] sm:$0xff]
    %v2141 = vld [vmem:[%s27 + $0x60] sm:$0xff]
    %v2142 = vld [vmem:[%s27 + $0x68] sm:$0xff]
    %v2143 = vld [vmem:[%s27 + $0x70] sm:$0xff]
    %v2144 = vld [vmem:[%s27 + $0x78] sm:$0xff]
    %v2145 = vld [vmem:[#allocation17] sm:$0x3]
    %v2147 = vlaneseq
    %v2148 = vshrl.u32 %v2147, 7
    %v2149 = vsub.s32 0, %v2148
    %v2150 = vrot.slane %v2145, %v2149
    %v2151 = vlaneseq
    %v2152 = vshrl.u32 %v2151, 7
    %v2153 = vsub.s32 1, %v2152
    %v2154 = vrot.slane %v2145, %v2153
    %v2173 = vunpack.c.l.b16 %v2129
    %v2174 = vunpack.c.h.b16 %v2129
    %v2175 = vunpack.c.l.b16 %v2130
    %v2176 = vunpack.c.h.b16 %v2130
    %v2177 = vunpack.c.l.b16 %v2131
    %v2178 = vunpack.c.h.b16 %v2131
    %v2179 = vunpack.c.l.b16 %v2132
    %v2180 = vunpack.c.h.b16 %v2132
    %v2181 = vunpack.c.l.b16 %v2133
    %v2182 = vunpack.c.h.b16 %v2133
    %v2183 = vunpack.c.l.b16 %v2134
    %v2184 = vunpack.c.h.b16 %v2134
    %v2185 = vunpack.c.l.b16 %v2135
    %v2186 = vunpack.c.h.b16 %v2135
    %v2187 = vunpack.c.l.b16 %v2136
    %v2188 = vunpack.c.h.b16 %v2136
    %v2189 = vunpack.c.l.b16 %v2137
    %v2190 = vunpack.c.h.b16 %v2137
    %v2191 = vunpack.c.l.b16 %v2138
    %v2192 = vunpack.c.h.b16 %v2138
    %v2193 = vunpack.c.l.b16 %v2139
    %v2194 = vunpack.c.h.b16 %v2139
    %v2195 = vunpack.c.l.b16 %v2140
    %v2196 = vunpack.c.h.b16 %v2140
    %v2197 = vunpack.c.l.b16 %v2141
    %v2198 = vunpack.c.h.b16 %v2141
    %v2199 = vunpack.c.l.b16 %v2142
    %v2200 = vunpack.c.h.b16 %v2142
    %v2201 = vunpack.c.l.b16 %v2143
    %v2202 = vunpack.c.h.b16 %v2143
    %v2203 = vunpack.c.l.b16 %v2144
    %v2204 = vunpack.c.h.b16 %v2144
    %v2205 = vpack.c.b16 %v2175, %v2173
    %v2206 = vpack.c.b16 %v2176, %v2174
    %v2207 = vpack.c.b16 %v2179, %v2177
    %v2208 = vpack.c.b16 %v2180, %v2178
    %v2209 = vpack.c.b16 %v2183, %v2181
    %v2210 = vpack.c.b16 %v2184, %v2182
    %v2211 = vpack.c.b16 %v2187, %v2185
    %v2212 = vpack.c.b16 %v2188, %v2186
    %v2213 = vpack.c.b16 %v2191, %v2189
    %v2214 = vpack.c.b16 %v2192, %v2190
    %v2215 = vpack.c.b16 %v2195, %v2193
    %v2216 = vpack.c.b16 %v2196, %v2194
    %v2217 = vpack.c.b16 %v2199, %v2197
    %v2218 = vpack.c.b16 %v2200, %v2198
    %v2219 = vpack.c.b16 %v2203, %v2201
    %v2220 = vpack.c.b16 %v2204, %v2202
    %2237 = vmatprep.subr.bf16.mxu0 %v2206
    %2238 = vmatpush1.bf16.msra.mxu0 %v2205
    %2239 = vmatprep.subr.bf16.mxu0 %v2208
    %2240 = vmatpush1.bf16.msra.mxu0 %v2207
    %2241 = vmatprep.subr.bf16.mxu0 %v2210
    %2242 = vmatpush1.bf16.msra.mxu0 %v2209
    %2243 = vmatprep.subr.bf16.mxu0 %v2212
    %2244 = vmatpush1.bf16.msra.mxu0 %v2211
    %2245 = vmatprep.subr.bf16.mxu0 %v2214
    %2246 = vmatpush1.bf16.msra.mxu0 %v2213
    %2247 = vmatprep.subr.bf16.mxu0 %v2216
    %2248 = vmatpush1.bf16.msra.mxu0 %v2215
    %2249 = vmatprep.subr.bf16.mxu0 %v2218
    %2250 = vmatpush1.bf16.msra.mxu0 %v2217
    %2251 = vmatprep.subr.bf16.mxu0 %v2220
    %2252 = vmatpush1.bf16.msra.mxu0 %v2219
    %2253 = vmatprep.subr.bf16.mxu0 0
    %2254 = vmatpush1.bf16.msra.mxu0 0
    %2255 = vmatprep.subr.bf16.mxu0 0
    %2256 = vmatpush1.bf16.msra.mxu0 0
    %2257 = vmatprep.subr.bf16.mxu0 0
    %2258 = vmatpush1.bf16.msra.mxu0 0
    %2259 = vmatprep.subr.bf16.mxu0 0
    %2260 = vmatpush1.bf16.msra.mxu0 0
    %2261 = vmatprep.subr.bf16.mxu0 0
    %2262 = vmatpush1.bf16.msra.mxu0 0
    %2263 = vmatprep.subr.bf16.mxu0 0
    %2264 = vmatpush1.bf16.msra.mxu0 0
    %2265 = vmatprep.subr.bf16.mxu0 0
    %2266 = vmatpush1.bf16.msra.mxu0 0
    %2267 = vmatprep.subr.bf16.mxu0 0
    %2268 = vmatpush1.bf16.msra.mxu0 0
    %2269 = vmatprep.mubr.bf16.mxu0 0
    %2270 = vmatmul.mubr.bf16.gmra.mrb[0].mxu0 %v1977
    %v2271 = vpop.f32.mrb[0].mxu0
    %v2272 = vadd.f32 %v2150, %v2271
    %v2273 = vpop.f32.mrb[0].mxu0
    %v2274 = vadd.f32 %v2154, %v2273
    %v2275 = vpop.f32.mrb[0].mxu0
    %v2276 = vadd.f32 %v2150, %v2275
    %v2277 = vpop.f32.mrb[0].mxu0
    %v2278 = vadd.f32 %v2154, %v2277
    %2279 = vdwg.mxu0
    %v2280 = vld [vmem:[%s23] sm:$0xff]
    %v2281 = vld [vmem:[%s23 + $0x8] sm:$0xff]
    %v2282 = vld [vmem:[%s23 + $0x10] sm:$0xff]
    %v2283 = vld [vmem:[%s23 + $0x18] sm:$0xff]
    %v2284 = vld [vmem:[%s23 + $0x20] sm:$0xff]
    %v2285 = vld [vmem:[%s23 + $0x28] sm:$0xff]
    %v2286 = vld [vmem:[%s23 + $0x30] sm:$0xff]
    %v2287 = vld [vmem:[%s23 + $0x38] sm:$0xff]
    %v2288 = vld [vmem:[%s29] sm:$0xff]
    %v2289 = vld [vmem:[%s29 + $0x8] sm:$0xff]
    %v2290 = vld [vmem:[%s29 + $0x10] sm:$0xff]
    %v2291 = vld [vmem:[%s29 + $0x18] sm:$0xff]
    %v2292 = vld [vmem:[%s29 + $0x20] sm:$0xff]
    %v2293 = vld [vmem:[%s29 + $0x28] sm:$0xff]
    %v2294 = vld [vmem:[%s29 + $0x30] sm:$0xff]
    %v2295 = vld [vmem:[%s29 + $0x38] sm:$0xff]
    %v2304 = vunpack.c.l.b16 %v2280
    %v2305 = vunpack.c.h.b16 %v2280
    %v2306 = vunpack.c.l.b16 %v2281
    %v2307 = vunpack.c.h.b16 %v2281
    %v2308 = vunpack.c.l.b16 %v2282
    %v2309 = vunpack.c.h.b16 %v2282
    %v2310 = vunpack.c.l.b16 %v2283
    %v2311 = vunpack.c.h.b16 %v2283
    %v2312 = vunpack.c.l.b16 %v2284
    %v2313 = vunpack.c.h.b16 %v2284
    %v2314 = vunpack.c.l.b16 %v2285
    %v2315 = vunpack.c.h.b16 %v2285
    %v2316 = vunpack.c.l.b16 %v2286
    %v2317 = vunpack.c.h.b16 %v2286
    %v2318 = vunpack.c.l.b16 %v2287
    %v2319 = vunpack.c.h.b16 %v2287
    %v2320 = vpack.c.b16 %v2306, %v2304
    %v2321 = vpack.c.b16 %v2307, %v2305
    %v2322 = vpack.c.b16 %v2310, %v2308
    %v2323 = vpack.c.b16 %v2311, %v2309
    %v2324 = vpack.c.b16 %v2314, %v2312
    %v2325 = vpack.c.b16 %v2315, %v2313
    %v2326 = vpack.c.b16 %v2318, %v2316
    %v2327 = vpack.c.b16 %v2319, %v2317
    %2336 = vmatprep.subr.bf16.mxu0 %v2321
    %2337 = vmatpush1.bf16.msra.mxu0 %v2320
    %2338 = vmatprep.subr.bf16.mxu0 %v2323
    %2339 = vmatpush1.bf16.msra.mxu0 %v2322
    %2340 = vmatprep.subr.bf16.mxu0 %v2325
    %2341 = vmatpush1.bf16.msra.mxu0 %v2324
    %2342 = vmatprep.subr.bf16.mxu0 %v2327
    %2343 = vmatpush1.bf16.msra.mxu0 %v2326
    %2344 = vmatprep.subr.bf16.mxu0 0
    %2345 = vmatpush1.bf16.msra.mxu0 0
    %2346 = vmatprep.subr.bf16.mxu0 0
    %2347 = vmatpush1.bf16.msra.mxu0 0
    %2348 = vmatprep.subr.bf16.mxu0 0
    %2349 = vmatpush1.bf16.msra.mxu0 0
    %2350 = vmatprep.subr.bf16.mxu0 0
    %2351 = vmatpush1.bf16.msra.mxu0 0
    %2352 = vmatprep.subr.bf16.mxu0 0
    %2353 = vmatpush1.bf16.msra.mxu0 0
    %2354 = vmatprep.subr.bf16.mxu0 0
    %2355 = vmatpush1.bf16.msra.mxu0 0
    %2356 = vmatprep.subr.bf16.mxu0 0
    %2357 = vmatpush1.bf16.msra.mxu0 0
    %2358 = vmatprep.subr.bf16.mxu0 0
    %2359 = vmatpush1.bf16.msra.mxu0 0
    %2360 = vmatprep.subr.bf16.mxu0 0
    %2361 = vmatpush1.bf16.msra.mxu0 0
    %2362 = vmatprep.subr.bf16.mxu0 0
    %2363 = vmatpush1.bf16.msra.mxu0 0
    %2364 = vmatprep.subr.bf16.mxu0 0
    %2365 = vmatpush1.bf16.msra.mxu0 0
    %2366 = vmatprep.subr.bf16.mxu0 0
    %2367 = vmatpush1.bf16.msra.mxu0 0
    %2368 = vmatprep.mubr.bf16.mxu0 0
    %2369 = vmatmul.mubr.bf16.gmra.mrb[0].mxu0 %v614
    %v2370 = vpop.f32.mrb[0].mxu0
    %v2371 = vadd.f32 0.0, %v2370
    %v2372 = vpop.f32.mrb[0].mxu0
    %v2373 = vadd.f32 0.0, %v2372
    %v2374 = vpop.f32.mrb[0].mxu0
    %v2375 = vpop.f32.mrb[0].mxu0
    %2376 = vdwg.mxu0
    %v2377 = vadd.f32 %v2121, %v2371
    %v2378 = vadd.f32 %v2123, %v2373
    %v2379 = vxor.u32 %v2377, 2147483648
    %v2380 = vmul.f32 %v2379, 1.442695
    %v2381 = vpow.pop %v2380
    %v2382 = vadd.f32 %v2381, 1.0
    %v2383 = vrcp.pop %v2382
    %v2384 = vmul.f32 1.0, %v2383
    %v2385 = vtanh.pop %v2378
    %v2386 = vxor.u32 %v2378, 2147483648
    %v2387 = vmul.f32 %v2386, 1.442695
    %v2388 = vpow.pop %v2387
    %v2389 = vadd.f32 %v2388, 1.0
    %v2390 = vrcp.pop %v2389
    %v2391 = vmul.f32 1.0, %v2390
    %v2392 = vmul.f32 %v2384, 0.0
    %v2393 = vmul.f32 %v2384, %v2385
    %2395 = vrot.lane.b32.xlu0 %v2393, 64
    %v2396 = vpop.permute.xlu0 %2395
    %v2398 = vadd.f32 %v2392, %v2396
    %v2399 = vtanh.pop %v2398
    %v2400 = vmul.f32 %v2391, %v2399
    %2402 = vrot.lane.b32.xlu0 %v2400, 64
    %v2403 = vpop.permute.xlu0 %2402
    %2405 = vst.msk [vmem:[#allocation3] sm:$0x3] %vm685, %v2403
    %v2414 = vunpack.c.l.b16 %v2288
    %v2415 = vunpack.c.h.b16 %v2288
    %v2416 = vunpack.c.l.b16 %v2289
    %v2417 = vunpack.c.h.b16 %v2289
    %v2418 = vunpack.c.l.b16 %v2290
    %v2419 = vunpack.c.h.b16 %v2290
    %v2420 = vunpack.c.l.b16 %v2291
    %v2421 = vunpack.c.h.b16 %v2291
    %v2422 = vunpack.c.l.b16 %v2292
    %v2423 = vunpack.c.h.b16 %v2292
    %v2424 = vunpack.c.l.b16 %v2293
    %v2425 = vunpack.c.h.b16 %v2293
    %v2426 = vunpack.c.l.b16 %v2294
    %v2427 = vunpack.c.h.b16 %v2294
    %v2428 = vunpack.c.l.b16 %v2295
    %v2429 = vunpack.c.h.b16 %v2295
    %v2430 = vpack.c.b16 %v2416, %v2414
    %v2431 = vpack.c.b16 %v2417, %v2415
    %v2432 = vpack.c.b16 %v2420, %v2418
    %v2433 = vpack.c.b16 %v2421, %v2419
    %v2434 = vpack.c.b16 %v2424, %v2422
    %v2435 = vpack.c.b16 %v2425, %v2423
    %v2436 = vpack.c.b16 %v2428, %v2426
    %v2437 = vpack.c.b16 %v2429, %v2427
    %2446 = vmatprep.subr.bf16.mxu0 %v2431
    %2447 = vmatpush1.bf16.msra.mxu0 %v2430
    %2448 = vmatprep.subr.bf16.mxu0 %v2433
    %2449 = vmatpush1.bf16.msra.mxu0 %v2432
    %2450 = vmatprep.subr.bf16.mxu0 %v2435
    %2451 = vmatpush1.bf16.msra.mxu0 %v2434
    %2452 = vmatprep.subr.bf16.mxu0 %v2437
    %2453 = vmatpush1.bf16.msra.mxu0 %v2436
    %2454 = vmatprep.subr.bf16.mxu0 0
    %2455 = vmatpush1.bf16.msra.mxu0 0
    %2456 = vmatprep.subr.bf16.mxu0 0
    %2457 = vmatpush1.bf16.msra.mxu0 0
    %2458 = vmatprep.subr.bf16.mxu0 0
    %2459 = vmatpush1.bf16.msra.mxu0 0
    %2460 = vmatprep.subr.bf16.mxu0 0
    %2461 = vmatpush1.bf16.msra.mxu0 0
    %2462 = vmatprep.subr.bf16.mxu0 0
    %2463 = vmatpush1.bf16.msra.mxu0 0
    %2464 = vmatprep.subr.bf16.mxu0 0
    %2465 = vmatpush1.bf16.msra.mxu0 0
    %2466 = vmatprep.subr.bf16.mxu0 0
    %2467 = vmatpush1.bf16.msra.mxu0 0
    %2468 = vmatprep.subr.bf16.mxu0 0
    %2469 = vmatpush1.bf16.msra.mxu0 0
    %2470 = vmatprep.subr.bf16.mxu0 0
    %2471 = vmatpush1.bf16.msra.mxu0 0
    %2472 = vmatprep.subr.bf16.mxu0 0
    %2473 = vmatpush1.bf16.msra.mxu0 0
    %2474 = vmatprep.subr.bf16.mxu0 0
    %2475 = vmatpush1.bf16.msra.mxu0 0
    %2476 = vmatprep.subr.bf16.mxu0 0
    %2477 = vmatpush1.bf16.msra.mxu0 0
    %2478 = vmatprep.mubr.bf16.mxu0 0
    %2479 = vmatmul.mubr.bf16.gmra.mrb[0].mxu0 %v614
    %v2480 = vpop.f32.mrb[0].mxu0
    %v2481 = vadd.f32 0.0, %v2480
    %v2482 = vpop.f32.mrb[0].mxu0
    %v2483 = vadd.f32 0.0, %v2482
    %v2484 = vpop.f32.mrb[0].mxu0
    %v2485 = vpop.f32.mrb[0].mxu0
    %2486 = vdwg.mxu0
    %v2489 = vrot.slane %v2481, 2
    %v2490 = vrot.slane %v2483, 2
    %v2493 = vadd.f32 %v2276, %v2489
    %v2494 = vadd.f32 %v2278, %v2490
    %v2495 = vxor.u32 %v2493, 2147483648
    %v2496 = vmul.f32 %v2495, 1.442695
    %v2497 = vpow.pop %v2496
    %v2498 = vadd.f32 %v2497, 1.0
    %v2499 = vrcp.pop %v2498
    %v2500 = vmul.f32 1.0, %v2499
    %v2501 = vtanh.pop %v2494
    %v2502 = vxor.u32 %v2494, 2147483648
    %v2503 = vmul.f32 %v2502, 1.442695
    %v2504 = vpow.pop %v2503
    %v2505 = vadd.f32 %v2504, 1.0
    %v2506 = vrcp.pop %v2505
    %v2507 = vmul.f32 1.0, %v2506
    %v2508 = vmul.f32 %v2500, 0.0
    %v2509 = vmul.f32 %v2500, %v2501
    %2511 = vrot.lane.b32.xlu0 %v2509, 64
    %v2512 = vpop.permute.xlu0 %2511
    %v2514 = vadd.f32 %v2508, %v2512
    %v2515 = vtanh.pop %v2514
    %v2516 = vmul.f32 %v2507, %v2515
    %2517 = vst.msk [vmem:[#allocation3 + $0x8] sm:$0xc0] %vm798, %v2516
    %v2518 = vpack.c.bf16 %v2400, %v2400
    %2520 = vrot.lane.b32.xlu0 %v2518, 64
    %v2521 = vpop.permute.xlu0 %2520
    %v2523 = vsel %vm612, %v2521, 0
    %2525 = vmatprep.subr.bf16.mxu0 %v2321
    %2526 = vmatpush1.bf16.msra.mxu0 %v2320
    %2527 = vmatprep.subr.bf16.mxu0 %v2323
    %2528 = vmatpush1.bf16.msra.mxu0 %v2322
    %2529 = vmatprep.subr.bf16.mxu0 %v2325
    %2530 = vmatpush1.bf16.msra.mxu0 %v2324
    %2531 = vmatprep.subr.bf16.mxu0 %v2327
    %2532 = vmatpush1.bf16.msra.mxu0 %v2326
    %2533 = vmatprep.subr.bf16.mxu0 0
    %2534 = vmatpush1.bf16.msra.mxu0 0
    %2535 = vmatprep.subr.bf16.mxu0 0
    %2536 = vmatpush1.bf16.msra.mxu0 0
    %2537 = vmatprep.subr.bf16.mxu0 0
    %2538 = vmatpush1.bf16.msra.mxu0 0
    %2539 = vmatprep.subr.bf16.mxu0 0
    %2540 = vmatpush1.bf16.msra.mxu0 0
    %2541 = vmatprep.subr.bf16.mxu0 0
    %2542 = vmatpush1.bf16.msra.mxu0 0
    %2543 = vmatprep.subr.bf16.mxu0 0
    %2544 = vmatpush1.bf16.msra.mxu0 0
    %2545 = vmatprep.subr.bf16.mxu0 0
    %2546 = vmatpush1.bf16.msra.mxu0 0
    %2547 = vmatprep.subr.bf16.mxu0 0
    %2548 = vmatpush1.bf16.msra.mxu0 0
    %2549 = vmatprep.subr.bf16.mxu0 0
    %2550 = vmatpush1.bf16.msra.mxu0 0
    %2551 = vmatprep.subr.bf16.mxu0 0
    %2552 = vmatpush1.bf16.msra.mxu0 0
    %2553 = vmatprep.subr.bf16.mxu0 0
    %2554 = vmatpush1.bf16.msra.mxu0 0
    %2555 = vmatprep.subr.bf16.mxu0 0
    %2556 = vmatpush1.bf16.msra.mxu0 0
    %2557 = vmatprep.mubr.bf16.mxu0 0
    %2558 = vmatmul.mubr.bf16.gmra.mrb[0].mxu0 %v2523
    %v2559 = vpop.f32.mrb[0].mxu0
    %v2560 = vadd.f32 0.0, %v2559
    %v2561 = vpop.f32.mrb[0].mxu0
    %v2562 = vadd.f32 0.0, %v2561
    %v2563 = vpop.f32.mrb[0].mxu0
    %v2564 = vpop.f32.mrb[0].mxu0
    %2565 = vdwg.mxu0
    %v2568 = vrot.slane %v2560, 6
    %v2569 = vrot.slane %v2562, 6
    %v2572 = vadd.f32 %v2121, %v2568
    %v2573 = vadd.f32 %v2123, %v2569
    %v2574 = vxor.u32 %v2572, 2147483648
    %v2575 = vmul.f32 %v2574, 1.442695
    %v2576 = vpow.pop %v2575
    %v2577 = vadd.f32 %v2576, 1.0
    %v2578 = vrcp.pop %v2577
    %v2579 = vmul.f32 1.0, %v2578
    %v2580 = vtanh.pop %v2573
    %v2581 = vxor.u32 %v2573, 2147483648
    %v2582 = vmul.f32 %v2581, 1.442695
    %v2583 = vpow.pop %v2582
    %v2584 = vadd.f32 %v2583, 1.0
    %v2585 = vrcp.pop %v2584
    %v2586 = vmul.f32 1.0, %v2585
    %v2588 = vrot.slane %v2398, 6
    %v2590 = vmul.f32 %v2579, %v2588
    %v2591 = vmul.f32 %v2579, %v2580
    %2593 = vrot.lane.b32.xlu0 %v2591, 64
    %v2594 = vpop.permute.xlu0 %2593
    %v2596 = vadd.f32 %v2590, %v2594
    %v2597 = vtanh.pop %v2596
    %v2598 = vmul.f32 %v2586, %v2597
    %2600 = vrot.lane.b32.xlu0 %v2598, 64
    %v2601 = vpop.permute.xlu0 %2600
    %2603 = vst.msk [vmem:[#allocation3] sm:$0xc] %vm885, %v2601
    %v2604 = vpack.c.bf16 %v2516, %v2516
    %v2606 = vrot.slane %v2604, 3
    %2607 = vrot.lane.b32.xlu0 %v2606, 64
    %v2608 = vpop.permute.xlu0 %2607
    %v2610 = vsel %vm612, %v2608, 0
    %2612 = vmatprep.subr.bf16.mxu0 %v2431
    %2613 = vmatpush1.bf16.msra.mxu0 %v2430
    %2614 = vmatprep.subr.bf16.mxu0 %v2433
    %2615 = vmatpush1.bf16.msra.mxu0 %v2432
    %2616 = vmatprep.subr.bf16.mxu0 %v2435
    %2617 = vmatpush1.bf16.msra.mxu0 %v2434
    %2618 = vmatprep.subr.bf16.mxu0 %v2437
    %2619 = vmatpush1.bf16.msra.mxu0 %v2436
    %2620 = vmatprep.subr.bf16.mxu0 0
    %2621 = vmatpush1.bf16.msra.mxu0 0
    %2622 = vmatprep.subr.bf16.mxu0 0
    %2623 = vmatpush1.bf16.msra.mxu0 0
    %2624 = vmatprep.subr.bf16.mxu0 0
    %2625 = vmatpush1.bf16.msra.mxu0 0
    %2626 = vmatprep.subr.bf16.mxu0 0
    %2627 = vmatpush1.bf16.msra.mxu0 0
    %2628 = vmatprep.subr.bf16.mxu0 0
    %2629 = vmatpush1.bf16.msra.mxu0 0
    %2630 = vmatprep.subr.bf16.mxu0 0
    %2631 = vmatpush1.bf16.msra.mxu0 0
    %2632 = vmatprep.subr.bf16.mxu0 0
    %2633 = vmatpush1.bf16.msra.mxu0 0
    %2634 = vmatprep.subr.bf16.mxu0 0
    %2635 = vmatpush1.bf16.msra.mxu0 0
    %2636 = vmatprep.subr.bf16.mxu0 0
    %2637 = vmatpush1.bf16.msra.mxu0 0
    %2638 = vmatprep.subr.bf16.mxu0 0
    %2639 = vmatpush1.bf16.msra.mxu0 0
    %2640 = vmatprep.subr.bf16.mxu0 0
    %2641 = vmatpush1.bf16.msra.mxu0 0
    %2642 = vmatprep.subr.bf16.mxu0 0
    %2643 = vmatpush1.bf16.msra.mxu0 0
    %2644 = vmatprep.mubr.bf16.mxu0 0
    %2645 = vmatmul.mubr.bf16.gmra.mrb[0].mxu0 %v2610
    %v2646 = vpop.f32.mrb[0].mxu0
    %v2647 = vadd.f32 0.0, %v2646
    %v2648 = vpop.f32.mrb[0].mxu0
    %v2649 = vadd.f32 0.0, %v2648
    %v2650 = vpop.f32.mrb[0].mxu0
    %v2651 = vpop.f32.mrb[0].mxu0
    %2652 = vdwg.mxu0
    %v2655 = vrot.slane %v2647, 4
    %v2656 = vrot.slane %v2649, 4
    %v2659 = vadd.f32 %v2276, %v2655
    %v2660 = vadd.f32 %v2278, %v2656
    %v2661 = vxor.u32 %v2659, 2147483648
    %v2662 = vmul.f32 %v2661, 1.442695
    %v2663 = vpow.pop %v2662
    %v2664 = vadd.f32 %v2663, 1.0
    %v2665 = vrcp.pop %v2664
    %v2666 = vmul.f32 1.0, %v2665
    %v2667 = vtanh.pop %v2660
    %v2668 = vxor.u32 %v2660, 2147483648
    %v2669 = vmul.f32 %v2668, 1.442695
    %v2670 = vpow.pop %v2669
    %v2671 = vadd.f32 %v2670, 1.0
    %v2672 = vrcp.pop %v2671
    %v2673 = vmul.f32 1.0, %v2672
    %v2675 = vrot.slane %v2514, 2
    %v2677 = vmul.f32 %v2666, %v2675
    %v2678 = vmul.f32 %v2666, %v2667
    %2680 = vrot.lane.b32.xlu0 %v2678, 64
    %v2681 = vpop.permute.xlu0 %2680
    %v2683 = vadd.f32 %v2677, %v2681
    %v2684 = vtanh.pop %v2683
    %v2685 = vmul.f32 %v2673, %v2684
    %2686 = vst.msk [vmem:[#allocation3 + $0x8] sm:$0x30] %vm969, %v2685
    %v2687 = vpack.c.bf16 %v2598, %v2598
    %v2689 = vrot.slane %v2687, 1
    %2690 = vrot.lane.b32.xlu0 %v2689, 64
    %v2691 = vpop.permute.xlu0 %2690
    %v2693 = vsel %vm612, %v2691, 0
    %2695 = vmatprep.subr.bf16.mxu0 %v2321
    %2696 = vmatpush1.bf16.msra.mxu0 %v2320
    %2697 = vmatprep.subr.bf16.mxu0 %v2323
    %2698 = vmatpush1.bf16.msra.mxu0 %v2322
    %2699 = vmatprep.subr.bf16.mxu0 %v2325
    %2700 = vmatpush1.bf16.msra.mxu0 %v2324
    %2701 = vmatprep.subr.bf16.mxu0 %v2327
    %2702 = vmatpush1.bf16.msra.mxu0 %v2326
    %2703 = vmatprep.subr.bf16.mxu0 0
    %2704 = vmatpush1.bf16.msra.mxu0 0
    %2705 = vmatprep.subr.bf16.mxu0 0
    %2706 = vmatpush1.bf16.msra.mxu0 0
    %2707 = vmatprep.subr.bf16.mxu0 0
    %2708 = vmatpush1.bf16.msra.mxu0 0
    %2709 = vmatprep.subr.bf16.mxu0 0
    %2710 = vmatpush1.bf16.msra.mxu0 0
    %2711 = vmatprep.subr.bf16.mxu0 0
    %2712 = vmatpush1.bf16.msra.mxu0 0
    %2713 = vmatprep.subr.bf16.mxu0 0
    %2714 = vmatpush1.bf16.msra.mxu0 0
    %2715 = vmatprep.subr.bf16.mxu0 0
    %2716 = vmatpush1.bf16.msra.mxu0 0
    %2717 = vmatprep.subr.bf16.mxu0 0
    %2718 = vmatpush1.bf16.msra.mxu0 0
    %2719 = vmatprep.subr.bf16.mxu0 0
    %2720 = vmatpush1.bf16.msra.mxu0 0
    %2721 = vmatprep.subr.bf16.mxu0 0
    %2722 = vmatpush1.bf16.msra.mxu0 0
    %2723 = vmatprep.subr.bf16.mxu0 0
    %2724 = vmatpush1.bf16.msra.mxu0 0
    %2725 = vmatprep.subr.bf16.mxu0 0
    %2726 = vmatpush1.bf16.msra.mxu0 0
    %2727 = vmatprep.mubr.bf16.mxu0 0
    %2728 = vmatmul.mubr.bf16.gmra.mrb[0].mxu0 %v2693
    %v2729 = vpop.f32.mrb[0].mxu0
    %v2730 = vadd.f32 0.0, %v2729
    %v2731 = vpop.f32.mrb[0].mxu0
    %v2732 = vadd.f32 0.0, %v2731
    %v2733 = vpop.f32.mrb[0].mxu0
    %v2734 = vpop.f32.mrb[0].mxu0
    %2735 = vdwg.mxu0
    %v2738 = vrot.slane %v2730, 4
    %v2739 = vrot.slane %v2732, 4
    %v2742 = vadd.f32 %v2121, %v2738
    %v2743 = vadd.f32 %v2123, %v2739
    %v2744 = vxor.u32 %v2742, 2147483648
    %v2745 = vmul.f32 %v2744, 1.442695
    %v2746 = vpow.pop %v2745
    %v2747 = vadd.f32 %v2746, 1.0
    %v2748 = vrcp.pop %v2747
    %v2749 = vmul.f32 1.0, %v2748
    %v2750 = vtanh.pop %v2743
    %v2751 = vxor.u32 %v2743, 2147483648
    %v2752 = vmul.f32 %v2751, 1.442695
    %v2753 = vpow.pop %v2752
    %v2754 = vadd.f32 %v2753, 1.0
    %v2755 = vrcp.pop %v2754
    %v2756 = vmul.f32 1.0, %v2755
    %v2758 = vrot.slane %v2596, 6
    %v2760 = vmul.f32 %v2749, %v2758
    %v2761 = vmul.f32 %v2749, %v2750
    %2763 = vrot.lane.b32.xlu0 %v2761, 64
    %v2764 = vpop.permute.xlu0 %2763
    %v2766 = vadd.f32 %v2760, %v2764
    %v2767 = vtanh.pop %v2766
    %v2768 = vmul.f32 %v2756, %v2767
    %2770 = vrot.lane.b32.xlu0 %v2768, 64
    %v2771 = vpop.permute.xlu0 %2770
    %2773 = vst.msk [vmem:[#allocation3] sm:$0x30] %vm1057, %v2771
    %v2774 = vpack.c.bf16 %v2685, %v2685
    %v2776 = vrot.slane %v2774, 2
    %2777 = vrot.lane.b32.xlu0 %v2776, 64
    %v2778 = vpop.permute.xlu0 %2777
    %v2780 = vsel %vm612, %v2778, 0
    %2782 = vmatprep.subr.bf16.mxu0 %v2431
    %2783 = vmatpush1.bf16.msra.mxu0 %v2430
    %2784 = vmatprep.subr.bf16.mxu0 %v2433
    %2785 = vmatpush1.bf16.msra.mxu0 %v2432
    %2786 = vmatprep.subr.bf16.mxu0 %v2435
    %2787 = vmatpush1.bf16.msra.mxu0 %v2434
    %2788 = vmatprep.subr.bf16.mxu0 %v2437
    %2789 = vmatpush1.bf16.msra.mxu0 %v2436
    %2790 = vmatprep.subr.bf16.mxu0 0
    %2791 = vmatpush1.bf16.msra.mxu0 0
    %2792 = vmatprep.subr.bf16.mxu0 0
    %2793 = vmatpush1.bf16.msra.mxu0 0
    %2794 = vmatprep.subr.bf16.mxu0 0
    %2795 = vmatpush1.bf16.msra.mxu0 0
    %2796 = vmatprep.subr.bf16.mxu0 0
    %2797 = vmatpush1.bf16.msra.mxu0 0
    %2798 = vmatprep.subr.bf16.mxu0 0
    %2799 = vmatpush1.bf16.msra.mxu0 0
    %2800 = vmatprep.subr.bf16.mxu0 0
    %2801 = vmatpush1.bf16.msra.mxu0 0
    %2802 = vmatprep.subr.bf16.mxu0 0
    %2803 = vmatpush1.bf16.msra.mxu0 0
    %2804 = vmatprep.subr.bf16.mxu0 0
    %2805 = vmatpush1.bf16.msra.mxu0 0
    %2806 = vmatprep.subr.bf16.mxu0 0
    %2807 = vmatpush1.bf16.msra.mxu0 0
    %2808 = vmatprep.subr.bf16.mxu0 0
    %2809 = vmatpush1.bf16.msra.mxu0 0
    %2810 = vmatprep.subr.bf16.mxu0 0
    %2811 = vmatpush1.bf16.msra.mxu0 0
    %2812 = vmatprep.subr.bf16.mxu0 0
    %2813 = vmatpush1.bf16.msra.mxu0 0
    %2814 = vmatprep.mubr.bf16.mxu0 0
    %2815 = vmatmul.mubr.bf16.gmra.mrb[0].mxu0 %v2780
    %v2816 = vpop.f32.mrb[0].mxu0
    %v2817 = vadd.f32 0.0, %v2816
    %v2818 = vpop.f32.mrb[0].mxu0
    %v2819 = vadd.f32 0.0, %v2818
    %v2820 = vpop.f32.mrb[0].mxu0
    %v2821 = vpop.f32.mrb[0].mxu0
    %2822 = vdwg.mxu0
    %v2825 = vrot.slane %v2817, 6
    %v2826 = vrot.slane %v2819, 6
    %v2829 = vadd.f32 %v2276, %v2825
    %v2830 = vadd.f32 %v2278, %v2826
    %v2831 = vxor.u32 %v2829, 2147483648
    %v2832 = vmul.f32 %v2831, 1.442695
    %v2833 = vpow.pop %v2832
    %v2834 = vadd.f32 %v2833, 1.0
    %v2835 = vrcp.pop %v2834
    %v2836 = vmul.f32 1.0, %v2835
    %v2837 = vtanh.pop %v2830
    %v2838 = vxor.u32 %v2830, 2147483648
    %v2839 = vmul.f32 %v2838, 1.442695
    %v2840 = vpow.pop %v2839
    %v2841 = vadd.f32 %v2840, 1.0
    %v2842 = vrcp.pop %v2841
    %v2843 = vmul.f32 1.0, %v2842
    %v2845 = vrot.slane %v2683, 2
    %v2847 = vmul.f32 %v2836, %v2845
    %v2848 = vmul.f32 %v2836, %v2837
    %2850 = vrot.lane.b32.xlu0 %v2848, 64
    %v2851 = vpop.permute.xlu0 %2850
    %v2853 = vadd.f32 %v2847, %v2851
    %v2854 = vtanh.pop %v2853
    %v2855 = vmul.f32 %v2843, %v2854
    %2856 = vst.msk [vmem:[#allocation3 + $0x8] sm:$0xc] %vm1141, %v2855
    %v2857 = vpack.c.bf16 %v2768, %v2768
    %v2859 = vrot.slane %v2857, 2
    %2860 = vrot.lane.b32.xlu0 %v2859, 64
    %v2861 = vpop.permute.xlu0 %2860
    %v2863 = vsel %vm612, %v2861, 0
    %2865 = vmatprep.subr.bf16.mxu0 %v2321
    %2866 = vmatpush1.bf16.msra.mxu0 %v2320
    %2867 = vmatprep.subr.bf16.mxu0 %v2323
    %2868 = vmatpush1.bf16.msra.mxu0 %v2322
    %2869 = vmatprep.subr.bf16.mxu0 %v2325
    %2870 = vmatpush1.bf16.msra.mxu0 %v2324
    %2871 = vmatprep.subr.bf16.mxu0 %v2327
    %2872 = vmatpush1.bf16.msra.mxu0 %v2326
    %2873 = vmatprep.subr.bf16.mxu0 0
    %2874 = vmatpush1.bf16.msra.mxu0 0
    %2875 = vmatprep.subr.bf16.mxu0 0
    %2876 = vmatpush1.bf16.msra.mxu0 0
    %2877 = vmatprep.subr.bf16.mxu0 0
    %2878 = vmatpush1.bf16.msra.mxu0 0
    %2879 = vmatprep.subr.bf16.mxu0 0
    %2880 = vmatpush1.bf16.msra.mxu0 0
    %2881 = vmatprep.subr.bf16.mxu0 0
    %2882 = vmatpush1.bf16.msra.mxu0 0
    %2883 = vmatprep.subr.bf16.mxu0 0
    %2884 = vmatpush1.bf16.msra.mxu0 0
    %2885 = vmatprep.subr.bf16.mxu0 0
    %2886 = vmatpush1.bf16.msra.mxu0 0
    %2887 = vmatprep.subr.bf16.mxu0 0
    %2888 = vmatpush1.bf16.msra.mxu0 0
    %2889 = vmatprep.subr.bf16.mxu0 0
    %2890 = vmatpush1.bf16.msra.mxu0 0
    %2891 = vmatprep.subr.bf16.mxu0 0
    %2892 = vmatpush1.bf16.msra.mxu0 0
    %2893 = vmatprep.subr.bf16.mxu0 0
    %2894 = vmatpush1.bf16.msra.mxu0 0
    %2895 = vmatprep.subr.bf16.mxu0 0
    %2896 = vmatpush1.bf16.msra.mxu0 0
    %2897 = vmatprep.mubr.bf16.mxu0 0
    %2898 = vmatmul.mubr.bf16.gmra.mrb[0].mxu0 %v2863
    %v2899 = vpop.f32.mrb[0].mxu0
    %v2900 = vadd.f32 0.0, %v2899
    %v2901 = vpop.f32.mrb[0].mxu0
    %v2902 = vadd.f32 0.0, %v2901
    %v2903 = vpop.f32.mrb[0].mxu0
    %v2904 = vpop.f32.mrb[0].mxu0
    %2905 = vdwg.mxu0
    %v2908 = vrot.slane %v2900, 2
    %v2909 = vrot.slane %v2902, 2
    %v2912 = vadd.f32 %v2121, %v2908
    %v2913 = vadd.f32 %v2123, %v2909
    %v2914 = vxor.u32 %v2912, 2147483648
    %v2915 = vmul.f32 %v2914, 1.442695
    %v2916 = vpow.pop %v2915
    %v2917 = vadd.f32 %v2916, 1.0
    %v2918 = vrcp.pop %v2917
    %v2919 = vmul.f32 1.0, %v2918
    %v2920 = vtanh.pop %v2913
    %v2921 = vxor.u32 %v2913, 2147483648
    %v2922 = vmul.f32 %v2921, 1.442695
    %v2923 = vpow.pop %v2922
    %v2924 = vadd.f32 %v2923, 1.0
    %v2925 = vrcp.pop %v2924
    %v2926 = vmul.f32 1.0, %v2925
    %v2928 = vrot.slane %v2766, 6
    %v2930 = vmul.f32 %v2919, %v2928
    %v2931 = vmul.f32 %v2919, %v2920
    %2933 = vrot.lane.b32.xlu0 %v2931, 64
    %v2934 = vpop.permute.xlu0 %2933
    %v2936 = vadd.f32 %v2930, %v2934
    %v2937 = vtanh.pop %v2936
    %v2938 = vmul.f32 %v2926, %v2937
    %2940 = vrot.lane.b32.xlu0 %v2938, 64
    %v2941 = vpop.permute.xlu0 %2940
    %2943 = vst.msk [vmem:[#allocation3] sm:$0xc0] %vm1229, %v2941
    %v2944 = vpack.c.bf16 %v2855, %v2855
    %v2946 = vrot.slane %v2944, 1
    %2947 = vrot.lane.b32.xlu0 %v2946, 64
    %v2948 = vpop.permute.xlu0 %2947
    %v2950 = vsel %vm612, %v2948, 0
    %2952 = vmatprep.subr.bf16.mxu0 %v2431
    %2953 = vmatpush1.bf16.msra.mxu0 %v2430
    %2954 = vmatprep.subr.bf16.mxu0 %v2433
    %2955 = vmatpush1.bf16.msra.mxu0 %v2432
    %2956 = vmatprep.subr.bf16.mxu0 %v2435
    %2957 = vmatpush1.bf16.msra.mxu0 %v2434
    %2958 = vmatprep.subr.bf16.mxu0 %v2437
    %2959 = vmatpush1.bf16.msra.mxu0 %v2436
    %2960 = vmatprep.subr.bf16.mxu0 0
    %2961 = vmatpush1.bf16.msra.mxu0 0
    %2962 = vmatprep.subr.bf16.mxu0 0
    %2963 = vmatpush1.bf16.msra.mxu0 0
    %2964 = vmatprep.subr.bf16.mxu0 0
    %2965 = vmatpush1.bf16.msra.mxu0 0
    %2966 = vmatprep.subr.bf16.mxu0 0
    %2967 = vmatpush1.bf16.msra.mxu0 0
    %2968 = vmatprep.subr.bf16.mxu0 0
    %2969 = vmatpush1.bf16.msra.mxu0 0
    %2970 = vmatprep.subr.bf16.mxu0 0
    %2971 = vmatpush1.bf16.msra.mxu0 0
    %2972 = vmatprep.subr.bf16.mxu0 0
    %2973 = vmatpush1.bf16.msra.mxu0 0
    %2974 = vmatprep.subr.bf16.mxu0 0
    %2975 = vmatpush1.bf16.msra.mxu0 0
    %2976 = vmatprep.subr.bf16.mxu0 0
    %2977 = vmatpush1.bf16.msra.mxu0 0
    %2978 = vmatprep.subr.bf16.mxu0 0
    %2979 = vmatpush1.bf16.msra.mxu0 0
    %2980 = vmatprep.subr.bf16.mxu0 0
    %2981 = vmatpush1.bf16.msra.mxu0 0
    %2982 = vmatprep.subr.bf16.mxu0 0
    %2983 = vmatpush1.bf16.msra.mxu0 0
    %2984 = vmatprep.mubr.bf16.mxu0 0
    %2985 = vmatmul.mubr.bf16.gmra.mrb[0].mxu0 %v2950
    %v2986 = vpop.f32.mrb[0].mxu0
    %v2987 = vadd.f32 0.0, %v2986
    %v2988 = vpop.f32.mrb[0].mxu0
    %v2989 = vadd.f32 0.0, %v2988
    %v2990 = vpop.f32.mrb[0].mxu0
    %v2991 = vpop.f32.mrb[0].mxu0
    %2992 = vdwg.mxu0
    %v2993 = vadd.f32 %v2276, %v2987
    %v2994 = vadd.f32 %v2278, %v2989
    %v2995 = vxor.u32 %v2993, 2147483648
    %v2996 = vmul.f32 %v2995, 1.442695
    %v2997 = vpow.pop %v2996
    %v2998 = vadd.f32 %v2997, 1.0
    %v2999 = vrcp.pop %v2998
    %v3000 = vmul.f32 1.0, %v2999
    %v3001 = vtanh.pop %v2994
    %v3002 = vxor.u32 %v2994, 2147483648
    %v3003 = vmul.f32 %v3002, 1.442695
    %v3004 = vpow.pop %v3003
    %v3005 = vadd.f32 %v3004, 1.0
    %v3006 = vrcp.pop %v3005
    %v3007 = vmul.f32 1.0, %v3006
    %v3009 = vrot.slane %v2853, 2
    %v3011 = vmul.f32 %v3000, %v3009
    %v3012 = vmul.f32 %v3000, %v3001
    %3014 = vrot.lane.b32.xlu0 %v3012, 64
    %v3015 = vpop.permute.xlu0 %3014
    %v3017 = vadd.f32 %v3011, %v3015
    %v3018 = vtanh.pop %v3017
    %v3019 = vmul.f32 %v3007, %v3018
    %3020 = vst.msk [vmem:[#allocation3 + $0x8] sm:$0x3] %vm1307, %v3019
    %v3021 = vpack.c.bf16 %v2938, %v2938
    %v3023 = vrot.slane %v3021, 3
    %3024 = vrot.lane.b32.xlu0 %v3023, 64
    %v3025 = vpop.permute.xlu0 %3024
    %v3027 = vsel %vm612, %v3025, 0
    %3029 = vmatprep.subr.bf16.mxu0 %v2321
    %3030 = vmatpush1.bf16.msra.mxu0 %v2320
    %3031 = vmatprep.subr.bf16.mxu0 %v2323
    %3032 = vmatpush1.bf16.msra.mxu0 %v2322
    %3033 = vmatprep.subr.bf16.mxu0 %v2325
    %3034 = vmatpush1.bf16.msra.mxu0 %v2324
    %3035 = vmatprep.subr.bf16.mxu0 %v2327
    %3036 = vmatpush1.bf16.msra.mxu0 %v2326
    %3037 = vmatprep.subr.bf16.mxu0 0
    %3038 = vmatpush1.bf16.msra.mxu0 0
    %3039 = vmatprep.subr.bf16.mxu0 0
    %3040 = vmatpush1.bf16.msra.mxu0 0
    %3041 = vmatprep.subr.bf16.mxu0 0
    %3042 = vmatpush1.bf16.msra.mxu0 0
    %3043 = vmatprep.subr.bf16.mxu0 0
    %3044 = vmatpush1.bf16.msra.mxu0 0
    %3045 = vmatprep.subr.bf16.mxu0 0
    %3046 = vmatpush1.bf16.msra.mxu0 0
    %3047 = vmatprep.subr.bf16.mxu0 0
    %3048 = vmatpush1.bf16.msra.mxu0 0
    %3049 = vmatprep.subr.bf16.mxu0 0
    %3050 = vmatpush1.bf16.msra.mxu0 0
    %3051 = vmatprep.subr.bf16.mxu0 0
    %3052 = vmatpush1.bf16.msra.mxu0 0
    %3053 = vmatprep.subr.bf16.mxu0 0
    %3054 = vmatpush1.bf16.msra.mxu0 0
    %3055 = vmatprep.subr.bf16.mxu0 0
    %3056 = vmatpush1.bf16.msra.mxu0 0
    %3057 = vmatprep.subr.bf16.mxu0 0
    %3058 = vmatpush1.bf16.msra.mxu0 0
    %3059 = vmatprep.subr.bf16.mxu0 0
    %3060 = vmatpush1.bf16.msra.mxu0 0
    %3061 = vmatprep.mubr.bf16.mxu0 0
    %3062 = vmatmul.mubr.bf16.gmra.mrb[0].mxu0 %v3027
    %v3063 = vpop.f32.mrb[0].mxu0
    %v3064 = vadd.f32 0.0, %v3063
    %v3065 = vpop.f32.mrb[0].mxu0
    %v3066 = vadd.f32 0.0, %v3065
    %v3067 = vpop.f32.mrb[0].mxu0
    %v3068 = vpop.f32.mrb[0].mxu0
    %3069 = vdwg.mxu0
    %v3070 = vadd.f32 %v2125, %v3064
    %v3071 = vadd.f32 %v2127, %v3066
    %v3072 = vxor.u32 %v3070, 2147483648
    %v3073 = vmul.f32 %v3072, 1.442695
    %v3074 = vpow.pop %v3073
    %v3075 = vadd.f32 %v3074, 1.0
    %v3076 = vrcp.pop %v3075
    %v3077 = vmul.f32 1.0, %v3076
    %v3078 = vtanh.pop %v3071
    %v3079 = vxor.u32 %v3071, 2147483648
    %v3080 = vmul.f32 %v3079, 1.442695
    %v3081 = vpow.pop %v3080
    %v3082 = vadd.f32 %v3081, 1.0
    %v3083 = vrcp.pop %v3082
    %v3084 = vmul.f32 1.0, %v3083
    %v3086 = vrot.slane %v2936, 6
    %v3088 = vmul.f32 %v3077, %v3086
    %v3089 = vmul.f32 %v3077, %v3078
    %3091 = vrot.lane.b32.xlu0 %v3089, 64
    %v3092 = vpop.permute.xlu0 %3091
    %v3094 = vadd.f32 %v3088, %v3092
    %v3095 = vtanh.pop %v3094
    %v3096 = vmul.f32 %v3084, %v3095
    %3098 = vrot.lane.b32.xlu0 %v3096, 64
    %v3099 = vpop.permute.xlu0 %3098
    %3101 = vst.msk [vmem:[#allocation3 + $0x8] sm:$0x3] %vm685, %v3099
    %v3102 = vpack.c.bf16 %v3019, %v3019
    %3104 = vrot.lane.b32.xlu0 %v3102, 64
    %v3105 = vpop.permute.xlu0 %3104
    %v3107 = vsel %vm612, %v3105, 0
    %3109 = vmatprep.subr.bf16.mxu0 %v2431
    %3110 = vmatpush1.bf16.msra.mxu0 %v2430
    %3111 = vmatprep.subr.bf16.mxu0 %v2433
    %3112 = vmatpush1.bf16.msra.mxu0 %v2432
    %3113 = vmatprep.subr.bf16.mxu0 %v2435
    %3114 = vmatpush1.bf16.msra.mxu0 %v2434
    %3115 = vmatprep.subr.bf16.mxu0 %v2437
    %3116 = vmatpush1.bf16.msra.mxu0 %v2436
    %3117 = vmatprep.subr.bf16.mxu0 0
    %3118 = vmatpush1.bf16.msra.mxu0 0
    %3119 = vmatprep.subr.bf16.mxu0 0
    %3120 = vmatpush1.bf16.msra.mxu0 0
    %3121 = vmatprep.subr.bf16.mxu0 0
    %3122 = vmatpush1.bf16.msra.mxu0 0
    %3123 = vmatprep.subr.bf16.mxu0 0
    %3124 = vmatpush1.bf16.msra.mxu0 0
    %3125 = vmatprep.subr.bf16.mxu0 0
    %3126 = vmatpush1.bf16.msra.mxu0 0
    %3127 = vmatprep.subr.bf16.mxu0 0
    %3128 = vmatpush1.bf16.msra.mxu0 0
    %3129 = vmatprep.subr.bf16.mxu0 0
    %3130 = vmatpush1.bf16.msra.mxu0 0
    %3131 = vmatprep.subr.bf16.mxu0 0
    %3132 = vmatpush1.bf16.msra.mxu0 0
    %3133 = vmatprep.subr.bf16.mxu0 0
    %3134 = vmatpush1.bf16.msra.mxu0 0
    %3135 = vmatprep.subr.bf16.mxu0 0
    %3136 = vmatpush1.bf16.msra.mxu0 0
    %3137 = vmatprep.subr.bf16.mxu0 0
    %3138 = vmatpush1.bf16.msra.mxu0 0
    %3139 = vmatprep.subr.bf16.mxu0 0
    %3140 = vmatpush1.bf16.msra.mxu0 0
    %3141 = vmatprep.mubr.bf16.mxu0 0
    %3142 = vmatmul.mubr.bf16.gmra.mrb[0].mxu0 %v3107
    %v3143 = vpop.f32.mrb[0].mxu0
    %v3144 = vadd.f32 0.0, %v3143
    %v3145 = vpop.f32.mrb[0].mxu0
    %v3146 = vadd.f32 0.0, %v3145
    %v3147 = vpop.f32.mrb[0].mxu0
    %v3148 = vpop.f32.mrb[0].mxu0
    %3149 = vdwg.mxu0
    %v3152 = vrot.slane %v3144, 2
    %v3153 = vrot.slane %v3146, 2
    %v3156 = vadd.f32 %v2272, %v3152
    %v3157 = vadd.f32 %v2274, %v3153
    %v3158 = vxor.u32 %v3156, 2147483648
    %v3159 = vmul.f32 %v3158, 1.442695
    %v3160 = vpow.pop %v3159
    %v3161 = vadd.f32 %v3160, 1.0
    %v3162 = vrcp.pop %v3161
    %v3163 = vmul.f32 1.0, %v3162
    %v3164 = vtanh.pop %v3157
    %v3165 = vxor.u32 %v3157, 2147483648
    %v3166 = vmul.f32 %v3165, 1.442695
    %v3167 = vpow.pop %v3166
    %v3168 = vadd.f32 %v3167, 1.0
    %v3169 = vrcp.pop %v3168
    %v3170 = vmul.f32 1.0, %v3169
    %v3172 = vrot.slane %v3017, 2
    %v3174 = vmul.f32 %v3163, %v3172
    %v3175 = vmul.f32 %v3163, %v3164
    %3177 = vrot.lane.b32.xlu0 %v3175, 64
    %v3178 = vpop.permute.xlu0 %3177
    %v3180 = vadd.f32 %v3174, %v3178
    %v3181 = vtanh.pop %v3180
    %v3182 = vmul.f32 %v3170, %v3181
    %3183 = vst.msk [vmem:[#allocation3] sm:$0xc0] %vm798, %v3182
    %v3184 = vpack.c.bf16 %v3096, %v3096
    %3186 = vrot.lane.b32.xlu0 %v3184, 64
    %v3187 = vpop.permute.xlu0 %3186
    %v3189 = vsel %vm612, %v3187, 0
    %3191 = vmatprep.subr.bf16.mxu0 %v2321
    %3192 = vmatpush1.bf16.msra.mxu0 %v2320
    %3193 = vmatprep.subr.bf16.mxu0 %v2323
    %3194 = vmatpush1.bf16.msra.mxu0 %v2322
    %3195 = vmatprep.subr.bf16.mxu0 %v2325
    %3196 = vmatpush1.bf16.msra.mxu0 %v2324
    %3197 = vmatprep.subr.bf16.mxu0 %v2327
    %3198 = vmatpush1.bf16.msra.mxu0 %v2326
    %3199 = vmatprep.subr.bf16.mxu0 0
    %3200 = vmatpush1.bf16.msra.mxu0 0
    %3201 = vmatprep.subr.bf16.mxu0 0
    %3202 = vmatpush1.bf16.msra.mxu0 0
    %3203 = vmatprep.subr.bf16.mxu0 0
    %3204 = vmatpush1.bf16.msra.mxu0 0
    %3205 = vmatprep.subr.bf16.mxu0 0
    %3206 = vmatpush1.bf16.msra.mxu0 0
    %3207 = vmatprep.subr.bf16.mxu0 0
    %3208 = vmatpush1.bf16.msra.mxu0 0
    %3209 = vmatprep.subr.bf16.mxu0 0
    %3210 = vmatpush1.bf16.msra.mxu0 0
    %3211 = vmatprep.subr.bf16.mxu0 0
    %3212 = vmatpush1.bf16.msra.mxu0 0
    %3213 = vmatprep.subr.bf16.mxu0 0
    %3214 = vmatpush1.bf16.msra.mxu0 0
    %3215 = vmatprep.subr.bf16.mxu0 0
    %3216 = vmatpush1.bf16.msra.mxu0 0
    %3217 = vmatprep.subr.bf16.mxu0 0
    %3218 = vmatpush1.bf16.msra.mxu0 0
    %3219 = vmatprep.subr.bf16.mxu0 0
    %3220 = vmatpush1.bf16.msra.mxu0 0
    %3221 = vmatprep.subr.bf16.mxu0 0
    %3222 = vmatpush1.bf16.msra.mxu0 0
    %3223 = vmatprep.mubr.bf16.mxu0 0
    %3224 = vmatmul.mubr.bf16.gmra.mrb[0].mxu0 %v3189
    %v3225 = vpop.f32.mrb[0].mxu0
    %v3226 = vadd.f32 0.0, %v3225
    %v3227 = vpop.f32.mrb[0].mxu0
    %v3228 = vadd.f32 0.0, %v3227
    %v3229 = vpop.f32.mrb[0].mxu0
    %v3230 = vpop.f32.mrb[0].mxu0
    %3231 = vdwg.mxu0
    %v3234 = vrot.slane %v3226, 6
    %v3235 = vrot.slane %v3228, 6
    %v3238 = vadd.f32 %v2125, %v3234
    %v3239 = vadd.f32 %v2127, %v3235
    %v3240 = vxor.u32 %v3238, 2147483648
    %v3241 = vmul.f32 %v3240, 1.442695
    %v3242 = vpow.pop %v3241
    %v3243 = vadd.f32 %v3242, 1.0
    %v3244 = vrcp.pop %v3243
    %v3245 = vmul.f32 1.0, %v3244
    %v3246 = vtanh.pop %v3239
    %v3247 = vxor.u32 %v3239, 2147483648
    %v3248 = vmul.f32 %v3247, 1.442695
    %v3249 = vpow.pop %v3248
    %v3250 = vadd.f32 %v3249, 1.0
    %v3251 = vrcp.pop %v3250
    %v3252 = vmul.f32 1.0, %v3251
    %v3254 = vrot.slane %v3094, 6
    %v3256 = vmul.f32 %v3245, %v3254
    %v3257 = vmul.f32 %v3245, %v3246
    %3259 = vrot.lane.b32.xlu0 %v3257, 64
    %v3260 = vpop.permute.xlu0 %3259
    %v3262 = vadd.f32 %v3256, %v3260
    %v3263 = vtanh.pop %v3262
    %v3264 = vmul.f32 %v3252, %v3263
    %3266 = vrot.lane.b32.xlu0 %v3264, 64
    %v3267 = vpop.permute.xlu0 %3266
    %3269 = vst.msk [vmem:[#allocation3 + $0x8] sm:$0xc] %vm885, %v3267
    %v3270 = vpack.c.bf16 %v3182, %v3182
    %v3272 = vrot.slane %v3270, 3
    %3273 = vrot.lane.b32.xlu0 %v3272, 64
    %v3274 = vpop.permute.xlu0 %3273
    %v3276 = vsel %vm612, %v3274, 0
    %3278 = vmatprep.subr.bf16.mxu0 %v2431
    %3279 = vmatpush1.bf16.msra.mxu0 %v2430
    %3280 = vmatprep.subr.bf16.mxu0 %v2433
    %3281 = vmatpush1.bf16.msra.mxu0 %v2432
    %3282 = vmatprep.subr.bf16.mxu0 %v2435
    %3283 = vmatpush1.bf16.msra.mxu0 %v2434
    %3284 = vmatprep.subr.bf16.mxu0 %v2437
    %3285 = vmatpush1.bf16.msra.mxu0 %v2436
    %3286 = vmatprep.subr.bf16.mxu0 0
    %3287 = vmatpush1.bf16.msra.mxu0 0
    %3288 = vmatprep.subr.bf16.mxu0 0
    %3289 = vmatpush1.bf16.msra.mxu0 0
    %3290 = vmatprep.subr.bf16.mxu0 0
    %3291 = vmatpush1.bf16.msra.mxu0 0
    %3292 = vmatprep.subr.bf16.mxu0 0
    %3293 = vmatpush1.bf16.msra.mxu0 0
    %3294 = vmatprep.subr.bf16.mxu0 0
    %3295 = vmatpush1.bf16.msra.mxu0 0
    %3296 = vmatprep.subr.bf16.mxu0 0
    %3297 = vmatpush1.bf16.msra.mxu0 0
    %3298 = vmatprep.subr.bf16.mxu0 0
    %3299 = vmatpush1.bf16.msra.mxu0 0
    %3300 = vmatprep.subr.bf16.mxu0 0
    %3301 = vmatpush1.bf16.msra.mxu0 0
    %3302 = vmatprep.subr.bf16.mxu0 0
    %3303 = vmatpush1.bf16.msra.mxu0 0
    %3304 = vmatprep.subr.bf16.mxu0 0
    %3305 = vmatpush1.bf16.msra.mxu0 0
    %3306 = vmatprep.subr.bf16.mxu0 0
    %3307 = vmatpush1.bf16.msra.mxu0 0
    %3308 = vmatprep.subr.bf16.mxu0 0
    %3309 = vmatpush1.bf16.msra.mxu0 0
    %3310 = vmatprep.mubr.bf16.mxu0 0
    %3311 = vmatmul.mubr.bf16.gmra.mrb[0].mxu0 %v3276
    %v3312 = vpop.f32.mrb[0].mxu0
    %v3313 = vadd.f32 0.0, %v3312
    %v3314 = vpop.f32.mrb[0].mxu0
    %v3315 = vadd.f32 0.0, %v3314
    %v3316 = vpop.f32.mrb[0].mxu0
    %v3317 = vpop.f32.mrb[0].mxu0
    %3318 = vdwg.mxu0
    %v3321 = vrot.slane %v3313, 4
    %v3322 = vrot.slane %v3315, 4
    %v3325 = vadd.f32 %v2272, %v3321
    %v3326 = vadd.f32 %v2274, %v3322
    %v3327 = vxor.u32 %v3325, 2147483648
    %v3328 = vmul.f32 %v3327, 1.442695
    %v3329 = vpow.pop %v3328
    %v3330 = vadd.f32 %v3329, 1.0
    %v3331 = vrcp.pop %v3330
    %v3332 = vmul.f32 1.0, %v3331
    %v3333 = vtanh.pop %v3326
    %v3334 = vxor.u32 %v3326, 2147483648
    %v3335 = vmul.f32 %v3334, 1.442695
    %v3336 = vpow.pop %v3335
    %v3337 = vadd.f32 %v3336, 1.0
    %v3338 = vrcp.pop %v3337
    %v3339 = vmul.f32 1.0, %v3338
    %v3341 = vrot.slane %v3180, 2
    %v3343 = vmul.f32 %v3332, %v3341
    %v3344 = vmul.f32 %v3332, %v3333
    %3346 = vrot.lane.b32.xlu0 %v3344, 64
    %v3347 = vpop.permute.xlu0 %3346
    %v3349 = vadd.f32 %v3343, %v3347
    %v3350 = vtanh.pop %v3349
    %v3351 = vmul.f32 %v3339, %v3350
    %3352 = vst.msk [vmem:[#allocation3] sm:$0x30] %vm969, %v3351
    %v3353 = vpack.c.bf16 %v3264, %v3264
    %v3355 = vrot.slane %v3353, 1
    %3356 = vrot.lane.b32.xlu0 %v3355, 64
    %v3357 = vpop.permute.xlu0 %3356
    %v3359 = vsel %vm612, %v3357, 0
    %3361 = vmatprep.subr.bf16.mxu0 %v2321
    %3362 = vmatpush1.bf16.msra.mxu0 %v2320
    %3363 = vmatprep.subr.bf16.mxu0 %v2323
    %3364 = vmatpush1.bf16.msra.mxu0 %v2322
    %3365 = vmatprep.subr.bf16.mxu0 %v2325
    %3366 = vmatpush1.bf16.msra.mxu0 %v2324
    %3367 = vmatprep.subr.bf16.mxu0 %v2327
    %3368 = vmatpush1.bf16.msra.mxu0 %v2326
    %3369 = vmatprep.subr.bf16.mxu0 0
    %3370 = vmatpush1.bf16.msra.mxu0 0
    %3371 = vmatprep.subr.bf16.mxu0 0
    %3372 = vmatpush1.bf16.msra.mxu0 0
    %3373 = vmatprep.subr.bf16.mxu0 0
    %3374 = vmatpush1.bf16.msra.mxu0 0
    %3375 = vmatprep.subr.bf16.mxu0 0
    %3376 = vmatpush1.bf16.msra.mxu0 0
    %3377 = vmatprep.subr.bf16.mxu0 0
    %3378 = vmatpush1.bf16.msra.mxu0 0
    %3379 = vmatprep.subr.bf16.mxu0 0
    %3380 = vmatpush1.bf16.msra.mxu0 0
    %3381 = vmatprep.subr.bf16.mxu0 0
    %3382 = vmatpush1.bf16.msra.mxu0 0
    %3383 = vmatprep.subr.bf16.mxu0 0
    %3384 = vmatpush1.bf16.msra.mxu0 0
    %3385 = vmatprep.subr.bf16.mxu0 0
    %3386 = vmatpush1.bf16.msra.mxu0 0
    %3387 = vmatprep.subr.bf16.mxu0 0
    %3388 = vmatpush1.bf16.msra.mxu0 0
    %3389 = vmatprep.subr.bf16.mxu0 0
    %3390 = vmatpush1.bf16.msra.mxu0 0
    %3391 = vmatprep.subr.bf16.mxu0 0
    %3392 = vmatpush1.bf16.msra.mxu0 0
    %3393 = vmatprep.mubr.bf16.mxu0 0
    %3394 = vmatmul.mubr.bf16.gmra.mrb[0].mxu0 %v3359
    %v3395 = vpop.f32.mrb[0].mxu0
    %v3396 = vadd.f32 0.0, %v3395
    %v3397 = vpop.f32.mrb[0].mxu0
    %v3398 = vadd.f32 0.0, %v3397
    %v3399 = vpop.f32.mrb[0].mxu0
    %v3400 = vpop.f32.mrb[0].mxu0
    %3401 = vdwg.mxu0
    %v3404 = vrot.slane %v3396, 4
    %v3405 = vrot.slane %v3398, 4
    %v3408 = vadd.f32 %v2125, %v3404
    %v3409 = vadd.f32 %v2127, %v3405
    %v3410 = vxor.u32 %v3408, 2147483648
    %v3411 = vmul.f32 %v3410, 1.442695
    %v3412 = vpow.pop %v3411
    %v3413 = vadd.f32 %v3412, 1.0
    %v3414 = vrcp.pop %v3413
    %v3415 = vmul.f32 1.0, %v3414
    %v3416 = vtanh.pop %v3409
    %v3417 = vxor.u32 %v3409, 2147483648
    %v3418 = vmul.f32 %v3417, 1.442695
    %v3419 = vpow.pop %v3418
    %v3420 = vadd.f32 %v3419, 1.0
    %v3421 = vrcp.pop %v3420
    %v3422 = vmul.f32 1.0, %v3421
    %v3424 = vrot.slane %v3262, 6
    %v3426 = vmul.f32 %v3415, %v3424
    %v3427 = vmul.f32 %v3415, %v3416
    %3429 = vrot.lane.b32.xlu0 %v3427, 64
    %v3430 = vpop.permute.xlu0 %3429
    %v3432 = vadd.f32 %v3426, %v3430
    %v3433 = vtanh.pop %v3432
    %v3434 = vmul.f32 %v3422, %v3433
    %3436 = vrot.lane.b32.xlu0 %v3434, 64
    %v3437 = vpop.permute.xlu0 %3436
    %3439 = vst.msk [vmem:[#allocation3 + $0x8] sm:$0x30] %vm1057, %v3437
    %v3440 = vpack.c.bf16 %v3351, %v3351
    %v3442 = vrot.slane %v3440, 2
    %3443 = vrot.lane.b32.xlu0 %v3442, 64
    %v3444 = vpop.permute.xlu0 %3443
    %v3446 = vsel %vm612, %v3444, 0
    %3448 = vmatprep.subr.bf16.mxu0 %v2431
    %3449 = vmatpush1.bf16.msra.mxu0 %v2430
    %3450 = vmatprep.subr.bf16.mxu0 %v2433
    %3451 = vmatpush1.bf16.msra.mxu0 %v2432
    %3452 = vmatprep.subr.bf16.mxu0 %v2435
    %3453 = vmatpush1.bf16.msra.mxu0 %v2434
    %3454 = vmatprep.subr.bf16.mxu0 %v2437
    %3455 = vmatpush1.bf16.msra.mxu0 %v2436
    %3456 = vmatprep.subr.bf16.mxu0 0
    %3457 = vmatpush1.bf16.msra.mxu0 0
    %3458 = vmatprep.subr.bf16.mxu0 0
    %3459 = vmatpush1.bf16.msra.mxu0 0
    %3460 = vmatprep.subr.bf16.mxu0 0
    %3461 = vmatpush1.bf16.msra.mxu0 0
    %3462 = vmatprep.subr.bf16.mxu0 0
    %3463 = vmatpush1.bf16.msra.mxu0 0
    %3464 = vmatprep.subr.bf16.mxu0 0
    %3465 = vmatpush1.bf16.msra.mxu0 0
    %3466 = vmatprep.subr.bf16.mxu0 0
    %3467 = vmatpush1.bf16.msra.mxu0 0
    %3468 = vmatprep.subr.bf16.mxu0 0
    %3469 = vmatpush1.bf16.msra.mxu0 0
    %3470 = vmatprep.subr.bf16.mxu0 0
    %3471 = vmatpush1.bf16.msra.mxu0 0
    %3472 = vmatprep.subr.bf16.mxu0 0
    %3473 = vmatpush1.bf16.msra.mxu0 0
    %3474 = vmatprep.subr.bf16.mxu0 0
    %3475 = vmatpush1.bf16.msra.mxu0 0
    %3476 = vmatprep.subr.bf16.mxu0 0
    %3477 = vmatpush1.bf16.msra.mxu0 0
    %3478 = vmatprep.subr.bf16.mxu0 0
    %3479 = vmatpush1.bf16.msra.mxu0 0
    %3480 = vmatprep.mubr.bf16.mxu0 0
    %3481 = vmatmul.mubr.bf16.gmra.mrb[0].mxu0 %v3446
    %v3482 = vpop.f32.mrb[0].mxu0
    %v3483 = vadd.f32 0.0, %v3482
    %v3484 = vpop.f32.mrb[0].mxu0
    %v3485 = vadd.f32 0.0, %v3484
    %v3486 = vpop.f32.mrb[0].mxu0
    %v3487 = vpop.f32.mrb[0].mxu0
    %3488 = vdwg.mxu0
    %v3491 = vrot.slane %v3483, 6
    %v3492 = vrot.slane %v3485, 6
    %v3495 = vadd.f32 %v2272, %v3491
    %v3496 = vadd.f32 %v2274, %v3492
    %v3497 = vxor.u32 %v3495, 2147483648
    %v3498 = vmul.f32 %v3497, 1.442695
    %v3499 = vpow.pop %v3498
    %v3500 = vadd.f32 %v3499, 1.0
    %v3501 = vrcp.pop %v3500
    %v3502 = vmul.f32 1.0, %v3501
    %v3503 = vtanh.pop %v3496
    %v3504 = vxor.u32 %v3496, 2147483648
    %v3505 = vmul.f32 %v3504, 1.442695
    %v3506 = vpow.pop %v3505
    %v3507 = vadd.f32 %v3506, 1.0
    %v3508 = vrcp.pop %v3507
    %v3509 = vmul.f32 1.0, %v3508
    %v3511 = vrot.slane %v3349, 2
    %v3513 = vmul.f32 %v3502, %v3511
    %v3514 = vmul.f32 %v3502, %v3503
    %3516 = vrot.lane.b32.xlu0 %v3514, 64
    %v3517 = vpop.permute.xlu0 %3516
    %v3519 = vadd.f32 %v3513, %v3517
    %v3520 = vtanh.pop %v3519
    %v3521 = vmul.f32 %v3509, %v3520
    %3522 = vst.msk [vmem:[#allocation3] sm:$0xc] %vm1141, %v3521
    %v3523 = vpack.c.bf16 %v3434, %v3434
    %v3525 = vrot.slane %v3523, 2
    %3526 = vrot.lane.b32.xlu0 %v3525, 64
    %v3527 = vpop.permute.xlu0 %3526
    %v3529 = vsel %vm612, %v3527, 0
    %3531 = vmatprep.subr.bf16.mxu0 %v2321
    %3532 = vmatpush1.bf16.msra.mxu0 %v2320
    %3533 = vmatprep.subr.bf16.mxu0 %v2323
    %3534 = vmatpush1.bf16.msra.mxu0 %v2322
    %3535 = vmatprep.subr.bf16.mxu0 %v2325
    %3536 = vmatpush1.bf16.msra.mxu0 %v2324
    %3537 = vmatprep.subr.bf16.mxu0 %v2327
    %3538 = vmatpush1.bf16.msra.mxu0 %v2326
    %3539 = vmatprep.subr.bf16.mxu0 0
    %3540 = vmatpush1.bf16.msra.mxu0 0
    %3541 = vmatprep.subr.bf16.mxu0 0
    %3542 = vmatpush1.bf16.msra.mxu0 0
    %3543 = vmatprep.subr.bf16.mxu0 0
    %3544 = vmatpush1.bf16.msra.mxu0 0
    %3545 = vmatprep.subr.bf16.mxu0 0
    %3546 = vmatpush1.bf16.msra.mxu0 0
    %3547 = vmatprep.subr.bf16.mxu0 0
    %3548 = vmatpush1.bf16.msra.mxu0 0
    %3549 = vmatprep.subr.bf16.mxu0 0
    %3550 = vmatpush1.bf16.msra.mxu0 0
    %3551 = vmatprep.subr.bf16.mxu0 0
    %3552 = vmatpush1.bf16.msra.mxu0 0
    %3553 = vmatprep.subr.bf16.mxu0 0
    %3554 = vmatpush1.bf16.msra.mxu0 0
    %3555 = vmatprep.subr.bf16.mxu0 0
    %3556 = vmatpush1.bf16.msra.mxu0 0
    %3557 = vmatprep.subr.bf16.mxu0 0
    %3558 = vmatpush1.bf16.msra.mxu0 0
    %3559 = vmatprep.subr.bf16.mxu0 0
    %3560 = vmatpush1.bf16.msra.mxu0 0
    %3561 = vmatprep.subr.bf16.mxu0 0
    %3562 = vmatpush1.bf16.msra.mxu0 0
    %3563 = vmatprep.mubr.bf16.mxu0 0
    %3564 = vmatmul.mubr.bf16.gmra.mrb[0].mxu0 %v3529
    %v3565 = vpop.f32.mrb[0].mxu0
    %v3566 = vadd.f32 0.0, %v3565
    %v3567 = vpop.f32.mrb[0].mxu0
    %v3568 = vadd.f32 0.0, %v3567
    %v3569 = vpop.f32.mrb[0].mxu0
    %v3570 = vpop.f32.mrb[0].mxu0
    %3571 = vdwg.mxu0
    %v3574 = vrot.slane %v3566, 2
    %v3575 = vrot.slane %v3568, 2
    %v3578 = vadd.f32 %v2125, %v3574
    %v3579 = vadd.f32 %v2127, %v3575
    %v3580 = vxor.u32 %v3578, 2147483648
    %v3581 = vmul.f32 %v3580, 1.442695
    %v3582 = vpow.pop %v3581
    %v3583 = vadd.f32 %v3582, 1.0
    %v3584 = vrcp.pop %v3583
    %v3585 = vmul.f32 1.0, %v3584
    %v3586 = vtanh.pop %v3579
    %v3587 = vxor.u32 %v3579, 2147483648
    %v3588 = vmul.f32 %v3587, 1.442695
    %v3589 = vpow.pop %v3588
    %v3590 = vadd.f32 %v3589, 1.0
    %v3591 = vrcp.pop %v3590
    %v3592 = vmul.f32 1.0, %v3591
    %v3594 = vrot.slane %v3432, 6
    %v3596 = vmul.f32 %v3585, %v3594
    %v3597 = vmul.f32 %v3585, %v3586
    %3599 = vrot.lane.b32.xlu0 %v3597, 64
    %v3600 = vpop.permute.xlu0 %3599
    %v3602 = vadd.f32 %v3596, %v3600
    %v3603 = vtanh.pop %v3602
    %v3604 = vmul.f32 %v3592, %v3603
    %3606 = vrot.lane.b32.xlu0 %v3604, 64
    %v3607 = vpop.permute.xlu0 %3606
    %3609 = vst.msk [vmem:[#allocation3 + $0x8] sm:$0xc0] %vm1229, %v3607
    %v3610 = vpack.c.bf16 %v3521, %v3521
    %v3612 = vrot.slane %v3610, 1
    %3613 = vrot.lane.b32.xlu0 %v3612, 64
    %v3614 = vpop.permute.xlu0 %3613
    %v3616 = vsel %vm612, %v3614, 0
    %3618 = vmatprep.subr.bf16.mxu0 %v2431
    %3619 = vmatpush1.bf16.msra.mxu0 %v2430
    %3620 = vmatprep.subr.bf16.mxu0 %v2433
    %3621 = vmatpush1.bf16.msra.mxu0 %v2432
    %3622 = vmatprep.subr.bf16.mxu0 %v2435
    %3623 = vmatpush1.bf16.msra.mxu0 %v2434
    %3624 = vmatprep.subr.bf16.mxu0 %v2437
    %3625 = vmatpush1.bf16.msra.mxu0 %v2436
    %3626 = vmatprep.subr.bf16.mxu0 0
    %3627 = vmatpush1.bf16.msra.mxu0 0
    %3628 = vmatprep.subr.bf16.mxu0 0
    %3629 = vmatpush1.bf16.msra.mxu0 0
    %3630 = vmatprep.subr.bf16.mxu0 0
    %3631 = vmatpush1.bf16.msra.mxu0 0
    %3632 = vmatprep.subr.bf16.mxu0 0
    %3633 = vmatpush1.bf16.msra.mxu0 0
    %3634 = vmatprep.subr.bf16.mxu0 0
    %3635 = vmatpush1.bf16.msra.mxu0 0
    %3636 = vmatprep.subr.bf16.mxu0 0
    %3637 = vmatpush1.bf16.msra.mxu0 0
    %3638 = vmatprep.subr.bf16.mxu0 0
    %3639 = vmatpush1.bf16.msra.mxu0 0
    %3640 = vmatprep.subr.bf16.mxu0 0
    %3641 = vmatpush1.bf16.msra.mxu0 0
    %3642 = vmatprep.subr.bf16.mxu0 0
    %3643 = vmatpush1.bf16.msra.mxu0 0
    %3644 = vmatprep.subr.bf16.mxu0 0
    %3645 = vmatpush1.bf16.msra.mxu0 0
    %3646 = vmatprep.subr.bf16.mxu0 0
    %3647 = vmatpush1.bf16.msra.mxu0 0
    %3648 = vmatprep.subr.bf16.mxu0 0
    %3649 = vmatpush1.bf16.msra.mxu0 0
    %3650 = vmatprep.mubr.bf16.mxu0 0
    %3651 = vmatmul.mubr.bf16.gmra.mrb[0].mxu0 %v3616
    %v3652 = vpop.f32.mrb[0].mxu0
    %v3653 = vadd.f32 0.0, %v3652
    %v3654 = vpop.f32.mrb[0].mxu0
    %v3655 = vadd.f32 0.0, %v3654
    %v3656 = vpop.f32.mrb[0].mxu0
    %v3657 = vpop.f32.mrb[0].mxu0
    %3658 = vdwg.mxu0
    %v3659 = vadd.f32 %v2272, %v3653
    %v3660 = vadd.f32 %v2274, %v3655
    %v3661 = vxor.u32 %v3659, 2147483648
    %v3662 = vmul.f32 %v3661, 1.442695
    %v3663 = vpow.pop %v3662
    %v3664 = vadd.f32 %v3663, 1.0
    %v3665 = vrcp.pop %v3664
    %v3666 = vmul.f32 1.0, %v3665
    %v3667 = vtanh.pop %v3660
    %v3668 = vxor.u32 %v3660, 2147483648
    %v3669 = vmul.f32 %v3668, 1.442695
    %v3670 = vpow.pop %v3669
    %v3671 = vadd.f32 %v3670, 1.0
    %v3672 = vrcp.pop %v3671
    %v3673 = vmul.f32 1.0, %v3672
    %v3675 = vrot.slane %v3519, 2
    %v3677 = vmul.f32 %v3666, %v3675
    %v3678 = vmul.f32 %v3666, %v3667
    %3680 = vrot.lane.b32.xlu0 %v3678, 64
    %v3681 = vpop.permute.xlu0 %3680
    %v3683 = vadd.f32 %v3677, %v3681
    %v3684 = vtanh.pop %v3683
    %v3685 = vmul.f32 %v3673, %v3684
    %3686 = vst.msk [vmem:[#allocation3] sm:$0x3] %vm1307, %v3685
    %v3687 = vld [vmem:[#allocation3] sm:$0xff]
    %v3688 = vld [vmem:[#allocation3 + $0x8] sm:$0xff]
    %v3689 = vpack.c.bf16 %v3688, %v3687
    %v3690 = vld [vmem:[%s33] sm:$0xff]
    %v3691 = vld [vmem:[%s33 + $0x8] sm:$0xff]
    %v3692 = vld [vmem:[%s33 + $0x10] sm:$0xff]
    %v3693 = vld [vmem:[%s33 + $0x18] sm:$0xff]
    %v3694 = vld [vmem:[%s33 + $0x20] sm:$0xff]
    %v3695 = vld [vmem:[%s33 + $0x28] sm:$0xff]
    %v3696 = vld [vmem:[%s33 + $0x30] sm:$0xff]
    %v3697 = vld [vmem:[%s33 + $0x38] sm:$0xff]
    %v3698 = vld [vmem:[%s33 + $0x40] sm:$0xff]
    %v3699 = vld [vmem:[%s33 + $0x48] sm:$0xff]
    %v3700 = vld [vmem:[%s33 + $0x50] sm:$0xff]
    %v3701 = vld [vmem:[%s33 + $0x58] sm:$0xff]
    %v3702 = vld [vmem:[%s33 + $0x60] sm:$0xff]
    %v3703 = vld [vmem:[%s33 + $0x68] sm:$0xff]
    %v3704 = vld [vmem:[%s33 + $0x70] sm:$0xff]
    %v3705 = vld [vmem:[%s33 + $0x78] sm:$0xff]
    %v3706 = vld [vmem:[#allocation19] sm:$0x3]
    %v3708 = vlaneseq
    %v3709 = vshrl.u32 %v3708, 7
    %v3710 = vsub.s32 0, %v3709
    %v3711 = vrot.slane %v3706, %v3710
    %v3712 = vlaneseq
    %v3713 = vshrl.u32 %v3712, 7
    %v3714 = vsub.s32 1, %v3713
    %v3715 = vrot.slane %v3706, %v3714
    %v3734 = vunpack.c.l.b16 %v3690
    %v3735 = vunpack.c.h.b16 %v3690
    %v3736 = vunpack.c.l.b16 %v3691
    %v3737 = vunpack.c.h.b16 %v3691
    %v3738 = vunpack.c.l.b16 %v3692
    %v3739 = vunpack.c.h.b16 %v3692
    %v3740 = vunpack.c.l.b16 %v3693
    %v3741 = vunpack.c.h.b16 %v3693
    %v3742 = vunpack.c.l.b16 %v3694
    %v3743 = vunpack.c.h.b16 %v3694
    %v3744 = vunpack.c.l.b16 %v3695
    %v3745 = vunpack.c.h.b16 %v3695
    %v3746 = vunpack.c.l.b16 %v3696
    %v3747 = vunpack.c.h.b16 %v3696
    %v3748 = vunpack.c.l.b16 %v3697
    %v3749 = vunpack.c.h.b16 %v3697
    %v3750 = vunpack.c.l.b16 %v3698
    %v3751 = vunpack.c.h.b16 %v3698
    %v3752 = vunpack.c.l.b16 %v3699
    %v3753 = vunpack.c.h.b16 %v3699
    %v3754 = vunpack.c.l.b16 %v3700
    %v3755 = vunpack.c.h.b16 %v3700
    %v3756 = vunpack.c.l.b16 %v3701
    %v3757 = vunpack.c.h.b16 %v3701
    %v3758 = vunpack.c.l.b16 %v3702
    %v3759 = vunpack.c.h.b16 %v3702
    %v3760 = vunpack.c.l.b16 %v3703
    %v3761 = vunpack.c.h.b16 %v3703
    %v3762 = vunpack.c.l.b16 %v3704
    %v3763 = vunpack.c.h.b16 %v3704
    %v3764 = vunpack.c.l.b16 %v3705
    %v3765 = vunpack.c.h.b16 %v3705
    %v3766 = vpack.c.b16 %v3736, %v3734
    %v3767 = vpack.c.b16 %v3737, %v3735
    %v3768 = vpack.c.b16 %v3740, %v3738
    %v3769 = vpack.c.b16 %v3741, %v3739
    %v3770 = vpack.c.b16 %v3744, %v3742
    %v3771 = vpack.c.b16 %v3745, %v3743
    %v3772 = vpack.c.b16 %v3748, %v3746
    %v3773 = vpack.c.b16 %v3749, %v3747
    %v3774 = vpack.c.b16 %v3752, %v3750
    %v3775 = vpack.c.b16 %v3753, %v3751
    %v3776 = vpack.c.b16 %v3756, %v3754
    %v3777 = vpack.c.b16 %v3757, %v3755
    %v3778 = vpack.c.b16 %v3760, %v3758
    %v3779 = vpack.c.b16 %v3761, %v3759
    %v3780 = vpack.c.b16 %v3764, %v3762
    %v3781 = vpack.c.b16 %v3765, %v3763
    %3798 = vmatprep.subr.bf16.mxu0 %v3767
    %3799 = vmatpush1.bf16.msra.mxu0 %v3766
    %3800 = vmatprep.subr.bf16.mxu0 %v3769
    %3801 = vmatpush1.bf16.msra.mxu0 %v3768
    %3802 = vmatprep.subr.bf16.mxu0 %v3771
    %3803 = vmatpush1.bf16.msra.mxu0 %v3770
    %3804 = vmatprep.subr.bf16.mxu0 %v3773
    %3805 = vmatpush1.bf16.msra.mxu0 %v3772
    %3806 = vmatprep.subr.bf16.mxu0 %v3775
    %3807 = vmatpush1.bf16.msra.mxu0 %v3774
    %3808 = vmatprep.subr.bf16.mxu0 %v3777
    %3809 = vmatpush1.bf16.msra.mxu0 %v3776
    %3810 = vmatprep.subr.bf16.mxu0 %v3779
    %3811 = vmatpush1.bf16.msra.mxu0 %v3778
    %3812 = vmatprep.subr.bf16.mxu0 %v3781
    %3813 = vmatpush1.bf16.msra.mxu0 %v3780
    %3814 = vmatprep.subr.bf16.mxu0 0
    %3815 = vmatpush1.bf16.msra.mxu0 0
    %3816 = vmatprep.subr.bf16.mxu0 0
    %3817 = vmatpush1.bf16.msra.mxu0 0
    %3818 = vmatprep.subr.bf16.mxu0 0
    %3819 = vmatpush1.bf16.msra.mxu0 0
    %3820 = vmatprep.subr.bf16.mxu0 0
    %3821 = vmatpush1.bf16.msra.mxu0 0
    %3822 = vmatprep.subr.bf16.mxu0 0
    %3823 = vmatpush1.bf16.msra.mxu0 0
    %3824 = vmatprep.subr.bf16.mxu0 0
    %3825 = vmatpush1.bf16.msra.mxu0 0
    %3826 = vmatprep.subr.bf16.mxu0 0
    %3827 = vmatpush1.bf16.msra.mxu0 0
    %3828 = vmatprep.subr.bf16.mxu0 0
    %3829 = vmatpush1.bf16.msra.mxu0 0
    %3830 = vmatprep.mubr.bf16.mxu0 0
    %3831 = vmatmul.mubr.bf16.gmra.mrb[0].mxu0 %v3689
    %v3832 = vpop.f32.mrb[0].mxu0
    %v3833 = vadd.f32 %v3711, %v3832
    %v3834 = vpop.f32.mrb[0].mxu0
    %v3835 = vadd.f32 %v3715, %v3834
    %v3836 = vpop.f32.mrb[0].mxu0
    %v3837 = vadd.f32 %v3711, %v3836
    %v3838 = vpop.f32.mrb[0].mxu0
    %v3839 = vadd.f32 %v3715, %v3838
    %3840 = vdwg.mxu0
    %v3841 = vld [vmem:[%s39] sm:$0xff]
    %v3842 = vld [vmem:[%s39 + $0x8] sm:$0xff]
    %v3843 = vld [vmem:[%s39 + $0x10] sm:$0xff]
    %v3844 = vld [vmem:[%s39 + $0x18] sm:$0xff]
    %v3845 = vld [vmem:[%s39 + $0x20] sm:$0xff]
    %v3846 = vld [vmem:[%s39 + $0x28] sm:$0xff]
    %v3847 = vld [vmem:[%s39 + $0x30] sm:$0xff]
    %v3848 = vld [vmem:[%s39 + $0x38] sm:$0xff]
    %v3849 = vld [vmem:[%s39 + $0x40] sm:$0xff]
    %v3850 = vld [vmem:[%s39 + $0x48] sm:$0xff]
    %v3851 = vld [vmem:[%s39 + $0x50] sm:$0xff]
    %v3852 = vld [vmem:[%s39 + $0x58] sm:$0xff]
    %v3853 = vld [vmem:[%s39 + $0x60] sm:$0xff]
    %v3854 = vld [vmem:[%s39 + $0x68] sm:$0xff]
    %v3855 = vld [vmem:[%s39 + $0x70] sm:$0xff]
    %v3856 = vld [vmem:[%s39 + $0x78] sm:$0xff]
    %v3857 = vld [vmem:[#allocation20] sm:$0x3]
    %v3859 = vlaneseq
    %v3860 = vshrl.u32 %v3859, 7
    %v3861 = vsub.s32 0, %v3860
    %v3862 = vrot.slane %v3857, %v3861
    %v3863 = vlaneseq
    %v3864 = vshrl.u32 %v3863, 7
    %v3865 = vsub.s32 1, %v3864
    %v3866 = vrot.slane %v3857, %v3865
    %v3885 = vunpack.c.l.b16 %v3841
    %v3886 = vunpack.c.h.b16 %v3841
    %v3887 = vunpack.c.l.b16 %v3842
    %v3888 = vunpack.c.h.b16 %v3842
    %v3889 = vunpack.c.l.b16 %v3843
    %v3890 = vunpack.c.h.b16 %v3843
    %v3891 = vunpack.c.l.b16 %v3844
    %v3892 = vunpack.c.h.b16 %v3844
    %v3893 = vunpack.c.l.b16 %v3845
    %v3894 = vunpack.c.h.b16 %v3845
    %v3895 = vunpack.c.l.b16 %v3846
    %v3896 = vunpack.c.h.b16 %v3846
    %v3897 = vunpack.c.l.b16 %v3847
    %v3898 = vunpack.c.h.b16 %v3847
    %v3899 = vunpack.c.l.b16 %v3848
    %v3900 = vunpack.c.h.b16 %v3848
    %v3901 = vunpack.c.l.b16 %v3849
    %v3902 = vunpack.c.h.b16 %v3849
    %v3903 = vunpack.c.l.b16 %v3850
    %v3904 = vunpack.c.h.b16 %v3850
    %v3905 = vunpack.c.l.b16 %v3851
    %v3906 = vunpack.c.h.b16 %v3851
    %v3907 = vunpack.c.l.b16 %v3852
    %v3908 = vunpack.c.h.b16 %v3852
    %v3909 = vunpack.c.l.b16 %v3853
    %v3910 = vunpack.c.h.b16 %v3853
    %v3911 = vunpack.c.l.b16 %v3854
    %v3912 = vunpack.c.h.b16 %v3854
    %v3913 = vunpack.c.l.b16 %v3855
    %v3914 = vunpack.c.h.b16 %v3855
    %v3915 = vunpack.c.l.b16 %v3856
    %v3916 = vunpack.c.h.b16 %v3856
    %v3917 = vpack.c.b16 %v3887, %v3885
    %v3918 = vpack.c.b16 %v3888, %v3886
    %v3919 = vpack.c.b16 %v3891, %v3889
    %v3920 = vpack.c.b16 %v3892, %v3890
    %v3921 = vpack.c.b16 %v3895, %v3893
    %v3922 = vpack.c.b16 %v3896, %v3894
    %v3923 = vpack.c.b16 %v3899, %v3897
    %v3924 = vpack.c.b16 %v3900, %v3898
    %v3925 = vpack.c.b16 %v3903, %v3901
    %v3926 = vpack.c.b16 %v3904, %v3902
    %v3927 = vpack.c.b16 %v3907, %v3905
    %v3928 = vpack.c.b16 %v3908, %v3906
    %v3929 = vpack.c.b16 %v3911, %v3909
    %v3930 = vpack.c.b16 %v3912, %v3910
    %v3931 = vpack.c.b16 %v3915, %v3913
    %v3932 = vpack.c.b16 %v3916, %v3914
    %3949 = vmatprep.subr.bf16.mxu0 %v3918
    %3950 = vmatpush1.bf16.msra.mxu0 %v3917
    %3951 = vmatprep.subr.bf16.mxu0 %v3920
    %3952 = vmatpush1.bf16.msra.mxu0 %v3919
    %3953 = vmatprep.subr.bf16.mxu0 %v3922
    %3954 = vmatpush1.bf16.msra.mxu0 %v3921
    %3955 = vmatprep.subr.bf16.mxu0 %v3924
    %3956 = vmatpush1.bf16.msra.mxu0 %v3923
    %3957 = vmatprep.subr.bf16.mxu0 %v3926
    %3958 = vmatpush1.bf16.msra.mxu0 %v3925
    %3959 = vmatprep.subr.bf16.mxu0 %v3928
    %3960 = vmatpush1.bf16.msra.mxu0 %v3927
    %3961 = vmatprep.subr.bf16.mxu0 %v3930
    %3962 = vmatpush1.bf16.msra.mxu0 %v3929
    %3963 = vmatprep.subr.bf16.mxu0 %v3932
    %3964 = vmatpush1.bf16.msra.mxu0 %v3931
    %3965 = vmatprep.subr.bf16.mxu0 0
    %3966 = vmatpush1.bf16.msra.mxu0 0
    %3967 = vmatprep.subr.bf16.mxu0 0
    %3968 = vmatpush1.bf16.msra.mxu0 0
    %3969 = vmatprep.subr.bf16.mxu0 0
    %3970 = vmatpush1.bf16.msra.mxu0 0
    %3971 = vmatprep.subr.bf16.mxu0 0
    %3972 = vmatpush1.bf16.msra.mxu0 0
    %3973 = vmatprep.subr.bf16.mxu0 0
    %3974 = vmatpush1.bf16.msra.mxu0 0
    %3975 = vmatprep.subr.bf16.mxu0 0
    %3976 = vmatpush1.bf16.msra.mxu0 0
    %3977 = vmatprep.subr.bf16.mxu0 0
    %3978 = vmatpush1.bf16.msra.mxu0 0
    %3979 = vmatprep.subr.bf16.mxu0 0
    %3980 = vmatpush1.bf16.msra.mxu0 0
    %3981 = vmatprep.mubr.bf16.mxu0 0
    %3982 = vmatmul.mubr.bf16.gmra.mrb[0].mxu0 %v3689
    %v3983 = vpop.f32.mrb[0].mxu0
    %v3984 = vadd.f32 %v3862, %v3983
    %v3985 = vpop.f32.mrb[0].mxu0
    %v3986 = vadd.f32 %v3866, %v3985
    %v3987 = vpop.f32.mrb[0].mxu0
    %v3988 = vadd.f32 %v3862, %v3987
    %v3989 = vpop.f32.mrb[0].mxu0
    %v3990 = vadd.f32 %v3866, %v3989
    %3991 = vdwg.mxu0
    %v3992 = vld [vmem:[%s35] sm:$0xff]
    %v3993 = vld [vmem:[%s35 + $0x8] sm:$0xff]
    %v3994 = vld [vmem:[%s35 + $0x10] sm:$0xff]
    %v3995 = vld [vmem:[%s35 + $0x18] sm:$0xff]
    %v3996 = vld [vmem:[%s35 + $0x20] sm:$0xff]
    %v3997 = vld [vmem:[%s35 + $0x28] sm:$0xff]
    %v3998 = vld [vmem:[%s35 + $0x30] sm:$0xff]
    %v3999 = vld [vmem:[%s35 + $0x38] sm:$0xff]
    %v4000 = vld [vmem:[%s41] sm:$0xff]
    %v4001 = vld [vmem:[%s41 + $0x8] sm:$0xff]
    %v4002 = vld [vmem:[%s41 + $0x10] sm:$0xff]
    %v4003 = vld [vmem:[%s41 + $0x18] sm:$0xff]
    %v4004 = vld [vmem:[%s41 + $0x20] sm:$0xff]
    %v4005 = vld [vmem:[%s41 + $0x28] sm:$0xff]
    %v4006 = vld [vmem:[%s41 + $0x30] sm:$0xff]
    %v4007 = vld [vmem:[%s41 + $0x38] sm:$0xff]
    %v4016 = vunpack.c.l.b16 %v3992
    %v4017 = vunpack.c.h.b16 %v3992
    %v4018 = vunpack.c.l.b16 %v3993
    %v4019 = vunpack.c.h.b16 %v3993
    %v4020 = vunpack.c.l.b16 %v3994
    %v4021 = vunpack.c.h.b16 %v3994
    %v4022 = vunpack.c.l.b16 %v3995
    %v4023 = vunpack.c.h.b16 %v3995
    %v4024 = vunpack.c.l.b16 %v3996
    %v4025 = vunpack.c.h.b16 %v3996
    %v4026 = vunpack.c.l.b16 %v3997
    %v4027 = vunpack.c.h.b16 %v3997
    %v4028 = vunpack.c.l.b16 %v3998
    %v4029 = vunpack.c.h.b16 %v3998
    %v4030 = vunpack.c.l.b16 %v3999
    %v4031 = vunpack.c.h.b16 %v3999
    %v4032 = vpack.c.b16 %v4018, %v4016
    %v4033 = vpack.c.b16 %v4019, %v4017
    %v4034 = vpack.c.b16 %v4022, %v4020
    %v4035 = vpack.c.b16 %v4023, %v4021
    %v4036 = vpack.c.b16 %v4026, %v4024
    %v4037 = vpack.c.b16 %v4027, %v4025
    %v4038 = vpack.c.b16 %v4030, %v4028
    %v4039 = vpack.c.b16 %v4031, %v4029
    %4048 = vmatprep.subr.bf16.mxu0 %v4033
    %4049 = vmatpush1.bf16.msra.mxu0 %v4032
    %4050 = vmatprep.subr.bf16.mxu0 %v4035
    %4051 = vmatpush1.bf16.msra.mxu0 %v4034
    %4052 = vmatprep.subr.bf16.mxu0 %v4037
    %4053 = vmatpush1.bf16.msra.mxu0 %v4036
    %4054 = vmatprep.subr.bf16.mxu0 %v4039
    %4055 = vmatpush1.bf16.msra.mxu0 %v4038
    %4056 = vmatprep.subr.bf16.mxu0 0
    %4057 = vmatpush1.bf16.msra.mxu0 0
    %4058 = vmatprep.subr.bf16.mxu0 0
    %4059 = vmatpush1.bf16.msra.mxu0 0
    %4060 = vmatprep.subr.bf16.mxu0 0
    %4061 = vmatpush1.bf16.msra.mxu0 0
    %4062 = vmatprep.subr.bf16.mxu0 0
    %4063 = vmatpush1.bf16.msra.mxu0 0
    %4064 = vmatprep.subr.bf16.mxu0 0
    %4065 = vmatpush1.bf16.msra.mxu0 0
    %4066 = vmatprep.subr.bf16.mxu0 0
    %4067 = vmatpush1.bf16.msra.mxu0 0
    %4068 = vmatprep.subr.bf16.mxu0 0
    %4069 = vmatpush1.bf16.msra.mxu0 0
    %4070 = vmatprep.subr.bf16.mxu0 0
    %4071 = vmatpush1.bf16.msra.mxu0 0
    %4072 = vmatprep.subr.bf16.mxu0 0
    %4073 = vmatpush1.bf16.msra.mxu0 0
    %4074 = vmatprep.subr.bf16.mxu0 0
    %4075 = vmatpush1.bf16.msra.mxu0 0
    %4076 = vmatprep.subr.bf16.mxu0 0
    %4077 = vmatpush1.bf16.msra.mxu0 0
    %4078 = vmatprep.subr.bf16.mxu0 0
    %4079 = vmatpush1.bf16.msra.mxu0 0
    %4080 = vmatprep.mubr.bf16.mxu0 0
    %4081 = vmatmul.mubr.bf16.gmra.mrb[0].mxu0 %v614
    %v4082 = vpop.f32.mrb[0].mxu0
    %v4083 = vadd.f32 0.0, %v4082
    %v4084 = vpop.f32.mrb[0].mxu0
    %v4085 = vadd.f32 0.0, %v4084
    %v4086 = vpop.f32.mrb[0].mxu0
    %v4087 = vpop.f32.mrb[0].mxu0
    %4088 = vdwg.mxu0
    %v4089 = vadd.f32 %v3833, %v4083
    %v4090 = vadd.f32 %v3835, %v4085
    %v4091 = vxor.u32 %v4089, 2147483648
    %v4092 = vmul.f32 %v4091, 1.442695
    %v4093 = vpow.pop %v4092
    %v4094 = vadd.f32 %v4093, 1.0
    %v4095 = vrcp.pop %v4094
    %v4096 = vmul.f32 1.0, %v4095
    %v4097 = vtanh.pop %v4090
    %v4098 = vxor.u32 %v4090, 2147483648
    %v4099 = vmul.f32 %v4098, 1.442695
    %v4100 = vpow.pop %v4099
    %v4101 = vadd.f32 %v4100, 1.0
    %v4102 = vrcp.pop %v4101
    %v4103 = vmul.f32 1.0, %v4102
    %v4104 = vmul.f32 %v4096, 0.0
    %v4105 = vmul.f32 %v4096, %v4097
    %4107 = vrot.lane.b32.xlu0 %v4105, 64
    %v4108 = vpop.permute.xlu0 %4107
    %v4110 = vadd.f32 %v4104, %v4108
    %v4111 = vtanh.pop %v4110
    %v4112 = vmul.f32 %v4103, %v4111
    %4114 = vrot.lane.b32.xlu0 %v4112, 64
    %v4115 = vpop.permute.xlu0 %4114
    %4117 = vst.msk [vmem:[#allocation3] sm:$0x3] %vm685, %v4115
    %v4126 = vunpack.c.l.b16 %v4000
    %v4127 = vunpack.c.h.b16 %v4000
    %v4128 = vunpack.c.l.b16 %v4001
    %v4129 = vunpack.c.h.b16 %v4001
    %v4130 = vunpack.c.l.b16 %v4002
    %v4131 = vunpack.c.h.b16 %v4002
    %v4132 = vunpack.c.l.b16 %v4003
    %v4133 = vunpack.c.h.b16 %v4003
    %v4134 = vunpack.c.l.b16 %v4004
    %v4135 = vunpack.c.h.b16 %v4004
    %v4136 = vunpack.c.l.b16 %v4005
    %v4137 = vunpack.c.h.b16 %v4005
    %v4138 = vunpack.c.l.b16 %v4006
    %v4139 = vunpack.c.h.b16 %v4006
    %v4140 = vunpack.c.l.b16 %v4007
    %v4141 = vunpack.c.h.b16 %v4007
    %v4142 = vpack.c.b16 %v4128, %v4126
    %v4143 = vpack.c.b16 %v4129, %v4127
    %v4144 = vpack.c.b16 %v4132, %v4130
    %v4145 = vpack.c.b16 %v4133, %v4131
    %v4146 = vpack.c.b16 %v4136, %v4134
    %v4147 = vpack.c.b16 %v4137, %v4135
    %v4148 = vpack.c.b16 %v4140, %v4138
    %v4149 = vpack.c.b16 %v4141, %v4139
    %4158 = vmatprep.subr.bf16.mxu0 %v4143
    %4159 = vmatpush1.bf16.msra.mxu0 %v4142
    %4160 = vmatprep.subr.bf16.mxu0 %v4145
    %4161 = vmatpush1.bf16.msra.mxu0 %v4144
    %4162 = vmatprep.subr.bf16.mxu0 %v4147
    %4163 = vmatpush1.bf16.msra.mxu0 %v4146
    %4164 = vmatprep.subr.bf16.mxu0 %v4149
    %4165 = vmatpush1.bf16.msra.mxu0 %v4148
    %4166 = vmatprep.subr.bf16.mxu0 0
    %4167 = vmatpush1.bf16.msra.mxu0 0
    %4168 = vmatprep.subr.bf16.mxu0 0
    %4169 = vmatpush1.bf16.msra.mxu0 0
    %4170 = vmatprep.subr.bf16.mxu0 0
    %4171 = vmatpush1.bf16.msra.mxu0 0
    %4172 = vmatprep.subr.bf16.mxu0 0
    %4173 = vmatpush1.bf16.msra.mxu0 0
    %4174 = vmatprep.subr.bf16.mxu0 0
    %4175 = vmatpush1.bf16.msra.mxu0 0
    %4176 = vmatprep.subr.bf16.mxu0 0
    %4177 = vmatpush1.bf16.msra.mxu0 0
    %4178 = vmatprep.subr.bf16.mxu0 0
    %4179 = vmatpush1.bf16.msra.mxu0 0
    %4180 = vmatprep.subr.bf16.mxu0 0
    %4181 = vmatpush1.bf16.msra.mxu0 0
    %4182 = vmatprep.subr.bf16.mxu0 0
    %4183 = vmatpush1.bf16.msra.mxu0 0
    %4184 = vmatprep.subr.bf16.mxu0 0
    %4185 = vmatpush1.bf16.msra.mxu0 0
    %4186 = vmatprep.subr.bf16.mxu0 0
    %4187 = vmatpush1.bf16.msra.mxu0 0
    %4188 = vmatprep.subr.bf16.mxu0 0
    %4189 = vmatpush1.bf16.msra.mxu0 0
    %4190 = vmatprep.mubr.bf16.mxu0 0
    %4191 = vmatmul.mubr.bf16.gmra.mrb[0].mxu0 %v614
    %v4192 = vpop.f32.mrb[0].mxu0
    %v4193 = vadd.f32 0.0, %v4192
    %v4194 = vpop.f32.mrb[0].mxu0
    %v4195 = vadd.f32 0.0, %v4194
    %v4196 = vpop.f32.mrb[0].mxu0
    %v4197 = vpop.f32.mrb[0].mxu0
    %4198 = vdwg.mxu0
    %v4201 = vrot.slane %v4193, 2
    %v4202 = vrot.slane %v4195, 2
    %v4205 = vadd.f32 %v3988, %v4201
    %v4206 = vadd.f32 %v3990, %v4202
    %v4207 = vxor.u32 %v4205, 2147483648
    %v4208 = vmul.f32 %v4207, 1.442695
    %v4209 = vpow.pop %v4208
    %v4210 = vadd.f32 %v4209, 1.0
    %v4211 = vrcp.pop %v4210
    %v4212 = vmul.f32 1.0, %v4211
    %v4213 = vtanh.pop %v4206
    %v4214 = vxor.u32 %v4206, 2147483648
    %v4215 = vmul.f32 %v4214, 1.442695
    %v4216 = vpow.pop %v4215
    %v4217 = vadd.f32 %v4216, 1.0
    %v4218 = vrcp.pop %v4217
    %v4219 = vmul.f32 1.0, %v4218
    %v4220 = vmul.f32 %v4212, 0.0
    %v4221 = vmul.f32 %v4212, %v4213
    %4223 = vrot.lane.b32.xlu0 %v4221, 64
    %v4224 = vpop.permute.xlu0 %4223
    %v4226 = vadd.f32 %v4220, %v4224
    %v4227 = vtanh.pop %v4226
    %v4228 = vmul.f32 %v4219, %v4227
    %4229 = vst.msk [vmem:[#allocation3 + $0x8] sm:$0xc0] %vm798, %v4228
    %v4230 = vpack.c.bf16 %v4112, %v4112
    %4232 = vrot.lane.b32.xlu0 %v4230, 64
    %v4233 = vpop.permute.xlu0 %4232
    %v4235 = vsel %vm612, %v4233, 0
    %4237 = vmatprep.subr.bf16.mxu0 %v4033
    %4238 = vmatpush1.bf16.msra.mxu0 %v4032
    %4239 = vmatprep.subr.bf16.mxu0 %v4035
    %4240 = vmatpush1.bf16.msra.mxu0 %v4034
    %4241 = vmatprep.subr.bf16.mxu0 %v4037
    %4242 = vmatpush1.bf16.msra.mxu0 %v4036
    %4243 = vmatprep.subr.bf16.mxu0 %v4039
    %4244 = vmatpush1.bf16.msra.mxu0 %v4038
    %4245 = vmatprep.subr.bf16.mxu0 0
    %4246 = vmatpush1.bf16.msra.mxu0 0
    %4247 = vmatprep.subr.bf16.mxu0 0
    %4248 = vmatpush1.bf16.msra.mxu0 0
    %4249 = vmatprep.subr.bf16.mxu0 0
    %4250 = vmatpush1.bf16.msra.mxu0 0
    %4251 = vmatprep.subr.bf16.mxu0 0
    %4252 = vmatpush1.bf16.msra.mxu0 0
    %4253 = vmatprep.subr.bf16.mxu0 0
    %4254 = vmatpush1.bf16.msra.mxu0 0
    %4255 = vmatprep.subr.bf16.mxu0 0
    %4256 = vmatpush1.bf16.msra.mxu0 0
    %4257 = vmatprep.subr.bf16.mxu0 0
    %4258 = vmatpush1.bf16.msra.mxu0 0
    %4259 = vmatprep.subr.bf16.mxu0 0
    %4260 = vmatpush1.bf16.msra.mxu0 0
    %4261 = vmatprep.subr.bf16.mxu0 0
    %4262 = vmatpush1.bf16.msra.mxu0 0
    %4263 = vmatprep.subr.bf16.mxu0 0
    %4264 = vmatpush1.bf16.msra.mxu0 0
    %4265 = vmatprep.subr.bf16.mxu0 0
    %4266 = vmatpush1.bf16.msra.mxu0 0
    %4267 = vmatprep.subr.bf16.mxu0 0
    %4268 = vmatpush1.bf16.msra.mxu0 0
    %4269 = vmatprep.mubr.bf16.mxu0 0
    %4270 = vmatmul.mubr.bf16.gmra.mrb[0].mxu0 %v4235
    %v4271 = vpop.f32.mrb[0].mxu0
    %v4272 = vadd.f32 0.0, %v4271
    %v4273 = vpop.f32.mrb[0].mxu0
    %v4274 = vadd.f32 0.0, %v4273
    %v4275 = vpop.f32.mrb[0].mxu0
    %v4276 = vpop.f32.mrb[0].mxu0
    %4277 = vdwg.mxu0
    %v4280 = vrot.slane %v4272, 6
    %v4281 = vrot.slane %v4274, 6
    %v4284 = vadd.f32 %v3833, %v4280
    %v4285 = vadd.f32 %v3835, %v4281
    %v4286 = vxor.u32 %v4284, 2147483648
    %v4287 = vmul.f32 %v4286, 1.442695
    %v4288 = vpow.pop %v4287
    %v4289 = vadd.f32 %v4288, 1.0
    %v4290 = vrcp.pop %v4289
    %v4291 = vmul.f32 1.0, %v4290
    %v4292 = vtanh.pop %v4285
    %v4293 = vxor.u32 %v4285, 2147483648
    %v4294 = vmul.f32 %v4293, 1.442695
    %v4295 = vpow.pop %v4294
    %v4296 = vadd.f32 %v4295, 1.0
    %v4297 = vrcp.pop %v4296
    %v4298 = vmul.f32 1.0, %v4297
    %v4300 = vrot.slane %v4110, 6
    %v4302 = vmul.f32 %v4291, %v4300
    %v4303 = vmul.f32 %v4291, %v4292
    %4305 = vrot.lane.b32.xlu0 %v4303, 64
    %v4306 = vpop.permute.xlu0 %4305
    %v4308 = vadd.f32 %v4302, %v4306
    %v4309 = vtanh.pop %v4308
    %v4310 = vmul.f32 %v4298, %v4309
    %4312 = vrot.lane.b32.xlu0 %v4310, 64
    %v4313 = vpop.permute.xlu0 %4312
    %4315 = vst.msk [vmem:[#allocation3] sm:$0xc] %vm885, %v4313
    %v4316 = vpack.c.bf16 %v4228, %v4228
    %v4318 = vrot.slane %v4316, 3
    %4319 = vrot.lane.b32.xlu0 %v4318, 64
    %v4320 = vpop.permute.xlu0 %4319
    %v4322 = vsel %vm612, %v4320, 0
    %4324 = vmatprep.subr.bf16.mxu0 %v4143
    %4325 = vmatpush1.bf16.msra.mxu0 %v4142
    %4326 = vmatprep.subr.bf16.mxu0 %v4145
    %4327 = vmatpush1.bf16.msra.mxu0 %v4144
    %4328 = vmatprep.subr.bf16.mxu0 %v4147
    %4329 = vmatpush1.bf16.msra.mxu0 %v4146
    %4330 = vmatprep.subr.bf16.mxu0 %v4149
    %4331 = vmatpush1.bf16.msra.mxu0 %v4148
    %4332 = vmatprep.subr.bf16.mxu0 0
    %4333 = vmatpush1.bf16.msra.mxu0 0
    %4334 = vmatprep.subr.bf16.mxu0 0
    %4335 = vmatpush1.bf16.msra.mxu0 0
    %4336 = vmatprep.subr.bf16.mxu0 0
    %4337 = vmatpush1.bf16.msra.mxu0 0
    %4338 = vmatprep.subr.bf16.mxu0 0
    %4339 = vmatpush1.bf16.msra.mxu0 0
    %4340 = vmatprep.subr.bf16.mxu0 0
    %4341 = vmatpush1.bf16.msra.mxu0 0
    %4342 = vmatprep.subr.bf16.mxu0 0
    %4343 = vmatpush1.bf16.msra.mxu0 0
    %4344 = vmatprep.subr.bf16.mxu0 0
    %4345 = vmatpush1.bf16.msra.mxu0 0
    %4346 = vmatprep.subr.bf16.mxu0 0
    %4347 = vmatpush1.bf16.msra.mxu0 0
    %4348 = vmatprep.subr.bf16.mxu0 0
    %4349 = vmatpush1.bf16.msra.mxu0 0
    %4350 = vmatprep.subr.bf16.mxu0 0
    %4351 = vmatpush1.bf16.msra.mxu0 0
    %4352 = vmatprep.subr.bf16.mxu0 0
    %4353 = vmatpush1.bf16.msra.mxu0 0
    %4354 = vmatprep.subr.bf16.mxu0 0
    %4355 = vmatpush1.bf16.msra.mxu0 0
    %4356 = vmatprep.mubr.bf16.mxu0 0
    %4357 = vmatmul.mubr.bf16.gmra.mrb[0].mxu0 %v4322
    %v4358 = vpop.f32.mrb[0].mxu0
    %v4359 = vadd.f32 0.0, %v4358
    %v4360 = vpop.f32.mrb[0].mxu0
    %v4361 = vadd.f32 0.0, %v4360
    %v4362 = vpop.f32.mrb[0].mxu0
    %v4363 = vpop.f32.mrb[0].mxu0
    %4364 = vdwg.mxu0
    %v4367 = vrot.slane %v4359, 4
    %v4368 = vrot.slane %v4361, 4
    %v4371 = vadd.f32 %v3988, %v4367
    %v4372 = vadd.f32 %v3990, %v4368
    %v4373 = vxor.u32 %v4371, 2147483648
    %v4374 = vmul.f32 %v4373, 1.442695
    %v4375 = vpow.pop %v4374
    %v4376 = vadd.f32 %v4375, 1.0
    %v4377 = vrcp.pop %v4376
    %v4378 = vmul.f32 1.0, %v4377
    %v4379 = vtanh.pop %v4372
    %v4380 = vxor.u32 %v4372, 2147483648
    %v4381 = vmul.f32 %v4380, 1.442695
    %v4382 = vpow.pop %v4381
    %v4383 = vadd.f32 %v4382, 1.0
    %v4384 = vrcp.pop %v4383
    %v4385 = vmul.f32 1.0, %v4384
    %v4387 = vrot.slane %v4226, 2
    %v4389 = vmul.f32 %v4378, %v4387
    %v4390 = vmul.f32 %v4378, %v4379
    %4392 = vrot.lane.b32.xlu0 %v4390, 64
    %v4393 = vpop.permute.xlu0 %4392
    %v4395 = vadd.f32 %v4389, %v4393
    %v4396 = vtanh.pop %v4395
    %v4397 = vmul.f32 %v4385, %v4396
    %4398 = vst.msk [vmem:[#allocation3 + $0x8] sm:$0x30] %vm969, %v4397
    %v4399 = vpack.c.bf16 %v4310, %v4310
    %v4401 = vrot.slane %v4399, 1
    %4402 = vrot.lane.b32.xlu0 %v4401, 64
    %v4403 = vpop.permute.xlu0 %4402
    %v4405 = vsel %vm612, %v4403, 0
    %4407 = vmatprep.subr.bf16.mxu0 %v4033
    %4408 = vmatpush1.bf16.msra.mxu0 %v4032
    %4409 = vmatprep.subr.bf16.mxu0 %v4035
    %4410 = vmatpush1.bf16.msra.mxu0 %v4034
    %4411 = vmatprep.subr.bf16.mxu0 %v4037
    %4412 = vmatpush1.bf16.msra.mxu0 %v4036
    %4413 = vmatprep.subr.bf16.mxu0 %v4039
    %4414 = vmatpush1.bf16.msra.mxu0 %v4038
    %4415 = vmatprep.subr.bf16.mxu0 0
    %4416 = vmatpush1.bf16.msra.mxu0 0
    %4417 = vmatprep.subr.bf16.mxu0 0
    %4418 = vmatpush1.bf16.msra.mxu0 0
    %4419 = vmatprep.subr.bf16.mxu0 0
    %4420 = vmatpush1.bf16.msra.mxu0 0
    %4421 = vmatprep.subr.bf16.mxu0 0
    %4422 = vmatpush1.bf16.msra.mxu0 0
    %4423 = vmatprep.subr.bf16.mxu0 0
    %4424 = vmatpush1.bf16.msra.mxu0 0
    %4425 = vmatprep.subr.bf16.mxu0 0
    %4426 = vmatpush1.bf16.msra.mxu0 0
    %4427 = vmatprep.subr.bf16.mxu0 0
    %4428 = vmatpush1.bf16.msra.mxu0 0
    %4429 = vmatprep.subr.bf16.mxu0 0
    %4430 = vmatpush1.bf16.msra.mxu0 0
    %4431 = vmatprep.subr.bf16.mxu0 0
    %4432 = vmatpush1.bf16.msra.mxu0 0
    %4433 = vmatprep.subr.bf16.mxu0 0
    %4434 = vmatpush1.bf16.msra.mxu0 0
    %4435 = vmatprep.subr.bf16.mxu0 0
    %4436 = vmatpush1.bf16.msra.mxu0 0
    %4437 = vmatprep.subr.bf16.mxu0 0
    %4438 = vmatpush1.bf16.msra.mxu0 0
    %4439 = vmatprep.mubr.bf16.mxu0 0
    %4440 = vmatmul.mubr.bf16.gmra.mrb[0].mxu0 %v4405
    %v4441 = vpop.f32.mrb[0].mxu0
    %v4442 = vadd.f32 0.0, %v4441
    %v4443 = vpop.f32.mrb[0].mxu0
    %v4444 = vadd.f32 0.0, %v4443
    %v4445 = vpop.f32.mrb[0].mxu0
    %v4446 = vpop.f32.mrb[0].mxu0
    %4447 = vdwg.mxu0
    %v4450 = vrot.slane %v4442, 4
    %v4451 = vrot.slane %v4444, 4
    %v4454 = vadd.f32 %v3833, %v4450
    %v4455 = vadd.f32 %v3835, %v4451
    %v4456 = vxor.u32 %v4454, 2147483648
    %v4457 = vmul.f32 %v4456, 1.442695
    %v4458 = vpow.pop %v4457
    %v4459 = vadd.f32 %v4458, 1.0
    %v4460 = vrcp.pop %v4459
    %v4461 = vmul.f32 1.0, %v4460
    %v4462 = vtanh.pop %v4455
    %v4463 = vxor.u32 %v4455, 2147483648
    %v4464 = vmul.f32 %v4463, 1.442695
    %v4465 = vpow.pop %v4464
    %v4466 = vadd.f32 %v4465, 1.0
    %v4467 = vrcp.pop %v4466
    %v4468 = vmul.f32 1.0, %v4467
    %v4470 = vrot.slane %v4308, 6
    %v4472 = vmul.f32 %v4461, %v4470
    %v4473 = vmul.f32 %v4461, %v4462
    %4475 = vrot.lane.b32.xlu0 %v4473, 64
    %v4476 = vpop.permute.xlu0 %4475
    %v4478 = vadd.f32 %v4472, %v4476
    %v4479 = vtanh.pop %v4478
    %v4480 = vmul.f32 %v4468, %v4479
    %4482 = vrot.lane.b32.xlu0 %v4480, 64
    %v4483 = vpop.permute.xlu0 %4482
    %4485 = vst.msk [vmem:[#allocation3] sm:$0x30] %vm1057, %v4483
    %v4486 = vpack.c.bf16 %v4397, %v4397
    %v4488 = vrot.slane %v4486, 2
    %4489 = vrot.lane.b32.xlu0 %v4488, 64
    %v4490 = vpop.permute.xlu0 %4489
    %v4492 = vsel %vm612, %v4490, 0
    %4494 = vmatprep.subr.bf16.mxu0 %v4143
    %4495 = vmatpush1.bf16.msra.mxu0 %v4142
    %4496 = vmatprep.subr.bf16.mxu0 %v4145
    %4497 = vmatpush1.bf16.msra.mxu0 %v4144
    %4498 = vmatprep.subr.bf16.mxu0 %v4147
    %4499 = vmatpush1.bf16.msra.mxu0 %v4146
    %4500 = vmatprep.subr.bf16.mxu0 %v4149
    %4501 = vmatpush1.bf16.msra.mxu0 %v4148
    %4502 = vmatprep.subr.bf16.mxu0 0
    %4503 = vmatpush1.bf16.msra.mxu0 0
    %4504 = vmatprep.subr.bf16.mxu0 0
    %4505 = vmatpush1.bf16.msra.mxu0 0
    %4506 = vmatprep.subr.bf16.mxu0 0
    %4507 = vmatpush1.bf16.msra.mxu0 0
    %4508 = vmatprep.subr.bf16.mxu0 0
    %4509 = vmatpush1.bf16.msra.mxu0 0
    %4510 = vmatprep.subr.bf16.mxu0 0
    %4511 = vmatpush1.bf16.msra.mxu0 0
    %4512 = vmatprep.subr.bf16.mxu0 0
    %4513 = vmatpush1.bf16.msra.mxu0 0
    %4514 = vmatprep.subr.bf16.mxu0 0
    %4515 = vmatpush1.bf16.msra.mxu0 0
    %4516 = vmatprep.subr.bf16.mxu0 0
    %4517 = vmatpush1.bf16.msra.mxu0 0
    %4518 = vmatprep.subr.bf16.mxu0 0
    %4519 = vmatpush1.bf16.msra.mxu0 0
    %4520 = vmatprep.subr.bf16.mxu0 0
    %4521 = vmatpush1.bf16.msra.mxu0 0
    %4522 = vmatprep.subr.bf16.mxu0 0
    %4523 = vmatpush1.bf16.msra.mxu0 0
    %4524 = vmatprep.subr.bf16.mxu0 0
    %4525 = vmatpush1.bf16.msra.mxu0 0
    %4526 = vmatprep.mubr.bf16.mxu0 0
    %4527 = vmatmul.mubr.bf16.gmra.mrb[0].mxu0 %v4492
    %v4528 = vpop.f32.mrb[0].mxu0
    %v4529 = vadd.f32 0.0, %v4528
    %v4530 = vpop.f32.mrb[0].mxu0
    %v4531 = vadd.f32 0.0, %v4530
    %v4532 = vpop.f32.mrb[0].mxu0
    %v4533 = vpop.f32.mrb[0].mxu0
    %4534 = vdwg.mxu0
    %v4537 = vrot.slane %v4529, 6
    %v4538 = vrot.slane %v4531, 6
    %v4541 = vadd.f32 %v3988, %v4537
    %v4542 = vadd.f32 %v3990, %v4538
    %v4543 = vxor.u32 %v4541, 2147483648
    %v4544 = vmul.f32 %v4543, 1.442695
    %v4545 = vpow.pop %v4544
    %v4546 = vadd.f32 %v4545, 1.0
    %v4547 = vrcp.pop %v4546
    %v4548 = vmul.f32 1.0, %v4547
    %v4549 = vtanh.pop %v4542
    %v4550 = vxor.u32 %v4542, 2147483648
    %v4551 = vmul.f32 %v4550, 1.442695
    %v4552 = vpow.pop %v4551
    %v4553 = vadd.f32 %v4552, 1.0
    %v4554 = vrcp.pop %v4553
    %v4555 = vmul.f32 1.0, %v4554
    %v4557 = vrot.slane %v4395, 2
    %v4559 = vmul.f32 %v4548, %v4557
    %v4560 = vmul.f32 %v4548, %v4549
    %4562 = vrot.lane.b32.xlu0 %v4560, 64
    %v4563 = vpop.permute.xlu0 %4562
    %v4565 = vadd.f32 %v4559, %v4563
    %v4566 = vtanh.pop %v4565
    %v4567 = vmul.f32 %v4555, %v4566
    %4568 = vst.msk [vmem:[#allocation3 + $0x8] sm:$0xc] %vm1141, %v4567
    %v4569 = vpack.c.bf16 %v4480, %v4480
    %v4571 = vrot.slane %v4569, 2
    %4572 = vrot.lane.b32.xlu0 %v4571, 64
    %v4573 = vpop.permute.xlu0 %4572
    %v4575 = vsel %vm612, %v4573, 0
    %4577 = vmatprep.subr.bf16.mxu0 %v4033
    %4578 = vmatpush1.bf16.msra.mxu0 %v4032
    %4579 = vmatprep.subr.bf16.mxu0 %v4035
    %4580 = vmatpush1.bf16.msra.mxu0 %v4034
    %4581 = vmatprep.subr.bf16.mxu0 %v4037
    %4582 = vmatpush1.bf16.msra.mxu0 %v4036
    %4583 = vmatprep.subr.bf16.mxu0 %v4039
    %4584 = vmatpush1.bf16.msra.mxu0 %v4038
    %4585 = vmatprep.subr.bf16.mxu0 0
    %4586 = vmatpush1.bf16.msra.mxu0 0
    %4587 = vmatprep.subr.bf16.mxu0 0
    %4588 = vmatpush1.bf16.msra.mxu0 0
    %4589 = vmatprep.subr.bf16.mxu0 0
    %4590 = vmatpush1.bf16.msra.mxu0 0
    %4591 = vmatprep.subr.bf16.mxu0 0
    %4592 = vmatpush1.bf16.msra.mxu0 0
    %4593 = vmatprep.subr.bf16.mxu0 0
    %4594 = vmatpush1.bf16.msra.mxu0 0
    %4595 = vmatprep.subr.bf16.mxu0 0
    %4596 = vmatpush1.bf16.msra.mxu0 0
    %4597 = vmatprep.subr.bf16.mxu0 0
    %4598 = vmatpush1.bf16.msra.mxu0 0
    %4599 = vmatprep.subr.bf16.mxu0 0
    %4600 = vmatpush1.bf16.msra.mxu0 0
    %4601 = vmatprep.subr.bf16.mxu0 0
    %4602 = vmatpush1.bf16.msra.mxu0 0
    %4603 = vmatprep.subr.bf16.mxu0 0
    %4604 = vmatpush1.bf16.msra.mxu0 0
    %4605 = vmatprep.subr.bf16.mxu0 0
    %4606 = vmatpush1.bf16.msra.mxu0 0
    %4607 = vmatprep.subr.bf16.mxu0 0
    %4608 = vmatpush1.bf16.msra.mxu0 0
    %4609 = vmatprep.mubr.bf16.mxu0 0
    %4610 = vmatmul.mubr.bf16.gmra.mrb[0].mxu0 %v4575
    %v4611 = vpop.f32.mrb[0].mxu0
    %v4612 = vadd.f32 0.0, %v4611
    %v4613 = vpop.f32.mrb[0].mxu0
    %v4614 = vadd.f32 0.0, %v4613
    %v4615 = vpop.f32.mrb[0].mxu0
    %v4616 = vpop.f32.mrb[0].mxu0
    %4617 = vdwg.mxu0
    %v4620 = vrot.slane %v4612, 2
    %v4621 = vrot.slane %v4614, 2
    %v4624 = vadd.f32 %v3833, %v4620
    %v4625 = vadd.f32 %v3835, %v4621
    %v4626 = vxor.u32 %v4624, 2147483648
    %v4627 = vmul.f32 %v4626, 1.442695
    %v4628 = vpow.pop %v4627
    %v4629 = vadd.f32 %v4628, 1.0
    %v4630 = vrcp.pop %v4629
    %v4631 = vmul.f32 1.0, %v4630
    %v4632 = vtanh.pop %v4625
    %v4633 = vxor.u32 %v4625, 2147483648
    %v4634 = vmul.f32 %v4633, 1.442695
    %v4635 = vpow.pop %v4634
    %v4636 = vadd.f32 %v4635, 1.0
    %v4637 = vrcp.pop %v4636
    %v4638 = vmul.f32 1.0, %v4637
    %v4640 = vrot.slane %v4478, 6
    %v4642 = vmul.f32 %v4631, %v4640
    %v4643 = vmul.f32 %v4631, %v4632
    %4645 = vrot.lane.b32.xlu0 %v4643, 64
    %v4646 = vpop.permute.xlu0 %4645
    %v4648 = vadd.f32 %v4642, %v4646
    %v4649 = vtanh.pop %v4648
    %v4650 = vmul.f32 %v4638, %v4649
    %4652 = vrot.lane.b32.xlu0 %v4650, 64
    %v4653 = vpop.permute.xlu0 %4652
    %4655 = vst.msk [vmem:[#allocation3] sm:$0xc0] %vm1229, %v4653
    %v4656 = vpack.c.bf16 %v4567, %v4567
    %v4658 = vrot.slane %v4656, 1
    %4659 = vrot.lane.b32.xlu0 %v4658, 64
    %v4660 = vpop.permute.xlu0 %4659
    %v4662 = vsel %vm612, %v4660, 0
    %4664 = vmatprep.subr.bf16.mxu0 %v4143
    %4665 = vmatpush1.bf16.msra.mxu0 %v4142
    %4666 = vmatprep.subr.bf16.mxu0 %v4145
    %4667 = vmatpush1.bf16.msra.mxu0 %v4144
    %4668 = vmatprep.subr.bf16.mxu0 %v4147
    %4669 = vmatpush1.bf16.msra.mxu0 %v4146
    %4670 = vmatprep.subr.bf16.mxu0 %v4149
    %4671 = vmatpush1.bf16.msra.mxu0 %v4148
    %4672 = vmatprep.subr.bf16.mxu0 0
    %4673 = vmatpush1.bf16.msra.mxu0 0
    %4674 = vmatprep.subr.bf16.mxu0 0
    %4675 = vmatpush1.bf16.msra.mxu0 0
    %4676 = vmatprep.subr.bf16.mxu0 0
    %4677 = vmatpush1.bf16.msra.mxu0 0
    %4678 = vmatprep.subr.bf16.mxu0 0
    %4679 = vmatpush1.bf16.msra.mxu0 0
    %4680 = vmatprep.subr.bf16.mxu0 0
    %4681 = vmatpush1.bf16.msra.mxu0 0
    %4682 = vmatprep.subr.bf16.mxu0 0
    %4683 = vmatpush1.bf16.msra.mxu0 0
    %4684 = vmatprep.subr.bf16.mxu0 0
    %4685 = vmatpush1.bf16.msra.mxu0 0
    %4686 = vmatprep.subr.bf16.mxu0 0
    %4687 = vmatpush1.bf16.msra.mxu0 0
    %4688 = vmatprep.subr.bf16.mxu0 0
    %4689 = vmatpush1.bf16.msra.mxu0 0
    %4690 = vmatprep.subr.bf16.mxu0 0
    %4691 = vmatpush1.bf16.msra.mxu0 0
    %4692 = vmatprep.subr.bf16.mxu0 0
    %4693 = vmatpush1.bf16.msra.mxu0 0
    %4694 = vmatprep.subr.bf16.mxu0 0
    %4695 = vmatpush1.bf16.msra.mxu0 0
    %4696 = vmatprep.mubr.bf16.mxu0 0
    %4697 = vmatmul.mubr.bf16.gmra.mrb[0].mxu0 %v4662
    %v4698 = vpop.f32.mrb[0].mxu0
    %v4699 = vadd.f32 0.0, %v4698
    %v4700 = vpop.f32.mrb[0].mxu0
    %v4701 = vadd.f32 0.0, %v4700
    %v4702 = vpop.f32.mrb[0].mxu0
    %v4703 = vpop.f32.mrb[0].mxu0
    %4704 = vdwg.mxu0
    %v4705 = vadd.f32 %v3988, %v4699
    %v4706 = vadd.f32 %v3990, %v4701
    %v4707 = vxor.u32 %v4705, 2147483648
    %v4708 = vmul.f32 %v4707, 1.442695
    %v4709 = vpow.pop %v4708
    %v4710 = vadd.f32 %v4709, 1.0
    %v4711 = vrcp.pop %v4710
    %v4712 = vmul.f32 1.0, %v4711
    %v4713 = vtanh.pop %v4706
    %v4714 = vxor.u32 %v4706, 2147483648
    %v4715 = vmul.f32 %v4714, 1.442695
    %v4716 = vpow.pop %v4715
    %v4717 = vadd.f32 %v4716, 1.0
    %v4718 = vrcp.pop %v4717
    %v4719 = vmul.f32 1.0, %v4718
    %v4721 = vrot.slane %v4565, 2
    %v4723 = vmul.f32 %v4712, %v4721
    %v4724 = vmul.f32 %v4712, %v4713
    %4726 = vrot.lane.b32.xlu0 %v4724, 64
    %v4727 = vpop.permute.xlu0 %4726
    %v4729 = vadd.f32 %v4723, %v4727
    %v4730 = vtanh.pop %v4729
    %v4731 = vmul.f32 %v4719, %v4730
    %4732 = vst.msk [vmem:[#allocation3 + $0x8] sm:$0x3] %vm1307, %v4731
    %v4733 = vpack.c.bf16 %v4650, %v4650
    %v4735 = vrot.slane %v4733, 3
    %4736 = vrot.lane.b32.xlu0 %v4735, 64
    %v4737 = vpop.permute.xlu0 %4736
    %v4739 = vsel %vm612, %v4737, 0
    %4741 = vmatprep.subr.bf16.mxu0 %v4033
    %4742 = vmatpush1.bf16.msra.mxu0 %v4032
    %4743 = vmatprep.subr.bf16.mxu0 %v4035
    %4744 = vmatpush1.bf16.msra.mxu0 %v4034
    %4745 = vmatprep.subr.bf16.mxu0 %v4037
    %4746 = vmatpush1.bf16.msra.mxu0 %v4036
    %4747 = vmatprep.subr.bf16.mxu0 %v4039
    %4748 = vmatpush1.bf16.msra.mxu0 %v4038
    %4749 = vmatprep.subr.bf16.mxu0 0
    %4750 = vmatpush1.bf16.msra.mxu0 0
    %4751 = vmatprep.subr.bf16.mxu0 0
    %4752 = vmatpush1.bf16.msra.mxu0 0
    %4753 = vmatprep.subr.bf16.mxu0 0
    %4754 = vmatpush1.bf16.msra.mxu0 0
    %4755 = vmatprep.subr.bf16.mxu0 0
    %4756 = vmatpush1.bf16.msra.mxu0 0
    %4757 = vmatprep.subr.bf16.mxu0 0
    %4758 = vmatpush1.bf16.msra.mxu0 0
    %4759 = vmatprep.subr.bf16.mxu0 0
    %4760 = vmatpush1.bf16.msra.mxu0 0
    %4761 = vmatprep.subr.bf16.mxu0 0
    %4762 = vmatpush1.bf16.msra.mxu0 0
    %4763 = vmatprep.subr.bf16.mxu0 0
    %4764 = vmatpush1.bf16.msra.mxu0 0
    %4765 = vmatprep.subr.bf16.mxu0 0
    %4766 = vmatpush1.bf16.msra.mxu0 0
    %4767 = vmatprep.subr.bf16.mxu0 0
    %4768 = vmatpush1.bf16.msra.mxu0 0
    %4769 = vmatprep.subr.bf16.mxu0 0
    %4770 = vmatpush1.bf16.msra.mxu0 0
    %4771 = vmatprep.subr.bf16.mxu0 0
    %4772 = vmatpush1.bf16.msra.mxu0 0
    %4773 = vmatprep.mubr.bf16.mxu0 0
    %4774 = vmatmul.mubr.bf16.gmra.mrb[0].mxu0 %v4739
    %v4775 = vpop.f32.mrb[0].mxu0
    %v4776 = vadd.f32 0.0, %v4775
    %v4777 = vpop.f32.mrb[0].mxu0
    %v4778 = vadd.f32 0.0, %v4777
    %v4779 = vpop.f32.mrb[0].mxu0
    %v4780 = vpop.f32.mrb[0].mxu0
    %4781 = vdwg.mxu0
    %v4782 = vadd.f32 %v3837, %v4776
    %v4783 = vadd.f32 %v3839, %v4778
    %v4784 = vxor.u32 %v4782, 2147483648
    %v4785 = vmul.f32 %v4784, 1.442695
    %v4786 = vpow.pop %v4785
    %v4787 = vadd.f32 %v4786, 1.0
    %v4788 = vrcp.pop %v4787
    %v4789 = vmul.f32 1.0, %v4788
    %v4790 = vtanh.pop %v4783
    %v4791 = vxor.u32 %v4783, 2147483648
    %v4792 = vmul.f32 %v4791, 1.442695
    %v4793 = vpow.pop %v4792
    %v4794 = vadd.f32 %v4793, 1.0
    %v4795 = vrcp.pop %v4794
    %v4796 = vmul.f32 1.0, %v4795
    %v4798 = vrot.slane %v4648, 6
    %v4800 = vmul.f32 %v4789, %v4798
    %v4801 = vmul.f32 %v4789, %v4790
    %4803 = vrot.lane.b32.xlu0 %v4801, 64
    %v4804 = vpop.permute.xlu0 %4803
    %v4806 = vadd.f32 %v4800, %v4804
    %v4807 = vtanh.pop %v4806
    %v4808 = vmul.f32 %v4796, %v4807
    %4810 = vrot.lane.b32.xlu0 %v4808, 64
    %v4811 = vpop.permute.xlu0 %4810
    %4813 = vst.msk [vmem:[#allocation3 + $0x8] sm:$0x3] %vm685, %v4811
    %v4814 = vpack.c.bf16 %v4731, %v4731
    %4816 = vrot.lane.b32.xlu0 %v4814, 64
    %v4817 = vpop.permute.xlu0 %4816
    %v4819 = vsel %vm612, %v4817, 0
    %4821 = vmatprep.subr.bf16.mxu0 %v4143
    %4822 = vmatpush1.bf16.msra.mxu0 %v4142
    %4823 = vmatprep.subr.bf16.mxu0 %v4145
    %4824 = vmatpush1.bf16.msra.mxu0 %v4144
    %4825 = vmatprep.subr.bf16.mxu0 %v4147
    %4826 = vmatpush1.bf16.msra.mxu0 %v4146
    %4827 = vmatprep.subr.bf16.mxu0 %v4149
    %4828 = vmatpush1.bf16.msra.mxu0 %v4148
    %4829 = vmatprep.subr.bf16.mxu0 0
    %4830 = vmatpush1.bf16.msra.mxu0 0
    %4831 = vmatprep.subr.bf16.mxu0 0
    %4832 = vmatpush1.bf16.msra.mxu0 0
    %4833 = vmatprep.subr.bf16.mxu0 0
    %4834 = vmatpush1.bf16.msra.mxu0 0
    %4835 = vmatprep.subr.bf16.mxu0 0
    %4836 = vmatpush1.bf16.msra.mxu0 0
    %4837 = vmatprep.subr.bf16.mxu0 0
    %4838 = vmatpush1.bf16.msra.mxu0 0
    %4839 = vmatprep.subr.bf16.mxu0 0
    %4840 = vmatpush1.bf16.msra.mxu0 0
    %4841 = vmatprep.subr.bf16.mxu0 0
    %4842 = vmatpush1.bf16.msra.mxu0 0
    %4843 = vmatprep.subr.bf16.mxu0 0
    %4844 = vmatpush1.bf16.msra.mxu0 0
    %4845 = vmatprep.subr.bf16.mxu0 0
    %4846 = vmatpush1.bf16.msra.mxu0 0
    %4847 = vmatprep.subr.bf16.mxu0 0
    %4848 = vmatpush1.bf16.msra.mxu0 0
    %4849 = vmatprep.subr.bf16.mxu0 0
    %4850 = vmatpush1.bf16.msra.mxu0 0
    %4851 = vmatprep.subr.bf16.mxu0 0
    %4852 = vmatpush1.bf16.msra.mxu0 0
    %4853 = vmatprep.mubr.bf16.mxu0 0
    %4854 = vmatmul.mubr.bf16.gmra.mrb[0].mxu0 %v4819
    %v4855 = vpop.f32.mrb[0].mxu0
    %v4856 = vadd.f32 0.0, %v4855
    %v4857 = vpop.f32.mrb[0].mxu0
    %v4858 = vadd.f32 0.0, %v4857
    %v4859 = vpop.f32.mrb[0].mxu0
    %v4860 = vpop.f32.mrb[0].mxu0
    %4861 = vdwg.mxu0
    %v4864 = vrot.slane %v4856, 2
    %v4865 = vrot.slane %v4858, 2
    %v4868 = vadd.f32 %v3984, %v4864
    %v4869 = vadd.f32 %v3986, %v4865
    %v4870 = vxor.u32 %v4868, 2147483648
    %v4871 = vmul.f32 %v4870, 1.442695
    %v4872 = vpow.pop %v4871
    %v4873 = vadd.f32 %v4872, 1.0
    %v4874 = vrcp.pop %v4873
    %v4875 = vmul.f32 1.0, %v4874
    %v4876 = vtanh.pop %v4869
    %v4877 = vxor.u32 %v4869, 2147483648
    %v4878 = vmul.f32 %v4877, 1.442695
    %v4879 = vpow.pop %v4878
    %v4880 = vadd.f32 %v4879, 1.0
    %v4881 = vrcp.pop %v4880
    %v4882 = vmul.f32 1.0, %v4881
    %v4884 = vrot.slane %v4729, 2
    %v4886 = vmul.f32 %v4875, %v4884
    %v4887 = vmul.f32 %v4875, %v4876
    %4889 = vrot.lane.b32.xlu0 %v4887, 64
    %v4890 = vpop.permute.xlu0 %4889
    %v4892 = vadd.f32 %v4886, %v4890
    %v4893 = vtanh.pop %v4892
    %v4894 = vmul.f32 %v4882, %v4893
    %4895 = vst.msk [vmem:[#allocation3] sm:$0xc0] %vm798, %v4894
    %v4896 = vpack.c.bf16 %v4808, %v4808
    %4898 = vrot.lane.b32.xlu0 %v4896, 64
    %v4899 = vpop.permute.xlu0 %4898
    %v4901 = vsel %vm612, %v4899, 0
    %4903 = vmatprep.subr.bf16.mxu0 %v4033
    %4904 = vmatpush1.bf16.msra.mxu0 %v4032
    %4905 = vmatprep.subr.bf16.mxu0 %v4035
    %4906 = vmatpush1.bf16.msra.mxu0 %v4034
    %4907 = vmatprep.subr.bf16.mxu0 %v4037
    %4908 = vmatpush1.bf16.msra.mxu0 %v4036
    %4909 = vmatprep.subr.bf16.mxu0 %v4039
    %4910 = vmatpush1.bf16.msra.mxu0 %v4038
    %4911 = vmatprep.subr.bf16.mxu0 0
    %4912 = vmatpush1.bf16.msra.mxu0 0
    %4913 = vmatprep.subr.bf16.mxu0 0
    %4914 = vmatpush1.bf16.msra.mxu0 0
    %4915 = vmatprep.subr.bf16.mxu0 0
    %4916 = vmatpush1.bf16.msra.mxu0 0
    %4917 = vmatprep.subr.bf16.mxu0 0
    %4918 = vmatpush1.bf16.msra.mxu0 0
    %4919 = vmatprep.subr.bf16.mxu0 0
    %4920 = vmatpush1.bf16.msra.mxu0 0
    %4921 = vmatprep.subr.bf16.mxu0 0
    %4922 = vmatpush1.bf16.msra.mxu0 0
    %4923 = vmatprep.subr.bf16.mxu0 0
    %4924 = vmatpush1.bf16.msra.mxu0 0
    %4925 = vmatprep.subr.bf16.mxu0 0
    %4926 = vmatpush1.bf16.msra.mxu0 0
    %4927 = vmatprep.subr.bf16.mxu0 0
    %4928 = vmatpush1.bf16.msra.mxu0 0
    %4929 = vmatprep.subr.bf16.mxu0 0
    %4930 = vmatpush1.bf16.msra.mxu0 0
    %4931 = vmatprep.subr.bf16.mxu0 0
    %4932 = vmatpush1.bf16.msra.mxu0 0
    %4933 = vmatprep.subr.bf16.mxu0 0
    %4934 = vmatpush1.bf16.msra.mxu0 0
    %4935 = vmatprep.mubr.bf16.mxu0 0
    %4936 = vmatmul.mubr.bf16.gmra.mrb[0].mxu0 %v4901
    %v4937 = vpop.f32.mrb[0].mxu0
    %v4938 = vadd.f32 0.0, %v4937
    %v4939 = vpop.f32.mrb[0].mxu0
    %v4940 = vadd.f32 0.0, %v4939
    %v4941 = vpop.f32.mrb[0].mxu0
    %v4942 = vpop.f32.mrb[0].mxu0
    %4943 = vdwg.mxu0
    %v4946 = vrot.slane %v4938, 6
    %v4947 = vrot.slane %v4940, 6
    %v4950 = vadd.f32 %v3837, %v4946
    %v4951 = vadd.f32 %v3839, %v4947
    %v4952 = vxor.u32 %v4950, 2147483648
    %v4953 = vmul.f32 %v4952, 1.442695
    %v4954 = vpow.pop %v4953
    %v4955 = vadd.f32 %v4954, 1.0
    %v4956 = vrcp.pop %v4955
    %v4957 = vmul.f32 1.0, %v4956
    %v4958 = vtanh.pop %v4951
    %v4959 = vxor.u32 %v4951, 2147483648
    %v4960 = vmul.f32 %v4959, 1.442695
    %v4961 = vpow.pop %v4960
    %v4962 = vadd.f32 %v4961, 1.0
    %v4963 = vrcp.pop %v4962
    %v4964 = vmul.f32 1.0, %v4963
    %v4966 = vrot.slane %v4806, 6
    %v4968 = vmul.f32 %v4957, %v4966
    %v4969 = vmul.f32 %v4957, %v4958
    %4971 = vrot.lane.b32.xlu0 %v4969, 64
    %v4972 = vpop.permute.xlu0 %4971
    %v4974 = vadd.f32 %v4968, %v4972
    %v4975 = vtanh.pop %v4974
    %v4976 = vmul.f32 %v4964, %v4975
    %4978 = vrot.lane.b32.xlu0 %v4976, 64
    %v4979 = vpop.permute.xlu0 %4978
    %4981 = vst.msk [vmem:[#allocation3 + $0x8] sm:$0xc] %vm885, %v4979
    %v4982 = vpack.c.bf16 %v4894, %v4894
    %v4984 = vrot.slane %v4982, 3
    %4985 = vrot.lane.b32.xlu0 %v4984, 64
    %v4986 = vpop.permute.xlu0 %4985
    %v4988 = vsel %vm612, %v4986, 0
    %4990 = vmatprep.subr.bf16.mxu0 %v4143
    %4991 = vmatpush1.bf16.msra.mxu0 %v4142
    %4992 = vmatprep.subr.bf16.mxu0 %v4145
    %4993 = vmatpush1.bf16.msra.mxu0 %v4144
    %4994 = vmatprep.subr.bf16.mxu0 %v4147
    %4995 = vmatpush1.bf16.msra.mxu0 %v4146
    %4996 = vmatprep.subr.bf16.mxu0 %v4149
    %4997 = vmatpush1.bf16.msra.mxu0 %v4148
    %4998 = vmatprep.subr.bf16.mxu0 0
    %4999 = vmatpush1.bf16.msra.mxu0 0
    %5000 = vmatprep.subr.bf16.mxu0 0
    %5001 = vmatpush1.bf16.msra.mxu0 0
    %5002 = vmatprep.subr.bf16.mxu0 0
    %5003 = vmatpush1.bf16.msra.mxu0 0
    %5004 = vmatprep.subr.bf16.mxu0 0
    %5005 = vmatpush1.bf16.msra.mxu0 0
    %5006 = vmatprep.subr.bf16.mxu0 0
    %5007 = vmatpush1.bf16.msra.mxu0 0
    %5008 = vmatprep.subr.bf16.mxu0 0
    %5009 = vmatpush1.bf16.msra.mxu0 0
    %5010 = vmatprep.subr.bf16.mxu0 0
    %5011 = vmatpush1.bf16.msra.mxu0 0
    %5012 = vmatprep.subr.bf16.mxu0 0
    %5013 = vmatpush1.bf16.msra.mxu0 0
    %5014 = vmatprep.subr.bf16.mxu0 0
    %5015 = vmatpush1.bf16.msra.mxu0 0
    %5016 = vmatprep.subr.bf16.mxu0 0
    %5017 = vmatpush1.bf16.msra.mxu0 0
    %5018 = vmatprep.subr.bf16.mxu0 0
    %5019 = vmatpush1.bf16.msra.mxu0 0
    %5020 = vmatprep.subr.bf16.mxu0 0
    %5021 = vmatpush1.bf16.msra.mxu0 0
    %5022 = vmatprep.mubr.bf16.mxu0 0
    %5023 = vmatmul.mubr.bf16.gmra.mrb[0].mxu0 %v4988
    %v5024 = vpop.f32.mrb[0].mxu0
    %v5025 = vadd.f32 0.0, %v5024
    %v5026 = vpop.f32.mrb[0].mxu0
    %v5027 = vadd.f32 0.0, %v5026
    %v5028 = vpop.f32.mrb[0].mxu0
    %v5029 = vpop.f32.mrb[0].mxu0
    %5030 = vdwg.mxu0
    %v5033 = vrot.slane %v5025, 4
    %v5034 = vrot.slane %v5027, 4
    %v5037 = vadd.f32 %v3984, %v5033
    %v5038 = vadd.f32 %v3986, %v5034
    %v5039 = vxor.u32 %v5037, 2147483648
    %v5040 = vmul.f32 %v5039, 1.442695
    %v5041 = vpow.pop %v5040
    %v5042 = vadd.f32 %v5041, 1.0
    %v5043 = vrcp.pop %v5042
    %v5044 = vmul.f32 1.0, %v5043
    %v5045 = vtanh.pop %v5038
    %v5046 = vxor.u32 %v5038, 2147483648
    %v5047 = vmul.f32 %v5046, 1.442695
    %v5048 = vpow.pop %v5047
    %v5049 = vadd.f32 %v5048, 1.0
    %v5050 = vrcp.pop %v5049
    %v5051 = vmul.f32 1.0, %v5050
    %v5053 = vrot.slane %v4892, 2
    %v5055 = vmul.f32 %v5044, %v5053
    %v5056 = vmul.f32 %v5044, %v5045
    %5058 = vrot.lane.b32.xlu0 %v5056, 64
    %v5059 = vpop.permute.xlu0 %5058
    %v5061 = vadd.f32 %v5055, %v5059
    %v5062 = vtanh.pop %v5061
    %v5063 = vmul.f32 %v5051, %v5062
    %5064 = vst.msk [vmem:[#allocation3] sm:$0x30] %vm969, %v5063
    %v5065 = vpack.c.bf16 %v4976, %v4976
    %v5067 = vrot.slane %v5065, 1
    %5068 = vrot.lane.b32.xlu0 %v5067, 64
    %v5069 = vpop.permute.xlu0 %5068
    %v5071 = vsel %vm612, %v5069, 0
    %5073 = vmatprep.subr.bf16.mxu0 %v4033
    %5074 = vmatpush1.bf16.msra.mxu0 %v4032
    %5075 = vmatprep.subr.bf16.mxu0 %v4035
    %5076 = vmatpush1.bf16.msra.mxu0 %v4034
    %5077 = vmatprep.subr.bf16.mxu0 %v4037
    %5078 = vmatpush1.bf16.msra.mxu0 %v4036
    %5079 = vmatprep.subr.bf16.mxu0 %v4039
    %5080 = vmatpush1.bf16.msra.mxu0 %v4038
    %5081 = vmatprep.subr.bf16.mxu0 0
    %5082 = vmatpush1.bf16.msra.mxu0 0
    %5083 = vmatprep.subr.bf16.mxu0 0
    %5084 = vmatpush1.bf16.msra.mxu0 0
    %5085 = vmatprep.subr.bf16.mxu0 0
    %5086 = vmatpush1.bf16.msra.mxu0 0
    %5087 = vmatprep.subr.bf16.mxu0 0
    %5088 = vmatpush1.bf16.msra.mxu0 0
    %5089 = vmatprep.subr.bf16.mxu0 0
    %5090 = vmatpush1.bf16.msra.mxu0 0
    %5091 = vmatprep.subr.bf16.mxu0 0
    %5092 = vmatpush1.bf16.msra.mxu0 0
    %5093 = vmatprep.subr.bf16.mxu0 0
    %5094 = vmatpush1.bf16.msra.mxu0 0
    %5095 = vmatprep.subr.bf16.mxu0 0
    %5096 = vmatpush1.bf16.msra.mxu0 0
    %5097 = vmatprep.subr.bf16.mxu0 0
    %5098 = vmatpush1.bf16.msra.mxu0 0
    %5099 = vmatprep.subr.bf16.mxu0 0
    %5100 = vmatpush1.bf16.msra.mxu0 0
    %5101 = vmatprep.subr.bf16.mxu0 0
    %5102 = vmatpush1.bf16.msra.mxu0 0
    %5103 = vmatprep.subr.bf16.mxu0 0
    %5104 = vmatpush1.bf16.msra.mxu0 0
    %5105 = vmatprep.mubr.bf16.mxu0 0
    %5106 = vmatmul.mubr.bf16.gmra.mrb[0].mxu0 %v5071
    %v5107 = vpop.f32.mrb[0].mxu0
    %v5108 = vadd.f32 0.0, %v5107
    %v5109 = vpop.f32.mrb[0].mxu0
    %v5110 = vadd.f32 0.0, %v5109
    %v5111 = vpop.f32.mrb[0].mxu0
    %v5112 = vpop.f32.mrb[0].mxu0
    %5113 = vdwg.mxu0
    %v5116 = vrot.slane %v5108, 4
    %v5117 = vrot.slane %v5110, 4
    %v5120 = vadd.f32 %v3837, %v5116
    %v5121 = vadd.f32 %v3839, %v5117
    %v5122 = vxor.u32 %v5120, 2147483648
    %v5123 = vmul.f32 %v5122, 1.442695
    %v5124 = vpow.pop %v5123
    %v5125 = vadd.f32 %v5124, 1.0
    %v5126 = vrcp.pop %v5125
    %v5127 = vmul.f32 1.0, %v5126
    %v5128 = vtanh.pop %v5121
    %v5129 = vxor.u32 %v5121, 2147483648
    %v5130 = vmul.f32 %v5129, 1.442695
    %v5131 = vpow.pop %v5130
    %v5132 = vadd.f32 %v5131, 1.0
    %v5133 = vrcp.pop %v5132
    %v5134 = vmul.f32 1.0, %v5133
    %v5136 = vrot.slane %v4974, 6
    %v5138 = vmul.f32 %v5127, %v5136
    %v5139 = vmul.f32 %v5127, %v5128
    %5141 = vrot.lane.b32.xlu0 %v5139, 64
    %v5142 = vpop.permute.xlu0 %5141
    %v5144 = vadd.f32 %v5138, %v5142
    %v5145 = vtanh.pop %v5144
    %v5146 = vmul.f32 %v5134, %v5145
    %5148 = vrot.lane.b32.xlu0 %v5146, 64
    %v5149 = vpop.permute.xlu0 %5148
    %5151 = vst.msk [vmem:[#allocation3 + $0x8] sm:$0x30] %vm1057, %v5149
    %v5152 = vpack.c.bf16 %v5063, %v5063
    %v5154 = vrot.slane %v5152, 2
    %5155 = vrot.lane.b32.xlu0 %v5154, 64
    %v5156 = vpop.permute.xlu0 %5155
    %v5158 = vsel %vm612, %v5156, 0
    %5160 = vmatprep.subr.bf16.mxu0 %v4143
    %5161 = vmatpush1.bf16.msra.mxu0 %v4142
    %5162 = vmatprep.subr.bf16.mxu0 %v4145
    %5163 = vmatpush1.bf16.msra.mxu0 %v4144
    %5164 = vmatprep.subr.bf16.mxu0 %v4147
    %5165 = vmatpush1.bf16.msra.mxu0 %v4146
    %5166 = vmatprep.subr.bf16.mxu0 %v4149
    %5167 = vmatpush1.bf16.msra.mxu0 %v4148
    %5168 = vmatprep.subr.bf16.mxu0 0
    %5169 = vmatpush1.bf16.msra.mxu0 0
    %5170 = vmatprep.subr.bf16.mxu0 0
    %5171 = vmatpush1.bf16.msra.mxu0 0
    %5172 = vmatprep.subr.bf16.mxu0 0
    %5173 = vmatpush1.bf16.msra.mxu0 0
    %5174 = vmatprep.subr.bf16.mxu0 0
    %5175 = vmatpush1.bf16.msra.mxu0 0
    %5176 = vmatprep.subr.bf16.mxu0 0
    %5177 = vmatpush1.bf16.msra.mxu0 0
    %5178 = vmatprep.subr.bf16.mxu0 0
    %5179 = vmatpush1.bf16.msra.mxu0 0
    %5180 = vmatprep.subr.bf16.mxu0 0
    %5181 = vmatpush1.bf16.msra.mxu0 0
    %5182 = vmatprep.subr.bf16.mxu0 0
    %5183 = vmatpush1.bf16.msra.mxu0 0
    %5184 = vmatprep.subr.bf16.mxu0 0
    %5185 = vmatpush1.bf16.msra.mxu0 0
    %5186 = vmatprep.subr.bf16.mxu0 0
    %5187 = vmatpush1.bf16.msra.mxu0 0
    %5188 = vmatprep.subr.bf16.mxu0 0
    %5189 = vmatpush1.bf16.msra.mxu0 0
    %5190 = vmatprep.subr.bf16.mxu0 0
    %5191 = vmatpush1.bf16.msra.mxu0 0
    %5192 = vmatprep.mubr.bf16.mxu0 0
    %5193 = vmatmul.mubr.bf16.gmra.mrb[0].mxu0 %v5158
    %v5194 = vpop.f32.mrb[0].mxu0
    %v5195 = vadd.f32 0.0, %v5194
    %v5196 = vpop.f32.mrb[0].mxu0
    %v5197 = vadd.f32 0.0, %v5196
    %v5198 = vpop.f32.mrb[0].mxu0
    %v5199 = vpop.f32.mrb[0].mxu0
    %5200 = vdwg.mxu0
    %v5203 = vrot.slane %v5195, 6
    %v5204 = vrot.slane %v5197, 6
    %v5207 = vadd.f32 %v3984, %v5203
    %v5208 = vadd.f32 %v3986, %v5204
    %v5209 = vxor.u32 %v5207, 2147483648
    %v5210 = vmul.f32 %v5209, 1.442695
    %v5211 = vpow.pop %v5210
    %v5212 = vadd.f32 %v5211, 1.0
    %v5213 = vrcp.pop %v5212
    %v5214 = vmul.f32 1.0, %v5213
    %v5215 = vtanh.pop %v5208
    %v5216 = vxor.u32 %v5208, 2147483648
    %v5217 = vmul.f32 %v5216, 1.442695
    %v5218 = vpow.pop %v5217
    %v5219 = vadd.f32 %v5218, 1.0
    %v5220 = vrcp.pop %v5219
    %v5221 = vmul.f32 1.0, %v5220
    %v5223 = vrot.slane %v5061, 2
    %v5225 = vmul.f32 %v5214, %v5223
    %v5226 = vmul.f32 %v5214, %v5215
    %5228 = vrot.lane.b32.xlu0 %v5226, 64
    %v5229 = vpop.permute.xlu0 %5228
    %v5231 = vadd.f32 %v5225, %v5229
    %v5232 = vtanh.pop %v5231
    %v5233 = vmul.f32 %v5221, %v5232
    %5234 = vst.msk [vmem:[#allocation3] sm:$0xc] %vm1141, %v5233
    %v5235 = vpack.c.bf16 %v5146, %v5146
    %v5237 = vrot.slane %v5235, 2
    %5238 = vrot.lane.b32.xlu0 %v5237, 64
    %v5239 = vpop.permute.xlu0 %5238
    %v5241 = vsel %vm612, %v5239, 0
    %5243 = vmatprep.subr.bf16.mxu0 %v4033
    %5244 = vmatpush1.bf16.msra.mxu0 %v4032
    %5245 = vmatprep.subr.bf16.mxu0 %v4035
    %5246 = vmatpush1.bf16.msra.mxu0 %v4034
    %5247 = vmatprep.subr.bf16.mxu0 %v4037
    %5248 = vmatpush1.bf16.msra.mxu0 %v4036
    %5249 = vmatprep.subr.bf16.mxu0 %v4039
    %5250 = vmatpush1.bf16.msra.mxu0 %v4038
    %5251 = vmatprep.subr.bf16.mxu0 0
    %5252 = vmatpush1.bf16.msra.mxu0 0
    %5253 = vmatprep.subr.bf16.mxu0 0
    %5254 = vmatpush1.bf16.msra.mxu0 0
    %5255 = vmatprep.subr.bf16.mxu0 0
    %5256 = vmatpush1.bf16.msra.mxu0 0
    %5257 = vmatprep.subr.bf16.mxu0 0
    %5258 = vmatpush1.bf16.msra.mxu0 0
    %5259 = vmatprep.subr.bf16.mxu0 0
    %5260 = vmatpush1.bf16.msra.mxu0 0
    %5261 = vmatprep.subr.bf16.mxu0 0
    %5262 = vmatpush1.bf16.msra.mxu0 0
    %5263 = vmatprep.subr.bf16.mxu0 0
    %5264 = vmatpush1.bf16.msra.mxu0 0
    %5265 = vmatprep.subr.bf16.mxu0 0
    %5266 = vmatpush1.bf16.msra.mxu0 0
    %5267 = vmatprep.subr.bf16.mxu0 0
    %5268 = vmatpush1.bf16.msra.mxu0 0
    %5269 = vmatprep.subr.bf16.mxu0 0
    %5270 = vmatpush1.bf16.msra.mxu0 0
    %5271 = vmatprep.subr.bf16.mxu0 0
    %5272 = vmatpush1.bf16.msra.mxu0 0
    %5273 = vmatprep.subr.bf16.mxu0 0
    %5274 = vmatpush1.bf16.msra.mxu0 0
    %5275 = vmatprep.mubr.bf16.mxu0 0
    %5276 = vmatmul.mubr.bf16.gmra.mrb[0].mxu0 %v5241
    %v5277 = vpop.f32.mrb[0].mxu0
    %v5278 = vadd.f32 0.0, %v5277
    %v5279 = vpop.f32.mrb[0].mxu0
    %v5280 = vadd.f32 0.0, %v5279
    %v5281 = vpop.f32.mrb[0].mxu0
    %v5282 = vpop.f32.mrb[0].mxu0
    %5283 = vdwg.mxu0
    %v5286 = vrot.slane %v5278, 2
    %v5287 = vrot.slane %v5280, 2
    %v5290 = vadd.f32 %v3837, %v5286
    %v5291 = vadd.f32 %v3839, %v5287
    %v5292 = vxor.u32 %v5290, 2147483648
    %v5293 = vmul.f32 %v5292, 1.442695
    %v5294 = vpow.pop %v5293
    %v5295 = vadd.f32 %v5294, 1.0
    %v5296 = vrcp.pop %v5295
    %v5297 = vmul.f32 1.0, %v5296
    %v5298 = vtanh.pop %v5291
    %v5299 = vxor.u32 %v5291, 2147483648
    %v5300 = vmul.f32 %v5299, 1.442695
    %v5301 = vpow.pop %v5300
    %v5302 = vadd.f32 %v5301, 1.0
    %v5303 = vrcp.pop %v5302
    %v5304 = vmul.f32 1.0, %v5303
    %v5306 = vrot.slane %v5144, 6
    %v5308 = vmul.f32 %v5297, %v5306
    %v5309 = vmul.f32 %v5297, %v5298
    %5311 = vrot.lane.b32.xlu0 %v5309, 64
    %v5312 = vpop.permute.xlu0 %5311
    %v5314 = vadd.f32 %v5308, %v5312
    %v5315 = vtanh.pop %v5314
    %v5316 = vmul.f32 %v5304, %v5315
    %5318 = vrot.lane.b32.xlu0 %v5316, 64
    %v5319 = vpop.permute.xlu0 %5318
    %5321 = vst.msk [vmem:[#allocation3 + $0x8] sm:$0xc0] %vm1229, %v5319
    %v5322 = vpack.c.bf16 %v5233, %v5233
    %v5324 = vrot.slane %v5322, 1
    %5325 = vrot.lane.b32.xlu0 %v5324, 64
    %v5326 = vpop.permute.xlu0 %5325
    %v5328 = vsel %vm612, %v5326, 0
    %5330 = vmatprep.subr.bf16.mxu0 %v4143
    %5331 = vmatpush1.bf16.msra.mxu0 %v4142
    %5332 = vmatprep.subr.bf16.mxu0 %v4145
    %5333 = vmatpush1.bf16.msra.mxu0 %v4144
    %5334 = vmatprep.subr.bf16.mxu0 %v4147
    %5335 = vmatpush1.bf16.msra.mxu0 %v4146
    %5336 = vmatprep.subr.bf16.mxu0 %v4149
    %5337 = vmatpush1.bf16.msra.mxu0 %v4148
    %5338 = vmatprep.subr.bf16.mxu0 0
    %5339 = vmatpush1.bf16.msra.mxu0 0
    %5340 = vmatprep.subr.bf16.mxu0 0
    %5341 = vmatpush1.bf16.msra.mxu0 0
    %5342 = vmatprep.subr.bf16.mxu0 0
    %5343 = vmatpush1.bf16.msra.mxu0 0
    %5344 = vmatprep.subr.bf16.mxu0 0
    %5345 = vmatpush1.bf16.msra.mxu0 0
    %5346 = vmatprep.subr.bf16.mxu0 0
    %5347 = vmatpush1.bf16.msra.mxu0 0
    %5348 = vmatprep.subr.bf16.mxu0 0
    %5349 = vmatpush1.bf16.msra.mxu0 0
    %5350 = vmatprep.subr.bf16.mxu0 0
    %5351 = vmatpush1.bf16.msra.mxu0 0
    %5352 = vmatprep.subr.bf16.mxu0 0
    %5353 = vmatpush1.bf16.msra.mxu0 0
    %5354 = vmatprep.subr.bf16.mxu0 0
    %5355 = vmatpush1.bf16.msra.mxu0 0
    %5356 = vmatprep.subr.bf16.mxu0 0
    %5357 = vmatpush1.bf16.msra.mxu0 0
    %5358 = vmatprep.subr.bf16.mxu0 0
    %5359 = vmatpush1.bf16.msra.mxu0 0
    %5360 = vmatprep.subr.bf16.mxu0 0
    %5361 = vmatpush1.bf16.msra.mxu0 0
    %5362 = vmatprep.mubr.bf16.mxu0 0
    %5363 = vmatmul.mubr.bf16.gmra.mrb[0].mxu0 %v5328
    %v5364 = vpop.f32.mrb[0].mxu0
    %v5365 = vadd.f32 0.0, %v5364
    %v5366 = vpop.f32.mrb[0].mxu0
    %v5367 = vadd.f32 0.0, %v5366
    %v5368 = vpop.f32.mrb[0].mxu0
    %v5369 = vpop.f32.mrb[0].mxu0
    %5370 = vdwg.mxu0
    %v5371 = vadd.f32 %v3984, %v5365
    %v5372 = vadd.f32 %v3986, %v5367
    %v5373 = vxor.u32 %v5371, 2147483648
    %v5374 = vmul.f32 %v5373, 1.442695
    %v5375 = vpow.pop %v5374
    %v5376 = vadd.f32 %v5375, 1.0
    %v5377 = vrcp.pop %v5376
    %v5378 = vmul.f32 1.0, %v5377
    %v5379 = vtanh.pop %v5372
    %v5380 = vxor.u32 %v5372, 2147483648
    %v5381 = vmul.f32 %v5380, 1.442695
    %v5382 = vpow.pop %v5381
    %v5383 = vadd.f32 %v5382, 1.0
    %v5384 = vrcp.pop %v5383
    %v5385 = vmul.f32 1.0, %v5384
    %v5387 = vrot.slane %v5231, 2
    %v5389 = vmul.f32 %v5378, %v5387
    %v5390 = vmul.f32 %v5378, %v5379
    %5392 = vrot.lane.b32.xlu0 %v5390, 64
    %v5393 = vpop.permute.xlu0 %5392
    %v5395 = vadd.f32 %v5389, %v5393
    %v5396 = vtanh.pop %v5395
    %v5397 = vmul.f32 %v5385, %v5396
    %5398 = vst.msk [vmem:[#allocation3] sm:$0x3] %vm1307, %v5397
    %v5399 = vld [vmem:[#allocation3] sm:$0xff]
    %v5400 = vld [vmem:[#allocation3 + $0x8] sm:$0xff]
    %v5401 = vpack.c.bf16 %v5400, %v5399
    %v5402 = vld [vmem:[%s45] sm:$0xff]
    %v5403 = vld [vmem:[%s45 + $0x8] sm:$0xf]
    %v5404 = vld [vmem:[%s45 + $0xc] sm:$0xff]
    %v5405 = vld [vmem:[%s45 + $0x14] sm:$0xf]
    %v5406 = vld [vmem:[%s45 + $0x18] sm:$0xff]
    %v5407 = vld [vmem:[%s45 + $0x20] sm:$0xf]
    %v5408 = vld [vmem:[%s45 + $0x24] sm:$0xff]
    %v5409 = vld [vmem:[%s45 + $0x2c] sm:$0xf]
    %v5410 = vld [vmem:[%s45 + $0x30] sm:$0xff]
    %v5411 = vld [vmem:[%s45 + $0x38] sm:$0xf]
    %v5412 = vld [vmem:[%s45 + $0x3c] sm:$0xff]
    %v5413 = vld [vmem:[%s45 + $0x44] sm:$0xf]
    %v5414 = vld [vmem:[%s45 + $0x48] sm:$0xff]
    %v5415 = vld [vmem:[%s45 + $0x50] sm:$0xf]
    %v5416 = vld [vmem:[%s45 + $0x54] sm:$0xff]
    %v5417 = vld [vmem:[%s45 + $0x5c] sm:$0xf]
    %v5418 = vld [vmem:[%s45 + $0x60] sm:$0xff]
    %v5419 = vld [vmem:[%s45 + $0x68] sm:$0xf]
    %v5420 = vld [vmem:[%s45 + $0x6c] sm:$0xff]
    %v5421 = vld [vmem:[%s45 + $0x74] sm:$0xf]
    %v5422 = vld [vmem:[%s45 + $0x78] sm:$0xff]
    %v5423 = vld [vmem:[%s45 + $0x80] sm:$0xf]
    %v5424 = vld [vmem:[%s45 + $0x84] sm:$0xff]
    %v5425 = vld [vmem:[%s45 + $0x8c] sm:$0xf]
    %v5426 = vld [vmem:[%s45 + $0x90] sm:$0xff]
    %v5427 = vld [vmem:[%s45 + $0x98] sm:$0xf]
    %v5428 = vld [vmem:[%s45 + $0x9c] sm:$0xff]
    %v5429 = vld [vmem:[%s45 + $0xa4] sm:$0xf]
    %v5430 = vld [vmem:[%s45 + $0xa8] sm:$0xff]
    %v5431 = vld [vmem:[%s45 + $0xb0] sm:$0xf]
    %v5432 = vld [vmem:[%s45 + $0xb4] sm:$0xff]
    %v5433 = vld [vmem:[%s45 + $0xbc] sm:$0xf]
    %v5434 = vld [vmem:[%s47] sm:$0x7]
    %v5436 = vlaneseq
    %v5437 = vshrl.u32 %v5436, 7
    %v5438 = vsub.s32 0, %v5437
    %v5439 = vrot.slane %v5434, %v5438
    %v5440 = vlaneseq
    %v5441 = vshrl.u32 %v5440, 7
    %v5442 = vsub.s32 1, %v5441
    %v5443 = vrot.slane %v5434, %v5442
    %v5444 = vlaneseq
    %v5445 = vshrl.u32 %v5444, 7
    %v5446 = vsub.s32 2, %v5445
    %v5447 = vrot.slane %v5434, %v5446
    %v5483 = vunpack.c.l.b16 %v5402
    %v5484 = vunpack.c.h.b16 %v5402
    %v5485 = vunpack.c.l.b16 %v5403
    %v5486 = vunpack.c.l.b16 %v5404
    %v5487 = vunpack.c.h.b16 %v5404
    %v5488 = vunpack.c.l.b16 %v5405
    %v5489 = vunpack.c.l.b16 %v5406
    %v5490 = vunpack.c.h.b16 %v5406
    %v5491 = vunpack.c.l.b16 %v5407
    %v5492 = vunpack.c.l.b16 %v5408
    %v5493 = vunpack.c.h.b16 %v5408
    %v5494 = vunpack.c.l.b16 %v5409
    %v5495 = vunpack.c.l.b16 %v5410
    %v5496 = vunpack.c.h.b16 %v5410
    %v5497 = vunpack.c.l.b16 %v5411
    %v5498 = vunpack.c.l.b16 %v5412
    %v5499 = vunpack.c.h.b16 %v5412
    %v5500 = vunpack.c.l.b16 %v5413
    %v5501 = vunpack.c.l.b16 %v5414
    %v5502 = vunpack.c.h.b16 %v5414
    %v5503 = vunpack.c.l.b16 %v5415
    %v5504 = vunpack.c.l.b16 %v5416
    %v5505 = vunpack.c.h.b16 %v5416
    %v5506 = vunpack.c.l.b16 %v5417
    %v5507 = vunpack.c.l.b16 %v5418
    %v5508 = vunpack.c.h.b16 %v5418
    %v5509 = vunpack.c.l.b16 %v5419
    %v5510 = vunpack.c.l.b16 %v5420
    %v5511 = vunpack.c.h.b16 %v5420
    %v5512 = vunpack.c.l.b16 %v5421
    %v5513 = vunpack.c.l.b16 %v5422
    %v5514 = vunpack.c.h.b16 %v5422
    %v5515 = vunpack.c.l.b16 %v5423
    %v5516 = vunpack.c.l.b16 %v5424
    %v5517 = vunpack.c.h.b16 %v5424
    %v5518 = vunpack.c.l.b16 %v5425
    %v5519 = vunpack.c.l.b16 %v5426
    %v5520 = vunpack.c.h.b16 %v5426
    %v5521 = vunpack.c.l.b16 %v5427
    %v5522 = vunpack.c.l.b16 %v5428
    %v5523 = vunpack.c.h.b16 %v5428
    %v5524 = vunpack.c.l.b16 %v5429
    %v5525 = vunpack.c.l.b16 %v5430
    %v5526 = vunpack.c.h.b16 %v5430
    %v5527 = vunpack.c.l.b16 %v5431
    %v5528 = vunpack.c.l.b16 %v5432
    %v5529 = vunpack.c.h.b16 %v5432
    %v5530 = vunpack.c.l.b16 %v5433
    %v5531 = vpack.c.b16 %v5486, %v5483
    %v5532 = vpack.c.b16 %v5487, %v5484
    %v5533 = vpack.c.b16 %v5488, %v5485
    %v5534 = vpack.c.b16 %v5492, %v5489
    %v5535 = vpack.c.b16 %v5493, %v5490
    %v5536 = vpack.c.b16 %v5494, %v5491
    %v5537 = vpack.c.b16 %v5498, %v5495
    %v5538 = vpack.c.b16 %v5499, %v5496
    %v5539 = vpack.c.b16 %v5500, %v5497
    %v5540 = vpack.c.b16 %v5504, %v5501
    %v5541 = vpack.c.b16 %v5505, %v5502
    %v5542 = vpack.c.b16 %v5506, %v5503
    %v5543 = vpack.c.b16 %v5510, %v5507
    %v5544 = vpack.c.b16 %v5511, %v5508
    %v5545 = vpack.c.b16 %v5512, %v5509
    %v5546 = vpack.c.b16 %v5516, %v5513
    %v5547 = vpack.c.b16 %v5517, %v5514
    %v5548 = vpack.c.b16 %v5518, %v5515
    %v5549 = vpack.c.b16 %v5522, %v5519
    %v5550 = vpack.c.b16 %v5523, %v5520
    %v5551 = vpack.c.b16 %v5524, %v5521
    %v5552 = vpack.c.b16 %v5528, %v5525
    %v5553 = vpack.c.b16 %v5529, %v5526
    %v5554 = vpack.c.b16 %v5530, %v5527
    %5579 = vmatprep.subr.bf16.mxu0 %v5532
    %5580 = vmatpush1.bf16.msra.mxu0 %v5531
    %5581 = vmatprep.subr.bf16.mxu0 %v5535
    %5582 = vmatpush1.bf16.msra.mxu0 %v5534
    %5583 = vmatprep.subr.bf16.mxu0 %v5538
    %5584 = vmatpush1.bf16.msra.mxu0 %v5537
    %5585 = vmatprep.subr.bf16.mxu0 %v5541
    %5586 = vmatpush1.bf16.msra.mxu0 %v5540
    %5587 = vmatprep.subr.bf16.mxu0 %v5544
    %5588 = vmatpush1.bf16.msra.mxu0 %v5543
    %5589 = vmatprep.subr.bf16.mxu0 %v5547
    %5590 = vmatpush1.bf16.msra.mxu0 %v5546
    %5591 = vmatprep.subr.bf16.mxu0 %v5550
    %5592 = vmatpush1.bf16.msra.mxu0 %v5549
    %5593 = vmatprep.subr.bf16.mxu0 %v5553
    %5594 = vmatpush1.bf16.msra.mxu0 %v5552
    %5595 = vmatprep.subr.bf16.mxu0 0
    %5596 = vmatpush1.bf16.msra.mxu0 0
    %5597 = vmatprep.subr.bf16.mxu0 0
    %5598 = vmatpush1.bf16.msra.mxu0 0
    %5599 = vmatprep.subr.bf16.mxu0 0
    %5600 = vmatpush1.bf16.msra.mxu0 0
    %5601 = vmatprep.subr.bf16.mxu0 0
    %5602 = vmatpush1.bf16.msra.mxu0 0
    %5603 = vmatprep.subr.bf16.mxu0 0
    %5604 = vmatpush1.bf16.msra.mxu0 0
    %5605 = vmatprep.subr.bf16.mxu0 0
    %5606 = vmatpush1.bf16.msra.mxu0 0
    %5607 = vmatprep.subr.bf16.mxu0 0
    %5608 = vmatpush1.bf16.msra.mxu0 0
    %5609 = vmatprep.subr.bf16.mxu0 0
    %5610 = vmatpush1.bf16.msra.mxu0 0
    %5611 = vmatprep.mubr.bf16.mxu0 0
    %5612 = vmatmul.mubr.bf16.gmra.mrb[0].mxu0 %v5401
    %v5613 = vpop.f32.mrb[0].mxu0
    %v5614 = vadd.f32 %v5439, %v5613
    %v5615 = vpop.f32.mrb[0].mxu0
    %v5616 = vadd.f32 %v5443, %v5615
    %v5617 = vpop.f32.mrb[0].mxu0
    %v5618 = vadd.f32 %v5439, %v5617
    %v5619 = vpop.f32.mrb[0].mxu0
    %v5620 = vadd.f32 %v5443, %v5619
    %5621 = vdwg.mxu0
    %5622 = vmatprep.subr.bf16.mxu0 0
    %5623 = vmatpush1.bf16.msra.mxu0 %v5533
    %5624 = vmatprep.subr.bf16.mxu0 0
    %5625 = vmatpush1.bf16.msra.mxu0 %v5536
    %5626 = vmatprep.subr.bf16.mxu0 0
    %5627 = vmatpush1.bf16.msra.mxu0 %v5539
    %5628 = vmatprep.subr.bf16.mxu0 0
    %5629 = vmatpush1.bf16.msra.mxu0 %v5542
    %5630 = vmatprep.subr.bf16.mxu0 0
    %5631 = vmatpush1.bf16.msra.mxu0 %v5545
    %5632 = vmatprep.subr.bf16.mxu0 0
    %5633 = vmatpush1.bf16.msra.mxu0 %v5548
    %5634 = vmatprep.subr.bf16.mxu0 0
    %5635 = vmatpush1.bf16.msra.mxu0 %v5551
    %5636 = vmatprep.subr.bf16.mxu0 0
    %5637 = vmatpush1.bf16.msra.mxu0 %v5554
    %5638 = vmatprep.subr.bf16.mxu0 0
    %5639 = vmatpush1.bf16.msra.mxu0 0
    %5640 = vmatprep.subr.bf16.mxu0 0
    %5641 = vmatpush1.bf16.msra.mxu0 0
    %5642 = vmatprep.subr.bf16.mxu0 0
    %5643 = vmatpush1.bf16.msra.mxu0 0
    %5644 = vmatprep.subr.bf16.mxu0 0
    %5645 = vmatpush1.bf16.msra.mxu0 0
    %5646 = vmatprep.subr.bf16.mxu0 0
    %5647 = vmatpush1.bf16.msra.mxu0 0
    %5648 = vmatprep.subr.bf16.mxu0 0
    %5649 = vmatpush1.bf16.msra.mxu0 0
    %5650 = vmatprep.subr.bf16.mxu0 0
    %5651 = vmatpush1.bf16.msra.mxu0 0
    %5652 = vmatprep.subr.bf16.mxu0 0
    %5653 = vmatpush1.bf16.msra.mxu0 0
    %5654 = vmatprep.mubr.bf16.mxu0 0
    %5655 = vmatmul.mubr.bf16.gmra.mrb[0].mxu0 %v5401
    %v5656 = vpop.f32.mrb[0].mxu0
    %v5657 = vadd.f32 %v5447, %v5656
    %v5658 = vpop.f32.mrb[0].mxu0
    %v5659 = vpop.f32.mrb[0].mxu0
    %v5660 = vadd.f32 %v5447, %v5659
    %v5661 = vpop.f32.mrb[0].mxu0
    %5662 = vdwg.mxu0
    %v5663 = vld [vmem:[#allocation11] sm:$0xff]
    %v5664 = vld [vmem:[#allocation11 + $0x8] sm:$0xff]
    %v5665 = vpack.c.bf16 %v5618, %v5614
    %v5666 = vpack.c.bf16 %v5620, %v5616
    %v5667 = vpack.c.bf16 %v5660, %v5657
    %vm5668 = vcmask 130048
    %v5670 = vsel %vm5668, %v5665, 0
    %v5673 = vsel %vm5668, %v5666, 0
    %5675 = vmatprep.subr.bf16.mxu0 0
    %5676 = vmatpush1.bf16.xpose.msra.mxu0 %v5673
    %5677 = vmatprep.subr.bf16.mxu0 0
    %5678 = vmatpush1.bf16.xpose.msra.mxu0 0
    %5679 = vmatprep.subr.bf16.mxu0 0
    %5680 = vmatpush1.bf16.xpose.msra.mxu0 0
    %5681 = vmatprep.subr.bf16.mxu0 0
    %5682 = vmatpush1.bf16.xpose.msra.mxu0 0
    %5683 = vmatprep.subr.bf16.mxu0 0
    %5684 = vmatpush1.bf16.xpose.msra.mxu0 0
    %5685 = vmatprep.subr.bf16.mxu0 0
    %5686 = vmatpush1.bf16.xpose.msra.mxu0 0
    %5687 = vmatprep.subr.bf16.mxu0 0
    %5688 = vmatpush1.bf16.xpose.msra.mxu0 0
    %5689 = vmatprep.subr.bf16.mxu0 0
    %5690 = vmatpush1.bf16.xpose.msra.mxu0 0
    %5691 = vmatprep.subr.bf16.mxu0 0
    %5692 = vmatpush1.bf16.xpose.msra.mxu0 0
    %5693 = vmatprep.subr.bf16.mxu0 0
    %5694 = vmatpush1.bf16.xpose.msra.mxu0 0
    %5695 = vmatprep.subr.bf16.mxu0 0
    %5696 = vmatpush1.bf16.xpose.msra.mxu0 0
    %5697 = vmatprep.subr.bf16.mxu0 0
    %5698 = vmatpush1.bf16.xpose.msra.mxu0 0
    %5699 = vmatprep.subr.bf16.mxu0 0
    %5700 = vmatpush1.bf16.xpose.msra.mxu0 0
    %5701 = vmatprep.subr.bf16.mxu0 0
    %5702 = vmatpush1.bf16.xpose.msra.mxu0 0
    %5703 = vmatprep.subr.bf16.mxu0 0
    %5704 = vmatpush1.bf16.xpose.msra.mxu0 0
    %5705 = vmatprep.subr.bf16.mxu0 0
    %5706 = vmatpush1.bf16.xpose.msra.mxu0 0
    %5707 = vmatprep.mubr.bf16.mxu0 0
    %5708 = vmatmul.mubr.bf16.gmra.mrb[0].mxu0 %v5670
    %v5709 = vpop.f32.mrb[0].mxu0
    %v5710 = vadd.f32 %v5663, %v5709
    %v5711 = vpop.f32.mrb[0].mxu0
    %v5712 = vpop.f32.mrb[0].mxu0
    %v5713 = vadd.f32 %v5664, %v5712
    %v5714 = vpop.f32.mrb[0].mxu0
    %5715 = vdwg.mxu0
    %v5716 = vsel %vm5668, %v5710, -inf
    %5717 = vmax.xlane.f32.xlu0 %v5716
    %v5718 = vpop.xlane.xlu0 %5717
    %v5719 = vsel %vm5668, %v5713, -inf
    %5720 = vmax.xlane.f32.xlu0 %v5719
    %v5721 = vpop.xlane.xlu0 %5720
    %v5722 = vsub.f32 %v5710, %v5718
    %v5723 = vsub.f32 %v5713, %v5721
    %v5724 = vmul.f32 %v5722, 1.442695
    %v5725 = vpow.pop %v5724
    %v5726 = vmul.f32 %v5723, 1.442695
    %v5727 = vpow.pop %v5726
    %v5728 = vsel %vm5668, %v5725, 0.0
    %5729 = vadd.xlane.f32.xlu0 %v5728
    %v5730 = vpop.xlane.xlu0 %5729
    %v5731 = vsel %vm5668, %v5727, 0.0
    %5732 = vadd.xlane.f32.xlu0 %v5731
    %v5733 = vpop.xlane.xlu0 %5732
    %v5734 = vrcp.pop %v5730
    %v5735 = vrcp.pop %v5733
    %v5736 = vmul.f32 %v5725, %v5734
    %v5737 = vmul.f32 %v5727, %v5735
    %v5738 = vpack.c.bf16 %v5737, %v5736
    %v5740 = vsel %vm5668, %v5738, 0
    %5742 = vmatprep.subr.bf16.mxu0 0
    %5743 = vmatpush1.bf16.msra.mxu0 %v5667
    %5744 = vmatprep.subr.bf16.mxu0 0
    %5745 = vmatpush1.bf16.msra.mxu0 0
    %5746 = vmatprep.subr.bf16.mxu0 0
    %5747 = vmatpush1.bf16.msra.mxu0 0
    %5748 = vmatprep.subr.bf16.mxu0 0
    %5749 = vmatpush1.bf16.msra.mxu0 0
    %5750 = vmatprep.subr.bf16.mxu0 0
    %5751 = vmatpush1.bf16.msra.mxu0 0
    %5752 = vmatprep.subr.bf16.mxu0 0
    %5753 = vmatpush1.bf16.msra.mxu0 0
    %5754 = vmatprep.subr.bf16.mxu0 0
    %5755 = vmatpush1.bf16.msra.mxu0 0
    %5756 = vmatprep.subr.bf16.mxu0 0
    %5757 = vmatpush1.bf16.msra.mxu0 0
    %5758 = vmatprep.subr.bf16.mxu0 0
    %5759 = vmatpush1.bf16.msra.mxu0 0
    %5760 = vmatprep.subr.bf16.mxu0 0
    %5761 = vmatpush1.bf16.msra.mxu0 0
    %5762 = vmatprep.subr.bf16.mxu0 0
    %5763 = vmatpush1.bf16.msra.mxu0 0
    %5764 = vmatprep.subr.bf16.mxu0 0
    %5765 = vmatpush1.bf16.msra.mxu0 0
    %5766 = vmatprep.subr.bf16.mxu0 0
    %5767 = vmatpush1.bf16.msra.mxu0 0
    %5768 = vmatprep.subr.bf16.mxu0 0
    %5769 = vmatpush1.bf16.msra.mxu0 0
    %5770 = vmatprep.subr.bf16.mxu0 0
    %5771 = vmatpush1.bf16.msra.mxu0 0
    %5772 = vmatprep.subr.bf16.mxu0 0
    %5773 = vmatpush1.bf16.msra.mxu0 0
    %5774 = vmatprep.mubr.bf16.mxu0 0
    %5775 = vmatmul.mubr.bf16.gmra.mrb[0].mxu0 %v5740
    %v5776 = vpop.f32.mrb[0].mxu0
    %v5777 = vadd.f32 0.0, %v5776
    %v5778 = vpop.f32.mrb[0].mxu0
    %v5779 = vpop.f32.mrb[0].mxu0
    %v5780 = vadd.f32 0.0, %v5779
    %v5781 = vpop.f32.mrb[0].mxu0
    %5782 = vdwg.mxu0
    %5783 = vst.msk [vmem:[#allocation4] sm:$0xff] %vm5668, %v5777
    %5784 = vst.msk [vmem:[#allocation4 + $0x8] sm:$0xff] %vm5668, %v5780
    %5786 = vrot.lane.b32.xlu0 %v5665, 112
    %v5787 = vpop.permute.xlu0 %5786
    %5789 = vrot.lane.b32.xlu0 %v5666, 112
    %v5790 = vpop.permute.xlu0 %5789
    %v5792 = vsel %vm5668, %v5787, 0
    %v5795 = vsel %vm5668, %v5790, 0
    %5797 = vmatprep.subr.bf16.mxu0 0
    %5798 = vmatpush1.bf16.xpose.msra.mxu0 %v5795
    %5799 = vmatprep.subr.bf16.mxu0 0
    %5800 = vmatpush1.bf16.xpose.msra.mxu0 0
    %5801 = vmatprep.subr.bf16.mxu0 0
    %5802 = vmatpush1.bf16.xpose.msra.mxu0 0
    %5803 = vmatprep.subr.bf16.mxu0 0
    %5804 = vmatpush1.bf16.xpose.msra.mxu0 0
    %5805 = vmatprep.subr.bf16.mxu0 0
    %5806 = vmatpush1.bf16.xpose.msra.mxu0 0
    %5807 = vmatprep.subr.bf16.mxu0 0
    %5808 = vmatpush1.bf16.xpose.msra.mxu0 0
    %5809 = vmatprep.subr.bf16.mxu0 0
    %5810 = vmatpush1.bf16.xpose.msra.mxu0 0
    %5811 = vmatprep.subr.bf16.mxu0 0
    %5812 = vmatpush1.bf16.xpose.msra.mxu0 0
    %5813 = vmatprep.subr.bf16.mxu0 0
    %5814 = vmatpush1.bf16.xpose.msra.mxu0 0
    %5815 = vmatprep.subr.bf16.mxu0 0
    %5816 = vmatpush1.bf16.xpose.msra.mxu0 0
    %5817 = vmatprep.subr.bf16.mxu0 0
    %5818 = vmatpush1.bf16.xpose.msra.mxu0 0
    %5819 = vmatprep.subr.bf16.mxu0 0
    %5820 = vmatpush1.bf16.xpose.msra.mxu0 0
    %5821 = vmatprep.subr.bf16.mxu0 0
    %5822 = vmatpush1.bf16.xpose.msra.mxu0 0
    %5823 = vmatprep.subr.bf16.mxu0 0
    %5824 = vmatpush1.bf16.xpose.msra.mxu0 0
    %5825 = vmatprep.subr.bf16.mxu0 0
    %5826 = vmatpush1.bf16.xpose.msra.mxu0 0
    %5827 = vmatprep.subr.bf16.mxu0 0
    %5828 = vmatpush1.bf16.xpose.msra.mxu0 0
    %5829 = vmatprep.mubr.bf16.mxu0 0
    %5830 = vmatmul.mubr.bf16.gmra.mrb[0].mxu0 %v5792
    %v5831 = vpop.f32.mrb[0].mxu0
    %v5832 = vadd.f32 %v5663, %v5831
    %v5833 = vpop.f32.mrb[0].mxu0
    %v5834 = vpop.f32.mrb[0].mxu0
    %v5835 = vadd.f32 %v5664, %v5834
    %v5836 = vpop.f32.mrb[0].mxu0
    %5837 = vdwg.mxu0
    %v5838 = vsel %vm5668, %v5832, -inf
    %5839 = vmax.xlane.f32.xlu0 %v5838
    %v5840 = vpop.xlane.xlu0 %5839
    %v5841 = vsel %vm5668, %v5835, -inf
    %5842 = vmax.xlane.f32.xlu0 %v5841
    %v5843 = vpop.xlane.xlu0 %5842
    %v5844 = vsub.f32 %v5832, %v5840
    %v5845 = vsub.f32 %v5835, %v5843
    %v5846 = vmul.f32 %v5844, 1.442695
    %v5847 = vpow.pop %v5846
    %v5848 = vmul.f32 %v5845, 1.442695
    %v5849 = vpow.pop %v5848
    %v5850 = vsel %vm5668, %v5847, 0.0
    %5851 = vadd.xlane.f32.xlu0 %v5850
    %v5852 = vpop.xlane.xlu0 %5851
    %v5853 = vsel %vm5668, %v5849, 0.0
    %5854 = vadd.xlane.f32.xlu0 %v5853
    %v5855 = vpop.xlane.xlu0 %5854
    %v5856 = vrcp.pop %v5852
    %v5857 = vrcp.pop %v5855
    %v5858 = vmul.f32 %v5847, %v5856
    %v5859 = vmul.f32 %v5849, %v5857
    %v5860 = vpack.c.bf16 %v5859, %v5858
    %5862 = vrot.lane.b32.xlu0 %v5667, 112
    %v5863 = vpop.permute.xlu0 %5862
    %v5866 = vsel %vm5668, %v5860, 0
    %5868 = vmatprep.subr.bf16.mxu0 0
    %5869 = vmatpush1.bf16.msra.mxu0 %v5863
    %5870 = vmatprep.subr.bf16.mxu0 0
    %5871 = vmatpush1.bf16.msra.mxu0 0
    %5872 = vmatprep.subr.bf16.mxu0 0
    %5873 = vmatpush1.bf16.msra.mxu0 0
    %5874 = vmatprep.subr.bf16.mxu0 0
    %5875 = vmatpush1.bf16.msra.mxu0 0
    %5876 = vmatprep.subr.bf16.mxu0 0
    %5877 = vmatpush1.bf16.msra.mxu0 0
    %5878 = vmatprep.subr.bf16.mxu0 0
    %5879 = vmatpush1.bf16.msra.mxu0 0
    %5880 = vmatprep.subr.bf16.mxu0 0
    %5881 = vmatpush1.bf16.msra.mxu0 0
    %5882 = vmatprep.subr.bf16.mxu0 0
    %5883 = vmatpush1.bf16.msra.mxu0 0
    %5884 = vmatprep.subr.bf16.mxu0 0
    %5885 = vmatpush1.bf16.msra.mxu0 0
    %5886 = vmatprep.subr.bf16.mxu0 0
    %5887 = vmatpush1.bf16.msra.mxu0 0
    %5888 = vmatprep.subr.bf16.mxu0 0
    %5889 = vmatpush1.bf16.msra.mxu0 0
    %5890 = vmatprep.subr.bf16.mxu0 0
    %5891 = vmatpush1.bf16.msra.mxu0 0
    %5892 = vmatprep.subr.bf16.mxu0 0
    %5893 = vmatpush1.bf16.msra.mxu0 0
    %5894 = vmatprep.subr.bf16.mxu0 0
    %5895 = vmatpush1.bf16.msra.mxu0 0
    %5896 = vmatprep.subr.bf16.mxu0 0
    %5897 = vmatpush1.bf16.msra.mxu0 0
    %5898 = vmatprep.subr.bf16.mxu0 0
    %5899 = vmatpush1.bf16.msra.mxu0 0
    %5900 = vmatprep.mubr.bf16.mxu0 0
    %5901 = vmatmul.mubr.bf16.gmra.mrb[0].mxu0 %v5866
    %v5902 = vpop.f32.mrb[0].mxu0
    %v5903 = vadd.f32 0.0, %v5902
    %v5904 = vpop.f32.mrb[0].mxu0
    %v5905 = vpop.f32.mrb[0].mxu0
    %v5906 = vadd.f32 0.0, %v5905
    %v5907 = vpop.f32.mrb[0].mxu0
    %5908 = vdwg.mxu0
    %5911 = vrot.lane.b32.xlu0 %v5903, 16
    %v5912 = vpop.permute.xlu0 %5911
    %5913 = vrot.lane.b32.xlu0 %v5906, 16
    %v5914 = vpop.permute.xlu0 %5913
    %vm5917 = vcmask 261248
    %5918 = vst.msk [vmem:[#allocation4] sm:$0xff] %vm5917, %v5912
    %5919 = vst.msk [vmem:[#allocation4 + $0x8] sm:$0xff] %vm5917, %v5914
    %5920 = vrot.lane.b32.xlu0 %v5665, 96
    %v5921 = vpop.permute.xlu0 %5920
    %5922 = vrot.lane.b32.xlu0 %v5666, 96
    %v5923 = vpop.permute.xlu0 %5922
    %v5925 = vsel %vm5668, %v5921, 0
    %v5928 = vsel %vm5668, %v5923, 0
    %5930 = vmatprep.subr.bf16.mxu0 0
    %5931 = vmatpush1.bf16.xpose.msra.mxu0 %v5928
    %5932 = vmatprep.subr.bf16.mxu0 0
    %5933 = vmatpush1.bf16.xpose.msra.mxu0 0
    %5934 = vmatprep.subr.bf16.mxu0 0
    %5935 = vmatpush1.bf16.xpose.msra.mxu0 0
    %5936 = vmatprep.subr.bf16.mxu0 0
    %5937 = vmatpush1.bf16.xpose.msra.mxu0 0
    %5938 = vmatprep.subr.bf16.mxu0 0
    %5939 = vmatpush1.bf16.xpose.msra.mxu0 0
    %5940 = vmatprep.subr.bf16.mxu0 0
    %5941 = vmatpush1.bf16.xpose.msra.mxu0 0
    %5942 = vmatprep.subr.bf16.mxu0 0
    %5943 = vmatpush1.bf16.xpose.msra.mxu0 0
    %5944 = vmatprep.subr.bf16.mxu0 0
    %5945 = vmatpush1.bf16.xpose.msra.mxu0 0
    %5946 = vmatprep.subr.bf16.mxu0 0
    %5947 = vmatpush1.bf16.xpose.msra.mxu0 0
    %5948 = vmatprep.subr.bf16.mxu0 0
    %5949 = vmatpush1.bf16.xpose.msra.mxu0 0
    %5950 = vmatprep.subr.bf16.mxu0 0
    %5951 = vmatpush1.bf16.xpose.msra.mxu0 0
    %5952 = vmatprep.subr.bf16.mxu0 0
    %5953 = vmatpush1.bf16.xpose.msra.mxu0 0
    %5954 = vmatprep.subr.bf16.mxu0 0
    %5955 = vmatpush1.bf16.xpose.msra.mxu0 0
    %5956 = vmatprep.subr.bf16.mxu0 0
    %5957 = vmatpush1.bf16.xpose.msra.mxu0 0
    %5958 = vmatprep.subr.bf16.mxu0 0
    %5959 = vmatpush1.bf16.xpose.msra.mxu0 0
    %5960 = vmatprep.subr.bf16.mxu0 0
    %5961 = vmatpush1.bf16.xpose.msra.mxu0 0
    %5962 = vmatprep.mubr.bf16.mxu0 0
    %5963 = vmatmul.mubr.bf16.gmra.mrb[0].mxu0 %v5925
    %v5964 = vpop.f32.mrb[0].mxu0
    %v5965 = vadd.f32 %v5663, %v5964
    %v5966 = vpop.f32.mrb[0].mxu0
    %v5967 = vpop.f32.mrb[0].mxu0
    %v5968 = vadd.f32 %v5664, %v5967
    %v5969 = vpop.f32.mrb[0].mxu0
    %5970 = vdwg.mxu0
    %v5971 = vsel %vm5668, %v5965, -inf
    %5972 = vmax.xlane.f32.xlu0 %v5971
    %v5973 = vpop.xlane.xlu0 %5972
    %v5974 = vsel %vm5668, %v5968, -inf
    %5975 = vmax.xlane.f32.xlu0 %v5974
    %v5976 = vpop.xlane.xlu0 %5975
    %v5977 = vsub.f32 %v5965, %v5973
    %v5978 = vsub.f32 %v5968, %v5976
    %v5979 = vmul.f32 %v5977, 1.442695
    %v5980 = vpow.pop %v5979
    %v5981 = vmul.f32 %v5978, 1.442695
    %v5982 = vpow.pop %v5981
    %v5983 = vsel %vm5668, %v5980, 0.0
    %5984 = vadd.xlane.f32.xlu0 %v5983
    %v5985 = vpop.xlane.xlu0 %5984
    %v5986 = vsel %vm5668, %v5982, 0.0
    %5987 = vadd.xlane.f32.xlu0 %v5986
    %v5988 = vpop.xlane.xlu0 %5987
    %v5989 = vrcp.pop %v5985
    %v5990 = vrcp.pop %v5988
    %v5991 = vmul.f32 %v5980, %v5989
    %v5992 = vmul.f32 %v5982, %v5990
    %v5993 = vpack.c.bf16 %v5992, %v5991
    %5994 = vrot.lane.b32.xlu0 %v5667, 96
    %v5995 = vpop.permute.xlu0 %5994
    %v5998 = vsel %vm5668, %v5993, 0
    %6000 = vmatprep.subr.bf16.mxu0 0
    %6001 = vmatpush1.bf16.msra.mxu0 %v5995
    %6002 = vmatprep.subr.bf16.mxu0 0
    %6003 = vmatpush1.bf16.msra.mxu0 0
    %6004 = vmatprep.subr.bf16.mxu0 0
    %6005 = vmatpush1.bf16.msra.mxu0 0
    %6006 = vmatprep.subr.bf16.mxu0 0
    %6007 = vmatpush1.bf16.msra.mxu0 0
    %6008 = vmatprep.subr.bf16.mxu0 0
    %6009 = vmatpush1.bf16.msra.mxu0 0
    %6010 = vmatprep.subr.bf16.mxu0 0
    %6011 = vmatpush1.bf16.msra.mxu0 0
    %6012 = vmatprep.subr.bf16.mxu0 0
    %6013 = vmatpush1.bf16.msra.mxu0 0
    %6014 = vmatprep.subr.bf16.mxu0 0
    %6015 = vmatpush1.bf16.msra.mxu0 0
    %6016 = vmatprep.subr.bf16.mxu0 0
    %6017 = vmatpush1.bf16.msra.mxu0 0
    %6018 = vmatprep.subr.bf16.mxu0 0
    %6019 = vmatpush1.bf16.msra.mxu0 0
    %6020 = vmatprep.subr.bf16.mxu0 0
    %6021 = vmatpush1.bf16.msra.mxu0 0
    %6022 = vmatprep.subr.bf16.mxu0 0
    %6023 = vmatpush1.bf16.msra.mxu0 0
    %6024 = vmatprep.subr.bf16.mxu0 0
    %6025 = vmatpush1.bf16.msra.mxu0 0
    %6026 = vmatprep.subr.bf16.mxu0 0
    %6027 = vmatpush1.bf16.msra.mxu0 0
    %6028 = vmatprep.subr.bf16.mxu0 0
    %6029 = vmatpush1.bf16.msra.mxu0 0
    %6030 = vmatprep.subr.bf16.mxu0 0
    %6031 = vmatpush1.bf16.msra.mxu0 0
    %6032 = vmatprep.mubr.bf16.mxu0 0
    %6033 = vmatmul.mubr.bf16.gmra.mrb[0].mxu0 %v5998
    %v6034 = vpop.f32.mrb[0].mxu0
    %v6035 = vadd.f32 0.0, %v6034
    %v6036 = vpop.f32.mrb[0].mxu0
    %v6037 = vpop.f32.mrb[0].mxu0
    %v6038 = vadd.f32 0.0, %v6037
    %v6039 = vpop.f32.mrb[0].mxu0
    %6040 = vdwg.mxu0
    %6043 = vrot.lane.b32.xlu0 %v6035, 32
    %v6044 = vpop.permute.xlu0 %6043
    %6045 = vrot.lane.b32.xlu0 %v6038, 32
    %v6046 = vpop.permute.xlu0 %6045
    %vm6049 = vcmask 392448
    %6050 = vst.msk [vmem:[#allocation4] sm:$0xff] %vm6049, %v6044
    %6051 = vst.msk [vmem:[#allocation4 + $0x8] sm:$0xff] %vm6049, %v6046
    %6052 = vrot.lane.b32.xlu0 %v5665, 80
    %v6053 = vpop.permute.xlu0 %6052
    %6054 = vrot.lane.b32.xlu0 %v5666, 80
    %v6055 = vpop.permute.xlu0 %6054
    %v6057 = vsel %vm5668, %v6053, 0
    %v6060 = vsel %vm5668, %v6055, 0
    %6062 = vmatprep.subr.bf16.mxu0 0
    %6063 = vmatpush1.bf16.xpose.msra.mxu0 %v6060
    %6064 = vmatprep.subr.bf16.mxu0 0
    %6065 = vmatpush1.bf16.xpose.msra.mxu0 0
    %6066 = vmatprep.subr.bf16.mxu0 0
    %6067 = vmatpush1.bf16.xpose.msra.mxu0 0
    %6068 = vmatprep.subr.bf16.mxu0 0
    %6069 = vmatpush1.bf16.xpose.msra.mxu0 0
    %6070 = vmatprep.subr.bf16.mxu0 0
    %6071 = vmatpush1.bf16.xpose.msra.mxu0 0
    %6072 = vmatprep.subr.bf16.mxu0 0
    %6073 = vmatpush1.bf16.xpose.msra.mxu0 0
    %6074 = vmatprep.subr.bf16.mxu0 0
    %6075 = vmatpush1.bf16.xpose.msra.mxu0 0
    %6076 = vmatprep.subr.bf16.mxu0 0
    %6077 = vmatpush1.bf16.xpose.msra.mxu0 0
    %6078 = vmatprep.subr.bf16.mxu0 0
    %6079 = vmatpush1.bf16.xpose.msra.mxu0 0
    %6080 = vmatprep.subr.bf16.mxu0 0
    %6081 = vmatpush1.bf16.xpose.msra.mxu0 0
    %6082 = vmatprep.subr.bf16.mxu0 0
    %6083 = vmatpush1.bf16.xpose.msra.mxu0 0
    %6084 = vmatprep.subr.bf16.mxu0 0
    %6085 = vmatpush1.bf16.xpose.msra.mxu0 0
    %6086 = vmatprep.subr.bf16.mxu0 0
    %6087 = vmatpush1.bf16.xpose.msra.mxu0 0
    %6088 = vmatprep.subr.bf16.mxu0 0
    %6089 = vmatpush1.bf16.xpose.msra.mxu0 0
    %6090 = vmatprep.subr.bf16.mxu0 0
    %6091 = vmatpush1.bf16.xpose.msra.mxu0 0
    %6092 = vmatprep.subr.bf16.mxu0 0
    %6093 = vmatpush1.bf16.xpose.msra.mxu0 0
    %6094 = vmatprep.mubr.bf16.mxu0 0
    %6095 = vmatmul.mubr.bf16.gmra.mrb[0].mxu0 %v6057
    %v6096 = vpop.f32.mrb[0].mxu0
    %v6097 = vadd.f32 %v5663, %v6096
    %v6098 = vpop.f32.mrb[0].mxu0
    %v6099 = vpop.f32.mrb[0].mxu0
    %v6100 = vadd.f32 %v5664, %v6099
    %v6101 = vpop.f32.mrb[0].mxu0
    %6102 = vdwg.mxu0
    %v6103 = vsel %vm5668, %v6097, -inf
    %6104 = vmax.xlane.f32.xlu0 %v6103
    %v6105 = vpop.xlane.xlu0 %6104
    %v6106 = vsel %vm5668, %v6100, -inf
    %6107 = vmax.xlane.f32.xlu0 %v6106
    %v6108 = vpop.xlane.xlu0 %6107
    %v6109 = vsub.f32 %v6097, %v6105
    %v6110 = vsub.f32 %v6100, %v6108
    %v6111 = vmul.f32 %v6109, 1.442695
    %v6112 = vpow.pop %v6111
    %v6113 = vmul.f32 %v6110, 1.442695
    %v6114 = vpow.pop %v6113
    %v6115 = vsel %vm5668, %v6112, 0.0
    %6116 = vadd.xlane.f32.xlu0 %v6115
    %v6117 = vpop.xlane.xlu0 %6116
    %v6118 = vsel %vm5668, %v6114, 0.0
    %6119 = vadd.xlane.f32.xlu0 %v6118
    %v6120 = vpop.xlane.xlu0 %6119
    %v6121 = vrcp.pop %v6117
    %v6122 = vrcp.pop %v6120
    %v6123 = vmul.f32 %v6112, %v6121
    %v6124 = vmul.f32 %v6114, %v6122
    %v6125 = vpack.c.bf16 %v6124, %v6123
    %6126 = vrot.lane.b32.xlu0 %v5667, 80
    %v6127 = vpop.permute.xlu0 %6126
    %v6130 = vsel %vm5668, %v6125, 0
    %6132 = vmatprep.subr.bf16.mxu0 0
    %6133 = vmatpush1.bf16.msra.mxu0 %v6127
    %6134 = vmatprep.subr.bf16.mxu0 0
    %6135 = vmatpush1.bf16.msra.mxu0 0
    %6136 = vmatprep.subr.bf16.mxu0 0
    %6137 = vmatpush1.bf16.msra.mxu0 0
    %6138 = vmatprep.subr.bf16.mxu0 0
    %6139 = vmatpush1.bf16.msra.mxu0 0
    %6140 = vmatprep.subr.bf16.mxu0 0
    %6141 = vmatpush1.bf16.msra.mxu0 0
    %6142 = vmatprep.subr.bf16.mxu0 0
    %6143 = vmatpush1.bf16.msra.mxu0 0
    %6144 = vmatprep.subr.bf16.mxu0 0
    %6145 = vmatpush1.bf16.msra.mxu0 0
    %6146 = vmatprep.subr.bf16.mxu0 0
    %6147 = vmatpush1.bf16.msra.mxu0 0
    %6148 = vmatprep.subr.bf16.mxu0 0
    %6149 = vmatpush1.bf16.msra.mxu0 0
    %6150 = vmatprep.subr.bf16.mxu0 0
    %6151 = vmatpush1.bf16.msra.mxu0 0
    %6152 = vmatprep.subr.bf16.mxu0 0
    %6153 = vmatpush1.bf16.msra.mxu0 0
    %6154 = vmatprep.subr.bf16.mxu0 0
    %6155 = vmatpush1.bf16.msra.mxu0 0
    %6156 = vmatprep.subr.bf16.mxu0 0
    %6157 = vmatpush1.bf16.msra.mxu0 0
    %6158 = vmatprep.subr.bf16.mxu0 0
    %6159 = vmatpush1.bf16.msra.mxu0 0
    %6160 = vmatprep.subr.bf16.mxu0 0
    %6161 = vmatpush1.bf16.msra.mxu0 0
    %6162 = vmatprep.subr.bf16.mxu0 0
    %6163 = vmatpush1.bf16.msra.mxu0 0
    %6164 = vmatprep.mubr.bf16.mxu0 0
    %6165 = vmatmul.mubr.bf16.gmra.mrb[0].mxu0 %v6130
    %v6166 = vpop.f32.mrb[0].mxu0
    %v6167 = vadd.f32 0.0, %v6166
    %v6168 = vpop.f32.mrb[0].mxu0
    %v6169 = vpop.f32.mrb[0].mxu0
    %v6170 = vadd.f32 0.0, %v6169
    %v6171 = vpop.f32.mrb[0].mxu0
    %6172 = vdwg.mxu0
    %6175 = vrot.lane.b32.xlu0 %v6167, 48
    %v6176 = vpop.permute.xlu0 %6175
    %6177 = vrot.lane.b32.xlu0 %v6170, 48
    %v6178 = vpop.permute.xlu0 %6177
    %vm6181 = vcmask 523648
    %6182 = vst.msk [vmem:[#allocation4] sm:$0xff] %vm6181, %v6176
    %6183 = vst.msk [vmem:[#allocation4 + $0x8] sm:$0xff] %vm6181, %v6178
    %6184 = vrot.lane.b32.xlu0 %v5665, 64
    %v6185 = vpop.permute.xlu0 %6184
    %6186 = vrot.lane.b32.xlu0 %v5666, 64
    %v6187 = vpop.permute.xlu0 %6186
    %v6189 = vsel %vm5668, %v6185, 0
    %v6192 = vsel %vm5668, %v6187, 0
    %6194 = vmatprep.subr.bf16.mxu0 0
    %6195 = vmatpush1.bf16.xpose.msra.mxu0 %v6192
    %6196 = vmatprep.subr.bf16.mxu0 0
    %6197 = vmatpush1.bf16.xpose.msra.mxu0 0
    %6198 = vmatprep.subr.bf16.mxu0 0
    %6199 = vmatpush1.bf16.xpose.msra.mxu0 0
    %6200 = vmatprep.subr.bf16.mxu0 0
    %6201 = vmatpush1.bf16.xpose.msra.mxu0 0
    %6202 = vmatprep.subr.bf16.mxu0 0
    %6203 = vmatpush1.bf16.xpose.msra.mxu0 0
    %6204 = vmatprep.subr.bf16.mxu0 0
    %6205 = vmatpush1.bf16.xpose.msra.mxu0 0
    %6206 = vmatprep.subr.bf16.mxu0 0
    %6207 = vmatpush1.bf16.xpose.msra.mxu0 0
    %6208 = vmatprep.subr.bf16.mxu0 0
    %6209 = vmatpush1.bf16.xpose.msra.mxu0 0
    %6210 = vmatprep.subr.bf16.mxu0 0
    %6211 = vmatpush1.bf16.xpose.msra.mxu0 0
    %6212 = vmatprep.subr.bf16.mxu0 0
    %6213 = vmatpush1.bf16.xpose.msra.mxu0 0
    %6214 = vmatprep.subr.bf16.mxu0 0
    %6215 = vmatpush1.bf16.xpose.msra.mxu0 0
    %6216 = vmatprep.subr.bf16.mxu0 0
    %6217 = vmatpush1.bf16.xpose.msra.mxu0 0
    %6218 = vmatprep.subr.bf16.mxu0 0
    %6219 = vmatpush1.bf16.xpose.msra.mxu0 0
    %6220 = vmatprep.subr.bf16.mxu0 0
    %6221 = vmatpush1.bf16.xpose.msra.mxu0 0
    %6222 = vmatprep.subr.bf16.mxu0 0
    %6223 = vmatpush1.bf16.xpose.msra.mxu0 0
    %6224 = vmatprep.subr.bf16.mxu0 0
    %6225 = vmatpush1.bf16.xpose.msra.mxu0 0
    %6226 = vmatprep.mubr.bf16.mxu0 0
    %6227 = vmatmul.mubr.bf16.gmra.mrb[0].mxu0 %v6189
    %v6228 = vpop.f32.mrb[0].mxu0
    %v6229 = vadd.f32 %v5663, %v6228
    %v6230 = vpop.f32.mrb[0].mxu0
    %v6231 = vpop.f32.mrb[0].mxu0
    %v6232 = vadd.f32 %v5664, %v6231
    %v6233 = vpop.f32.mrb[0].mxu0
    %6234 = vdwg.mxu0
    %v6235 = vsel %vm5668, %v6229, -inf
    %6236 = vmax.xlane.f32.xlu0 %v6235
    %v6237 = vpop.xlane.xlu0 %6236
    %v6238 = vsel %vm5668, %v6232, -inf
    %6239 = vmax.xlane.f32.xlu0 %v6238
    %v6240 = vpop.xlane.xlu0 %6239
    %v6241 = vsub.f32 %v6229, %v6237
    %v6242 = vsub.f32 %v6232, %v6240
    %v6243 = vmul.f32 %v6241, 1.442695
    %v6244 = vpow.pop %v6243
    %v6245 = vmul.f32 %v6242, 1.442695
    %v6246 = vpow.pop %v6245
    %v6247 = vsel %vm5668, %v6244, 0.0
    %6248 = vadd.xlane.f32.xlu0 %v6247
    %v6249 = vpop.xlane.xlu0 %6248
    %v6250 = vsel %vm5668, %v6246, 0.0
    %6251 = vadd.xlane.f32.xlu0 %v6250
    %v6252 = vpop.xlane.xlu0 %6251
    %v6253 = vrcp.pop %v6249
    %v6254 = vrcp.pop %v6252
    %v6255 = vmul.f32 %v6244, %v6253
    %v6256 = vmul.f32 %v6246, %v6254
    %v6257 = vpack.c.bf16 %v6256, %v6255
    %6258 = vrot.lane.b32.xlu0 %v5667, 64
    %v6259 = vpop.permute.xlu0 %6258
    %v6262 = vsel %vm5668, %v6257, 0
    %6264 = vmatprep.subr.bf16.mxu0 0
    %6265 = vmatpush1.bf16.msra.mxu0 %v6259
    %6266 = vmatprep.subr.bf16.mxu0 0
    %6267 = vmatpush1.bf16.msra.mxu0 0
    %6268 = vmatprep.subr.bf16.mxu0 0
    %6269 = vmatpush1.bf16.msra.mxu0 0
    %6270 = vmatprep.subr.bf16.mxu0 0
    %6271 = vmatpush1.bf16.msra.mxu0 0
    %6272 = vmatprep.subr.bf16.mxu0 0
    %6273 = vmatpush1.bf16.msra.mxu0 0
    %6274 = vmatprep.subr.bf16.mxu0 0
    %6275 = vmatpush1.bf16.msra.mxu0 0
    %6276 = vmatprep.subr.bf16.mxu0 0
    %6277 = vmatpush1.bf16.msra.mxu0 0
    %6278 = vmatprep.subr.bf16.mxu0 0
    %6279 = vmatpush1.bf16.msra.mxu0 0
    %6280 = vmatprep.subr.bf16.mxu0 0
    %6281 = vmatpush1.bf16.msra.mxu0 0
    %6282 = vmatprep.subr.bf16.mxu0 0
    %6283 = vmatpush1.bf16.msra.mxu0 0
    %6284 = vmatprep.subr.bf16.mxu0 0
    %6285 = vmatpush1.bf16.msra.mxu0 0
    %6286 = vmatprep.subr.bf16.mxu0 0
    %6287 = vmatpush1.bf16.msra.mxu0 0
    %6288 = vmatprep.subr.bf16.mxu0 0
    %6289 = vmatpush1.bf16.msra.mxu0 0
    %6290 = vmatprep.subr.bf16.mxu0 0
    %6291 = vmatpush1.bf16.msra.mxu0 0
    %6292 = vmatprep.subr.bf16.mxu0 0
    %6293 = vmatpush1.bf16.msra.mxu0 0
    %6294 = vmatprep.subr.bf16.mxu0 0
    %6295 = vmatpush1.bf16.msra.mxu0 0
    %6296 = vmatprep.mubr.bf16.mxu0 0
    %6297 = vmatmul.mubr.bf16.gmra.mrb[0].mxu0 %v6262
    %v6298 = vpop.f32.mrb[0].mxu0
    %v6299 = vadd.f32 0.0, %v6298
    %v6300 = vpop.f32.mrb[0].mxu0
    %v6301 = vpop.f32.mrb[0].mxu0
    %v6302 = vadd.f32 0.0, %v6301
    %v6303 = vpop.f32.mrb[0].mxu0
    %6304 = vdwg.mxu0
    %6307 = vrot.lane.b32.xlu0 %v6299, 64
    %v6308 = vpop.permute.xlu0 %6307
    %6309 = vrot.lane.b32.xlu0 %v6302, 64
    %v6310 = vpop.permute.xlu0 %6309
    %vm6313 = vcmask 654848
    %6314 = vst.msk [vmem:[#allocation4] sm:$0xff] %vm6313, %v6308
    %6315 = vst.msk [vmem:[#allocation4 + $0x8] sm:$0xff] %vm6313, %v6310
    %6316 = vrot.lane.b32.xlu0 %v5665, 48
    %v6317 = vpop.permute.xlu0 %6316
    %6318 = vrot.lane.b32.xlu0 %v5666, 48
    %v6319 = vpop.permute.xlu0 %6318
    %v6321 = vsel %vm5668, %v6317, 0
    %v6324 = vsel %vm5668, %v6319, 0
    %6326 = vmatprep.subr.bf16.mxu0 0
    %6327 = vmatpush1.bf16.xpose.msra.mxu0 %v6324
    %6328 = vmatprep.subr.bf16.mxu0 0
    %6329 = vmatpush1.bf16.xpose.msra.mxu0 0
    %6330 = vmatprep.subr.bf16.mxu0 0
    %6331 = vmatpush1.bf16.xpose.msra.mxu0 0
    %6332 = vmatprep.subr.bf16.mxu0 0
    %6333 = vmatpush1.bf16.xpose.msra.mxu0 0
    %6334 = vmatprep.subr.bf16.mxu0 0
    %6335 = vmatpush1.bf16.xpose.msra.mxu0 0
    %6336 = vmatprep.subr.bf16.mxu0 0
    %6337 = vmatpush1.bf16.xpose.msra.mxu0 0
    %6338 = vmatprep.subr.bf16.mxu0 0
    %6339 = vmatpush1.bf16.xpose.msra.mxu0 0
    %6340 = vmatprep.subr.bf16.mxu0 0
    %6341 = vmatpush1.bf16.xpose.msra.mxu0 0
    %6342 = vmatprep.subr.bf16.mxu0 0
    %6343 = vmatpush1.bf16.xpose.msra.mxu0 0
    %6344 = vmatprep.subr.bf16.mxu0 0
    %6345 = vmatpush1.bf16.xpose.msra.mxu0 0
    %6346 = vmatprep.subr.bf16.mxu0 0
    %6347 = vmatpush1.bf16.xpose.msra.mxu0 0
    %6348 = vmatprep.subr.bf16.mxu0 0
    %6349 = vmatpush1.bf16.xpose.msra.mxu0 0
    %6350 = vmatprep.subr.bf16.mxu0 0
    %6351 = vmatpush1.bf16.xpose.msra.mxu0 0
    %6352 = vmatprep.subr.bf16.mxu0 0
    %6353 = vmatpush1.bf16.xpose.msra.mxu0 0
    %6354 = vmatprep.subr.bf16.mxu0 0
    %6355 = vmatpush1.bf16.xpose.msra.mxu0 0
    %6356 = vmatprep.subr.bf16.mxu0 0
    %6357 = vmatpush1.bf16.xpose.msra.mxu0 0
    %6358 = vmatprep.mubr.bf16.mxu0 0
    %6359 = vmatmul.mubr.bf16.gmra.mrb[0].mxu0 %v6321
    %v6360 = vpop.f32.mrb[0].mxu0
    %v6361 = vadd.f32 %v5663, %v6360
    %v6362 = vpop.f32.mrb[0].mxu0
    %v6363 = vpop.f32.mrb[0].mxu0
    %v6364 = vadd.f32 %v5664, %v6363
    %v6365 = vpop.f32.mrb[0].mxu0
    %6366 = vdwg.mxu0
    %v6367 = vsel %vm5668, %v6361, -inf
    %6368 = vmax.xlane.f32.xlu0 %v6367
    %v6369 = vpop.xlane.xlu0 %6368
    %v6370 = vsel %vm5668, %v6364, -inf
    %6371 = vmax.xlane.f32.xlu0 %v6370
    %v6372 = vpop.xlane.xlu0 %6371
    %v6373 = vsub.f32 %v6361, %v6369
    %v6374 = vsub.f32 %v6364, %v6372
    %v6375 = vmul.f32 %v6373, 1.442695
    %v6376 = vpow.pop %v6375
    %v6377 = vmul.f32 %v6374, 1.442695
    %v6378 = vpow.pop %v6377
    %v6379 = vsel %vm5668, %v6376, 0.0
    %6380 = vadd.xlane.f32.xlu0 %v6379
    %v6381 = vpop.xlane.xlu0 %6380
    %v6382 = vsel %vm5668, %v6378, 0.0
    %6383 = vadd.xlane.f32.xlu0 %v6382
    %v6384 = vpop.xlane.xlu0 %6383
    %v6385 = vrcp.pop %v6381
    %v6386 = vrcp.pop %v6384
    %v6387 = vmul.f32 %v6376, %v6385
    %v6388 = vmul.f32 %v6378, %v6386
    %v6389 = vpack.c.bf16 %v6388, %v6387
    %6390 = vrot.lane.b32.xlu0 %v5667, 48
    %v6391 = vpop.permute.xlu0 %6390
    %v6394 = vsel %vm5668, %v6389, 0
    %6396 = vmatprep.subr.bf16.mxu0 0
    %6397 = vmatpush1.bf16.msra.mxu0 %v6391
    %6398 = vmatprep.subr.bf16.mxu0 0
    %6399 = vmatpush1.bf16.msra.mxu0 0
    %6400 = vmatprep.subr.bf16.mxu0 0
    %6401 = vmatpush1.bf16.msra.mxu0 0
    %6402 = vmatprep.subr.bf16.mxu0 0
    %6403 = vmatpush1.bf16.msra.mxu0 0
    %6404 = vmatprep.subr.bf16.mxu0 0
    %6405 = vmatpush1.bf16.msra.mxu0 0
    %6406 = vmatprep.subr.bf16.mxu0 0
    %6407 = vmatpush1.bf16.msra.mxu0 0
    %6408 = vmatprep.subr.bf16.mxu0 0
    %6409 = vmatpush1.bf16.msra.mxu0 0
    %6410 = vmatprep.subr.bf16.mxu0 0
    %6411 = vmatpush1.bf16.msra.mxu0 0
    %6412 = vmatprep.subr.bf16.mxu0 0
    %6413 = vmatpush1.bf16.msra.mxu0 0
    %6414 = vmatprep.subr.bf16.mxu0 0
    %6415 = vmatpush1.bf16.msra.mxu0 0
    %6416 = vmatprep.subr.bf16.mxu0 0
    %6417 = vmatpush1.bf16.msra.mxu0 0
    %6418 = vmatprep.subr.bf16.mxu0 0
    %6419 = vmatpush1.bf16.msra.mxu0 0
    %6420 = vmatprep.subr.bf16.mxu0 0
    %6421 = vmatpush1.bf16.msra.mxu0 0
    %6422 = vmatprep.subr.bf16.mxu0 0
    %6423 = vmatpush1.bf16.msra.mxu0 0
    %6424 = vmatprep.subr.bf16.mxu0 0
    %6425 = vmatpush1.bf16.msra.mxu0 0
    %6426 = vmatprep.subr.bf16.mxu0 0
    %6427 = vmatpush1.bf16.msra.mxu0 0
    %6428 = vmatprep.mubr.bf16.mxu0 0
    %6429 = vmatmul.mubr.bf16.gmra.mrb[0].mxu0 %v6394
    %v6430 = vpop.f32.mrb[0].mxu0
    %v6431 = vadd.f32 0.0, %v6430
    %v6432 = vpop.f32.mrb[0].mxu0
    %v6433 = vpop.f32.mrb[0].mxu0
    %v6434 = vadd.f32 0.0, %v6433
    %v6435 = vpop.f32.mrb[0].mxu0
    %6436 = vdwg.mxu0
    %6439 = vrot.lane.b32.xlu0 %v6431, 80
    %v6440 = vpop.permute.xlu0 %6439
    %6441 = vrot.lane.b32.xlu0 %v6434, 80
    %v6442 = vpop.permute.xlu0 %6441
    %vm6445 = vcmask 786048
    %6446 = vst.msk [vmem:[#allocation4] sm:$0xff] %vm6445, %v6440
    %6447 = vst.msk [vmem:[#allocation4 + $0x8] sm:$0xff] %vm6445, %v6442
    %6448 = vrot.lane.b32.xlu0 %v5665, 32
    %v6449 = vpop.permute.xlu0 %6448
    %6450 = vrot.lane.b32.xlu0 %v5666, 32
    %v6451 = vpop.permute.xlu0 %6450
    %v6453 = vsel %vm5668, %v6449, 0
    %v6456 = vsel %vm5668, %v6451, 0
    %6458 = vmatprep.subr.bf16.mxu0 0
    %6459 = vmatpush1.bf16.xpose.msra.mxu0 %v6456
    %6460 = vmatprep.subr.bf16.mxu0 0
    %6461 = vmatpush1.bf16.xpose.msra.mxu0 0
    %6462 = vmatprep.subr.bf16.mxu0 0
    %6463 = vmatpush1.bf16.xpose.msra.mxu0 0
    %6464 = vmatprep.subr.bf16.mxu0 0
    %6465 = vmatpush1.bf16.xpose.msra.mxu0 0
    %6466 = vmatprep.subr.bf16.mxu0 0
    %6467 = vmatpush1.bf16.xpose.msra.mxu0 0
    %6468 = vmatprep.subr.bf16.mxu0 0
    %6469 = vmatpush1.bf16.xpose.msra.mxu0 0
    %6470 = vmatprep.subr.bf16.mxu0 0
    %6471 = vmatpush1.bf16.xpose.msra.mxu0 0
    %6472 = vmatprep.subr.bf16.mxu0 0
    %6473 = vmatpush1.bf16.xpose.msra.mxu0 0
    %6474 = vmatprep.subr.bf16.mxu0 0
    %6475 = vmatpush1.bf16.xpose.msra.mxu0 0
    %6476 = vmatprep.subr.bf16.mxu0 0
    %6477 = vmatpush1.bf16.xpose.msra.mxu0 0
    %6478 = vmatprep.subr.bf16.mxu0 0
    %6479 = vmatpush1.bf16.xpose.msra.mxu0 0
    %6480 = vmatprep.subr.bf16.mxu0 0
    %6481 = vmatpush1.bf16.xpose.msra.mxu0 0
    %6482 = vmatprep.subr.bf16.mxu0 0
    %6483 = vmatpush1.bf16.xpose.msra.mxu0 0
    %6484 = vmatprep.subr.bf16.mxu0 0
    %6485 = vmatpush1.bf16.xpose.msra.mxu0 0
    %6486 = vmatprep.subr.bf16.mxu0 0
    %6487 = vmatpush1.bf16.xpose.msra.mxu0 0
    %6488 = vmatprep.subr.bf16.mxu0 0
    %6489 = vmatpush1.bf16.xpose.msra.mxu0 0
    %6490 = vmatprep.mubr.bf16.mxu0 0
    %6491 = vmatmul.mubr.bf16.gmra.mrb[0].mxu0 %v6453
    %v6492 = vpop.f32.mrb[0].mxu0
    %v6493 = vadd.f32 %v5663, %v6492
    %v6494 = vpop.f32.mrb[0].mxu0
    %v6495 = vpop.f32.mrb[0].mxu0
    %v6496 = vadd.f32 %v5664, %v6495
    %v6497 = vpop.f32.mrb[0].mxu0
    %6498 = vdwg.mxu0
    %v6499 = vsel %vm5668, %v6493, -inf
    %6500 = vmax.xlane.f32.xlu0 %v6499
    %v6501 = vpop.xlane.xlu0 %6500
    %v6502 = vsel %vm5668, %v6496, -inf
    %6503 = vmax.xlane.f32.xlu0 %v6502
    %v6504 = vpop.xlane.xlu0 %6503
    %v6505 = vsub.f32 %v6493, %v6501
    %v6506 = vsub.f32 %v6496, %v6504
    %v6507 = vmul.f32 %v6505, 1.442695
    %v6508 = vpow.pop %v6507
    %v6509 = vmul.f32 %v6506, 1.442695
    %v6510 = vpow.pop %v6509
    %v6511 = vsel %vm5668, %v6508, 0.0
    %6512 = vadd.xlane.f32.xlu0 %v6511
    %v6513 = vpop.xlane.xlu0 %6512
    %v6514 = vsel %vm5668, %v6510, 0.0
    %6515 = vadd.xlane.f32.xlu0 %v6514
    %v6516 = vpop.xlane.xlu0 %6515
    %v6517 = vrcp.pop %v6513
    %v6518 = vrcp.pop %v6516
    %v6519 = vmul.f32 %v6508, %v6517
    %v6520 = vmul.f32 %v6510, %v6518
    %v6521 = vpack.c.bf16 %v6520, %v6519
    %6522 = vrot.lane.b32.xlu0 %v5667, 32
    %v6523 = vpop.permute.xlu0 %6522
    %v6526 = vsel %vm5668, %v6521, 0
    %6528 = vmatprep.subr.bf16.mxu0 0
    %6529 = vmatpush1.bf16.msra.mxu0 %v6523
    %6530 = vmatprep.subr.bf16.mxu0 0
    %6531 = vmatpush1.bf16.msra.mxu0 0
    %6532 = vmatprep.subr.bf16.mxu0 0
    %6533 = vmatpush1.bf16.msra.mxu0 0
    %6534 = vmatprep.subr.bf16.mxu0 0
    %6535 = vmatpush1.bf16.msra.mxu0 0
    %6536 = vmatprep.subr.bf16.mxu0 0
    %6537 = vmatpush1.bf16.msra.mxu0 0
    %6538 = vmatprep.subr.bf16.mxu0 0
    %6539 = vmatpush1.bf16.msra.mxu0 0
    %6540 = vmatprep.subr.bf16.mxu0 0
    %6541 = vmatpush1.bf16.msra.mxu0 0
    %6542 = vmatprep.subr.bf16.mxu0 0
    %6543 = vmatpush1.bf16.msra.mxu0 0
    %6544 = vmatprep.subr.bf16.mxu0 0
    %6545 = vmatpush1.bf16.msra.mxu0 0
    %6546 = vmatprep.subr.bf16.mxu0 0
    %6547 = vmatpush1.bf16.msra.mxu0 0
    %6548 = vmatprep.subr.bf16.mxu0 0
    %6549 = vmatpush1.bf16.msra.mxu0 0
    %6550 = vmatprep.subr.bf16.mxu0 0
    %6551 = vmatpush1.bf16.msra.mxu0 0
    %6552 = vmatprep.subr.bf16.mxu0 0
    %6553 = vmatpush1.bf16.msra.mxu0 0
    %6554 = vmatprep.subr.bf16.mxu0 0
    %6555 = vmatpush1.bf16.msra.mxu0 0
    %6556 = vmatprep.subr.bf16.mxu0 0
    %6557 = vmatpush1.bf16.msra.mxu0 0
    %6558 = vmatprep.subr.bf16.mxu0 0
    %6559 = vmatpush1.bf16.msra.mxu0 0
    %6560 = vmatprep.mubr.bf16.mxu0 0
    %6561 = vmatmul.mubr.bf16.gmra.mrb[0].mxu0 %v6526
    %v6562 = vpop.f32.mrb[0].mxu0
    %v6563 = vadd.f32 0.0, %v6562
    %v6564 = vpop.f32.mrb[0].mxu0
    %v6565 = vpop.f32.mrb[0].mxu0
    %v6566 = vadd.f32 0.0, %v6565
    %v6567 = vpop.f32.mrb[0].mxu0
    %6568 = vdwg.mxu0
    %6571 = vrot.lane.b32.xlu0 %v6563, 96
    %v6572 = vpop.permute.xlu0 %6571
    %6573 = vrot.lane.b32.xlu0 %v6566, 96
    %v6574 = vpop.permute.xlu0 %6573
    %vm6577 = vcmask 917248
    %6578 = vst.msk [vmem:[#allocation4] sm:$0xff] %vm6577, %v6572
    %6579 = vst.msk [vmem:[#allocation4 + $0x8] sm:$0xff] %vm6577, %v6574
    %6580 = vrot.lane.b32.xlu0 %v5665, 16
    %v6581 = vpop.permute.xlu0 %6580
    %6582 = vrot.lane.b32.xlu0 %v5666, 16
    %v6583 = vpop.permute.xlu0 %6582
    %v6585 = vsel %vm5668, %v6581, 0
    %v6588 = vsel %vm5668, %v6583, 0
    %6590 = vmatprep.subr.bf16.mxu0 0
    %6591 = vmatpush1.bf16.xpose.msra.mxu0 %v6588
    %6592 = vmatprep.subr.bf16.mxu0 0
    %6593 = vmatpush1.bf16.xpose.msra.mxu0 0
    %6594 = vmatprep.subr.bf16.mxu0 0
    %6595 = vmatpush1.bf16.xpose.msra.mxu0 0
    %6596 = vmatprep.subr.bf16.mxu0 0
    %6597 = vmatpush1.bf16.xpose.msra.mxu0 0
    %6598 = vmatprep.subr.bf16.mxu0 0
    %6599 = vmatpush1.bf16.xpose.msra.mxu0 0
    %6600 = vmatprep.subr.bf16.mxu0 0
    %6601 = vmatpush1.bf16.xpose.msra.mxu0 0
    %6602 = vmatprep.subr.bf16.mxu0 0
    %6603 = vmatpush1.bf16.xpose.msra.mxu0 0
    %6604 = vmatprep.subr.bf16.mxu0 0
    %6605 = vmatpush1.bf16.xpose.msra.mxu0 0
    %6606 = vmatprep.subr.bf16.mxu0 0
    %6607 = vmatpush1.bf16.xpose.msra.mxu0 0
    %6608 = vmatprep.subr.bf16.mxu0 0
    %6609 = vmatpush1.bf16.xpose.msra.mxu0 0
    %6610 = vmatprep.subr.bf16.mxu0 0
    %6611 = vmatpush1.bf16.xpose.msra.mxu0 0
    %6612 = vmatprep.subr.bf16.mxu0 0
    %6613 = vmatpush1.bf16.xpose.msra.mxu0 0
    %6614 = vmatprep.subr.bf16.mxu0 0
    %6615 = vmatpush1.bf16.xpose.msra.mxu0 0
    %6616 = vmatprep.subr.bf16.mxu0 0
    %6617 = vmatpush1.bf16.xpose.msra.mxu0 0
    %6618 = vmatprep.subr.bf16.mxu0 0
    %6619 = vmatpush1.bf16.xpose.msra.mxu0 0
    %6620 = vmatprep.subr.bf16.mxu0 0
    %6621 = vmatpush1.bf16.xpose.msra.mxu0 0
    %6622 = vmatprep.mubr.bf16.mxu0 0
    %6623 = vmatmul.mubr.bf16.gmra.mrb[0].mxu0 %v6585
    %v6624 = vpop.f32.mrb[0].mxu0
    %v6625 = vadd.f32 %v5663, %v6624
    %v6626 = vpop.f32.mrb[0].mxu0
    %v6627 = vpop.f32.mrb[0].mxu0
    %v6628 = vadd.f32 %v5664, %v6627
    %v6629 = vpop.f32.mrb[0].mxu0
    %6630 = vdwg.mxu0
    %v6631 = vsel %vm5668, %v6625, -inf
    %6632 = vmax.xlane.f32.xlu0 %v6631
    %v6633 = vpop.xlane.xlu0 %6632
    %v6634 = vsel %vm5668, %v6628, -inf
    %6635 = vmax.xlane.f32.xlu0 %v6634
    %v6636 = vpop.xlane.xlu0 %6635
    %v6637 = vsub.f32 %v6625, %v6633
    %v6638 = vsub.f32 %v6628, %v6636
    %v6639 = vmul.f32 %v6637, 1.442695
    %v6640 = vpow.pop %v6639
    %v6641 = vmul.f32 %v6638, 1.442695
    %v6642 = vpow.pop %v6641
    %v6643 = vsel %vm5668, %v6640, 0.0
    %6644 = vadd.xlane.f32.xlu0 %v6643
    %v6645 = vpop.xlane.xlu0 %6644
    %v6646 = vsel %vm5668, %v6642, 0.0
    %6647 = vadd.xlane.f32.xlu0 %v6646
    %v6648 = vpop.xlane.xlu0 %6647
    %v6649 = vrcp.pop %v6645
    %v6650 = vrcp.pop %v6648
    %v6651 = vmul.f32 %v6640, %v6649
    %v6652 = vmul.f32 %v6642, %v6650
    %v6653 = vpack.c.bf16 %v6652, %v6651
    %6654 = vrot.lane.b32.xlu0 %v5667, 16
    %v6655 = vpop.permute.xlu0 %6654
    %v6658 = vsel %vm5668, %v6653, 0
    %6660 = vmatprep.subr.bf16.mxu0 0
    %6661 = vmatpush1.bf16.msra.mxu0 %v6655
    %6662 = vmatprep.subr.bf16.mxu0 0
    %6663 = vmatpush1.bf16.msra.mxu0 0
    %6664 = vmatprep.subr.bf16.mxu0 0
    %6665 = vmatpush1.bf16.msra.mxu0 0
    %6666 = vmatprep.subr.bf16.mxu0 0
    %6667 = vmatpush1.bf16.msra.mxu0 0
    %6668 = vmatprep.subr.bf16.mxu0 0
    %6669 = vmatpush1.bf16.msra.mxu0 0
    %6670 = vmatprep.subr.bf16.mxu0 0
    %6671 = vmatpush1.bf16.msra.mxu0 0
    %6672 = vmatprep.subr.bf16.mxu0 0
    %6673 = vmatpush1.bf16.msra.mxu0 0
    %6674 = vmatprep.subr.bf16.mxu0 0
    %6675 = vmatpush1.bf16.msra.mxu0 0
    %6676 = vmatprep.subr.bf16.mxu0 0
    %6677 = vmatpush1.bf16.msra.mxu0 0
    %6678 = vmatprep.subr.bf16.mxu0 0
    %6679 = vmatpush1.bf16.msra.mxu0 0
    %6680 = vmatprep.subr.bf16.mxu0 0
    %6681 = vmatpush1.bf16.msra.mxu0 0
    %6682 = vmatprep.subr.bf16.mxu0 0
    %6683 = vmatpush1.bf16.msra.mxu0 0
    %6684 = vmatprep.subr.bf16.mxu0 0
    %6685 = vmatpush1.bf16.msra.mxu0 0
    %6686 = vmatprep.subr.bf16.mxu0 0
    %6687 = vmatpush1.bf16.msra.mxu0 0
    %6688 = vmatprep.subr.bf16.mxu0 0
    %6689 = vmatpush1.bf16.msra.mxu0 0
    %6690 = vmatprep.subr.bf16.mxu0 0
    %6691 = vmatpush1.bf16.msra.mxu0 0
    %6692 = vmatprep.mubr.bf16.mxu0 0
    %6693 = vmatmul.mubr.bf16.gmra.mrb[0].mxu0 %v6658
    %v6694 = vpop.f32.mrb[0].mxu0
    %v6695 = vadd.f32 0.0, %v6694
    %v6696 = vpop.f32.mrb[0].mxu0
    %v6697 = vpop.f32.mrb[0].mxu0
    %v6698 = vadd.f32 0.0, %v6697
    %v6699 = vpop.f32.mrb[0].mxu0
    %6700 = vdwg.mxu0
    %6703 = vrot.lane.b32.xlu0 %v6695, 112
    %v6704 = vpop.permute.xlu0 %6703
    %6705 = vrot.lane.b32.xlu0 %v6698, 112
    %v6706 = vpop.permute.xlu0 %6705
    %vm6709 = vcmask 1048448
    %6710 = vst.msk [vmem:[#allocation4] sm:$0xff] %vm6709, %v6704
    %6711 = vst.msk [vmem:[#allocation4 + $0x8] sm:$0xff] %vm6709, %v6706
    %v6712 = vld [vmem:[#allocation4] sm:$0xff]
    %v6713 = vld [vmem:[#allocation4 + $0x8] sm:$0xff]
    %v6714 = vpack.c.bf16 %v6713, %v6712
    %v6715 = vld [vmem:[%s49] sm:$0xf]
    %v6716 = vld [vmem:[%s49 + $0x4] sm:$0xf]
    %v6717 = vld [vmem:[%s49 + $0x8] sm:$0xf]
    %v6718 = vld [vmem:[%s49 + $0xc] sm:$0xf]
    %v6719 = vld [vmem:[%s49 + $0x10] sm:$0xf]
    %v6720 = vld [vmem:[%s49 + $0x14] sm:$0xf]
    %v6721 = vld [vmem:[%s49 + $0x18] sm:$0xf]
    %v6722 = vld [vmem:[%s49 + $0x1c] sm:$0xf]
    %v6723 = vld [vmem:[%s49 + $0x20] sm:$0xf]
    %v6724 = vld [vmem:[%s49 + $0x24] sm:$0xf]
    %v6725 = vld [vmem:[%s49 + $0x28] sm:$0xf]
    %v6726 = vld [vmem:[%s49 + $0x2c] sm:$0xf]
    %v6727 = vld [vmem:[%s49 + $0x30] sm:$0xf]
    %v6728 = vld [vmem:[%s49 + $0x34] sm:$0xf]
    %v6729 = vld [vmem:[%s49 + $0x38] sm:$0xf]
    %v6730 = vld [vmem:[%s49 + $0x3c] sm:$0xf]
    %v6731 = vld [vmem:[#allocation22] sm:$0x1]
    %v6733 = vlaneseq
    %v6734 = vshrl.u32 %v6733, 7
    %v6735 = vsub.s32 0, %v6734
    %v6736 = vrot.slane %v6731, %v6735
    %v6754 = vunpack.c.l.b16 %v6715
    %v6755 = vunpack.c.l.b16 %v6716
    %v6756 = vunpack.c.l.b16 %v6717
    %v6757 = vunpack.c.l.b16 %v6718
    %v6758 = vunpack.c.l.b16 %v6719
    %v6759 = vunpack.c.l.b16 %v6720
    %v6760 = vunpack.c.l.b16 %v6721
    %v6761 = vunpack.c.l.b16 %v6722
    %v6762 = vunpack.c.l.b16 %v6723
    %v6763 = vunpack.c.l.b16 %v6724
    %v6764 = vunpack.c.l.b16 %v6725
    %v6765 = vunpack.c.l.b16 %v6726
    %v6766 = vunpack.c.l.b16 %v6727
    %v6767 = vunpack.c.l.b16 %v6728
    %v6768 = vunpack.c.l.b16 %v6729
    %v6769 = vunpack.c.l.b16 %v6730
    %v6770 = vpack.c.b16 %v6755, %v6754
    %v6771 = vpack.c.b16 %v6757, %v6756
    %v6772 = vpack.c.b16 %v6759, %v6758
    %v6773 = vpack.c.b16 %v6761, %v6760
    %v6774 = vpack.c.b16 %v6763, %v6762
    %v6775 = vpack.c.b16 %v6765, %v6764
    %v6776 = vpack.c.b16 %v6767, %v6766
    %v6777 = vpack.c.b16 %v6769, %v6768
    %6786 = vmatprep.subr.bf16.mxu0 0
    %6787 = vmatpush1.bf16.msra.mxu0 %v6770
    %6788 = vmatprep.subr.bf16.mxu0 0
    %6789 = vmatpush1.bf16.msra.mxu0 %v6771
    %6790 = vmatprep.subr.bf16.mxu0 0
    %6791 = vmatpush1.bf16.msra.mxu0 %v6772
    %6792 = vmatprep.subr.bf16.mxu0 0
    %6793 = vmatpush1.bf16.msra.mxu0 %v6773
    %6794 = vmatprep.subr.bf16.mxu0 0
    %6795 = vmatpush1.bf16.msra.mxu0 %v6774
    %6796 = vmatprep.subr.bf16.mxu0 0
    %6797 = vmatpush1.bf16.msra.mxu0 %v6775
    %6798 = vmatprep.subr.bf16.mxu0 0
    %6799 = vmatpush1.bf16.msra.mxu0 %v6776
    %6800 = vmatprep.subr.bf16.mxu0 0
    %6801 = vmatpush1.bf16.msra.mxu0 %v6777
    %6802 = vmatprep.subr.bf16.mxu0 0
    %6803 = vmatpush1.bf16.msra.mxu0 0
    %6804 = vmatprep.subr.bf16.mxu0 0
    %6805 = vmatpush1.bf16.msra.mxu0 0
    %6806 = vmatprep.subr.bf16.mxu0 0
    %6807 = vmatpush1.bf16.msra.mxu0 0
    %6808 = vmatprep.subr.bf16.mxu0 0
    %6809 = vmatpush1.bf16.msra.mxu0 0
    %6810 = vmatprep.subr.bf16.mxu0 0
    %6811 = vmatpush1.bf16.msra.mxu0 0
    %6812 = vmatprep.subr.bf16.mxu0 0
    %6813 = vmatpush1.bf16.msra.mxu0 0
    %6814 = vmatprep.subr.bf16.mxu0 0
    %6815 = vmatpush1.bf16.msra.mxu0 0
    %6816 = vmatprep.subr.bf16.mxu0 0
    %6817 = vmatpush1.bf16.msra.mxu0 0
    %6818 = vmatprep.mubr.bf16.mxu0 0
    %6819 = vmatmul.mubr.bf16.gmra.mrb[0].mxu0 %v6714
    %v6820 = vpop.f32.mrb[0].mxu0
    %v6821 = vadd.f32 %v6736, %v6820
    %v6822 = vpop.f32.mrb[0].mxu0
    %v6823 = vpop.f32.mrb[0].mxu0
    %v6824 = vadd.f32 %v6736, %v6823
    %v6825 = vpop.f32.mrb[0].mxu0
    %6826 = vdwg.mxu0
    %v6827 = vld [vmem:[#allocation10] sm:$0x3]
    %v6829 = vsel %vm5668, %v6827, 0
    %6831 = vmatprep.subr.mxu0 0.0
    %6832 = vmatpush1.msra.mxu0 %v6821
    %6833 = vmatprep.subr.mxu0 0.0
    %6834 = vmatpush1.msra.mxu0 %v6824
    %6835 = vmatprep.subr.mxu0 0.0
    %6836 = vmatpush1.msra.mxu0 0.0
    %6837 = vmatprep.subr.mxu0 0.0
    %6838 = vmatpush1.msra.mxu0 0.0
    %6839 = vmatprep.subr.mxu0 0.0
    %6840 = vmatpush1.msra.mxu0 0.0
    %6841 = vmatprep.subr.mxu0 0.0
    %6842 = vmatpush1.msra.mxu0 0.0
    %6843 = vmatprep.subr.mxu0 0.0
    %6844 = vmatpush1.msra.mxu0 0.0
    %6845 = vmatprep.subr.mxu0 0.0
    %6846 = vmatpush1.msra.mxu0 0.0
    %6847 = vmatprep.subr.mxu0 0.0
    %6848 = vmatpush1.msra.mxu0 0.0
    %6849 = vmatprep.subr.mxu0 0.0
    %6850 = vmatpush1.msra.mxu0 0.0
    %6851 = vmatprep.subr.mxu0 0.0
    %6852 = vmatpush1.msra.mxu0 0.0
    %6853 = vmatprep.subr.mxu0 0.0
    %6854 = vmatpush1.msra.mxu0 0.0
    %6855 = vmatprep.subr.mxu0 0.0
    %6856 = vmatpush1.msra.mxu0 0.0
    %6857 = vmatprep.subr.mxu0 0.0
    %6858 = vmatpush1.msra.mxu0 0.0
    %6859 = vmatprep.subr.mxu0 0.0
    %6860 = vmatpush1.msra.mxu0 0.0
    %6861 = vmatprep.subr.mxu0 0.0
    %6862 = vmatpush1.msra.mxu0 0.0
    %6863 = vmatprep.subr.mxu0 0.0
    %6864 = vmatpush1.msra.mxu0 0.0
    %6865 = vmatprep.subr.mxu0 0.0
    %6866 = vmatpush1.msra.mxu0 0.0
    %6867 = vmatprep.subr.mxu0 0.0
    %6868 = vmatpush1.msra.mxu0 0.0
    %6869 = vmatprep.subr.mxu0 0.0
    %6870 = vmatpush1.msra.mxu0 0.0
    %6871 = vmatprep.subr.mxu0 0.0
    %6872 = vmatpush1.msra.mxu0 0.0
    %6873 = vmatprep.subr.mxu0 0.0
    %6874 = vmatpush1.msra.mxu0 0.0
    %6875 = vmatprep.subr.mxu0 0.0
    %6876 = vmatpush1.msra.mxu0 0.0
    %6877 = vmatprep.subr.mxu0 0.0
    %6878 = vmatpush1.msra.mxu0 0.0
    %6879 = vmatprep.subr.mxu0 0.0
    %6880 = vmatpush1.msra.mxu0 0.0
    %6881 = vmatprep.subr.mxu0 0.0
    %6882 = vmatpush1.msra.mxu0 0.0
    %6883 = vmatprep.subr.mxu0 0.0
    %6884 = vmatpush1.msra.mxu0 0.0
    %6885 = vmatprep.subr.mxu0 0.0
    %6886 = vmatpush1.msra.mxu0 0.0
    %6887 = vmatprep.subr.mxu0 0.0
    %6888 = vmatpush1.msra.mxu0 0.0
    %6889 = vmatprep.subr.mxu0 0.0
    %6890 = vmatpush1.msra.mxu0 0.0
    %6891 = vmatprep.subr.mxu0 0.0
    %6892 = vmatpush1.msra.mxu0 0.0
    %6893 = vmatprep.subr.mxu0 0.0
    %6894 = vmatpush1.msra.mxu0 0.0
    %6895 = vmatprep.mubr.f32.mxu0 0.0
    %6896 = vmatmul.mubr.f32.gmra.mrb[0].mxu0 %v6829
    %v6897 = vpop.f32.mrb[0].mxu0
    %v6898 = vadd.f32 0.0, %v6897
    %v6899 = vpop.f32.mrb[0].mxu0
    %6900 = vdwg.mxu0
    %v6901 = vpack.c.bf16 %v6898, %v6898
    %v6902 = vld [vmem:[%s53] sm:$0xf]
    %v6903 = vld [vmem:[%s53 + $0x4] sm:$0xf]
    %v6904 = vld [vmem:[%s53 + $0x8] sm:$0xf]
    %v6905 = vld [vmem:[%s53 + $0xc] sm:$0xf]
    %v6906 = vld [vmem:[%s53 + $0x10] sm:$0xf]
    %v6907 = vld [vmem:[%s53 + $0x14] sm:$0xf]
    %v6908 = vld [vmem:[%s53 + $0x18] sm:$0xf]
    %v6909 = vld [vmem:[%s53 + $0x1c] sm:$0xf]
    %v6910 = vld [vmem:[%s53 + $0x20] sm:$0xf]
    %v6911 = vld [vmem:[%s53 + $0x24] sm:$0xf]
    %v6912 = vld [vmem:[%s53 + $0x28] sm:$0xf]
    %v6913 = vld [vmem:[%s53 + $0x2c] sm:$0xf]
    %v6914 = vld [vmem:[%s53 + $0x30] sm:$0xf]
    %v6915 = vld [vmem:[%s53 + $0x34] sm:$0xf]
    %v6916 = vld [vmem:[%s53 + $0x38] sm:$0xf]
    %v6917 = vld [vmem:[%s53 + $0x3c] sm:$0xf]
    %v6918 = vld [vmem:[#allocation23] sm:$0x1]
    %v6920 = vlaneseq
    %v6921 = vshrl.u32 %v6920, 7
    %v6922 = vsub.s32 0, %v6921
    %v6923 = vrot.slane %v6918, %v6922
    %v6941 = vunpack.c.l.b16 %v6902
    %v6942 = vunpack.c.l.b16 %v6903
    %v6943 = vunpack.c.l.b16 %v6904
    %v6944 = vunpack.c.l.b16 %v6905
    %v6945 = vunpack.c.l.b16 %v6906
    %v6946 = vunpack.c.l.b16 %v6907
    %v6947 = vunpack.c.l.b16 %v6908
    %v6948 = vunpack.c.l.b16 %v6909
    %v6949 = vunpack.c.l.b16 %v6910
    %v6950 = vunpack.c.l.b16 %v6911
    %v6951 = vunpack.c.l.b16 %v6912
    %v6952 = vunpack.c.l.b16 %v6913
    %v6953 = vunpack.c.l.b16 %v6914
    %v6954 = vunpack.c.l.b16 %v6915
    %v6955 = vunpack.c.l.b16 %v6916
    %v6956 = vunpack.c.l.b16 %v6917
    %v6957 = vpack.c.b16 %v6942, %v6941
    %v6958 = vpack.c.b16 %v6944, %v6943
    %v6959 = vpack.c.b16 %v6946, %v6945
    %v6960 = vpack.c.b16 %v6948, %v6947
    %v6961 = vpack.c.b16 %v6950, %v6949
    %v6962 = vpack.c.b16 %v6952, %v6951
    %v6963 = vpack.c.b16 %v6954, %v6953
    %v6964 = vpack.c.b16 %v6956, %v6955
    %6973 = vmatprep.subr.bf16.mxu0 0
    %6974 = vmatpush1.bf16.msra.mxu0 %v6957
    %6975 = vmatprep.subr.bf16.mxu0 0
    %6976 = vmatpush1.bf16.msra.mxu0 %v6958
    %6977 = vmatprep.subr.bf16.mxu0 0
    %6978 = vmatpush1.bf16.msra.mxu0 %v6959
    %6979 = vmatprep.subr.bf16.mxu0 0
    %6980 = vmatpush1.bf16.msra.mxu0 %v6960
    %6981 = vmatprep.subr.bf16.mxu0 0
    %6982 = vmatpush1.bf16.msra.mxu0 %v6961
    %6983 = vmatprep.subr.bf16.mxu0 0
    %6984 = vmatpush1.bf16.msra.mxu0 %v6962
    %6985 = vmatprep.subr.bf16.mxu0 0
    %6986 = vmatpush1.bf16.msra.mxu0 %v6963
    %6987 = vmatprep.subr.bf16.mxu0 0
    %6988 = vmatpush1.bf16.msra.mxu0 %v6964
    %6989 = vmatprep.subr.bf16.mxu0 0
    %6990 = vmatpush1.bf16.msra.mxu0 0
    %6991 = vmatprep.subr.bf16.mxu0 0
    %6992 = vmatpush1.bf16.msra.mxu0 0
    %6993 = vmatprep.subr.bf16.mxu0 0
    %6994 = vmatpush1.bf16.msra.mxu0 0
    %6995 = vmatprep.subr.bf16.mxu0 0
    %6996 = vmatpush1.bf16.msra.mxu0 0
    %6997 = vmatprep.subr.bf16.mxu0 0
    %6998 = vmatpush1.bf16.msra.mxu0 0
    %6999 = vmatprep.subr.bf16.mxu0 0
    %7000 = vmatpush1.bf16.msra.mxu0 0
    %7001 = vmatprep.subr.bf16.mxu0 0
    %7002 = vmatpush1.bf16.msra.mxu0 0
    %7003 = vmatprep.subr.bf16.mxu0 0
    %7004 = vmatpush1.bf16.msra.mxu0 0
    %7005 = vmatprep.mubr.bf16.mxu0 0
    %7006 = vmatmul.mubr.bf16.gmra.mrb[0].mxu0 %v6901
    %v7007 = vpop.f32.mrb[0].mxu0
    %v7008 = vadd.f32 %v6923, %v7007
    %v7009 = vpop.f32.mrb[0].mxu0
    %v7010 = vpop.f32.mrb[0].mxu0
    %v7011 = vpop.f32.mrb[0].mxu0
    %7012 = vdwg.mxu0
    %v7013 = vmax.f32 %v7008, 0.0
    %v7014 = vpack.c.bf16 %v7013, %v7013
    %v7015 = vld [vmem:[%s57] sm:$0xf]
    %v7016 = vld [vmem:[%s57 + $0x4] sm:$0xf]
    %v7017 = vld [vmem:[%s57 + $0x8] sm:$0xf]
    %v7018 = vld [vmem:[%s57 + $0xc] sm:$0xf]
    %v7019 = vld [vmem:[%s57 + $0x10] sm:$0xf]
    %v7020 = vld [vmem:[%s57 + $0x14] sm:$0xf]
    %v7021 = vld [vmem:[%s57 + $0x18] sm:$0xf]
    %v7022 = vld [vmem:[%s57 + $0x1c] sm:$0xf]
    %v7023 = vld [vmem:[%s59] sm:$0x1]
    %v7025 = vlaneseq
    %v7026 = vshrl.u32 %v7025, 7
    %v7027 = vsub.s32 0, %v7026
    %v7028 = vrot.slane %v7023, %v7027
    %v7038 = vunpack.c.l.b16 %v7015
    %v7039 = vunpack.c.l.b16 %v7016
    %v7040 = vunpack.c.l.b16 %v7017
    %v7041 = vunpack.c.l.b16 %v7018
    %v7042 = vunpack.c.l.b16 %v7019
    %v7043 = vunpack.c.l.b16 %v7020
    %v7044 = vunpack.c.l.b16 %v7021
    %v7045 = vunpack.c.l.b16 %v7022
    %v7046 = vpack.c.b16 %v7039, %v7038
    %v7047 = vpack.c.b16 %v7041, %v7040
    %v7048 = vpack.c.b16 %v7043, %v7042
    %v7049 = vpack.c.b16 %v7045, %v7044
    %v7055 = vsel %vm612, %v7014, 0
    %7057 = vmatprep.subr.bf16.mxu0 0
    %7058 = vmatpush1.bf16.msra.mxu0 %v7046
    %7059 = vmatprep.subr.bf16.mxu0 0
    %7060 = vmatpush1.bf16.msra.mxu0 %v7047
    %7061 = vmatprep.subr.bf16.mxu0 0
    %7062 = vmatpush1.bf16.msra.mxu0 %v7048
    %7063 = vmatprep.subr.bf16.mxu0 0
    %7064 = vmatpush1.bf16.msra.mxu0 %v7049
    %7065 = vmatprep.subr.bf16.mxu0 0
    %7066 = vmatpush1.bf16.msra.mxu0 0
    %7067 = vmatprep.subr.bf16.mxu0 0
    %7068 = vmatpush1.bf16.msra.mxu0 0
    %7069 = vmatprep.subr.bf16.mxu0 0
    %7070 = vmatpush1.bf16.msra.mxu0 0
    %7071 = vmatprep.subr.bf16.mxu0 0
    %7072 = vmatpush1.bf16.msra.mxu0 0
    %7073 = vmatprep.subr.bf16.mxu0 0
    %7074 = vmatpush1.bf16.msra.mxu0 0
    %7075 = vmatprep.subr.bf16.mxu0 0
    %7076 = vmatpush1.bf16.msra.mxu0 0
    %7077 = vmatprep.subr.bf16.mxu0 0
    %7078 = vmatpush1.bf16.msra.mxu0 0
    %7079 = vmatprep.subr.bf16.mxu0 0
    %7080 = vmatpush1.bf16.msra.mxu0 0
    %7081 = vmatprep.subr.bf16.mxu0 0
    %7082 = vmatpush1.bf16.msra.mxu0 0
    %7083 = vmatprep.subr.bf16.mxu0 0
    %7084 = vmatpush1.bf16.msra.mxu0 0
    %7085 = vmatprep.subr.bf16.mxu0 0
    %7086 = vmatpush1.bf16.msra.mxu0 0
    %7087 = vmatprep.subr.bf16.mxu0 0
    %7088 = vmatpush1.bf16.msra.mxu0 0
    %7089 = vmatprep.mubr.bf16.mxu0 0
    %7090 = vmatmul.mubr.bf16.gmra.mrb[0].mxu0 %v7055
    %v7091 = vpop.f32.mrb[0].mxu0
    %v7092 = vadd.f32 %v7028, %v7091
    %v7093 = vpop.f32.mrb[0].mxu0
    %v7094 = vpop.f32.mrb[0].mxu0
    %v7095 = vpop.f32.mrb[0].mxu0
    %7096 = vdwg.mxu0
    %v7097 = vmax.f32 %v7092, 0.0
    %vm7098 = vcmask 254976
    %7099 = vst.msk [vmem:[#allocation26] sm:$0x3] %vm7098, %v7097
    %v7100 = vpack.c.bf16 %v7097, %v7097
    %v7101 = vld [vmem:[#allocation25] sm:$0xf]
    %v7102 = vld [vmem:[#allocation25 + $0x4] sm:$0xf]
    %v7103 = vld [vmem:[#allocation25 + $0x8] sm:$0xf]
    %v7104 = vld [vmem:[#allocation25 + $0xc] sm:$0xf]
    %v7105 = vld [vmem:[%s63] sm:$0x1]
    %v7107 = vlaneseq
    %v7108 = vshrl.u32 %v7107, 7
    %v7109 = vsub.s32 0, %v7108
    %v7110 = vrot.slane %v7105, %v7109
    %v7116 = vunpack.c.l.b16 %v7101
    %v7117 = vunpack.c.l.b16 %v7102
    %v7118 = vunpack.c.l.b16 %v7103
    %v7119 = vunpack.c.l.b16 %v7104
    %v7120 = vpack.c.b16 %v7117, %v7116
    %v7121 = vpack.c.b16 %v7119, %v7118
    %v7125 = vsel %vm430, %v7100, 0
    %7127 = vmatprep.subr.bf16.mxu0 0
    %7128 = vmatpush1.bf16.msra.mxu0 %v7120
    %7129 = vmatprep.subr.bf16.mxu0 0
    %7130 = vmatpush1.bf16.msra.mxu0 %v7121
    %7131 = vmatprep.subr.bf16.mxu0 0
    %7132 = vmatpush1.bf16.msra.mxu0 0
    %7133 = vmatprep.subr.bf16.mxu0 0
    %7134 = vmatpush1.bf16.msra.mxu0 0
    %7135 = vmatprep.subr.bf16.mxu0 0
    %7136 = vmatpush1.bf16.msra.mxu0 0
    %7137 = vmatprep.subr.bf16.mxu0 0
    %7138 = vmatpush1.bf16.msra.mxu0 0
    %7139 = vmatprep.subr.bf16.mxu0 0
    %7140 = vmatpush1.bf16.msra.mxu0 0
    %7141 = vmatprep.subr.bf16.mxu0 0
    %7142 = vmatpush1.bf16.msra.mxu0 0
    %7143 = vmatprep.subr.bf16.mxu0 0
    %7144 = vmatpush1.bf16.msra.mxu0 0
    %7145 = vmatprep.subr.bf16.mxu0 0
    %7146 = vmatpush1.bf16.msra.mxu0 0
    %7147 = vmatprep.subr.bf16.mxu0 0
    %7148 = vmatpush1.bf16.msra.mxu0 0
    %7149 = vmatprep.subr.bf16.mxu0 0
    %7150 = vmatpush1.bf16.msra.mxu0 0
    %7151 = vmatprep.subr.bf16.mxu0 0
    %7152 = vmatpush1.bf16.msra.mxu0 0
    %7153 = vmatprep.subr.bf16.mxu0 0
    %7154 = vmatpush1.bf16.msra.mxu0 0
    %7155 = vmatprep.subr.bf16.mxu0 0
    %7156 = vmatpush1.bf16.msra.mxu0 0
    %7157 = vmatprep.subr.bf16.mxu0 0
    %7158 = vmatpush1.bf16.msra.mxu0 0
    %7159 = vmatprep.mubr.bf16.mxu0 0
    %7160 = vmatmul.mubr.bf16.gmra.mrb[0].mxu0 %v7125
    %v7161 = vpop.f32.mrb[0].mxu0
    %v7162 = vadd.f32 %v7110, %v7161
    %v7163 = vpop.f32.mrb[0].mxu0
    %v7164 = vpop.f32.mrb[0].mxu0
    %v7165 = vpop.f32.mrb[0].mxu0
    %7166 = vdwg.mxu0
    %v7167 = vmax.f32 %v7162, 0.0
    %v7168 = vpack.c.bf16 %v7167, %v7167
    %v7169 = vld [vmem:[%s65] sm:$0xf]
    %v7170 = vld [vmem:[%s65 + $0x4] sm:$0xf]
    %v7171 = vld [vmem:[%s65 + $0x8] sm:$0xf]
    %v7172 = vld [vmem:[%s65 + $0xc] sm:$0xf]
    %v7173 = vld [vmem:[%s65 + $0x10] sm:$0xf]
    %v7174 = vld [vmem:[%s65 + $0x14] sm:$0xf]
    %v7175 = vld [vmem:[%s65 + $0x18] sm:$0xf]
    %v7176 = vld [vmem:[%s65 + $0x1c] sm:$0xf]
    %v7177 = vld [vmem:[%s65 + $0x20] sm:$0xf]
    %v7178 = vld [vmem:[%s65 + $0x24] sm:$0xf]
    %v7179 = vld [vmem:[%s65 + $0x28] sm:$0xf]
    %v7180 = vld [vmem:[%s65 + $0x2c] sm:$0xf]
    %v7181 = vld [vmem:[%s65 + $0x30] sm:$0xf]
    %v7182 = vld [vmem:[%s65 + $0x34] sm:$0xf]
    %v7183 = vld [vmem:[%s65 + $0x38] sm:$0xf]
    %v7184 = vld [vmem:[%s65 + $0x3c] sm:$0xf]
    %v7185 = vld [vmem:[%s67] sm:$0x1]
    %v7187 = vlaneseq
    %v7188 = vshrl.u32 %v7187, 7
    %v7189 = vsub.s32 0, %v7188
    %v7190 = vrot.slane %v7185, %v7189
    %v7208 = vunpack.c.l.b16 %v7169
    %v7209 = vunpack.c.l.b16 %v7170
    %v7210 = vunpack.c.l.b16 %v7171
    %v7211 = vunpack.c.l.b16 %v7172
    %v7212 = vunpack.c.l.b16 %v7173
    %v7213 = vunpack.c.l.b16 %v7174
    %v7214 = vunpack.c.l.b16 %v7175
    %v7215 = vunpack.c.l.b16 %v7176
    %v7216 = vunpack.c.l.b16 %v7177
    %v7217 = vunpack.c.l.b16 %v7178
    %v7218 = vunpack.c.l.b16 %v7179
    %v7219 = vunpack.c.l.b16 %v7180
    %v7220 = vunpack.c.l.b16 %v7181
    %v7221 = vunpack.c.l.b16 %v7182
    %v7222 = vunpack.c.l.b16 %v7183
    %v7223 = vunpack.c.l.b16 %v7184
    %v7224 = vpack.c.b16 %v7209, %v7208
    %v7225 = vpack.c.b16 %v7211, %v7210
    %v7226 = vpack.c.b16 %v7213, %v7212
    %v7227 = vpack.c.b16 %v7215, %v7214
    %v7228 = vpack.c.b16 %v7217, %v7216
    %v7229 = vpack.c.b16 %v7219, %v7218
    %v7230 = vpack.c.b16 %v7221, %v7220
    %v7231 = vpack.c.b16 %v7223, %v7222
    %7240 = vmatprep.subr.bf16.mxu0 0
    %7241 = vmatpush1.bf16.msra.mxu0 %v7224
    %7242 = vmatprep.subr.bf16.mxu0 0
    %7243 = vmatpush1.bf16.msra.mxu0 %v7225
    %7244 = vmatprep.subr.bf16.mxu0 0
    %7245 = vmatpush1.bf16.msra.mxu0 %v7226
    %7246 = vmatprep.subr.bf16.mxu0 0
    %7247 = vmatpush1.bf16.msra.mxu0 %v7227
    %7248 = vmatprep.subr.bf16.mxu0 0
    %7249 = vmatpush1.bf16.msra.mxu0 %v7228
    %7250 = vmatprep.subr.bf16.mxu0 0
    %7251 = vmatpush1.bf16.msra.mxu0 %v7229
    %7252 = vmatprep.subr.bf16.mxu0 0
    %7253 = vmatpush1.bf16.msra.mxu0 %v7230
    %7254 = vmatprep.subr.bf16.mxu0 0
    %7255 = vmatpush1.bf16.msra.mxu0 %v7231
    %7256 = vmatprep.subr.bf16.mxu0 0
    %7257 = vmatpush1.bf16.msra.mxu0 0
    %7258 = vmatprep.subr.bf16.mxu0 0
    %7259 = vmatpush1.bf16.msra.mxu0 0
    %7260 = vmatprep.subr.bf16.mxu0 0
    %7261 = vmatpush1.bf16.msra.mxu0 0
    %7262 = vmatprep.subr.bf16.mxu0 0
    %7263 = vmatpush1.bf16.msra.mxu0 0
    %7264 = vmatprep.subr.bf16.mxu0 0
    %7265 = vmatpush1.bf16.msra.mxu0 0
    %7266 = vmatprep.subr.bf16.mxu0 0
    %7267 = vmatpush1.bf16.msra.mxu0 0
    %7268 = vmatprep.subr.bf16.mxu0 0
    %7269 = vmatpush1.bf16.msra.mxu0 0
    %7270 = vmatprep.subr.bf16.mxu0 0
    %7271 = vmatpush1.bf16.msra.mxu0 0
    %7272 = vmatprep.mubr.bf16.mxu0 0
    %7273 = vmatmul.mubr.bf16.gmra.mrb[0].mxu0 %v7168
    %v7274 = vpop.f32.mrb[0].mxu0
    %v7275 = vadd.f32 %v7190, %v7274
    %v7276 = vpop.f32.mrb[0].mxu0
    %v7277 = vpop.f32.mrb[0].mxu0
    %v7278 = vpop.f32.mrb[0].mxu0
    %7279 = vdwg.mxu0
    %v7280 = vmax.f32 %v7275, 0.0
    %v7281 = vpack.c.bf16 %v7280, %v7280
    %v7282 = vld [vmem:[%s69] sm:$0xf]
    %v7283 = vld [vmem:[%s69 + $0x4] sm:$0xf]
    %v7284 = vld [vmem:[%s69 + $0x8] sm:$0xf]
    %v7285 = vld [vmem:[%s69 + $0xc] sm:$0xf]
    %v7286 = vld [vmem:[%s69 + $0x10] sm:$0xf]
    %v7287 = vld [vmem:[%s69 + $0x14] sm:$0xf]
    %v7288 = vld [vmem:[%s69 + $0x18] sm:$0xf]
    %v7289 = vld [vmem:[%s69 + $0x1c] sm:$0xf]
    %v7290 = vld [vmem:[#allocation5] sm:$0x1]
    %v7292 = vlaneseq
    %v7293 = vshrl.u32 %v7292, 7
    %v7294 = vsub.s32 0, %v7293
    %v7295 = vrot.slane %v7290, %v7294
    %v7305 = vunpack.c.l.b16 %v7282
    %v7306 = vunpack.c.l.b16 %v7283
    %v7307 = vunpack.c.l.b16 %v7284
    %v7308 = vunpack.c.l.b16 %v7285
    %v7309 = vunpack.c.l.b16 %v7286
    %v7310 = vunpack.c.l.b16 %v7287
    %v7311 = vunpack.c.l.b16 %v7288
    %v7312 = vunpack.c.l.b16 %v7289
    %v7313 = vpack.c.b16 %v7306, %v7305
    %v7314 = vpack.c.b16 %v7308, %v7307
    %v7315 = vpack.c.b16 %v7310, %v7309
    %v7316 = vpack.c.b16 %v7312, %v7311
    %v7322 = vsel %vm612, %v7281, 0
    %7324 = vmatprep.subr.bf16.mxu0 0
    %7325 = vmatpush1.bf16.msra.mxu0 %v7313
    %7326 = vmatprep.subr.bf16.mxu0 0
    %7327 = vmatpush1.bf16.msra.mxu0 %v7314
    %7328 = vmatprep.subr.bf16.mxu0 0
    %7329 = vmatpush1.bf16.msra.mxu0 %v7315
    %7330 = vmatprep.subr.bf16.mxu0 0
    %7331 = vmatpush1.bf16.msra.mxu0 %v7316
    %7332 = vmatprep.subr.bf16.mxu0 0
    %7333 = vmatpush1.bf16.msra.mxu0 0
    %7334 = vmatprep.subr.bf16.mxu0 0
    %7335 = vmatpush1.bf16.msra.mxu0 0
    %7336 = vmatprep.subr.bf16.mxu0 0
    %7337 = vmatpush1.bf16.msra.mxu0 0
    %7338 = vmatprep.subr.bf16.mxu0 0
    %7339 = vmatpush1.bf16.msra.mxu0 0
    %7340 = vmatprep.subr.bf16.mxu0 0
    %7341 = vmatpush1.bf16.msra.mxu0 0
    %7342 = vmatprep.subr.bf16.mxu0 0
    %7343 = vmatpush1.bf16.msra.mxu0 0
    %7344 = vmatprep.subr.bf16.mxu0 0
    %7345 = vmatpush1.bf16.msra.mxu0 0
    %7346 = vmatprep.subr.bf16.mxu0 0
    %7347 = vmatpush1.bf16.msra.mxu0 0
    %7348 = vmatprep.subr.bf16.mxu0 0
    %7349 = vmatpush1.bf16.msra.mxu0 0
    %7350 = vmatprep.subr.bf16.mxu0 0
    %7351 = vmatpush1.bf16.msra.mxu0 0
    %7352 = vmatprep.subr.bf16.mxu0 0
    %7353 = vmatpush1.bf16.msra.mxu0 0
    %7354 = vmatprep.subr.bf16.mxu0 0
    %7355 = vmatpush1.bf16.msra.mxu0 0
    %7356 = vmatprep.mubr.bf16.mxu0 0
    %7357 = vmatmul.mubr.bf16.gmra.mrb[0].mxu0 %v7322
    %v7358 = vpop.f32.mrb[0].mxu0
    %v7359 = vadd.f32 %v7295, %v7358
    %v7360 = vpop.f32.mrb[0].mxu0
    %v7361 = vpop.f32.mrb[0].mxu0
    %v7362 = vpop.f32.mrb[0].mxu0
    %7363 = vdwg.mxu0
    %v7364 = vxor.u32 %v7359, 2147483648
    %v7365 = vmul.f32 %v7364, 1.442695
    %v7366 = vpow.pop %v7365
    %v7367 = vadd.f32 %v7366, 1.0
    %v7368 = vrcp.pop %v7367
    %v7369 = vmul.f32 1.0, %v7368
    %vm7370 = vcmask 1024
    %7371 = vst.msk [vmem:[%s87] sm:$0x3] %vm7370, %v7369
    %v7372 = vld [vmem:[%s73] sm:$0xff]
    %v7373 = vld [vmem:[%s73 + $0x8] sm:$0xff]
    %v7374 = vld [vmem:[%s73 + $0x10] sm:$0xff]
    %v7375 = vld [vmem:[%s73 + $0x18] sm:$0xff]
    %v7376 = vld [vmem:[%s75] sm:$0x3]
    %v7378 = vlaneseq
    %v7379 = vshrl.u32 %v7378, 7
    %v7380 = vsub.s32 0, %v7379
    %v7381 = vrot.slane %v7376, %v7380
    %v7382 = vlaneseq
    %v7383 = vshrl.u32 %v7382, 7
    %v7384 = vsub.s32 1, %v7383
    %v7385 = vrot.slane %v7376, %v7384
    %v7392 = vunpack.c.l.b16 %v7372
    %v7393 = vunpack.c.h.b16 %v7372
    %v7394 = vunpack.c.l.b16 %v7373
    %v7395 = vunpack.c.h.b16 %v7373
    %v7396 = vunpack.c.l.b16 %v7374
    %v7397 = vunpack.c.h.b16 %v7374
    %v7398 = vunpack.c.l.b16 %v7375
    %v7399 = vunpack.c.h.b16 %v7375
    %v7400 = vpack.c.b16 %v7394, %v7392
    %v7401 = vpack.c.b16 %v7395, %v7393
    %v7402 = vpack.c.b16 %v7398, %v7396
    %v7403 = vpack.c.b16 %v7399, %v7397
    %7408 = vmatprep.subr.bf16.mxu0 %v7401
    %7409 = vmatpush1.bf16.msra.mxu0 %v7400
    %7410 = vmatprep.subr.bf16.mxu0 %v7403
    %7411 = vmatpush1.bf16.msra.mxu0 %v7402
    %7412 = vmatprep.subr.bf16.mxu0 0
    %7413 = vmatpush1.bf16.msra.mxu0 0
    %7414 = vmatprep.subr.bf16.mxu0 0
    %7415 = vmatpush1.bf16.msra.mxu0 0
    %7416 = vmatprep.subr.bf16.mxu0 0
    %7417 = vmatpush1.bf16.msra.mxu0 0
    %7418 = vmatprep.subr.bf16.mxu0 0
    %7419 = vmatpush1.bf16.msra.mxu0 0
    %7420 = vmatprep.subr.bf16.mxu0 0
    %7421 = vmatpush1.bf16.msra.mxu0 0
    %7422 = vmatprep.subr.bf16.mxu0 0
    %7423 = vmatpush1.bf16.msra.mxu0 0
    %7424 = vmatprep.subr.bf16.mxu0 0
    %7425 = vmatpush1.bf16.msra.mxu0 0
    %7426 = vmatprep.subr.bf16.mxu0 0
    %7427 = vmatpush1.bf16.msra.mxu0 0
    %7428 = vmatprep.subr.bf16.mxu0 0
    %7429 = vmatpush1.bf16.msra.mxu0 0
    %7430 = vmatprep.subr.bf16.mxu0 0
    %7431 = vmatpush1.bf16.msra.mxu0 0
    %7432 = vmatprep.subr.bf16.mxu0 0
    %7433 = vmatpush1.bf16.msra.mxu0 0
    %7434 = vmatprep.subr.bf16.mxu0 0
    %7435 = vmatpush1.bf16.msra.mxu0 0
    %7436 = vmatprep.subr.bf16.mxu0 0
    %7437 = vmatpush1.bf16.msra.mxu0 0
    %7438 = vmatprep.subr.bf16.mxu0 0
    %7439 = vmatpush1.bf16.msra.mxu0 0
    %7440 = vmatprep.mubr.bf16.mxu0 0
    %7441 = vmatmul.mubr.bf16.gmra.mrb[0].mxu0 %v7125
    %v7442 = vpop.f32.mrb[0].mxu0
    %v7443 = vadd.f32 %v7381, %v7442
    %v7444 = vpop.f32.mrb[0].mxu0
    %v7445 = vadd.f32 %v7385, %v7444
    %v7446 = vpop.f32.mrb[0].mxu0
    %v7447 = vpop.f32.mrb[0].mxu0
    %7448 = vdwg.mxu0
    %v7449 = vmax.f32 %v7443, 0.0
    %v7450 = vmax.f32 %v7445, 0.0
    %v7451 = vpack.c.bf16 %v7449, %v7449
    %v7452 = vpack.c.bf16 %v7450, %v7450
    %v7453 = vld [vmem:[%s77] sm:$0xf]
    %v7454 = vld [vmem:[%s77 + $0x4] sm:$0xf]
    %v7455 = vld [vmem:[%s77 + $0x8] sm:$0xf]
    %v7456 = vld [vmem:[%s77 + $0xc] sm:$0xf]
    %v7457 = vld [vmem:[%s77 + $0x10] sm:$0xf]
    %v7458 = vld [vmem:[%s77 + $0x14] sm:$0xf]
    %v7459 = vld [vmem:[%s77 + $0x18] sm:$0xf]
    %v7460 = vld [vmem:[%s77 + $0x1c] sm:$0xf]
    %v7461 = vld [vmem:[%s77 + $0x20] sm:$0xf]
    %v7462 = vld [vmem:[%s77 + $0x24] sm:$0xf]
    %v7463 = vld [vmem:[%s77 + $0x28] sm:$0xf]
    %v7464 = vld [vmem:[%s77 + $0x2c] sm:$0xf]
    %v7465 = vld [vmem:[%s77 + $0x30] sm:$0xf]
    %v7466 = vld [vmem:[%s77 + $0x34] sm:$0xf]
    %v7467 = vld [vmem:[%s77 + $0x38] sm:$0xf]
    %v7468 = vld [vmem:[%s77 + $0x3c] sm:$0xf]
    %v7469 = vld [vmem:[%s77 + $0x40] sm:$0xf]
    %v7470 = vld [vmem:[%s77 + $0x44] sm:$0xf]
    %v7471 = vld [vmem:[%s77 + $0x48] sm:$0xf]
    %v7472 = vld [vmem:[%s77 + $0x4c] sm:$0xf]
    %v7473 = vld [vmem:[%s77 + $0x50] sm:$0xf]
    %v7474 = vld [vmem:[%s77 + $0x54] sm:$0xf]
    %v7475 = vld [vmem:[%s77 + $0x58] sm:$0xf]
    %v7476 = vld [vmem:[%s77 + $0x5c] sm:$0xf]
    %v7477 = vld [vmem:[%s77 + $0x60] sm:$0xf]
    %v7478 = vld [vmem:[%s77 + $0x64] sm:$0xf]
    %v7479 = vld [vmem:[%s77 + $0x68] sm:$0xf]
    %v7480 = vld [vmem:[%s77 + $0x6c] sm:$0xf]
    %v7481 = vld [vmem:[%s77 + $0x70] sm:$0xf]
    %v7482 = vld [vmem:[%s77 + $0x74] sm:$0xf]
    %v7483 = vld [vmem:[%s77 + $0x78] sm:$0xf]
    %v7484 = vld [vmem:[%s77 + $0x7c] sm:$0xf]
    %v7485 = vld [vmem:[%s79] sm:$0x1]
    %v7487 = vlaneseq
    %v7488 = vshrl.u32 %v7487, 7
    %v7489 = vsub.s32 0, %v7488
    %v7490 = vrot.slane %v7485, %v7489
    %v7524 = vunpack.c.l.b16 %v7453
    %v7525 = vunpack.c.l.b16 %v7454
    %v7526 = vunpack.c.l.b16 %v7455
    %v7527 = vunpack.c.l.b16 %v7456
    %v7528 = vunpack.c.l.b16 %v7457
    %v7529 = vunpack.c.l.b16 %v7458
    %v7530 = vunpack.c.l.b16 %v7459
    %v7531 = vunpack.c.l.b16 %v7460
    %v7532 = vunpack.c.l.b16 %v7461
    %v7533 = vunpack.c.l.b16 %v7462
    %v7534 = vunpack.c.l.b16 %v7463
    %v7535 = vunpack.c.l.b16 %v7464
    %v7536 = vunpack.c.l.b16 %v7465
    %v7537 = vunpack.c.l.b16 %v7466
    %v7538 = vunpack.c.l.b16 %v7467
    %v7539 = vunpack.c.l.b16 %v7468
    %v7540 = vunpack.c.l.b16 %v7469
    %v7541 = vunpack.c.l.b16 %v7470
    %v7542 = vunpack.c.l.b16 %v7471
    %v7543 = vunpack.c.l.b16 %v7472
    %v7544 = vunpack.c.l.b16 %v7473
    %v7545 = vunpack.c.l.b16 %v7474
    %v7546 = vunpack.c.l.b16 %v7475
    %v7547 = vunpack.c.l.b16 %v7476
    %v7548 = vunpack.c.l.b16 %v7477
    %v7549 = vunpack.c.l.b16 %v7478
    %v7550 = vunpack.c.l.b16 %v7479
    %v7551 = vunpack.c.l.b16 %v7480
    %v7552 = vunpack.c.l.b16 %v7481
    %v7553 = vunpack.c.l.b16 %v7482
    %v7554 = vunpack.c.l.b16 %v7483
    %v7555 = vunpack.c.l.b16 %v7484
    %v7556 = vpack.c.b16 %v7525, %v7524
    %v7557 = vpack.c.b16 %v7527, %v7526
    %v7558 = vpack.c.b16 %v7529, %v7528
    %v7559 = vpack.c.b16 %v7531, %v7530
    %v7560 = vpack.c.b16 %v7533, %v7532
    %v7561 = vpack.c.b16 %v7535, %v7534
    %v7562 = vpack.c.b16 %v7537, %v7536
    %v7563 = vpack.c.b16 %v7539, %v7538
    %v7564 = vpack.c.b16 %v7541, %v7540
    %v7565 = vpack.c.b16 %v7543, %v7542
    %v7566 = vpack.c.b16 %v7545, %v7544
    %v7567 = vpack.c.b16 %v7547, %v7546
    %v7568 = vpack.c.b16 %v7549, %v7548
    %v7569 = vpack.c.b16 %v7551, %v7550
    %v7570 = vpack.c.b16 %v7553, %v7552
    %v7571 = vpack.c.b16 %v7555, %v7554
    %7588 = vmatprep.subr.bf16.mxu0 0
    %7589 = vmatpush1.bf16.msra.mxu0 %v7556
    %7590 = vmatprep.subr.bf16.mxu0 0
    %7591 = vmatpush1.bf16.msra.mxu0 %v7557
    %7592 = vmatprep.subr.bf16.mxu0 0
    %7593 = vmatpush1.bf16.msra.mxu0 %v7558
    %7594 = vmatprep.subr.bf16.mxu0 0
    %7595 = vmatpush1.bf16.msra.mxu0 %v7559
    %7596 = vmatprep.subr.bf16.mxu0 0
    %7597 = vmatpush1.bf16.msra.mxu0 %v7560
    %7598 = vmatprep.subr.bf16.mxu0 0
    %7599 = vmatpush1.bf16.msra.mxu0 %v7561
    %7600 = vmatprep.subr.bf16.mxu0 0
    %7601 = vmatpush1.bf16.msra.mxu0 %v7562
    %7602 = vmatprep.subr.bf16.mxu0 0
    %7603 = vmatpush1.bf16.msra.mxu0 %v7563
    %7604 = vmatprep.subr.bf16.mxu0 0
    %7605 = vmatpush1.bf16.msra.mxu0 %v7564
    %7606 = vmatprep.subr.bf16.mxu0 0
    %7607 = vmatpush1.bf16.msra.mxu0 %v7565
    %7608 = vmatprep.subr.bf16.mxu0 0
    %7609 = vmatpush1.bf16.msra.mxu0 %v7566
    %7610 = vmatprep.subr.bf16.mxu0 0
    %7611 = vmatpush1.bf16.msra.mxu0 %v7567
    %7612 = vmatprep.subr.bf16.mxu0 0
    %7613 = vmatpush1.bf16.msra.mxu0 %v7568
    %7614 = vmatprep.subr.bf16.mxu0 0
    %7615 = vmatpush1.bf16.msra.mxu0 %v7569
    %7616 = vmatprep.subr.bf16.mxu0 0
    %7617 = vmatpush1.bf16.msra.mxu0 %v7570
    %7618 = vmatprep.subr.bf16.mxu0 0
    %7619 = vmatpush1.bf16.msra.mxu0 %v7571
    %7620 = vmatprep.mubr.bf16.mxu0 %v7452
    %7621 = vmatmul.mubr.bf16.gmra.mrb[0].mxu0 %v7451
    %v7622 = vpop.f32.mrb[0].mxu0
    %v7623 = vadd.f32 %v7490, %v7622
    %v7624 = vpop.f32.mrb[0].mxu0
    %v7625 = vpop.f32.mrb[0].mxu0
    %v7626 = vpop.f32.mrb[0].mxu0
    %7627 = vdwg.mxu0
    %v7628 = vmax.f32 %v7623, 0.0
    %v7629 = vpack.c.bf16 %v7628, %v7628
    %v7630 = vld [vmem:[%s81] sm:$0xf]
    %v7631 = vld [vmem:[%s81 + $0x4] sm:$0xf]
    %v7632 = vld [vmem:[%s81 + $0x8] sm:$0xf]
    %v7633 = vld [vmem:[%s81 + $0xc] sm:$0xf]
    %v7634 = vld [vmem:[%s81 + $0x10] sm:$0xf]
    %v7635 = vld [vmem:[%s81 + $0x14] sm:$0xf]
    %v7636 = vld [vmem:[%s81 + $0x18] sm:$0xf]
    %v7637 = vld [vmem:[%s81 + $0x1c] sm:$0xf]
    %v7638 = vld [vmem:[%s81 + $0x20] sm:$0xf]
    %v7639 = vld [vmem:[%s81 + $0x24] sm:$0xf]
    %v7640 = vld [vmem:[%s81 + $0x28] sm:$0xf]
    %v7641 = vld [vmem:[%s81 + $0x2c] sm:$0xf]
    %v7642 = vld [vmem:[%s81 + $0x30] sm:$0xf]
    %v7643 = vld [vmem:[%s81 + $0x34] sm:$0xf]
    %v7644 = vld [vmem:[%s81 + $0x38] sm:$0xf]
    %v7645 = vld [vmem:[%s81 + $0x3c] sm:$0xf]
    %v7646 = vld [vmem:[%s83] sm:$0x1]
    %v7648 = vlaneseq
    %v7649 = vshrl.u32 %v7648, 7
    %v7650 = vsub.s32 0, %v7649
    %v7651 = vrot.slane %v7646, %v7650
    %v7669 = vunpack.c.l.b16 %v7630
    %v7670 = vunpack.c.l.b16 %v7631
    %v7671 = vunpack.c.l.b16 %v7632
    %v7672 = vunpack.c.l.b16 %v7633
    %v7673 = vunpack.c.l.b16 %v7634
    %v7674 = vunpack.c.l.b16 %v7635
    %v7675 = vunpack.c.l.b16 %v7636
    %v7676 = vunpack.c.l.b16 %v7637
    %v7677 = vunpack.c.l.b16 %v7638
    %v7678 = vunpack.c.l.b16 %v7639
    %v7679 = vunpack.c.l.b16 %v7640
    %v7680 = vunpack.c.l.b16 %v7641
    %v7681 = vunpack.c.l.b16 %v7642
    %v7682 = vunpack.c.l.b16 %v7643
    %v7683 = vunpack.c.l.b16 %v7644
    %v7684 = vunpack.c.l.b16 %v7645
    %v7685 = vpack.c.b16 %v7670, %v7669
    %v7686 = vpack.c.b16 %v7672, %v7671
    %v7687 = vpack.c.b16 %v7674, %v7673
    %v7688 = vpack.c.b16 %v7676, %v7675
    %v7689 = vpack.c.b16 %v7678, %v7677
    %v7690 = vpack.c.b16 %v7680, %v7679
    %v7691 = vpack.c.b16 %v7682, %v7681
    %v7692 = vpack.c.b16 %v7684, %v7683
    %7701 = vmatprep.subr.bf16.mxu0 0
    %7702 = vmatpush1.bf16.msra.mxu0 %v7685
    %7703 = vmatprep.subr.bf16.mxu0 0
    %7704 = vmatpush1.bf16.msra.mxu0 %v7686
    %7705 = vmatprep.subr.bf16.mxu0 0
    %7706 = vmatpush1.bf16.msra.mxu0 %v7687
    %7707 = vmatprep.subr.bf16.mxu0 0
    %7708 = vmatpush1.bf16.msra.mxu0 %v7688
    %7709 = vmatprep.subr.bf16.mxu0 0
    %7710 = vmatpush1.bf16.msra.mxu0 %v7689
    %7711 = vmatprep.subr.bf16.mxu0 0
    %7712 = vmatpush1.bf16.msra.mxu0 %v7690
    %7713 = vmatprep.subr.bf16.mxu0 0
    %7714 = vmatpush1.bf16.msra.mxu0 %v7691
    %7715 = vmatprep.subr.bf16.mxu0 0
    %7716 = vmatpush1.bf16.msra.mxu0 %v7692
    %7717 = vmatprep.subr.bf16.mxu0 0
    %7718 = vmatpush1.bf16.msra.mxu0 0
    %7719 = vmatprep.subr.bf16.mxu0 0
    %7720 = vmatpush1.bf16.msra.mxu0 0
    %7721 = vmatprep.subr.bf16.mxu0 0
    %7722 = vmatpush1.bf16.msra.mxu0 0
    %7723 = vmatprep.subr.bf16.mxu0 0
    %7724 = vmatpush1.bf16.msra.mxu0 0
    %7725 = vmatprep.subr.bf16.mxu0 0
    %7726 = vmatpush1.bf16.msra.mxu0 0
    %7727 = vmatprep.subr.bf16.mxu0 0
    %7728 = vmatpush1.bf16.msra.mxu0 0
    %7729 = vmatprep.subr.bf16.mxu0 0
    %7730 = vmatpush1.bf16.msra.mxu0 0
    %7731 = vmatprep.subr.bf16.mxu0 0
    %7732 = vmatpush1.bf16.msra.mxu0 0
    %7733 = vmatprep.mubr.bf16.mxu0 0
    %7734 = vmatmul.mubr.bf16.gmra.mrb[0].mxu0 %v7629
    %v7735 = vpop.f32.mrb[0].mxu0
    %v7736 = vadd.f32 %v7651, %v7735
    %v7737 = vpop.f32.mrb[0].mxu0
    %v7738 = vpop.f32.mrb[0].mxu0
    %v7739 = vpop.f32.mrb[0].mxu0
    %7740 = vdwg.mxu0
    %vm7741 = vcmask 33792
    %7742 = vst.msk [vmem:[#allocation27] sm:$0x3] %vm7741, %v7736
    // Predicated region
    $region218: #{tpu_custom_call.1} parent=1 // pred_check
      _
    $region219: #{tpu_custom_call.1} parent=1 // pred_check_branch
      %7744 = sbr.rel (0) target = $region221
    $region220: #{tpu_custom_call.1} parent=1 // pred_region
      %s7746 = ssub.s32 32, 32
      %7747 = vsyncadd [#allocation8], %s7746
      %s7749 = sshll.u32 [#allocation26], 4
      %s7750 = int_to_ptr.vmem [resolvable:$true] %s7749
      %7752 = dma.vmem_to_hbm [thread:$0]  %s7750, 32, %s85, [#allocation8]
    $region221: #{tpu_custom_call.1} parent=1 // pred_fallthru
      _
    // Predicated region
    $region222: #{tpu_custom_call.1} parent=1 // pred_check
      _
    $region223: #{tpu_custom_call.1} parent=1 // pred_check_branch
      %7754 = sbr.rel (0) target = $region225
    $region224: #{tpu_custom_call.1} parent=1 // pred_region
      _
    $region225: #{tpu_custom_call.1} parent=1 // pred_fallthru
      _
    // Predicated region
    $region226: #{tpu_custom_call.1} parent=1 // pred_check
      _
    $region227: #{tpu_custom_call.1} parent=1 // pred_check_branch
      %7756 = sbr.rel (0) target = $region229
    $region228: #{tpu_custom_call.1} parent=1 // pred_region
      %s7758 = ssub.s32 32, 32
      %7759 = vsyncadd [#allocation28], %s7758
      %s7761 = sshll.u32 [#allocation27], 4
      %s7762 = int_to_ptr.vmem [resolvable:$true] %s7761
      %7764 = dma.vmem_to_hbm [thread:$0]  %s7762, 32, %s89, [#allocation28]
    $region229: #{tpu_custom_call.1} parent=1 // pred_fallthru
      _
    // Predicated region
    $region230: #{tpu_custom_call.1} parent=1 // pred_check
      _
    $region231: #{tpu_custom_call.1} parent=1 // pred_check_branch
      %7766 = sbr.rel (0) target = $region233
    $region232: #{tpu_custom_call.1} parent=1 // pred_region
      %7767 = dma.done [#allocation8], 32
    $region233: #{tpu_custom_call.1} parent=1 // pred_fallthru
      _
    // Predicated region
    $region234: #{tpu_custom_call.1} parent=1 // pred_check
      _
    $region235: #{tpu_custom_call.1} parent=1 // pred_check_branch
      %7769 = sbr.rel (0) target = $region237
    $region236: #{tpu_custom_call.1} parent=1 // pred_region
      _
    $region237: #{tpu_custom_call.1} parent=1 // pred_fallthru
      _
    // Predicated region
    $region238: #{tpu_custom_call.1} parent=1 // pred_check
      _
    $region239: #{tpu_custom_call.1} parent=1 // pred_check_branch
      %7771 = sbr.rel (0) target = $region241
    $region240: #{tpu_custom_call.1} parent=1 // pred_region
      %7772 = dma.done [#allocation28], 32
    $region241: #{tpu_custom_call.1} parent=1 // pred_fallthru
      _
    %7773 = vsyncpa [#allocation7], 1
    %7774 = vsyncpa [#allocation12], 1
    %7775 = vsyncpa [#allocation15], 1
    %7776 = vsyncpa [#allocation18], 1
    %7777 = vsyncpa [#allocation21], 1
    %7778 = vsyncpa [#allocation24], 1
    %7779 = vsyncpa [#allocation8], 1
    %7780 = vsyncpa [#allocation28], 1
    %7781 = vsyncpa [#allocation9], 1

</llo_original>
